<compile_context>
chip_gen: v7x
topology: tpu7x:2x2x1
jax: 0.10.0
libtpu: 0.0.40
codegen_flags: <defaults>
</compile_context>

<pallas_src>
import jax
import jax.numpy as jnp
from jax.experimental import pallas as pl
from jax.experimental.pallas import tpu as pltpu

COMPUTE_DTYPE = jnp.bfloat16   # jnp.float32 for near-exact fp32 parity

# Geometry implied by the module: Linear(64*4*4) after three MaxPool(2) stages
# => 32x32 input images with 3 channels.
IMG = 32
C0, C1, C2, C3 = 3, 32, 32, 64
H1, H2, H3 = 32, 16, 8            # spatial size at the input of each conv stage


# ---------------------------------------------------------------------------
# Fused whole-network kernel (one image per grid step)
# ---------------------------------------------------------------------------
def _fewshot_kernel(x_ref, wk1, b1, wk2, b2, wk3, b3, w1f, fb1, w2f, fb2,
                    o_ref, act1, act2, act3):
    f32 = jnp.float32

    def conv_pool(a_ref, wk_ref, bias_ref, h):
        # a_ref : (h+4, Cin*h) padded activation (rows 0,1 and h+2,h+3 are zero)
        # wk_ref: (5, Cin*h, Cout*h) per-kh Toeplitz weights (kw taps + W-pad
        #         folded in; output columns in "split" order for pooling)
        # bias_ref: (1, Cout*h) f32
        s = jnp.dot(a_ref[0:h, :], wk_ref[0], preferred_element_type=f32)
        for kh in range(1, 5):                       # value accumulation: no VMEM RMW
            s = s + jnp.dot(a_ref[kh:kh + h, :], wk_ref[kh],
                            preferred_element_type=f32)
        s = s + bias_ref[...]
        n = s.shape[-1]
        y = s.reshape(h // 2, 2, n)                  # H pooling pairs -> axis 1
        hp = jnp.maximum(y[:, 0], y[:, 1])
        half = n // 2                                # W pooling partners are N/2 apart
        return jnp.maximum(hp[:, :half], hp[:, half:])   # (h//2, Cout*(h//2)), compact

    # ---- stage 1: Conv(3->32) + pool; H 'same'-pad via zeroed VMEM scratch ----
    act1[...] = jnp.zeros_like(act1)
    act1[2:2 + H1, :] = x_ref[0]
    p1 = conv_pool(act1, wk1, b1, H1)                # (16, 512) f32

    # ---- stage 2: Conv(32->32) + pool ----
    act2[...] = jnp.zeros_like(act2)
    act2[2:2 + H2, :] = p1.astype(act2.dtype)
    p2 = conv_pool(act2, wk2, b2, H2)                # (8, 256)

    # ---- stage 3: Conv(32->64) + pool ----
    act3[...] = jnp.zeros_like(act3)
    act3[2:2 + H3, :] = p2.astype(act3.dtype)
    p3 = conv_pool(act3, wk3, b3, H3)                # (4, 256)

    # ---- Flatten + Linear(1024,64) + Linear(64,10), all in VMEM ----
    f = p3.astype(w1f.dtype)                         # (4, 256); flatten order folded
    h = jnp.dot(f[0:1, :], w1f[0], preferred_element_type=f32)
    for r in range(1, 4):
        h = h + jnp.dot(f[r:r + 1, :], w1f[r], preferred_element_type=f32)
    h = h + fb1[...]                                 # (1, 64)
    out = jnp.dot(h.astype(w2f.dtype), w2f[...],
                  preferred_element_type=f32) + fb2[...]
    o_ref[0] = out                                   # (1, 10)


def few_shot_forward(kp, x_nchw):
    B = x_nchw.shape[0]
    # NCHW -> rows = H, lanes = c*W + w  (matches the stage-1 Toeplitz layout)
    x = jnp.transpose(x_nchw, (0, 2, 1, 3)).reshape(B, IMG, C0 * IMG)
    x = x.astype(COMPUTE_DTYPE)

    k1, k2, k3 = C0 * H1, C1 * H2, C2 * H3           # 96, 512, 256
    n1, n2, n3 = C1 * H1, C2 * H2, C3 * H3           # 1024, 512, 512

    out = pl.pallas_call(
        _fewshot_kernel,
        out_shape=jax.ShapeDtypeStruct((B, 1, 10), jnp.float32),
        grid=(B,),
        in_specs=[
            pl.BlockSpec((1, IMG, C0 * IMG), lambda i: (i, 0, 0)),
            pl.BlockSpec((5, k1, n1), lambda i: (0, 0, 0)),
            pl.BlockSpec((1, n1), lambda i: (0, 0)),
            pl.BlockSpec((5, k2, n2), lambda i: (0, 0, 0)),
            pl.BlockSpec((1, n2), lambda i: (0, 0)),
            pl.BlockSpec((5, k3, n3), lambda i: (0, 0, 0)),
            pl.BlockSpec((1, n3), lambda i: (0, 0)),
            pl.BlockSpec((4, C3 * 4, 64), lambda i: (0, 0, 0)),
            pl.BlockSpec((1, 64), lambda i: (0, 0)),
            pl.BlockSpec((64, 10), lambda i: (0, 0)),
            pl.BlockSpec((1, 10), lambda i: (0, 0)),
        ],
        out_specs=pl.BlockSpec((1, 1, 10), lambda i: (i, 0, 0)),
        scratch_shapes=[
            pltpu.VMEM((H1 + 4, C0 * H1), COMPUTE_DTYPE),   # padded stage-1 act
            pltpu.VMEM((H2 + 4, C1 * H2), COMPUTE_DTYPE),   # padded stage-2 act
            pltpu.VMEM((H3 + 4, C2 * H3), COMPUTE_DTYPE),   # padded stage-3 act
        ],
        compiler_params=pltpu.CompilerParams(
            dimension_semantics=("parallel",),
            vmem_limit_bytes=32 * 1024 * 1024),
    )(x, kp["wk1"], kp["b1"], kp["wk2"], kp["b2"], kp["wk3"], kp["b3"],
      kp["w1f"], kp["fb1"], kp["w2f"], kp["fb2"])
    return out[:, 0, :]


# ---------------------------------------------------------------------------
# One-time host-side weight layout work (torch layouts -> kernel layouts)
# ---------------------------------------------------------------------------
def _split_perm(cout, wout):
    """Output-lane permutation: even output columns in lanes [0, N/2), odd in
    [N/2, N), each ordered (co, w//2) -> 2x W-pool is max(first half, second
    half) and the pooled result is already in the next stage's (co, w) order."""
    wh = wout // 2
    co = jnp.arange(cout)[:, None]
    wo = jnp.arange(wh)[None, :]
    even = (co * wout + 2 * wo).reshape(-1)
    return jnp.concatenate([even, even + 1])


def _toeplitz_conv_weight(w_oihw, win, dtype):
    """torch OIHW 5x5 conv weight -> (5, Cin*win, Cout*win): per-kh block-
    Toeplitz matrices.  Input rows have lane = ci*win + w; the kw taps and the
    'same' zero padding in W are folded in; output columns use _split_perm."""
    wc = jnp.transpose(w_oihw, (2, 3, 1, 0)).astype(jnp.float32)  # (kh, kw, ci, co)
    cin, cout = wc.shape[2], wc.shape[3]
    wi = jnp.arange(win)[:, None]
    wo = jnp.arange(win)[None, :]
    kw = wi - wo + 2                                   # tap index for (win, wout)
    valid = ((kw >= 0) & (kw <= 4)).astype(jnp.float32)
    kwc = jnp.clip(kw, 0, 4)
    sel = wc[:, kwc, :, :] * valid[None, :, :, None, None]   # (5, win, wout, ci, co)
    t = jnp.transpose(sel, (0, 3, 1, 4, 2)).reshape(5, cin * win, cout * win)
    return t[:, :, _split_perm(cout, win)].astype(dtype)


def _tiled_bias(b, wout, cout):
    return jnp.repeat(b.astype(jnp.float32), wout)[_split_perm(cout, wout)][None, :]


def prepare_params(p, dtype=COMPUTE_DTYPE):
    wk1 = _toeplitz_conv_weight(p["w1"], H1, dtype)
    wk2 = _toeplitz_conv_weight(p["w2"], H2, dtype)
    wk3 = _toeplitz_conv_weight(p["w3"], H3, dtype)
    b1 = _tiled_bias(p["b1"], H1, C1)
    b2 = _tiled_bias(p["b2"], H2, C2)
    b3 = _tiled_bias(p["b3"], H3, C3)
    # fc1: fold torch's NCHW flatten order AND our (h, co*4 + w) feature layout
    # into the weight -> no runtime transpose/gather.
    f = p["fc1_w"].reshape(64, C3, 4, 4)               # (o, c, h, w)
    w1f = jnp.transpose(f, (2, 1, 3, 0)).reshape(4, C3 * 4, 64).astype(dtype)
    fb1 = p["fc1_b"].reshape(1, -1).astype(jnp.float32)
    w2f = jnp.transpose(p["fc2_w"]).astype(dtype)
    fb2 = p["fc2_b"].reshape(1, -1).astype(jnp.float32)
    return dict(wk1=wk1, b1=b1, wk2=wk2, b2=b2, wk3=wk3, b3=b3,
                w1f=w1f, fb1=fb1, w2f=w2f, fb2=fb2)


def init_params(key):
    ks = jax.random.split(key, 10)
    nrm = lambda k, s, sc: sc * jax.random.normal(k, s, dtype=jnp.float32)
    return {
        "w1": nrm(ks[0], (C1, C0, 5, 5), 0.05), "b1": nrm(ks[1], (C1,), 0.05),
        "w2": nrm(ks[2], (C2, C1, 5, 5), 0.05), "b2": nrm(ks[3], (C2,), 0.05),
        "w3": nrm(ks[4], (C3, C2, 5, 5), 0.05), "b3": nrm(ks[5], (C3,), 0.05),
        "fc1_w": nrm(ks[6], (64, C3 * 16), 0.02), "fc1_b": nrm(ks[7], (64,), 0.02),
        "fc2_w": nrm(ks[8], (10, 64), 0.02), "fc2_b": nrm(ks[9], (10,), 0.02),
    }


# Pure-JAX reference (mirrors the PyTorch module) for a correctness check.
def reference_forward(p, x):
    def conv(x, w, b):
        y = jax.lax.conv_general_dilated(
            x, w, (1, 1), "SAME", dimension_numbers=("NCHW", "OIHW", "NCHW"))
        return y + b[None, :, None, None]

    def pool(x):
        return jax.lax.reduce_window(x, -jnp.inf, jax.lax.max,
                                     (1, 1, 2, 2), (1, 1, 2, 2), "VALID")

    x = pool(conv(x, p["w1"], p["b1"]))
    x = pool(conv(x, p["w2"], p["b2"]))
    x = pool(conv(x, p["w3"], p["b3"]))
    x = x.reshape(x.shape[0], -1)
    x = x @ p["fc1_w"].T + p["fc1_b"]
    return x @ p["fc2_w"].T + p["fc2_b"]


if __name__ == "__main__":
    key = jax.random.PRNGKey(0)
    pkey, xkey = jax.random.split(key)
    torch_layout_params = init_params(pkey)
    kparams = prepare_params(torch_layout_params)

    x = jax.random.normal(xkey, (2, C0, IMG, IMG), dtype=jnp.float32)

    fwd = jax.jit(few_shot_forward)
    out = jax.block_until_ready(fwd(kparams, x))

    assert out.shape == (2, 10) and out.dtype == jnp.float32
    assert bool(jnp.all(jnp.isfinite(out)))

    ref = reference_forward(torch_layout_params, x)
    err = float(jnp.max(jnp.abs(out - ref)))
    scale = float(jnp.max(jnp.abs(ref))) + 1e-6
    assert err / scale < 0.08, f"mismatch vs reference: {err} (scale {scale})"

    print("KERNEL_OK")
</pallas_src>

<mosaic_0001>
module attributes {stable_mosaic.version = 11 : i64} {
  func.func @_fewshot_kernel(%arg0: i32, %arg1: memref<1x32x96xbf16, #tpu.memory_space<vmem>>, %arg2: memref<5x96x1024xbf16, #tpu.memory_space<vmem>>, %arg3: memref<1x1024xf32, #tpu.memory_space<vmem>>, %arg4: memref<5x512x512xbf16, #tpu.memory_space<vmem>>, %arg5: memref<1x512xf32, #tpu.memory_space<vmem>>, %arg6: memref<5x256x512xbf16, #tpu.memory_space<vmem>>, %arg7: memref<1x512xf32, #tpu.memory_space<vmem>>, %arg8: memref<4x256x64xbf16, #tpu.memory_space<vmem>>, %arg9: memref<1x64xf32, #tpu.memory_space<vmem>>, %arg10: memref<64x10xbf16, #tpu.memory_space<vmem>>, %arg11: memref<1x10xf32, #tpu.memory_space<vmem>>, %arg12: memref<1x1x10xf32, #tpu.memory_space<vmem>>, %arg13: memref<36x96xbf16, #tpu.memory_space<vmem>>, %arg14: memref<20x512xbf16, #tpu.memory_space<vmem>>, %arg15: memref<12x256xbf16, #tpu.memory_space<vmem>>) attributes {dimension_semantics = [#tpu.dimension_semantics<parallel>], iteration_bounds = array<i64: 2>, scalar_prefetch = 0 : i64, scratch_operands = 3 : i64, tpu.core_type = #tpu.core_type<tc>, window_params = [{transform_indices = @transform_0, window_bounds = array<i64: 1, 32, 96>}, {pipeline_mode = #tpu.pipeline_mode<synchronous>, transform_indices = @transform_1, window_bounds = array<i64: 5, 96, 1024>}, {pipeline_mode = #tpu.pipeline_mode<synchronous>, transform_indices = @transform_2, window_bounds = array<i64: 1, 1024>}, {pipeline_mode = #tpu.pipeline_mode<synchronous>, transform_indices = @transform_3, window_bounds = array<i64: 5, 512, 512>}, {pipeline_mode = #tpu.pipeline_mode<synchronous>, transform_indices = @transform_4, window_bounds = array<i64: 1, 512>}, {pipeline_mode = #tpu.pipeline_mode<synchronous>, transform_indices = @transform_5, window_bounds = array<i64: 5, 256, 512>}, {pipeline_mode = #tpu.pipeline_mode<synchronous>, transform_indices = @transform_6, window_bounds = array<i64: 1, 512>}, {pipeline_mode = #tpu.pipeline_mode<synchronous>, transform_indices = @transform_7, window_bounds = array<i64: 4, 256, 64>}, {pipeline_mode = #tpu.pipeline_mode<synchronous>, transform_indices = @transform_8, window_bounds = array<i64: 1, 64>}, {pipeline_mode = #tpu.pipeline_mode<synchronous>, transform_indices = @transform_9, window_bounds = array<i64: 64, 10>}, {pipeline_mode = #tpu.pipeline_mode<synchronous>, transform_indices = @transform_10, window_bounds = array<i64: 1, 10>}, {transform_indices = @transform_11, window_bounds = array<i64: 1, 1, 10>}]} {
    %cst = arith.constant 0.000000e+00 : bf16
    %0 = vector.broadcast %cst : bf16 to vector<36x96xbf16>
    %c0 = arith.constant 0 : index
    %c0_0 = arith.constant 0 : index
    %1 = vector.load %arg13[%c0, %c0_0] : memref<36x96xbf16, #tpu.memory_space<vmem>>, vector<36x96xbf16>
    tpu.vector_store %arg13[%c0, %c0_0], %0 {strides = array<i32>} : memref<36x96xbf16, #tpu.memory_space<vmem>>, vector<36x96xbf16>,
    %c0_1 = arith.constant 0 : index
    %c0_2 = arith.constant 0 : index
    %c0_3 = arith.constant 0 : index
    %2 = vector.load %arg1[%c0_1, %c0_2, %c0_3] : memref<1x32x96xbf16, #tpu.memory_space<vmem>>, vector<1x32x96xbf16>
    %3 = vector.shape_cast %2 : vector<1x32x96xbf16> to vector<32x96xbf16>
    %c2 = arith.constant 2 : index
    %c0_4 = arith.constant 0 : index
    %4 = vector.load %arg13[%c2, %c0_4] : memref<36x96xbf16, #tpu.memory_space<vmem>>, vector<32x96xbf16>
    tpu.vector_store %arg13[%c2, %c0_4], %3 {strides = array<i32>} : memref<36x96xbf16, #tpu.memory_space<vmem>>, vector<32x96xbf16>,
    %c0_5 = arith.constant 0 : index
    %c0_6 = arith.constant 0 : index
    %5 = vector.load %arg13[%c0_5, %c0_6] : memref<36x96xbf16, #tpu.memory_space<vmem>>, vector<32x96xbf16>
    %c0_7 = arith.constant 0 : index
    %c0_8 = arith.constant 0 : index
    %c0_9 = arith.constant 0 : index
    %6 = vector.load %arg2[%c0_7, %c0_8, %c0_9] : memref<5x96x1024xbf16, #tpu.memory_space<vmem>>, vector<1x96x1024xbf16>
    %7 = vector.shape_cast %6 : vector<1x96x1024xbf16> to vector<96x1024xbf16>
    %cst_10 = arith.constant dense<0.000000e+00> : vector<32x1024xf32>
    %8 = tpu.matmul %5, %7, %cst_10 {dimension_numbers = #tpu.dot_dimension_numbers<[1], [0], [0], [1], [0, 0, 1, 1], [], []>} : vector<32x96xbf16>, vector<96x1024xbf16>, vector<32x1024xf32> -> vector<32x1024xf32>
    %c1 = arith.constant 1 : index
    %c0_11 = arith.constant 0 : index
    %9 = vector.load %arg13[%c1, %c0_11] : memref<36x96xbf16, #tpu.memory_space<vmem>>, vector<32x96xbf16>
    %c1_12 = arith.constant 1 : index
    %c0_13 = arith.constant 0 : index
    %c0_14 = arith.constant 0 : index
    %10 = vector.load %arg2[%c1_12, %c0_13, %c0_14] : memref<5x96x1024xbf16, #tpu.memory_space<vmem>>, vector<1x96x1024xbf16>
    %11 = vector.shape_cast %10 : vector<1x96x1024xbf16> to vector<96x1024xbf16>
    %cst_15 = arith.constant dense<0.000000e+00> : vector<32x1024xf32>
    %12 = tpu.matmul %9, %11, %cst_15 {dimension_numbers = #tpu.dot_dimension_numbers<[1], [0], [0], [1], [0, 0, 1, 1], [], []>} : vector<32x96xbf16>, vector<96x1024xbf16>, vector<32x1024xf32> -> vector<32x1024xf32>
    %13 = arith.addf %8, %12 : vector<32x1024xf32>
    %c2_16 = arith.constant 2 : index
    %c0_17 = arith.constant 0 : index
    %14 = vector.load %arg13[%c2_16, %c0_17] : memref<36x96xbf16, #tpu.memory_space<vmem>>, vector<32x96xbf16>
    %c2_18 = arith.constant 2 : index
    %c0_19 = arith.constant 0 : index
    %c0_20 = arith.constant 0 : index
    %15 = vector.load %arg2[%c2_18, %c0_19, %c0_20] : memref<5x96x1024xbf16, #tpu.memory_space<vmem>>, vector<1x96x1024xbf16>
    %16 = vector.shape_cast %15 : vector<1x96x1024xbf16> to vector<96x1024xbf16>
    %cst_21 = arith.constant dense<0.000000e+00> : vector<32x1024xf32>
    %17 = tpu.matmul %14, %16, %cst_21 {dimension_numbers = #tpu.dot_dimension_numbers<[1], [0], [0], [1], [0, 0, 1, 1], [], []>} : vector<32x96xbf16>, vector<96x1024xbf16>, vector<32x1024xf32> -> vector<32x1024xf32>
    %18 = arith.addf %13, %17 : vector<32x1024xf32>
    %c3 = arith.constant 3 : index
    %c0_22 = arith.constant 0 : index
    %19 = vector.load %arg13[%c3, %c0_22] : memref<36x96xbf16, #tpu.memory_space<vmem>>, vector<32x96xbf16>
    %c3_23 = arith.constant 3 : index
    %c0_24 = arith.constant 0 : index
    %c0_25 = arith.constant 0 : index
    %20 = vector.load %arg2[%c3_23, %c0_24, %c0_25] : memref<5x96x1024xbf16, #tpu.memory_space<vmem>>, vector<1x96x1024xbf16>
    %21 = vector.shape_cast %20 : vector<1x96x1024xbf16> to vector<96x1024xbf16>
    %cst_26 = arith.constant dense<0.000000e+00> : vector<32x1024xf32>
    %22 = tpu.matmul %19, %21, %cst_26 {dimension_numbers = #tpu.dot_dimension_numbers<[1], [0], [0], [1], [0, 0, 1, 1], [], []>} : vector<32x96xbf16>, vector<96x1024xbf16>, vector<32x1024xf32> -> vector<32x1024xf32>
    %23 = arith.addf %18, %22 : vector<32x1024xf32>
    %c4 = arith.constant 4 : index
    %c0_27 = arith.constant 0 : index
    %24 = vector.load %arg13[%c4, %c0_27] : memref<36x96xbf16, #tpu.memory_space<vmem>>, vector<32x96xbf16>
    %c4_28 = arith.constant 4 : index
    %c0_29 = arith.constant 0 : index
    %c0_30 = arith.constant 0 : index
    %25 = vector.load %arg2[%c4_28, %c0_29, %c0_30] : memref<5x96x1024xbf16, #tpu.memory_space<vmem>>, vector<1x96x1024xbf16>
    %26 = vector.shape_cast %25 : vector<1x96x1024xbf16> to vector<96x1024xbf16>
    %cst_31 = arith.constant dense<0.000000e+00> : vector<32x1024xf32>
    %27 = tpu.matmul %24, %26, %cst_31 {dimension_numbers = #tpu.dot_dimension_numbers<[1], [0], [0], [1], [0, 0, 1, 1], [], []>} : vector<32x96xbf16>, vector<96x1024xbf16>, vector<32x1024xf32> -> vector<32x1024xf32>
    %28 = arith.addf %23, %27 : vector<32x1024xf32>
    %c0_32 = arith.constant 0 : index
    %c0_33 = arith.constant 0 : index
    %29 = vector.load %arg3[%c0_32, %c0_33] : memref<1x1024xf32, #tpu.memory_space<vmem>>, vector<1x1024xf32>
    %30 = vector.broadcast %29 : vector<1x1024xf32> to vector<32x1024xf32>
    %31 = arith.addf %28, %30 : vector<32x1024xf32>
    %32 = vector.shape_cast %31 : vector<32x1024xf32> to vector<16x2x1024xf32>
    %33 = vector.extract_strided_slice %32 {offsets = [0, 0, 0], sizes = [16, 1, 1024], strides = [1, 1, 1]} : vector<16x2x1024xf32> to vector<16x1x1024xf32>
    %34 = vector.shape_cast %33 : vector<16x1x1024xf32> to vector<16x1024xf32>
    %35 = vector.extract_strided_slice %32 {offsets = [0, 1, 0], sizes = [16, 1, 1024], strides = [1, 1, 1]} : vector<16x2x1024xf32> to vector<16x1x1024xf32>
    %36 = vector.shape_cast %35 : vector<16x1x1024xf32> to vector<16x1024xf32>
    %37 = arith.maximumf %34, %36 : vector<16x1024xf32>
    %38 = vector.extract_strided_slice %37 {offsets = [0, 0], sizes = [16, 512], strides = [1, 1]} : vector<16x1024xf32> to vector<16x512xf32>
    %39 = vector.extract_strided_slice %37 {offsets = [0, 512], sizes = [16, 512], strides = [1, 1]} : vector<16x1024xf32> to vector<16x512xf32>
    %40 = arith.maximumf %38, %39 : vector<16x512xf32>
    %cst_34 = arith.constant 0.000000e+00 : bf16
    %41 = vector.broadcast %cst_34 : bf16 to vector<20x512xbf16>
    %c0_35 = arith.constant 0 : index
    %c0_36 = arith.constant 0 : index
    %42 = vector.load %arg14[%c0_35, %c0_36] : memref<20x512xbf16, #tpu.memory_space<vmem>>, vector<20x512xbf16>
    tpu.vector_store %arg14[%c0_35, %c0_36], %41 {strides = array<i32>} : memref<20x512xbf16, #tpu.memory_space<vmem>>, vector<20x512xbf16>,
    %43 = arith.truncf %40 : vector<16x512xf32> to vector<16x512xbf16>
    %c2_37 = arith.constant 2 : index
    %c0_38 = arith.constant 0 : index
    %44 = vector.load %arg14[%c2_37, %c0_38] : memref<20x512xbf16, #tpu.memory_space<vmem>>, vector<16x512xbf16>
    tpu.vector_store %arg14[%c2_37, %c0_38], %43 {strides = array<i32>} : memref<20x512xbf16, #tpu.memory_space<vmem>>, vector<16x512xbf16>,
    %c0_39 = arith.constant 0 : index
    %c0_40 = arith.constant 0 : index
    %45 = vector.load %arg14[%c0_39, %c0_40] : memref<20x512xbf16, #tpu.memory_space<vmem>>, vector<16x512xbf16>
    %c0_41 = arith.constant 0 : index
    %c0_42 = arith.constant 0 : index
    %c0_43 = arith.constant 0 : index
    %46 = vector.load %arg4[%c0_41, %c0_42, %c0_43] : memref<5x512x512xbf16, #tpu.memory_space<vmem>>, vector<1x512x512xbf16>
    %47 = vector.shape_cast %46 : vector<1x512x512xbf16> to vector<512x512xbf16>
    %cst_44 = arith.constant dense<0.000000e+00> : vector<16x512xf32>
    %48 = tpu.matmul %45, %47, %cst_44 {dimension_numbers = #tpu.dot_dimension_numbers<[1], [0], [0], [1], [0, 0, 1, 1], [], []>} : vector<16x512xbf16>, vector<512x512xbf16>, vector<16x512xf32> -> vector<16x512xf32>
    %c1_45 = arith.constant 1 : index
    %c0_46 = arith.constant 0 : index
    %49 = vector.load %arg14[%c1_45, %c0_46] : memref<20x512xbf16, #tpu.memory_space<vmem>>, vector<16x512xbf16>
    %c1_47 = arith.constant 1 : index
    %c0_48 = arith.constant 0 : index
    %c0_49 = arith.constant 0 : index
    %50 = vector.load %arg4[%c1_47, %c0_48, %c0_49] : memref<5x512x512xbf16, #tpu.memory_space<vmem>>, vector<1x512x512xbf16>
    %51 = vector.shape_cast %50 : vector<1x512x512xbf16> to vector<512x512xbf16>
    %cst_50 = arith.constant dense<0.000000e+00> : vector<16x512xf32>
    %52 = tpu.matmul %49, %51, %cst_50 {dimension_numbers = #tpu.dot_dimension_numbers<[1], [0], [0], [1], [0, 0, 1, 1], [], []>} : vector<16x512xbf16>, vector<512x512xbf16>, vector<16x512xf32> -> vector<16x512xf32>
    %53 = arith.addf %48, %52 : vector<16x512xf32>
    %c2_51 = arith.constant 2 : index
    %c0_52 = arith.constant 0 : index
    %54 = vector.load %arg14[%c2_51, %c0_52] : memref<20x512xbf16, #tpu.memory_space<vmem>>, vector<16x512xbf16>
    %c2_53 = arith.constant 2 : index
    %c0_54 = arith.constant 0 : index
    %c0_55 = arith.constant 0 : index
    %55 = vector.load %arg4[%c2_53, %c0_54, %c0_55] : memref<5x512x512xbf16, #tpu.memory_space<vmem>>, vector<1x512x512xbf16>
    %56 = vector.shape_cast %55 : vector<1x512x512xbf16> to vector<512x512xbf16>
    %cst_56 = arith.constant dense<0.000000e+00> : vector<16x512xf32>
    %57 = tpu.matmul %54, %56, %cst_56 {dimension_numbers = #tpu.dot_dimension_numbers<[1], [0], [0], [1], [0, 0, 1, 1], [], []>} : vector<16x512xbf16>, vector<512x512xbf16>, vector<16x512xf32> -> vector<16x512xf32>
    %58 = arith.addf %53, %57 : vector<16x512xf32>
    %c3_57 = arith.constant 3 : index
    %c0_58 = arith.constant 0 : index
    %59 = vector.load %arg14[%c3_57, %c0_58] : memref<20x512xbf16, #tpu.memory_space<vmem>>, vector<16x512xbf16>
    %c3_59 = arith.constant 3 : index
    %c0_60 = arith.constant 0 : index
    %c0_61 = arith.constant 0 : index
    %60 = vector.load %arg4[%c3_59, %c0_60, %c0_61] : memref<5x512x512xbf16, #tpu.memory_space<vmem>>, vector<1x512x512xbf16>
    %61 = vector.shape_cast %60 : vector<1x512x512xbf16> to vector<512x512xbf16>
    %cst_62 = arith.constant dense<0.000000e+00> : vector<16x512xf32>
    %62 = tpu.matmul %59, %61, %cst_62 {dimension_numbers = #tpu.dot_dimension_numbers<[1], [0], [0], [1], [0, 0, 1, 1], [], []>} : vector<16x512xbf16>, vector<512x512xbf16>, vector<16x512xf32> -> vector<16x512xf32>
    %63 = arith.addf %58, %62 : vector<16x512xf32>
    %c4_63 = arith.constant 4 : index
    %c0_64 = arith.constant 0 : index
    %64 = vector.load %arg14[%c4_63, %c0_64] : memref<20x512xbf16, #tpu.memory_space<vmem>>, vector<16x512xbf16>
    %c4_65 = arith.constant 4 : index
    %c0_66 = arith.constant 0 : index
    %c0_67 = arith.constant 0 : index
    %65 = vector.load %arg4[%c4_65, %c0_66, %c0_67] : memref<5x512x512xbf16, #tpu.memory_space<vmem>>, vector<1x512x512xbf16>
    %66 = vector.shape_cast %65 : vector<1x512x512xbf16> to vector<512x512xbf16>
    %cst_68 = arith.constant dense<0.000000e+00> : vector<16x512xf32>
    %67 = tpu.matmul %64, %66, %cst_68 {dimension_numbers = #tpu.dot_dimension_numbers<[1], [0], [0], [1], [0, 0, 1, 1], [], []>} : vector<16x512xbf16>, vector<512x512xbf16>, vector<16x512xf32> -> vector<16x512xf32>
    %68 = arith.addf %63, %67 : vector<16x512xf32>
    %c0_69 = arith.constant 0 : index
    %c0_70 = arith.constant 0 : index
    %69 = vector.load %arg5[%c0_69, %c0_70] : memref<1x512xf32, #tpu.memory_space<vmem>>, vector<1x512xf32>
    %70 = vector.broadcast %69 : vector<1x512xf32> to vector<16x512xf32>
    %71 = arith.addf %68, %70 : vector<16x512xf32>
    %72 = vector.shape_cast %71 : vector<16x512xf32> to vector<8x2x512xf32>
    %73 = vector.extract_strided_slice %72 {offsets = [0, 0, 0], sizes = [8, 1, 512], strides = [1, 1, 1]} : vector<8x2x512xf32> to vector<8x1x512xf32>
    %74 = vector.shape_cast %73 : vector<8x1x512xf32> to vector<8x512xf32>
    %75 = vector.extract_strided_slice %72 {offsets = [0, 1, 0], sizes = [8, 1, 512], strides = [1, 1, 1]} : vector<8x2x512xf32> to vector<8x1x512xf32>
    %76 = vector.shape_cast %75 : vector<8x1x512xf32> to vector<8x512xf32>
    %77 = arith.maximumf %74, %76 : vector<8x512xf32>
    %78 = vector.extract_strided_slice %77 {offsets = [0, 0], sizes = [8, 256], strides = [1, 1]} : vector<8x512xf32> to vector<8x256xf32>
    %79 = vector.extract_strided_slice %77 {offsets = [0, 256], sizes = [8, 256], strides = [1, 1]} : vector<8x512xf32> to vector<8x256xf32>
    %80 = arith.maximumf %78, %79 : vector<8x256xf32>
    %cst_71 = arith.constant 0.000000e+00 : bf16
    %81 = vector.broadcast %cst_71 : bf16 to vector<12x256xbf16>
    %c0_72 = arith.constant 0 : index
    %c0_73 = arith.constant 0 : index
    %82 = vector.load %arg15[%c0_72, %c0_73] : memref<12x256xbf16, #tpu.memory_space<vmem>>, vector<12x256xbf16>
    tpu.vector_store %arg15[%c0_72, %c0_73], %81 {strides = array<i32>} : memref<12x256xbf16, #tpu.memory_space<vmem>>, vector<12x256xbf16>,
    %83 = arith.truncf %80 : vector<8x256xf32> to vector<8x256xbf16>
    %c2_74 = arith.constant 2 : index
    %c0_75 = arith.constant 0 : index
    %84 = vector.load %arg15[%c2_74, %c0_75] : memref<12x256xbf16, #tpu.memory_space<vmem>>, vector<8x256xbf16>
    tpu.vector_store %arg15[%c2_74, %c0_75], %83 {strides = array<i32>} : memref<12x256xbf16, #tpu.memory_space<vmem>>, vector<8x256xbf16>,
    %c0_76 = arith.constant 0 : index
    %c0_77 = arith.constant 0 : index
    %85 = vector.load %arg15[%c0_76, %c0_77] : memref<12x256xbf16, #tpu.memory_space<vmem>>, vector<8x256xbf16>
    %c0_78 = arith.constant 0 : index
    %c0_79 = arith.constant 0 : index
    %c0_80 = arith.constant 0 : index
    %86 = vector.load %arg6[%c0_78, %c0_79, %c0_80] : memref<5x256x512xbf16, #tpu.memory_space<vmem>>, vector<1x256x512xbf16>
    %87 = vector.shape_cast %86 : vector<1x256x512xbf16> to vector<256x512xbf16>
    %cst_81 = arith.constant dense<0.000000e+00> : vector<8x512xf32>
    %88 = tpu.matmul %85, %87, %cst_81 {dimension_numbers = #tpu.dot_dimension_numbers<[1], [0], [0], [1], [0, 0, 1, 1], [], []>} : vector<8x256xbf16>, vector<256x512xbf16>, vector<8x512xf32> -> vector<8x512xf32>
    %c1_82 = arith.constant 1 : index
    %c0_83 = arith.constant 0 : index
    %89 = vector.load %arg15[%c1_82, %c0_83] : memref<12x256xbf16, #tpu.memory_space<vmem>>, vector<8x256xbf16>
    %c1_84 = arith.constant 1 : index
    %c0_85 = arith.constant 0 : index
    %c0_86 = arith.constant 0 : index
    %90 = vector.load %arg6[%c1_84, %c0_85, %c0_86] : memref<5x256x512xbf16, #tpu.memory_space<vmem>>, vector<1x256x512xbf16>
    %91 = vector.shape_cast %90 : vector<1x256x512xbf16> to vector<256x512xbf16>
    %cst_87 = arith.constant dense<0.000000e+00> : vector<8x512xf32>
    %92 = tpu.matmul %89, %91, %cst_87 {dimension_numbers = #tpu.dot_dimension_numbers<[1], [0], [0], [1], [0, 0, 1, 1], [], []>} : vector<8x256xbf16>, vector<256x512xbf16>, vector<8x512xf32> -> vector<8x512xf32>
    %93 = arith.addf %88, %92 : vector<8x512xf32>
    %c2_88 = arith.constant 2 : index
    %c0_89 = arith.constant 0 : index
    %94 = vector.load %arg15[%c2_88, %c0_89] : memref<12x256xbf16, #tpu.memory_space<vmem>>, vector<8x256xbf16>
    %c2_90 = arith.constant 2 : index
    %c0_91 = arith.constant 0 : index
    %c0_92 = arith.constant 0 : index
    %95 = vector.load %arg6[%c2_90, %c0_91, %c0_92] : memref<5x256x512xbf16, #tpu.memory_space<vmem>>, vector<1x256x512xbf16>
    %96 = vector.shape_cast %95 : vector<1x256x512xbf16> to vector<256x512xbf16>
    %cst_93 = arith.constant dense<0.000000e+00> : vector<8x512xf32>
    %97 = tpu.matmul %94, %96, %cst_93 {dimension_numbers = #tpu.dot_dimension_numbers<[1], [0], [0], [1], [0, 0, 1, 1], [], []>} : vector<8x256xbf16>, vector<256x512xbf16>, vector<8x512xf32> -> vector<8x512xf32>
    %98 = arith.addf %93, %97 : vector<8x512xf32>
    %c3_94 = arith.constant 3 : index
    %c0_95 = arith.constant 0 : index
    %99 = vector.load %arg15[%c3_94, %c0_95] : memref<12x256xbf16, #tpu.memory_space<vmem>>, vector<8x256xbf16>
    %c3_96 = arith.constant 3 : index
    %c0_97 = arith.constant 0 : index
    %c0_98 = arith.constant 0 : index
    %100 = vector.load %arg6[%c3_96, %c0_97, %c0_98] : memref<5x256x512xbf16, #tpu.memory_space<vmem>>, vector<1x256x512xbf16>
    %101 = vector.shape_cast %100 : vector<1x256x512xbf16> to vector<256x512xbf16>
    %cst_99 = arith.constant dense<0.000000e+00> : vector<8x512xf32>
    %102 = tpu.matmul %99, %101, %cst_99 {dimension_numbers = #tpu.dot_dimension_numbers<[1], [0], [0], [1], [0, 0, 1, 1], [], []>} : vector<8x256xbf16>, vector<256x512xbf16>, vector<8x512xf32> -> vector<8x512xf32>
    %103 = arith.addf %98, %102 : vector<8x512xf32>
    %c4_100 = arith.constant 4 : index
    %c0_101 = arith.constant 0 : index
    %104 = vector.load %arg15[%c4_100, %c0_101] : memref<12x256xbf16, #tpu.memory_space<vmem>>, vector<8x256xbf16>
    %c4_102 = arith.constant 4 : index
    %c0_103 = arith.constant 0 : index
    %c0_104 = arith.constant 0 : index
    %105 = vector.load %arg6[%c4_102, %c0_103, %c0_104] : memref<5x256x512xbf16, #tpu.memory_space<vmem>>, vector<1x256x512xbf16>
    %106 = vector.shape_cast %105 : vector<1x256x512xbf16> to vector<256x512xbf16>
    %cst_105 = arith.constant dense<0.000000e+00> : vector<8x512xf32>
    %107 = tpu.matmul %104, %106, %cst_105 {dimension_numbers = #tpu.dot_dimension_numbers<[1], [0], [0], [1], [0, 0, 1, 1], [], []>} : vector<8x256xbf16>, vector<256x512xbf16>, vector<8x512xf32> -> vector<8x512xf32>
    %108 = arith.addf %103, %107 : vector<8x512xf32>
    %c0_106 = arith.constant 0 : index
    %c0_107 = arith.constant 0 : index
    %109 = vector.load %arg7[%c0_106, %c0_107] : memref<1x512xf32, #tpu.memory_space<vmem>>, vector<1x512xf32>
    %110 = vector.broadcast %109 : vector<1x512xf32> to vector<8x512xf32>
    %111 = arith.addf %108, %110 : vector<8x512xf32>
    %112 = vector.shape_cast %111 : vector<8x512xf32> to vector<4x2x512xf32>
    %113 = vector.extract_strided_slice %112 {offsets = [0, 0, 0], sizes = [4, 1, 512], strides = [1, 1, 1]} : vector<4x2x512xf32> to vector<4x1x512xf32>
    %114 = vector.shape_cast %113 : vector<4x1x512xf32> to vector<4x512xf32>
    %115 = vector.extract_strided_slice %112 {offsets = [0, 1, 0], sizes = [4, 1, 512], strides = [1, 1, 1]} : vector<4x2x512xf32> to vector<4x1x512xf32>
    %116 = vector.shape_cast %115 : vector<4x1x512xf32> to vector<4x512xf32>
    %117 = arith.maximumf %114, %116 : vector<4x512xf32>
    %118 = vector.extract_strided_slice %117 {offsets = [0, 0], sizes = [4, 256], strides = [1, 1]} : vector<4x512xf32> to vector<4x256xf32>
    %119 = vector.extract_strided_slice %117 {offsets = [0, 256], sizes = [4, 256], strides = [1, 1]} : vector<4x512xf32> to vector<4x256xf32>
    %120 = arith.maximumf %118, %119 : vector<4x256xf32>
    %121 = arith.truncf %120 : vector<4x256xf32> to vector<4x256xbf16>
    %122 = vector.extract_strided_slice %121 {offsets = [0, 0], sizes = [1, 256], strides = [1, 1]} : vector<4x256xbf16> to vector<1x256xbf16>
    %c0_108 = arith.constant 0 : index
    %c0_109 = arith.constant 0 : index
    %c0_110 = arith.constant 0 : index
    %123 = vector.load %arg8[%c0_108, %c0_109, %c0_110] : memref<4x256x64xbf16, #tpu.memory_space<vmem>>, vector<1x256x64xbf16>
    %124 = vector.shape_cast %123 : vector<1x256x64xbf16> to vector<256x64xbf16>
    %cst_111 = arith.constant dense<0.000000e+00> : vector<1x64xf32>
    %125 = tpu.matmul %122, %124, %cst_111 {dimension_numbers = #tpu.dot_dimension_numbers<[1], [0], [0], [1], [0, 0, 1, 1], [], []>} : vector<1x256xbf16>, vector<256x64xbf16>, vector<1x64xf32> -> vector<1x64xf32>
    %126 = vector.extract_strided_slice %121 {offsets = [1, 0], sizes = [1, 256], strides = [1, 1]} : vector<4x256xbf16> to vector<1x256xbf16>
    %c1_112 = arith.constant 1 : index
    %c0_113 = arith.constant 0 : index
    %c0_114 = arith.constant 0 : index
    %127 = vector.load %arg8[%c1_112, %c0_113, %c0_114] : memref<4x256x64xbf16, #tpu.memory_space<vmem>>, vector<1x256x64xbf16>
    %128 = vector.shape_cast %127 : vector<1x256x64xbf16> to vector<256x64xbf16>
    %cst_115 = arith.constant dense<0.000000e+00> : vector<1x64xf32>
    %129 = tpu.matmul %126, %128, %cst_115 {dimension_numbers = #tpu.dot_dimension_numbers<[1], [0], [0], [1], [0, 0, 1, 1], [], []>} : vector<1x256xbf16>, vector<256x64xbf16>, vector<1x64xf32> -> vector<1x64xf32>
    %130 = arith.addf %125, %129 : vector<1x64xf32>
    %131 = vector.extract_strided_slice %121 {offsets = [2, 0], sizes = [1, 256], strides = [1, 1]} : vector<4x256xbf16> to vector<1x256xbf16>
    %c2_116 = arith.constant 2 : index
    %c0_117 = arith.constant 0 : index
    %c0_118 = arith.constant 0 : index
    %132 = vector.load %arg8[%c2_116, %c0_117, %c0_118] : memref<4x256x64xbf16, #tpu.memory_space<vmem>>, vector<1x256x64xbf16>
    %133 = vector.shape_cast %132 : vector<1x256x64xbf16> to vector<256x64xbf16>
    %cst_119 = arith.constant dense<0.000000e+00> : vector<1x64xf32>
    %134 = tpu.matmul %131, %133, %cst_119 {dimension_numbers = #tpu.dot_dimension_numbers<[1], [0], [0], [1], [0, 0, 1, 1], [], []>} : vector<1x256xbf16>, vector<256x64xbf16>, vector<1x64xf32> -> vector<1x64xf32>
    %135 = arith.addf %130, %134 : vector<1x64xf32>
    %136 = vector.extract_strided_slice %121 {offsets = [3, 0], sizes = [1, 256], strides = [1, 1]} : vector<4x256xbf16> to vector<1x256xbf16>
    %c3_120 = arith.constant 3 : index
    %c0_121 = arith.constant 0 : index
    %c0_122 = arith.constant 0 : index
    %137 = vector.load %arg8[%c3_120, %c0_121, %c0_122] : memref<4x256x64xbf16, #tpu.memory_space<vmem>>, vector<1x256x64xbf16>
    %138 = vector.shape_cast %137 : vector<1x256x64xbf16> to vector<256x64xbf16>
    %cst_123 = arith.constant dense<0.000000e+00> : vector<1x64xf32>
    %139 = tpu.matmul %136, %138, %cst_123 {dimension_numbers = #tpu.dot_dimension_numbers<[1], [0], [0], [1], [0, 0, 1, 1], [], []>} : vector<1x256xbf16>, vector<256x64xbf16>, vector<1x64xf32> -> vector<1x64xf32>
    %140 = arith.addf %135, %139 : vector<1x64xf32>
    %c0_124 = arith.constant 0 : index
    %c0_125 = arith.constant 0 : index
    %141 = vector.load %arg9[%c0_124, %c0_125] : memref<1x64xf32, #tpu.memory_space<vmem>>, vector<1x64xf32>
    %142 = arith.addf %140, %141 : vector<1x64xf32>
    %143 = arith.truncf %142 : vector<1x64xf32> to vector<1x64xbf16>
    %c0_126 = arith.constant 0 : index
    %c0_127 = arith.constant 0 : index
    %144 = vector.load %arg10[%c0_126, %c0_127] : memref<64x10xbf16, #tpu.memory_space<vmem>>, vector<64x10xbf16>
    %cst_128 = arith.constant dense<0.000000e+00> : vector<1x10xf32>
    %145 = tpu.matmul %143, %144, %cst_128 {dimension_numbers = #tpu.dot_dimension_numbers<[1], [0], [0], [1], [0, 0, 1, 1], [], []>} : vector<1x64xbf16>, vector<64x10xbf16>, vector<1x10xf32> -> vector<1x10xf32>
    %c0_129 = arith.constant 0 : index
    %c0_130 = arith.constant 0 : index
    %146 = vector.load %arg11[%c0_129, %c0_130] : memref<1x10xf32, #tpu.memory_space<vmem>>, vector<1x10xf32>
    %147 = arith.addf %145, %146 : vector<1x10xf32>
    %c0_131 = arith.constant 0 : index
    %c0_132 = arith.constant 0 : index
    %c0_133 = arith.constant 0 : index
    %148 = vector.load %arg12[%c0_131, %c0_132, %c0_133] : memref<1x1x10xf32, #tpu.memory_space<vmem>>, vector<1x1x10xf32>
    %149 = vector.shape_cast %148 : vector<1x1x10xf32> to vector<1x10xf32>
    %150 = vector.shape_cast %147 : vector<1x10xf32> to vector<1x1x10xf32>
    tpu.vector_store %arg12[%c0_131, %c0_132, %c0_133], %150 {strides = array<i32>} : memref<1x1x10xf32, #tpu.memory_space<vmem>>, vector<1x1x10xf32>,
    return
  }
  func.func @transform_0(%arg0: i32) -> (i32, i32, i32) {
    %c0_i32 = arith.constant 0 : i32
    %c0_i32_0 = arith.constant 0 : i32
    %c0_i32_1 = arith.constant 0 : i32
    return %arg0, %c0_i32, %c0_i32_0 : i32, i32, i32
  }
  func.func @transform_1(%arg0: i32) -> (i32, i32, i32) {
    %c0_i32 = arith.constant 0 : i32
    %c0_i32_0 = arith.constant 0 : i32
    %c0_i32_1 = arith.constant 0 : i32
    %c0_i32_2 = arith.constant 0 : i32
    return %c0_i32, %c0_i32_0, %c0_i32_1 : i32, i32, i32
  }
  func.func @transform_2(%arg0: i32) -> (i32, i32) {
    %c0_i32 = arith.constant 0 : i32
    %c0_i32_0 = arith.constant 0 : i32
    %c0_i32_1 = arith.constant 0 : i32
    return %c0_i32, %c0_i32_0 : i32, i32
  }
  func.func @transform_3(%arg0: i32) -> (i32, i32, i32) {
    %c0_i32 = arith.constant 0 : i32
    %c0_i32_0 = arith.constant 0 : i32
    %c0_i32_1 = arith.constant 0 : i32
    %c0_i32_2 = arith.constant 0 : i32
    return %c0_i32, %c0_i32_0, %c0_i32_1 : i32, i32, i32
  }
  func.func @transform_4(%arg0: i32) -> (i32, i32) {
    %c0_i32 = arith.constant 0 : i32
    %c0_i32_0 = arith.constant 0 : i32
    %c0_i32_1 = arith.constant 0 : i32
    return %c0_i32, %c0_i32_0 : i32, i32
  }
  func.func @transform_5(%arg0: i32) -> (i32, i32, i32) {
    %c0_i32 = arith.constant 0 : i32
    %c0_i32_0 = arith.constant 0 : i32
    %c0_i32_1 = arith.constant 0 : i32
    %c0_i32_2 = arith.constant 0 : i32
    return %c0_i32, %c0_i32_0, %c0_i32_1 : i32, i32, i32
  }
  func.func @transform_6(%arg0: i32) -> (i32, i32) {
    %c0_i32 = arith.constant 0 : i32
    %c0_i32_0 = arith.constant 0 : i32
    %c0_i32_1 = arith.constant 0 : i32
    return %c0_i32, %c0_i32_0 : i32, i32
  }
  func.func @transform_7(%arg0: i32) -> (i32, i32, i32) {
    %c0_i32 = arith.constant 0 : i32
    %c0_i32_0 = arith.constant 0 : i32
    %c0_i32_1 = arith.constant 0 : i32
    %c0_i32_2 = arith.constant 0 : i32
    return %c0_i32, %c0_i32_0, %c0_i32_1 : i32, i32, i32
  }
  func.func @transform_8(%arg0: i32) -> (i32, i32) {
    %c0_i32 = arith.constant 0 : i32
    %c0_i32_0 = arith.constant 0 : i32
    %c0_i32_1 = arith.constant 0 : i32
    return %c0_i32, %c0_i32_0 : i32, i32
  }
  func.func @transform_9(%arg0: i32) -> (i32, i32) {
    %c0_i32 = arith.constant 0 : i32
    %c0_i32_0 = arith.constant 0 : i32
    %c0_i32_1 = arith.constant 0 : i32
    return %c0_i32, %c0_i32_0 : i32, i32
  }
  func.func @transform_10(%arg0: i32) -> (i32, i32) {
    %c0_i32 = arith.constant 0 : i32
    %c0_i32_0 = arith.constant 0 : i32
    %c0_i32_1 = arith.constant 0 : i32
    return %c0_i32, %c0_i32_0 : i32, i32
  }
  func.func @transform_11(%arg0: i32) -> (i32, i32, i32) {
    %c0_i32 = arith.constant 0 : i32
    %c0_i32_0 = arith.constant 0 : i32
    %c0_i32_1 = arith.constant 0 : i32
    return %arg0, %c0_i32, %c0_i32_0 : i32, i32, i32
  }
}

</mosaic_0001>

<llo_original>
// kernel: few_shot_forward.1
$region0: #{few_shot_forward.1}
  #allocation0 [shape = 'u32[]', space=smem, size = 0x4, offset = 0x4, fixed_abs, tag = 'smem constant byte address 0x4 - core index']
  #allocation1 [shape = 'u32[144,128]{1,0:T(1,128)}', space=vmem, size = 0x12000, scoped, tag = 'internal scratch']
  #allocation2 [shape = 'bf16[36,96]{1,0:T(8,128)(2,1)}', space=vmem, size = 0x2800, scoped, tag = 'scratch operand']
  #allocation3 [shape = 'bf16[20,512]{1,0:T(8,128)(2,1)}', space=vmem, size = 0x6000, scoped, tag = 'scratch operand']
  #allocation4 [shape = 'bf16[12,256]{1,0:T(8,128)(2,1)}', space=vmem, size = 0x2000, scoped, tag = 'scratch operand']
  %s0 = inlined_call_operand.vmem [shape: bf16[2,32,96], index: 0, kind: input, shape index: {}]
  %s1 = inlined_call_operand.hbm [shape: bf16[5,96,1024], index: 1, kind: input, shape index: {}]
  %s2 = inlined_call_operand.hbm [shape: f32[1,1024], index: 2, kind: input, shape index: {}]
  %s3 = inlined_call_operand.hbm [shape: bf16[5,512,512], index: 3, kind: input, shape index: {}]
  %s4 = inlined_call_operand.hbm [shape: f32[1,512], index: 4, kind: input, shape index: {}]
  %s5 = inlined_call_operand.hbm [shape: bf16[5,256,512], index: 5, kind: input, shape index: {}]
  %s6 = inlined_call_operand.hbm [shape: f32[1,512], index: 6, kind: input, shape index: {}]
  %s7 = inlined_call_operand.vmem [shape: bf16[4,256,64], index: 7, kind: input, shape index: {}]
  %s8 = inlined_call_operand.hbm [shape: f32[1,64], index: 8, kind: input, shape index: {}]
  %s9 = inlined_call_operand.vmem [shape: bf16[64,10], index: 9, kind: input, shape index: {}]
  %s10 = inlined_call_operand.hbm [shape: f32[1,10], index: 10, kind: input, shape index: {}]
  %s11 = inlined_call_operand.hbm [shape: f32[2,1,10], index: 11, kind: output, shape index: {}]
  %s12 = sld [smem:[#allocation0]]
  $region109: #{few_shot_forward.1} parent=0
    _
  %s14 = ssub.s32 1, %s12
  %s15 = scalar_select 0, %s14, %s12
  $region1: #{few_shot_forward.1} parent=0
    #allocation5 [shape = 'u8[983040]{0}', space=vmem, size = 0xf0000, scoped, tag = 'input window, operand 1, single buffered']
    #allocation6 [shape = 's32[2]{0}', space=sflag, size = 0x8, scoped, tag = 'scoped memory for few_shot_forward.1']
    #allocation7 [shape = 's32[2]{0}', space=sflag, size = 0x8, scoped, tag = 'scoped memory for few_shot_forward.1']
    #allocation8 [shape = 'u8[4096]{0}', space=vmem, size = 0x1000, scoped, tag = 'input window, operand 2, single buffered']
    #allocation9 [shape = 's32[1]{0}', space=sflag, size = 0x4, scoped, tag = 'scoped memory for few_shot_forward.1']
    #allocation10 [shape = 'u8[2621440]{0}', space=vmem, size = 0x280000, scoped, tag = 'input window, operand 3, single buffered']
    #allocation11 [shape = 'u8[2048]{0}', space=vmem, size = 0x800, scoped, tag = 'input window, operand 4, single buffered']
    #allocation12 [shape = 's32[1]{0}', space=sflag, size = 0x4, scoped, tag = 'scoped memory for few_shot_forward.1']
    #allocation13 [shape = 'u8[1310720]{0}', space=vmem, size = 0x140000, scoped, tag = 'input window, operand 5, single buffered']
    #allocation14 [shape = 'u8[2048]{0}', space=vmem, size = 0x800, scoped, tag = 'input window, operand 6, single buffered']
    #allocation15 [shape = 's32[1]{0}', space=sflag, size = 0x4, scoped, tag = 'scoped memory for few_shot_forward.1']
    #allocation16 [shape = 'u8[512]{0}', space=vmem, size = 0x400, scoped, tag = 'input window, operand 8, single buffered']
    #allocation17 [shape = 'u8[512]{0}', space=vmem, size = 0x400, scoped, tag = 'input window, operand 10, single buffered']
    #allocation18 [shape = 's32[1]{0}', space=sflag, size = 0x4, scoped, tag = 'scoped memory for few_shot_forward.1']
    #allocation19 [shape = 'u8[1024]{0}', space=vmem, size = 0x400, scoped, tag = 'output window, operand 0']
    %16 = vsyncpa [#allocation6], 0
    %17 = vsyncpa [#allocation9], 0
    %18 = vsyncpa [#allocation12], 0
    %19 = vsyncpa [#allocation15], 0
    %20 = vsyncpa [#allocation18], 0
    %21 = vsyncpa [#allocation7], 0
    %s22 = scalar_lea.sflag [#allocation7], 1
    %23 = vsyncpa %s22, 0
    loop: start=0, step=1, limit=4
    $region2: #{few_shot_forward.1} parent=1 // loop_pre_header
      _
    $region3: #{few_shot_forward.1} parent=1 // loop_header
      %s25 = sphi 0, %s29
      %p26 = scmp.ge.s32.totalorder %s25, 4
      %s35 = sphi 0, %s37
      %s38 = sphi 0, %s35
      %s39 = sphi 0, %s38
      %s55 = sphi 0, %s39
      %s59 = sphi 0, %s59
      %s61 = sphi 0, %s59
      %s62 = sphi 0, %s61
      %s76 = sphi 0, %s62
      %s80 = sphi 0, %s80
      %s82 = sphi 0, %s80
      %s83 = sphi 0, %s82
      %s97 = sphi 0, %s83
      %s101 = sphi 0, %s101
      %s103 = sphi 0, %s101
      %s104 = sphi 0, %s103
      %s118 = sphi 0, %s104
      %s122 = sphi 0, %s122
      %s124 = sphi 0, %s122
      %s125 = sphi 0, %s124
      %s139 = sphi 0, %s125
      %s143 = sphi 0, %s143
      %s145 = sphi 0, %s143
      %s146 = sphi 0, %s145
      %s160 = sphi 0, %s146
      %s164 = sphi 0, %s164
      %s166 = sphi 0, %s164
      %s167 = sphi 0, %s166
      %s181 = sphi 0, %s167
      %s185 = sphi 0, %s185
      %s187 = sphi 0, %s185
      %s188 = sphi 0, %s187
      %s202 = sphi 0, %s188
      %s206 = sphi 0, %s206
      %s208 = sphi 0, %s206
      %s209 = sphi 0, %s208
      %s223 = sphi 0, %s209
      %s227 = sphi 0, %s227
      %s229 = sphi 0, %s227
      %s230 = sphi 0, %s229
      %s244 = sphi 0, %s230
      %s248 = sphi 0, %s248
      %s250 = sphi 0, %s248
      %s251 = sphi 0, %s250
      %s265 = sphi 0, %s251
      %s271 = sphi 0, %s273
      %s274 = sphi 0, %s271
      %s275 = sphi 0, %s274
      %s291 = sphi 0, %s275
    $region4: #{few_shot_forward.1} parent=1 // loop_header_branch
      %28 = sbr.rel (%p26) target = $region8
    $region5: #{few_shot_forward.1} parent=1 // loop_body
      %s30 = ssub.s32 %s25, 1
      %s31 = ssub.s32 %s25, 2
      %s32 = sadd.s32 %s25, 1
      %s33 = ssub.s32 %s25, %s32
      %p34 = scmp.eq.s32.totalorder %s33, 0
      %s36 = sadd.s32 %s35, 1
      %s37 = scalar_select %p34, %s35, %s36
      %p40 = pneg %p34
      %p41 = scmp.eq.s32.totalorder %s25, 1
      %p42 = por %p40, %p41
      %p43 = scmp.ne.s32.totalorder %s35, %s38
      %p44 = scmp.eq.s32.totalorder %s25, 0
      %p45 = por %p43, %p44
      %p46 = scmp.ne.s32.totalorder %s35, %s38
      %p47 = scmp.eq.s32.totalorder %s30, 1
      %p48 = por %p46, %p47
      %p49 = scmp.ne.s32.totalorder %s38, %s39
      %p50 = scmp.eq.s32.totalorder %s30, 0
      %p51 = por %p49, %p50
      %p52 = scmp.ne.s32.totalorder %s38, %s39
      %p53 = scmp.eq.s32.totalorder %s31, 1
      %p54 = por %p52, %p53
      %p56 = scmp.ne.s32.totalorder %s39, %s55
      %p57 = scmp.eq.s32.totalorder %s31, 0
      %p58 = por %p56, %p57
      %s60 = sadd.s32 %s59, 1
      %p63 = scmp.eq.s32.totalorder %s25, 1
      %p64 = scmp.ne.s32.totalorder %s59, %s61
      %p65 = scmp.eq.s32.totalorder %s25, 0
      %p66 = por %p64, %p65
      %p67 = scmp.ne.s32.totalorder %s59, %s61
      %p68 = scmp.eq.s32.totalorder %s30, 1
      %p69 = por %p67, %p68
      %p70 = scmp.ne.s32.totalorder %s61, %s62
      %p71 = scmp.eq.s32.totalorder %s30, 0
      %p72 = por %p70, %p71
      %p73 = scmp.ne.s32.totalorder %s61, %s62
      %p74 = scmp.eq.s32.totalorder %s31, 1
      %p75 = por %p73, %p74
      %p77 = scmp.ne.s32.totalorder %s62, %s76
      %p78 = scmp.eq.s32.totalorder %s31, 0
      %p79 = por %p77, %p78
      %s81 = sadd.s32 %s80, 1
      %p84 = scmp.eq.s32.totalorder %s25, 1
      %p85 = scmp.ne.s32.totalorder %s80, %s82
      %p86 = scmp.eq.s32.totalorder %s25, 0
      %p87 = por %p85, %p86
      %p88 = scmp.ne.s32.totalorder %s80, %s82
      %p89 = scmp.eq.s32.totalorder %s30, 1
      %p90 = por %p88, %p89
      %p91 = scmp.ne.s32.totalorder %s82, %s83
      %p92 = scmp.eq.s32.totalorder %s30, 0
      %p93 = por %p91, %p92
      %p94 = scmp.ne.s32.totalorder %s82, %s83
      %p95 = scmp.eq.s32.totalorder %s31, 1
      %p96 = por %p94, %p95
      %p98 = scmp.ne.s32.totalorder %s83, %s97
      %p99 = scmp.eq.s32.totalorder %s31, 0
      %p100 = por %p98, %p99
      %s102 = sadd.s32 %s101, 1
      %p105 = scmp.eq.s32.totalorder %s25, 1
      %p106 = scmp.ne.s32.totalorder %s101, %s103
      %p107 = scmp.eq.s32.totalorder %s25, 0
      %p108 = por %p106, %p107
      %p109 = scmp.ne.s32.totalorder %s101, %s103
      %p110 = scmp.eq.s32.totalorder %s30, 1
      %p111 = por %p109, %p110
      %p112 = scmp.ne.s32.totalorder %s103, %s104
      %p113 = scmp.eq.s32.totalorder %s30, 0
      %p114 = por %p112, %p113
      %p115 = scmp.ne.s32.totalorder %s103, %s104
      %p116 = scmp.eq.s32.totalorder %s31, 1
      %p117 = por %p115, %p116
      %p119 = scmp.ne.s32.totalorder %s104, %s118
      %p120 = scmp.eq.s32.totalorder %s31, 0
      %p121 = por %p119, %p120
      %s123 = sadd.s32 %s122, 1
      %p126 = scmp.eq.s32.totalorder %s25, 1
      %p127 = scmp.ne.s32.totalorder %s122, %s124
      %p128 = scmp.eq.s32.totalorder %s25, 0
      %p129 = por %p127, %p128
      %p130 = scmp.ne.s32.totalorder %s122, %s124
      %p131 = scmp.eq.s32.totalorder %s30, 1
      %p132 = por %p130, %p131
      %p133 = scmp.ne.s32.totalorder %s124, %s125
      %p134 = scmp.eq.s32.totalorder %s30, 0
      %p135 = por %p133, %p134
      %p136 = scmp.ne.s32.totalorder %s124, %s125
      %p137 = scmp.eq.s32.totalorder %s31, 1
      %p138 = por %p136, %p137
      %p140 = scmp.ne.s32.totalorder %s125, %s139
      %p141 = scmp.eq.s32.totalorder %s31, 0
      %p142 = por %p140, %p141
      %s144 = sadd.s32 %s143, 1
      %p147 = scmp.eq.s32.totalorder %s25, 1
      %p148 = scmp.ne.s32.totalorder %s143, %s145
      %p149 = scmp.eq.s32.totalorder %s25, 0
      %p150 = por %p148, %p149
      %p151 = scmp.ne.s32.totalorder %s143, %s145
      %p152 = scmp.eq.s32.totalorder %s30, 1
      %p153 = por %p151, %p152
      %p154 = scmp.ne.s32.totalorder %s145, %s146
      %p155 = scmp.eq.s32.totalorder %s30, 0
      %p156 = por %p154, %p155
      %p157 = scmp.ne.s32.totalorder %s145, %s146
      %p158 = scmp.eq.s32.totalorder %s31, 1
      %p159 = por %p157, %p158
      %p161 = scmp.ne.s32.totalorder %s146, %s160
      %p162 = scmp.eq.s32.totalorder %s31, 0
      %p163 = por %p161, %p162
      %s165 = sadd.s32 %s164, 1
      %p168 = scmp.eq.s32.totalorder %s25, 1
      %p169 = scmp.ne.s32.totalorder %s164, %s166
      %p170 = scmp.eq.s32.totalorder %s25, 0
      %p171 = por %p169, %p170
      %p172 = scmp.ne.s32.totalorder %s164, %s166
      %p173 = scmp.eq.s32.totalorder %s30, 1
      %p174 = por %p172, %p173
      %p175 = scmp.ne.s32.totalorder %s166, %s167
      %p176 = scmp.eq.s32.totalorder %s30, 0
      %p177 = por %p175, %p176
      %p178 = scmp.ne.s32.totalorder %s166, %s167
      %p179 = scmp.eq.s32.totalorder %s31, 1
      %p180 = por %p178, %p179
      %p182 = scmp.ne.s32.totalorder %s167, %s181
      %p183 = scmp.eq.s32.totalorder %s31, 0
      %p184 = por %p182, %p183
      %s186 = sadd.s32 %s185, 1
      %p189 = scmp.eq.s32.totalorder %s25, 1
      %p190 = scmp.ne.s32.totalorder %s185, %s187
      %p191 = scmp.eq.s32.totalorder %s25, 0
      %p192 = por %p190, %p191
      %p193 = scmp.ne.s32.totalorder %s185, %s187
      %p194 = scmp.eq.s32.totalorder %s30, 1
      %p195 = por %p193, %p194
      %p196 = scmp.ne.s32.totalorder %s187, %s188
      %p197 = scmp.eq.s32.totalorder %s30, 0
      %p198 = por %p196, %p197
      %p199 = scmp.ne.s32.totalorder %s187, %s188
      %p200 = scmp.eq.s32.totalorder %s31, 1
      %p201 = por %p199, %p200
      %p203 = scmp.ne.s32.totalorder %s188, %s202
      %p204 = scmp.eq.s32.totalorder %s31, 0
      %p205 = por %p203, %p204
      %s207 = sadd.s32 %s206, 1
      %p210 = scmp.eq.s32.totalorder %s25, 1
      %p211 = scmp.ne.s32.totalorder %s206, %s208
      %p212 = scmp.eq.s32.totalorder %s25, 0
      %p213 = por %p211, %p212
      %p214 = scmp.ne.s32.totalorder %s206, %s208
      %p215 = scmp.eq.s32.totalorder %s30, 1
      %p216 = por %p214, %p215
      %p217 = scmp.ne.s32.totalorder %s208, %s209
      %p218 = scmp.eq.s32.totalorder %s30, 0
      %p219 = por %p217, %p218
      %p220 = scmp.ne.s32.totalorder %s208, %s209
      %p221 = scmp.eq.s32.totalorder %s31, 1
      %p222 = por %p220, %p221
      %p224 = scmp.ne.s32.totalorder %s209, %s223
      %p225 = scmp.eq.s32.totalorder %s31, 0
      %p226 = por %p224, %p225
      %s228 = sadd.s32 %s227, 1
      %p231 = scmp.eq.s32.totalorder %s25, 1
      %p232 = scmp.ne.s32.totalorder %s227, %s229
      %p233 = scmp.eq.s32.totalorder %s25, 0
      %p234 = por %p232, %p233
      %p235 = scmp.ne.s32.totalorder %s227, %s229
      %p236 = scmp.eq.s32.totalorder %s30, 1
      %p237 = por %p235, %p236
      %p238 = scmp.ne.s32.totalorder %s229, %s230
      %p239 = scmp.eq.s32.totalorder %s30, 0
      %p240 = por %p238, %p239
      %p241 = scmp.ne.s32.totalorder %s229, %s230
      %p242 = scmp.eq.s32.totalorder %s31, 1
      %p243 = por %p241, %p242
      %p245 = scmp.ne.s32.totalorder %s230, %s244
      %p246 = scmp.eq.s32.totalorder %s31, 0
      %p247 = por %p245, %p246
      %s249 = sadd.s32 %s248, 1
      %p252 = scmp.eq.s32.totalorder %s25, 1
      %p253 = scmp.ne.s32.totalorder %s248, %s250
      %p254 = scmp.eq.s32.totalorder %s25, 0
      %p255 = por %p253, %p254
      %p256 = scmp.ne.s32.totalorder %s248, %s250
      %p257 = scmp.eq.s32.totalorder %s30, 1
      %p258 = por %p256, %p257
      %p259 = scmp.ne.s32.totalorder %s250, %s251
      %p260 = scmp.eq.s32.totalorder %s30, 0
      %p261 = por %p259, %p260
      %p262 = scmp.ne.s32.totalorder %s250, %s251
      %p263 = scmp.eq.s32.totalorder %s31, 1
      %p264 = por %p262, %p263
      %p266 = scmp.ne.s32.totalorder %s251, %s265
      %p267 = scmp.eq.s32.totalorder %s31, 0
      %p268 = por %p266, %p267
      %s269 = ssub.s32 %s25, %s32
      %p270 = scmp.eq.s32.totalorder %s269, 0
      %s272 = sadd.s32 %s271, 1
      %s273 = scalar_select %p270, %s271, %s272
      %p276 = pneg %p270
      %p277 = scmp.eq.s32.totalorder %s25, 1
      %p278 = por %p276, %p277
      %p279 = scmp.ne.s32.totalorder %s271, %s274
      %p280 = scmp.eq.s32.totalorder %s25, 0
      %p281 = por %p279, %p280
      %p282 = scmp.ne.s32.totalorder %s271, %s274
      %p283 = scmp.eq.s32.totalorder %s30, 1
      %p284 = por %p282, %p283
      %p285 = scmp.ne.s32.totalorder %s274, %s275
      %p286 = scmp.eq.s32.totalorder %s30, 0
      %p287 = por %p285, %p286
      %p288 = scmp.ne.s32.totalorder %s274, %s275
      %p289 = scmp.eq.s32.totalorder %s31, 1
      %p290 = por %p288, %p289
      %p292 = scmp.ne.s32.totalorder %s275, %s291
      %p293 = scmp.eq.s32.totalorder %s31, 0
      %p294 = por %p292, %p293
      %p295 = scmp.le.s32.totalorder 1, %s25
      %p296 = scmp.lt.s32.totalorder %s25, 3
      %p297 = pnand %p295, %p296
      %p298 = pneg %p297
      // Predicated region
      $region9: #{few_shot_forward.1} parent=5 // pred_check
        _
      $region10: #{few_shot_forward.1} parent=5 // pred_check_branch
        %300 = sbr.rel (%p297) target = $region12
      $region11: #{few_shot_forward.1} parent=5 // pred_region
        %s301 = ssub.s32 %s25, 1
        // Predicated region
        $region13: #{few_shot_forward.1} parent=11 // pred_check
          %p302 = pneg %p72
        $region14: #{few_shot_forward.1} parent=11 // pred_check_branch
          %304 = sbr.rel (%p302) target = $region16
        $region15: #{few_shot_forward.1} parent=11 // pred_region
          %s306 = ssub.s32 30720, 30720
          %307 = vsyncadd [#allocation6], %s306
          %s308 = sshll.u32 [#allocation5], 4
          %s309 = int_to_ptr.vmem [resolvable:$true] %s308
          %314 = dma.hbm_to_vmem [thread:$0]  %s1, 30720, %s309, [#allocation6], 512, 512, 32
        $region16: #{few_shot_forward.1} parent=11 // pred_fallthru
          _
        // Predicated region
        $region17: #{few_shot_forward.1} parent=11 // pred_check
          %p315 = pneg %p93
        $region18: #{few_shot_forward.1} parent=11 // pred_check_branch
          %317 = sbr.rel (%p315) target = $region20
        $region19: #{few_shot_forward.1} parent=11 // pred_region
          %s319 = ssub.s32 128, 128
          %320 = vsyncadd [#allocation9], %s319
          %s322 = sshll.u32 [#allocation8], 4
          %s323 = int_to_ptr.vmem [resolvable:$true] %s322
          %325 = dma.hbm_to_vmem [thread:$0]  %s2, 128, %s323, [#allocation9]
        $region20: #{few_shot_forward.1} parent=11 // pred_fallthru
          _
        // Predicated region
        $region21: #{few_shot_forward.1} parent=11 // pred_check
          %p326 = pneg %p114
        $region22: #{few_shot_forward.1} parent=11 // pred_check_branch
          %328 = sbr.rel (%p326) target = $region24
        $region23: #{few_shot_forward.1} parent=11 // pred_region
          %s330 = ssub.s32 81920, 81920
          %331 = vsyncadd [#allocation9], %s330
          %s332 = sshll.u32 [#allocation10], 4
          %s333 = int_to_ptr.vmem [resolvable:$true] %s332
          %338 = dma.hbm_to_vmem [thread:$0]  %s3, 81920, %s333, [#allocation9], 256, 256, 16
        $region24: #{few_shot_forward.1} parent=11 // pred_fallthru
          _
        // Predicated region
        $region25: #{few_shot_forward.1} parent=11 // pred_check
          %p339 = pneg %p135
        $region26: #{few_shot_forward.1} parent=11 // pred_check_branch
          %341 = sbr.rel (%p339) target = $region28
        $region27: #{few_shot_forward.1} parent=11 // pred_region
          %s343 = ssub.s32 64, 64
          %344 = vsyncadd [#allocation12], %s343
          %s346 = sshll.u32 [#allocation11], 4
          %s347 = int_to_ptr.vmem [resolvable:$true] %s346
          %349 = dma.hbm_to_vmem [thread:$0]  %s4, 64, %s347, [#allocation12]
        $region28: #{few_shot_forward.1} parent=11 // pred_fallthru
          _
        // Predicated region
        $region29: #{few_shot_forward.1} parent=11 // pred_check
          %p350 = pneg %p156
        $region30: #{few_shot_forward.1} parent=11 // pred_check_branch
          %352 = sbr.rel (%p350) target = $region32
        $region31: #{few_shot_forward.1} parent=11 // pred_region
          %s354 = ssub.s32 40960, 40960
          %355 = vsyncadd [#allocation12], %s354
          %s356 = sshll.u32 [#allocation13], 4
          %s357 = int_to_ptr.vmem [resolvable:$true] %s356
          %362 = dma.hbm_to_vmem [thread:$0]  %s5, 40960, %s357, [#allocation12], 256, 256, 16
        $region32: #{few_shot_forward.1} parent=11 // pred_fallthru
          _
        // Predicated region
        $region33: #{few_shot_forward.1} parent=11 // pred_check
          %p363 = pneg %p177
        $region34: #{few_shot_forward.1} parent=11 // pred_check_branch
          %365 = sbr.rel (%p363) target = $region36
        $region35: #{few_shot_forward.1} parent=11 // pred_region
          %s367 = ssub.s32 64, 64
          %368 = vsyncadd [#allocation15], %s367
          %s370 = sshll.u32 [#allocation14], 4
          %s371 = int_to_ptr.vmem [resolvable:$true] %s370
          %373 = dma.hbm_to_vmem [thread:$0]  %s6, 64, %s371, [#allocation15]
        $region36: #{few_shot_forward.1} parent=11 // pred_fallthru
          _
        // Predicated region
        $region37: #{few_shot_forward.1} parent=11 // pred_check
          %p374 = pneg %p198
        $region38: #{few_shot_forward.1} parent=11 // pred_check_branch
          %376 = sbr.rel (%p374) target = $region40
        $region39: #{few_shot_forward.1} parent=11 // pred_region
          _
        $region40: #{few_shot_forward.1} parent=11 // pred_fallthru
          _
        // Predicated region
        $region41: #{few_shot_forward.1} parent=11 // pred_check
          %p377 = pneg %p219
        $region42: #{few_shot_forward.1} parent=11 // pred_check_branch
          %379 = sbr.rel (%p377) target = $region44
        $region43: #{few_shot_forward.1} parent=11 // pred_region
          %s381 = ssub.s32 16, 16
          %382 = vsyncadd [#allocation15], %s381
          %s384 = sshll.u32 [#allocation16], 4
          %s385 = int_to_ptr.vmem [resolvable:$true] %s384
          %387 = dma.hbm_to_vmem [thread:$0]  %s8, 16, %s385, [#allocation15]
        $region44: #{few_shot_forward.1} parent=11 // pred_fallthru
          _
        // Predicated region
        $region45: #{few_shot_forward.1} parent=11 // pred_check
          %p388 = pneg %p240
        $region46: #{few_shot_forward.1} parent=11 // pred_check_branch
          %390 = sbr.rel (%p388) target = $region48
        $region47: #{few_shot_forward.1} parent=11 // pred_region
          _
        $region48: #{few_shot_forward.1} parent=11 // pred_fallthru
          _
        // Predicated region
        $region49: #{few_shot_forward.1} parent=11 // pred_check
          %p391 = pneg %p261
        $region50: #{few_shot_forward.1} parent=11 // pred_check_branch
          %393 = sbr.rel (%p391) target = $region52
        $region51: #{few_shot_forward.1} parent=11 // pred_region
          %s395 = ssub.s32 16, 16
          %396 = vsyncadd [#allocation18], %s395
          %s398 = sshll.u32 [#allocation17], 4
          %s399 = int_to_ptr.vmem [resolvable:$true] %s398
          %401 = dma.hbm_to_vmem [thread:$0]  %s10, 16, %s399, [#allocation18]
        $region52: #{few_shot_forward.1} parent=11 // pred_fallthru
          _
      $region12: #{few_shot_forward.1} parent=5 // pred_fallthru
        _
      %p402 = scmp.lt.s32.totalorder %s25, 2
      // Predicated region
      $region53: #{few_shot_forward.1} parent=5 // pred_check
        %p403 = pneg %p402
      $region54: #{few_shot_forward.1} parent=5 // pred_check_branch
        %405 = sbr.rel (%p403) target = $region56
      $region55: #{few_shot_forward.1} parent=5 // pred_region
        // Predicated region
        $region57: #{few_shot_forward.1} parent=55 // pred_check
          %p406 = pneg %p45
        $region58: #{few_shot_forward.1} parent=55 // pred_check_branch
          %408 = sbr.rel (%p406) target = $region60
        $region59: #{few_shot_forward.1} parent=55 // pred_region
          %p409 = scmp.lt.s32.totalorder %s25, 1
          %s410 = scalar_select %p409, %s25, 1
          %s411 = smul.addr %s410, 4
          %s412 = smul.addr %s411, 4
          %s413 = scalar_lea.vmem %s0, %s412
        $region60: #{few_shot_forward.1} parent=55 // pred_fallthru
          _
      $region56: #{few_shot_forward.1} parent=5 // pred_fallthru
        _
      %p414 = scmp.le.s32.totalorder 1, %s25
      %p415 = scmp.lt.s32.totalorder %s25, 3
      %p416 = pnand %p414, %p415
      %p417 = pneg %p416
      // Predicated region
      $region61: #{few_shot_forward.1} parent=5 // pred_check
        _
      $region62: #{few_shot_forward.1} parent=5 // pred_check_branch
        %419 = sbr.rel (%p416) target = $region64
      $region63: #{few_shot_forward.1} parent=5 // pred_region
        %s420 = ssub.s32 %s25, 1
        // Predicated region
        $region65: #{few_shot_forward.1} parent=63 // pred_check
          %p421 = pneg %p72
        $region66: #{few_shot_forward.1} parent=63 // pred_check_branch
          %423 = sbr.rel (%p421) target = $region68
        $region67: #{few_shot_forward.1} parent=63 // pred_region
          %424 = dma.done [#allocation6], 30720
        $region68: #{few_shot_forward.1} parent=63 // pred_fallthru
          _
        // Predicated region
        $region69: #{few_shot_forward.1} parent=63 // pred_check
          %p425 = pneg %p93
        $region70: #{few_shot_forward.1} parent=63 // pred_check_branch
          %427 = sbr.rel (%p425) target = $region72
        $region71: #{few_shot_forward.1} parent=63 // pred_region
          %428 = dma.done [#allocation9], 128
        $region72: #{few_shot_forward.1} parent=63 // pred_fallthru
          _
        // Predicated region
        $region73: #{few_shot_forward.1} parent=63 // pred_check
          %p429 = pneg %p114
        $region74: #{few_shot_forward.1} parent=63 // pred_check_branch
          %431 = sbr.rel (%p429) target = $region76
        $region75: #{few_shot_forward.1} parent=63 // pred_region
          %432 = dma.done [#allocation9], 81920
        $region76: #{few_shot_forward.1} parent=63 // pred_fallthru
          _
        // Predicated region
        $region77: #{few_shot_forward.1} parent=63 // pred_check
          %p433 = pneg %p135
        $region78: #{few_shot_forward.1} parent=63 // pred_check_branch
          %435 = sbr.rel (%p433) target = $region80
        $region79: #{few_shot_forward.1} parent=63 // pred_region
          %436 = dma.done [#allocation12], 64
        $region80: #{few_shot_forward.1} parent=63 // pred_fallthru
          _
        // Predicated region
        $region81: #{few_shot_forward.1} parent=63 // pred_check
          %p437 = pneg %p156
        $region82: #{few_shot_forward.1} parent=63 // pred_check_branch
          %439 = sbr.rel (%p437) target = $region84
        $region83: #{few_shot_forward.1} parent=63 // pred_region
          %440 = dma.done [#allocation12], 40960
        $region84: #{few_shot_forward.1} parent=63 // pred_fallthru
          _
        // Predicated region
        $region85: #{few_shot_forward.1} parent=63 // pred_check
          %p441 = pneg %p177
        $region86: #{few_shot_forward.1} parent=63 // pred_check_branch
          %443 = sbr.rel (%p441) target = $region88
        $region87: #{few_shot_forward.1} parent=63 // pred_region
          %444 = dma.done [#allocation15], 64
        $region88: #{few_shot_forward.1} parent=63 // pred_fallthru
          _
        // Predicated region
        $region89: #{few_shot_forward.1} parent=63 // pred_check
          %p445 = pneg %p219
        $region90: #{few_shot_forward.1} parent=63 // pred_check_branch
          %447 = sbr.rel (%p445) target = $region92
        $region91: #{few_shot_forward.1} parent=63 // pred_region
          %448 = dma.done [#allocation15], 16
        $region92: #{few_shot_forward.1} parent=63 // pred_fallthru
          _
        // Predicated region
        $region93: #{few_shot_forward.1} parent=63 // pred_check
          %p449 = pneg %p261
        $region94: #{few_shot_forward.1} parent=63 // pred_check_branch
          %451 = sbr.rel (%p449) target = $region96
        $region95: #{few_shot_forward.1} parent=63 // pred_region
          %452 = dma.done [#allocation18], 16
        $region96: #{few_shot_forward.1} parent=63 // pred_fallthru
          _
        %p453 = scmp.lt.s32.totalorder %s30, 1
        %s454 = scalar_select %p453, %s30, 1
        %s455 = smul.addr %s454, 4
        %s456 = smul.addr %s455, 4
        %s457 = scalar_lea.vmem %s0, %s456
        %p458 = pneg %p51
        %p459 = pneg %p48
        %p460 = pneg %p72
        %p461 = pneg %p69
        %p462 = pneg %p93
        %p463 = pneg %p90
        %p464 = pneg %p114
        %p465 = pneg %p111
        %p466 = pneg %p135
        %p467 = pneg %p132
        %p468 = pneg %p156
        %p469 = pneg %p153
        %p470 = pneg %p177
        %p471 = pneg %p174
        %p472 = pneg %p198
        %p473 = pneg %p195
        %p474 = pneg %p219
        %p475 = pneg %p216
        %p476 = pneg %p240
        %p477 = pneg %p237
        %p478 = pneg %p261
        %p479 = pneg %p258
        %p480 = pneg %p287
        %p481 = pneg %p284
        %s482 = sand.u32 %s274, 1
        %s483 = scalar_lea.sflag [#allocation7], %s482
        %s484 = sand.u32 %s274, 1
        %s485 = scalar_lea.vmem [#allocation19], %s484
        %p486 = scmp.lt.s32.totalorder %s30, 1
        %s487 = scalar_select %p486, %s30, 1
        %s488 = smul.addr %s487, 4
        %s489 = smul.addr %s488, 4
        %s490 = scalar_lea.vmem %s0, %s489
        %vm492 = vcmask 781312
        %493 = vst.msk [vmem:[#allocation2] sm:$0xf] %vm492, 0
        %494 = vst.msk [vmem:[#allocation2 + $0x4] sm:$0xf] %vm492, 0
        %495 = vst.msk [vmem:[#allocation2 + $0x8] sm:$0xf] %vm492, 0
        %496 = vst.msk [vmem:[#allocation2 + $0xc] sm:$0xf] %vm492, 0
        %vm497 = vcmask 779264
        %498 = vst.msk [vmem:[#allocation2 + $0x10] sm:$0x3] %vm497, 0
        %v499 = vld [vmem:[%s490] sm:$0xf]
        %v500 = vld [vmem:[%s490 + $0x4] sm:$0xf]
        %v501 = vld [vmem:[%s490 + $0x8] sm:$0xf]
        %v502 = vld [vmem:[%s490 + $0xc] sm:$0xf]
        %vm507 = vcmask 1040384
        %vm508 = vcmask 1044484
        %vm509 = vmor %vm507, %vm508
        %v510 = vrot.slane %v499, 7
        %v511 = vrot.slane %v510, 4
        %v512 = vrot.slane %v500, 7
        %v513 = vsel %vm509, %v511, %v512
        %v514 = vrot.slane %v512, 4
        %v515 = vrot.slane %v501, 7
        %v516 = vsel %vm509, %v514, %v515
        %v517 = vrot.slane %v515, 4
        %v518 = vrot.slane %v502, 7
        %v519 = vsel %vm509, %v517, %v518
        %v520 = vrot.slane %v518, 4
        %vm526 = vcmask 781313
        %527 = vst.msk [vmem:[#allocation2] sm:$0xe] %vm526, %v510
        %528 = vst.msk [vmem:[#allocation2 + $0x4] sm:$0xf] %vm492, %v513
        %529 = vst.msk [vmem:[#allocation2 + $0x8] sm:$0xf] %vm492, %v516
        %530 = vst.msk [vmem:[#allocation2 + $0xc] sm:$0xf] %vm492, %v519
        %vm531 = vcmask 778240
        %532 = vst.msk [vmem:[#allocation2 + $0x10] sm:$0x1] %vm531, %v520
        %v533 = vld [vmem:[#allocation2] sm:$0xf]
        %v534 = vld [vmem:[#allocation2 + $0x4] sm:$0xf]
        %v535 = vld [vmem:[#allocation2 + $0x8] sm:$0xf]
        %v536 = vld [vmem:[#allocation2 + $0xc] sm:$0xf]
        %v537 = vld [vmem:[#allocation5] sm:$0xff]
        %v538 = vld [vmem:[#allocation5 + $0x8] sm:$0xff]
        %v539 = vld [vmem:[#allocation5 + $0x10] sm:$0xff]
        %v540 = vld [vmem:[#allocation5 + $0x18] sm:$0xff]
        %v541 = vld [vmem:[#allocation5 + $0x20] sm:$0xff]
        %v542 = vld [vmem:[#allocation5 + $0x28] sm:$0xff]
        %v543 = vld [vmem:[#allocation5 + $0x30] sm:$0xff]
        %v544 = vld [vmem:[#allocation5 + $0x38] sm:$0xff]
        %v545 = vld [vmem:[#allocation5 + $0x40] sm:$0xff]
        %v546 = vld [vmem:[#allocation5 + $0x48] sm:$0xff]
        %v547 = vld [vmem:[#allocation5 + $0x50] sm:$0xff]
        %v548 = vld [vmem:[#allocation5 + $0x58] sm:$0xff]
        %v549 = vld [vmem:[#allocation5 + $0x60] sm:$0xff]
        %v550 = vld [vmem:[#allocation5 + $0x68] sm:$0xff]
        %v551 = vld [vmem:[#allocation5 + $0x70] sm:$0xff]
        %v552 = vld [vmem:[#allocation5 + $0x78] sm:$0xff]
        %v553 = vld [vmem:[#allocation5 + $0x80] sm:$0xff]
        %v554 = vld [vmem:[#allocation5 + $0x88] sm:$0xff]
        %v555 = vld [vmem:[#allocation5 + $0x90] sm:$0xff]
        %v556 = vld [vmem:[#allocation5 + $0x98] sm:$0xff]
        %v557 = vld [vmem:[#allocation5 + $0xa0] sm:$0xff]
        %v558 = vld [vmem:[#allocation5 + $0xa8] sm:$0xff]
        %v559 = vld [vmem:[#allocation5 + $0xb0] sm:$0xff]
        %v560 = vld [vmem:[#allocation5 + $0xb8] sm:$0xff]
        %v561 = vld [vmem:[#allocation5 + $0xc0] sm:$0xff]
        %v562 = vld [vmem:[#allocation5 + $0xc8] sm:$0xff]
        %v563 = vld [vmem:[#allocation5 + $0xd0] sm:$0xff]
        %v564 = vld [vmem:[#allocation5 + $0xd8] sm:$0xff]
        %v565 = vld [vmem:[#allocation5 + $0xe0] sm:$0xff]
        %v566 = vld [vmem:[#allocation5 + $0xe8] sm:$0xff]
        %v567 = vld [vmem:[#allocation5 + $0xf0] sm:$0xff]
        %v568 = vld [vmem:[#allocation5 + $0xf8] sm:$0xff]
        %v569 = vld [vmem:[#allocation5 + $0x100] sm:$0xff]
        %v570 = vld [vmem:[#allocation5 + $0x108] sm:$0xff]
        %v571 = vld [vmem:[#allocation5 + $0x110] sm:$0xff]
        %v572 = vld [vmem:[#allocation5 + $0x118] sm:$0xff]
        %v573 = vld [vmem:[#allocation5 + $0x120] sm:$0xff]
        %v574 = vld [vmem:[#allocation5 + $0x128] sm:$0xff]
        %v575 = vld [vmem:[#allocation5 + $0x130] sm:$0xff]
        %v576 = vld [vmem:[#allocation5 + $0x138] sm:$0xff]
        %v577 = vld [vmem:[#allocation5 + $0x140] sm:$0xff]
        %v578 = vld [vmem:[#allocation5 + $0x148] sm:$0xff]
        %v579 = vld [vmem:[#allocation5 + $0x150] sm:$0xff]
        %v580 = vld [vmem:[#allocation5 + $0x158] sm:$0xff]
        %v581 = vld [vmem:[#allocation5 + $0x160] sm:$0xff]
        %v582 = vld [vmem:[#allocation5 + $0x168] sm:$0xff]
        %v583 = vld [vmem:[#allocation5 + $0x170] sm:$0xff]
        %v584 = vld [vmem:[#allocation5 + $0x178] sm:$0xff]
        %v585 = vld [vmem:[#allocation2 + $0x10] sm:$0x1]
        %s586 = scalar_lea.vmem [#allocation5], 384
        %v587 = vld [vmem:[%s586] sm:$0xff]
        %v588 = vld [vmem:[%s586 + $0x8] sm:$0xff]
        %v589 = vld [vmem:[%s586 + $0x10] sm:$0xff]
        %v590 = vld [vmem:[%s586 + $0x18] sm:$0xff]
        %v591 = vld [vmem:[%s586 + $0x20] sm:$0xff]
        %v592 = vld [vmem:[%s586 + $0x28] sm:$0xff]
        %v593 = vld [vmem:[%s586 + $0x30] sm:$0xff]
        %v594 = vld [vmem:[%s586 + $0x38] sm:$0xff]
        %v595 = vld [vmem:[%s586 + $0x40] sm:$0xff]
        %v596 = vld [vmem:[%s586 + $0x48] sm:$0xff]
        %v597 = vld [vmem:[%s586 + $0x50] sm:$0xff]
        %v598 = vld [vmem:[%s586 + $0x58] sm:$0xff]
        %v599 = vld [vmem:[%s586 + $0x60] sm:$0xff]
        %v600 = vld [vmem:[%s586 + $0x68] sm:$0xff]
        %v601 = vld [vmem:[%s586 + $0x70] sm:$0xff]
        %v602 = vld [vmem:[%s586 + $0x78] sm:$0xff]
        %v603 = vld [vmem:[%s586 + $0x80] sm:$0xff]
        %v604 = vld [vmem:[%s586 + $0x88] sm:$0xff]
        %v605 = vld [vmem:[%s586 + $0x90] sm:$0xff]
        %v606 = vld [vmem:[%s586 + $0x98] sm:$0xff]
        %v607 = vld [vmem:[%s586 + $0xa0] sm:$0xff]
        %v608 = vld [vmem:[%s586 + $0xa8] sm:$0xff]
        %v609 = vld [vmem:[%s586 + $0xb0] sm:$0xff]
        %v610 = vld [vmem:[%s586 + $0xb8] sm:$0xff]
        %v611 = vld [vmem:[%s586 + $0xc0] sm:$0xff]
        %v612 = vld [vmem:[%s586 + $0xc8] sm:$0xff]
        %v613 = vld [vmem:[%s586 + $0xd0] sm:$0xff]
        %v614 = vld [vmem:[%s586 + $0xd8] sm:$0xff]
        %v615 = vld [vmem:[%s586 + $0xe0] sm:$0xff]
        %v616 = vld [vmem:[%s586 + $0xe8] sm:$0xff]
        %v617 = vld [vmem:[%s586 + $0xf0] sm:$0xff]
        %v618 = vld [vmem:[%s586 + $0xf8] sm:$0xff]
        %v619 = vld [vmem:[%s586 + $0x100] sm:$0xff]
        %v620 = vld [vmem:[%s586 + $0x108] sm:$0xff]
        %v621 = vld [vmem:[%s586 + $0x110] sm:$0xff]
        %v622 = vld [vmem:[%s586 + $0x118] sm:$0xff]
        %v623 = vld [vmem:[%s586 + $0x120] sm:$0xff]
        %v624 = vld [vmem:[%s586 + $0x128] sm:$0xff]
        %v625 = vld [vmem:[%s586 + $0x130] sm:$0xff]
        %v626 = vld [vmem:[%s586 + $0x138] sm:$0xff]
        %v627 = vld [vmem:[%s586 + $0x140] sm:$0xff]
        %v628 = vld [vmem:[%s586 + $0x148] sm:$0xff]
        %v629 = vld [vmem:[%s586 + $0x150] sm:$0xff]
        %v630 = vld [vmem:[%s586 + $0x158] sm:$0xff]
        %v631 = vld [vmem:[%s586 + $0x160] sm:$0xff]
        %v632 = vld [vmem:[%s586 + $0x168] sm:$0xff]
        %v633 = vld [vmem:[%s586 + $0x170] sm:$0xff]
        %v634 = vld [vmem:[%s586 + $0x178] sm:$0xff]
        %v640 = vunpack.c.l.b16 %v533
        %v641 = vunpack.c.l.b16 %v534
        %v642 = vunpack.c.l.b16 %v535
        %v643 = vunpack.c.l.b16 %v536
        %v644 = vunpack.c.l.b16 %v585
        %v645 = vpack.c.b16 %v641, %v640
        %v646 = vpack.c.b16 %v643, %v642
        %v647 = vpack.c.b16 %v644, %v644
        %vm648 = vsmask.f32 7424
        %v650 = vshrl.u32 %v645, 16
        %v652 = vshll.u32 %v645, 16
        %v654 = vrot.slane %v652, 1
        %v655 = vor.u32 %v650, %v654
        %v657 = vshll.u32 %v646, 16
        %v659 = vrot.slane %v657, 1
        %v660 = vsel %vm648, %v655, %v659
        %v661 = vshrl.u32 %v646, 16
        %v663 = vor.u32 %v661, %v659
        %v665 = vshll.u32 %v647, 16
        %v667 = vrot.slane %v665, 1
        %v668 = vsel %vm648, %v663, %v667
        %v717 = vunpack.c.l.b16 %v587
        %v718 = vunpack.c.h.b16 %v587
        %v719 = vunpack.c.l.b16 %v588
        %v720 = vunpack.c.h.b16 %v588
        %v721 = vunpack.c.l.b16 %v589
        %v722 = vunpack.c.h.b16 %v589
        %v723 = vunpack.c.l.b16 %v590
        %v724 = vunpack.c.h.b16 %v590
        %v725 = vunpack.c.l.b16 %v591
        %v726 = vunpack.c.h.b16 %v591
        %v727 = vunpack.c.l.b16 %v592
        %v728 = vunpack.c.h.b16 %v592
        %v729 = vunpack.c.l.b16 %v593
        %v730 = vunpack.c.h.b16 %v593
        %v731 = vunpack.c.l.b16 %v594
        %v732 = vunpack.c.h.b16 %v594
        %v733 = vunpack.c.l.b16 %v595
        %v734 = vunpack.c.h.b16 %v595
        %v735 = vunpack.c.l.b16 %v596
        %v736 = vunpack.c.h.b16 %v596
        %v737 = vunpack.c.l.b16 %v597
        %v738 = vunpack.c.h.b16 %v597
        %v739 = vunpack.c.l.b16 %v598
        %v740 = vunpack.c.h.b16 %v598
        %v741 = vunpack.c.l.b16 %v599
        %v742 = vunpack.c.h.b16 %v599
        %v743 = vunpack.c.l.b16 %v600
        %v744 = vunpack.c.h.b16 %v600
        %v745 = vunpack.c.l.b16 %v601
        %v746 = vunpack.c.h.b16 %v601
        %v747 = vunpack.c.l.b16 %v602
        %v748 = vunpack.c.h.b16 %v602
        %v749 = vunpack.c.l.b16 %v603
        %v750 = vunpack.c.h.b16 %v603
        %v751 = vunpack.c.l.b16 %v604
        %v752 = vunpack.c.h.b16 %v604
        %v753 = vunpack.c.l.b16 %v605
        %v754 = vunpack.c.h.b16 %v605
        %v755 = vunpack.c.l.b16 %v606
        %v756 = vunpack.c.h.b16 %v606
        %v757 = vunpack.c.l.b16 %v607
        %v758 = vunpack.c.h.b16 %v607
        %v759 = vunpack.c.l.b16 %v608
        %v760 = vunpack.c.h.b16 %v608
        %v761 = vunpack.c.l.b16 %v609
        %v762 = vunpack.c.h.b16 %v609
        %v763 = vunpack.c.l.b16 %v610
        %v764 = vunpack.c.h.b16 %v610
        %v765 = vunpack.c.l.b16 %v611
        %v766 = vunpack.c.h.b16 %v611
        %v767 = vunpack.c.l.b16 %v612
        %v768 = vunpack.c.h.b16 %v612
        %v769 = vunpack.c.l.b16 %v613
        %v770 = vunpack.c.h.b16 %v613
        %v771 = vunpack.c.l.b16 %v614
        %v772 = vunpack.c.h.b16 %v614
        %v773 = vunpack.c.l.b16 %v615
        %v774 = vunpack.c.h.b16 %v615
        %v775 = vunpack.c.l.b16 %v616
        %v776 = vunpack.c.h.b16 %v616
        %v777 = vunpack.c.l.b16 %v617
        %v778 = vunpack.c.h.b16 %v617
        %v779 = vunpack.c.l.b16 %v618
        %v780 = vunpack.c.h.b16 %v618
        %v781 = vunpack.c.l.b16 %v619
        %v782 = vunpack.c.h.b16 %v619
        %v783 = vunpack.c.l.b16 %v620
        %v784 = vunpack.c.h.b16 %v620
        %v785 = vunpack.c.l.b16 %v621
        %v786 = vunpack.c.h.b16 %v621
        %v787 = vunpack.c.l.b16 %v622
        %v788 = vunpack.c.h.b16 %v622
        %v789 = vunpack.c.l.b16 %v623
        %v790 = vunpack.c.h.b16 %v623
        %v791 = vunpack.c.l.b16 %v624
        %v792 = vunpack.c.h.b16 %v624
        %v793 = vunpack.c.l.b16 %v625
        %v794 = vunpack.c.h.b16 %v625
        %v795 = vunpack.c.l.b16 %v626
        %v796 = vunpack.c.h.b16 %v626
        %v797 = vunpack.c.l.b16 %v627
        %v798 = vunpack.c.h.b16 %v627
        %v799 = vunpack.c.l.b16 %v628
        %v800 = vunpack.c.h.b16 %v628
        %v801 = vunpack.c.l.b16 %v629
        %v802 = vunpack.c.h.b16 %v629
        %v803 = vunpack.c.l.b16 %v630
        %v804 = vunpack.c.h.b16 %v630
        %v805 = vunpack.c.l.b16 %v631
        %v806 = vunpack.c.h.b16 %v631
        %v807 = vunpack.c.l.b16 %v632
        %v808 = vunpack.c.h.b16 %v632
        %v809 = vunpack.c.l.b16 %v633
        %v810 = vunpack.c.h.b16 %v633
        %v811 = vunpack.c.l.b16 %v634
        %v812 = vunpack.c.h.b16 %v634
        %v813 = vpack.c.b16 %v725, %v717
        %v814 = vpack.c.b16 %v726, %v718
        %v815 = vpack.c.b16 %v727, %v719
        %v816 = vpack.c.b16 %v728, %v720
        %v817 = vpack.c.b16 %v729, %v721
        %v818 = vpack.c.b16 %v730, %v722
        %v819 = vpack.c.b16 %v731, %v723
        %v820 = vpack.c.b16 %v732, %v724
        %v821 = vpack.c.b16 %v741, %v733
        %v822 = vpack.c.b16 %v742, %v734
        %v823 = vpack.c.b16 %v743, %v735
        %v824 = vpack.c.b16 %v744, %v736
        %v825 = vpack.c.b16 %v745, %v737
        %v826 = vpack.c.b16 %v746, %v738
        %v827 = vpack.c.b16 %v747, %v739
        %v828 = vpack.c.b16 %v748, %v740
        %v829 = vpack.c.b16 %v757, %v749
        %v830 = vpack.c.b16 %v758, %v750
        %v831 = vpack.c.b16 %v759, %v751
        %v832 = vpack.c.b16 %v760, %v752
        %v833 = vpack.c.b16 %v761, %v753
        %v834 = vpack.c.b16 %v762, %v754
        %v835 = vpack.c.b16 %v763, %v755
        %v836 = vpack.c.b16 %v764, %v756
        %v837 = vpack.c.b16 %v773, %v765
        %v838 = vpack.c.b16 %v774, %v766
        %v839 = vpack.c.b16 %v775, %v767
        %v840 = vpack.c.b16 %v776, %v768
        %v841 = vpack.c.b16 %v777, %v769
        %v842 = vpack.c.b16 %v778, %v770
        %v843 = vpack.c.b16 %v779, %v771
        %v844 = vpack.c.b16 %v780, %v772
        %v845 = vpack.c.b16 %v789, %v781
        %v846 = vpack.c.b16 %v790, %v782
        %v847 = vpack.c.b16 %v791, %v783
        %v848 = vpack.c.b16 %v792, %v784
        %v849 = vpack.c.b16 %v793, %v785
        %v850 = vpack.c.b16 %v794, %v786
        %v851 = vpack.c.b16 %v795, %v787
        %v852 = vpack.c.b16 %v796, %v788
        %v853 = vpack.c.b16 %v805, %v797
        %v854 = vpack.c.b16 %v806, %v798
        %v855 = vpack.c.b16 %v807, %v799
        %v856 = vpack.c.b16 %v808, %v800
        %v857 = vpack.c.b16 %v809, %v801
        %v858 = vpack.c.b16 %v810, %v802
        %v859 = vpack.c.b16 %v811, %v803
        %v860 = vpack.c.b16 %v812, %v804
        %vm909 = vcmask 785408
        %v911 = vsel %vm909, %v660, 0
        %v914 = vsel %vm909, %v668, 0
        %916 = vmatprep.subr.bf16.mxu0 %v814
        %917 = vmatpush1.bf16.msra.mxu0 %v813
        %918 = vmatprep.subr.bf16.mxu0 %v822
        %919 = vmatpush1.bf16.msra.mxu0 %v821
        %920 = vmatprep.subr.bf16.mxu0 %v830
        %921 = vmatpush1.bf16.msra.mxu0 %v829
        %922 = vmatprep.subr.bf16.mxu0 %v838
        %923 = vmatpush1.bf16.msra.mxu0 %v837
        %924 = vmatprep.subr.bf16.mxu0 %v846
        %925 = vmatpush1.bf16.msra.mxu0 %v845
        %926 = vmatprep.subr.bf16.mxu0 %v854
        %927 = vmatpush1.bf16.msra.mxu0 %v853
        %928 = vmatprep.subr.bf16.mxu0 0
        %929 = vmatpush1.bf16.msra.mxu0 0
        %930 = vmatprep.subr.bf16.mxu0 0
        %931 = vmatpush1.bf16.msra.mxu0 0
        %932 = vmatprep.subr.bf16.mxu0 0
        %933 = vmatpush1.bf16.msra.mxu0 0
        %934 = vmatprep.subr.bf16.mxu0 0
        %935 = vmatpush1.bf16.msra.mxu0 0
        %936 = vmatprep.subr.bf16.mxu0 0
        %937 = vmatpush1.bf16.msra.mxu0 0
        %938 = vmatprep.subr.bf16.mxu0 0
        %939 = vmatpush1.bf16.msra.mxu0 0
        %940 = vmatprep.subr.bf16.mxu0 0
        %941 = vmatpush1.bf16.msra.mxu0 0
        %942 = vmatprep.subr.bf16.mxu0 0
        %943 = vmatpush1.bf16.msra.mxu0 0
        %944 = vmatprep.subr.bf16.mxu0 0
        %945 = vmatpush1.bf16.msra.mxu0 0
        %946 = vmatprep.subr.bf16.mxu0 0
        %947 = vmatpush1.bf16.msra.mxu0 0
        %948 = vmatprep.mubr.bf16.mxu0 0
        %949 = vmatmul.mubr.bf16.gmra.mrb[0].mxu0 %v911
        %v950 = vpop.f32.mrb[0].mxu0
        %v951 = vadd.f32 0.0, %v950
        %v952 = vpop.f32.mrb[0].mxu0
        %v953 = vadd.f32 0.0, %v952
        %v954 = vpop.f32.mrb[0].mxu0
        %v955 = vadd.f32 0.0, %v954
        %v956 = vpop.f32.mrb[0].mxu0
        %v957 = vadd.f32 0.0, %v956
        %958 = vmatprep.mubr.bf16.mxu0 0
        %959 = vmatmul.mubr.bf16.gmra.mrb[0].mxu0 %v914
        %v960 = vpop.f32.mrb[0].mxu0
        %v961 = vadd.f32 0.0, %v960
        %v962 = vpop.f32.mrb[0].mxu0
        %v963 = vadd.f32 0.0, %v962
        %v964 = vpop.f32.mrb[0].mxu0
        %v965 = vadd.f32 0.0, %v964
        %v966 = vpop.f32.mrb[0].mxu0
        %v967 = vadd.f32 0.0, %v966
        %968 = vdwg.mxu0
        %969 = vmatprep.subr.bf16.mxu0 %v816
        %970 = vmatpush1.bf16.msra.mxu0 %v815
        %971 = vmatprep.subr.bf16.mxu0 %v824
        %972 = vmatpush1.bf16.msra.mxu0 %v823
        %973 = vmatprep.subr.bf16.mxu0 %v832
        %974 = vmatpush1.bf16.msra.mxu0 %v831
        %975 = vmatprep.subr.bf16.mxu0 %v840
        %976 = vmatpush1.bf16.msra.mxu0 %v839
        %977 = vmatprep.subr.bf16.mxu0 %v848
        %978 = vmatpush1.bf16.msra.mxu0 %v847
        %979 = vmatprep.subr.bf16.mxu0 %v856
        %980 = vmatpush1.bf16.msra.mxu0 %v855
        %981 = vmatprep.subr.bf16.mxu0 0
        %982 = vmatpush1.bf16.msra.mxu0 0
        %983 = vmatprep.subr.bf16.mxu0 0
        %984 = vmatpush1.bf16.msra.mxu0 0
        %985 = vmatprep.subr.bf16.mxu0 0
        %986 = vmatpush1.bf16.msra.mxu0 0
        %987 = vmatprep.subr.bf16.mxu0 0
        %988 = vmatpush1.bf16.msra.mxu0 0
        %989 = vmatprep.subr.bf16.mxu0 0
        %990 = vmatpush1.bf16.msra.mxu0 0
        %991 = vmatprep.subr.bf16.mxu0 0
        %992 = vmatpush1.bf16.msra.mxu0 0
        %993 = vmatprep.subr.bf16.mxu0 0
        %994 = vmatpush1.bf16.msra.mxu0 0
        %995 = vmatprep.subr.bf16.mxu0 0
        %996 = vmatpush1.bf16.msra.mxu0 0
        %997 = vmatprep.subr.bf16.mxu0 0
        %998 = vmatpush1.bf16.msra.mxu0 0
        %999 = vmatprep.subr.bf16.mxu0 0
        %1000 = vmatpush1.bf16.msra.mxu0 0
        %1001 = vmatprep.mubr.bf16.mxu0 0
        %1002 = vmatmul.mubr.bf16.gmra.mrb[0].mxu0 %v911
        %v1003 = vpop.f32.mrb[0].mxu0
        %v1004 = vadd.f32 0.0, %v1003
        %v1005 = vpop.f32.mrb[0].mxu0
        %v1006 = vadd.f32 0.0, %v1005
        %v1007 = vpop.f32.mrb[0].mxu0
        %v1008 = vadd.f32 0.0, %v1007
        %v1009 = vpop.f32.mrb[0].mxu0
        %v1010 = vadd.f32 0.0, %v1009
        %1011 = vmatprep.mubr.bf16.mxu0 0
        %1012 = vmatmul.mubr.bf16.gmra.mrb[0].mxu0 %v914
        %v1013 = vpop.f32.mrb[0].mxu0
        %v1014 = vadd.f32 0.0, %v1013
        %v1015 = vpop.f32.mrb[0].mxu0
        %v1016 = vadd.f32 0.0, %v1015
        %v1017 = vpop.f32.mrb[0].mxu0
        %v1018 = vadd.f32 0.0, %v1017
        %v1019 = vpop.f32.mrb[0].mxu0
        %v1020 = vadd.f32 0.0, %v1019
        %1021 = vdwg.mxu0
        %1022 = vmatprep.subr.bf16.mxu0 %v818
        %1023 = vmatpush1.bf16.msra.mxu0 %v817
        %1024 = vmatprep.subr.bf16.mxu0 %v826
        %1025 = vmatpush1.bf16.msra.mxu0 %v825
        %1026 = vmatprep.subr.bf16.mxu0 %v834
        %1027 = vmatpush1.bf16.msra.mxu0 %v833
        %1028 = vmatprep.subr.bf16.mxu0 %v842
        %1029 = vmatpush1.bf16.msra.mxu0 %v841
        %1030 = vmatprep.subr.bf16.mxu0 %v850
        %1031 = vmatpush1.bf16.msra.mxu0 %v849
        %1032 = vmatprep.subr.bf16.mxu0 %v858
        %1033 = vmatpush1.bf16.msra.mxu0 %v857
        %1034 = vmatprep.subr.bf16.mxu0 0
        %1035 = vmatpush1.bf16.msra.mxu0 0
        %1036 = vmatprep.subr.bf16.mxu0 0
        %1037 = vmatpush1.bf16.msra.mxu0 0
        %1038 = vmatprep.subr.bf16.mxu0 0
        %1039 = vmatpush1.bf16.msra.mxu0 0
        %1040 = vmatprep.subr.bf16.mxu0 0
        %1041 = vmatpush1.bf16.msra.mxu0 0
        %1042 = vmatprep.subr.bf16.mxu0 0
        %1043 = vmatpush1.bf16.msra.mxu0 0
        %1044 = vmatprep.subr.bf16.mxu0 0
        %1045 = vmatpush1.bf16.msra.mxu0 0
        %1046 = vmatprep.subr.bf16.mxu0 0
        %1047 = vmatpush1.bf16.msra.mxu0 0
        %1048 = vmatprep.subr.bf16.mxu0 0
        %1049 = vmatpush1.bf16.msra.mxu0 0
        %1050 = vmatprep.subr.bf16.mxu0 0
        %1051 = vmatpush1.bf16.msra.mxu0 0
        %1052 = vmatprep.subr.bf16.mxu0 0
        %1053 = vmatpush1.bf16.msra.mxu0 0
        %1054 = vmatprep.mubr.bf16.mxu0 0
        %1055 = vmatmul.mubr.bf16.gmra.mrb[0].mxu0 %v911
        %v1056 = vpop.f32.mrb[0].mxu0
        %v1057 = vadd.f32 0.0, %v1056
        %v1058 = vpop.f32.mrb[0].mxu0
        %v1059 = vadd.f32 0.0, %v1058
        %v1060 = vpop.f32.mrb[0].mxu0
        %v1061 = vadd.f32 0.0, %v1060
        %v1062 = vpop.f32.mrb[0].mxu0
        %v1063 = vadd.f32 0.0, %v1062
        %1064 = vmatprep.mubr.bf16.mxu0 0
        %1065 = vmatmul.mubr.bf16.gmra.mrb[0].mxu0 %v914
        %v1066 = vpop.f32.mrb[0].mxu0
        %v1067 = vadd.f32 0.0, %v1066
        %v1068 = vpop.f32.mrb[0].mxu0
        %v1069 = vadd.f32 0.0, %v1068
        %v1070 = vpop.f32.mrb[0].mxu0
        %v1071 = vadd.f32 0.0, %v1070
        %v1072 = vpop.f32.mrb[0].mxu0
        %v1073 = vadd.f32 0.0, %v1072
        %1074 = vdwg.mxu0
        %1075 = vmatprep.subr.bf16.mxu0 %v820
        %1076 = vmatpush1.bf16.msra.mxu0 %v819
        %1077 = vmatprep.subr.bf16.mxu0 %v828
        %1078 = vmatpush1.bf16.msra.mxu0 %v827
        %1079 = vmatprep.subr.bf16.mxu0 %v836
        %1080 = vmatpush1.bf16.msra.mxu0 %v835
        %1081 = vmatprep.subr.bf16.mxu0 %v844
        %1082 = vmatpush1.bf16.msra.mxu0 %v843
        %1083 = vmatprep.subr.bf16.mxu0 %v852
        %1084 = vmatpush1.bf16.msra.mxu0 %v851
        %1085 = vmatprep.subr.bf16.mxu0 %v860
        %1086 = vmatpush1.bf16.msra.mxu0 %v859
        %1087 = vmatprep.subr.bf16.mxu0 0
        %1088 = vmatpush1.bf16.msra.mxu0 0
        %1089 = vmatprep.subr.bf16.mxu0 0
        %1090 = vmatpush1.bf16.msra.mxu0 0
        %1091 = vmatprep.subr.bf16.mxu0 0
        %1092 = vmatpush1.bf16.msra.mxu0 0
        %1093 = vmatprep.subr.bf16.mxu0 0
        %1094 = vmatpush1.bf16.msra.mxu0 0
        %1095 = vmatprep.subr.bf16.mxu0 0
        %1096 = vmatpush1.bf16.msra.mxu0 0
        %1097 = vmatprep.subr.bf16.mxu0 0
        %1098 = vmatpush1.bf16.msra.mxu0 0
        %1099 = vmatprep.subr.bf16.mxu0 0
        %1100 = vmatpush1.bf16.msra.mxu0 0
        %1101 = vmatprep.subr.bf16.mxu0 0
        %1102 = vmatpush1.bf16.msra.mxu0 0
        %1103 = vmatprep.subr.bf16.mxu0 0
        %1104 = vmatpush1.bf16.msra.mxu0 0
        %1105 = vmatprep.subr.bf16.mxu0 0
        %1106 = vmatpush1.bf16.msra.mxu0 0
        %1107 = vmatprep.mubr.bf16.mxu0 0
        %1108 = vmatmul.mubr.bf16.gmra.mrb[0].mxu0 %v911
        %v1109 = vpop.f32.mrb[0].mxu0
        %v1110 = vadd.f32 0.0, %v1109
        %v1111 = vpop.f32.mrb[0].mxu0
        %v1112 = vadd.f32 0.0, %v1111
        %v1113 = vpop.f32.mrb[0].mxu0
        %v1114 = vadd.f32 0.0, %v1113
        %v1115 = vpop.f32.mrb[0].mxu0
        %v1116 = vadd.f32 0.0, %v1115
        %1117 = vmatprep.mubr.bf16.mxu0 0
        %1118 = vmatmul.mubr.bf16.gmra.mrb[0].mxu0 %v914
        %v1119 = vpop.f32.mrb[0].mxu0
        %v1120 = vadd.f32 0.0, %v1119
        %v1121 = vpop.f32.mrb[0].mxu0
        %v1122 = vadd.f32 0.0, %v1121
        %v1123 = vpop.f32.mrb[0].mxu0
        %v1124 = vadd.f32 0.0, %v1123
        %v1125 = vpop.f32.mrb[0].mxu0
        %v1126 = vadd.f32 0.0, %v1125
        %1127 = vdwg.mxu0
        %v1176 = vunpack.c.l.b16 %v537
        %v1177 = vunpack.c.h.b16 %v537
        %v1178 = vunpack.c.l.b16 %v538
        %v1179 = vunpack.c.h.b16 %v538
        %v1180 = vunpack.c.l.b16 %v539
        %v1181 = vunpack.c.h.b16 %v539
        %v1182 = vunpack.c.l.b16 %v540
        %v1183 = vunpack.c.h.b16 %v540
        %v1184 = vunpack.c.l.b16 %v541
        %v1185 = vunpack.c.h.b16 %v541
        %v1186 = vunpack.c.l.b16 %v542
        %v1187 = vunpack.c.h.b16 %v542
        %v1188 = vunpack.c.l.b16 %v543
        %v1189 = vunpack.c.h.b16 %v543
        %v1190 = vunpack.c.l.b16 %v544
        %v1191 = vunpack.c.h.b16 %v544
        %v1192 = vunpack.c.l.b16 %v545
        %v1193 = vunpack.c.h.b16 %v545
        %v1194 = vunpack.c.l.b16 %v546
        %v1195 = vunpack.c.h.b16 %v546
        %v1196 = vunpack.c.l.b16 %v547
        %v1197 = vunpack.c.h.b16 %v547
        %v1198 = vunpack.c.l.b16 %v548
        %v1199 = vunpack.c.h.b16 %v548
        %v1200 = vunpack.c.l.b16 %v549
        %v1201 = vunpack.c.h.b16 %v549
        %v1202 = vunpack.c.l.b16 %v550
        %v1203 = vunpack.c.h.b16 %v550
        %v1204 = vunpack.c.l.b16 %v551
        %v1205 = vunpack.c.h.b16 %v551
        %v1206 = vunpack.c.l.b16 %v552
        %v1207 = vunpack.c.h.b16 %v552
        %v1208 = vunpack.c.l.b16 %v553
        %v1209 = vunpack.c.h.b16 %v553
        %v1210 = vunpack.c.l.b16 %v554
        %v1211 = vunpack.c.h.b16 %v554
        %v1212 = vunpack.c.l.b16 %v555
        %v1213 = vunpack.c.h.b16 %v555
        %v1214 = vunpack.c.l.b16 %v556
        %v1215 = vunpack.c.h.b16 %v556
        %v1216 = vunpack.c.l.b16 %v557
        %v1217 = vunpack.c.h.b16 %v557
        %v1218 = vunpack.c.l.b16 %v558
        %v1219 = vunpack.c.h.b16 %v558
        %v1220 = vunpack.c.l.b16 %v559
        %v1221 = vunpack.c.h.b16 %v559
        %v1222 = vunpack.c.l.b16 %v560
        %v1223 = vunpack.c.h.b16 %v560
        %v1224 = vunpack.c.l.b16 %v561
        %v1225 = vunpack.c.h.b16 %v561
        %v1226 = vunpack.c.l.b16 %v562
        %v1227 = vunpack.c.h.b16 %v562
        %v1228 = vunpack.c.l.b16 %v563
        %v1229 = vunpack.c.h.b16 %v563
        %v1230 = vunpack.c.l.b16 %v564
        %v1231 = vunpack.c.h.b16 %v564
        %v1232 = vunpack.c.l.b16 %v565
        %v1233 = vunpack.c.h.b16 %v565
        %v1234 = vunpack.c.l.b16 %v566
        %v1235 = vunpack.c.h.b16 %v566
        %v1236 = vunpack.c.l.b16 %v567
        %v1237 = vunpack.c.h.b16 %v567
        %v1238 = vunpack.c.l.b16 %v568
        %v1239 = vunpack.c.h.b16 %v568
        %v1240 = vunpack.c.l.b16 %v569
        %v1241 = vunpack.c.h.b16 %v569
        %v1242 = vunpack.c.l.b16 %v570
        %v1243 = vunpack.c.h.b16 %v570
        %v1244 = vunpack.c.l.b16 %v571
        %v1245 = vunpack.c.h.b16 %v571
        %v1246 = vunpack.c.l.b16 %v572
        %v1247 = vunpack.c.h.b16 %v572
        %v1248 = vunpack.c.l.b16 %v573
        %v1249 = vunpack.c.h.b16 %v573
        %v1250 = vunpack.c.l.b16 %v574
        %v1251 = vunpack.c.h.b16 %v574
        %v1252 = vunpack.c.l.b16 %v575
        %v1253 = vunpack.c.h.b16 %v575
        %v1254 = vunpack.c.l.b16 %v576
        %v1255 = vunpack.c.h.b16 %v576
        %v1256 = vunpack.c.l.b16 %v577
        %v1257 = vunpack.c.h.b16 %v577
        %v1258 = vunpack.c.l.b16 %v578
        %v1259 = vunpack.c.h.b16 %v578
        %v1260 = vunpack.c.l.b16 %v579
        %v1261 = vunpack.c.h.b16 %v579
        %v1262 = vunpack.c.l.b16 %v580
        %v1263 = vunpack.c.h.b16 %v580
        %v1264 = vunpack.c.l.b16 %v581
        %v1265 = vunpack.c.h.b16 %v581
        %v1266 = vunpack.c.l.b16 %v582
        %v1267 = vunpack.c.h.b16 %v582
        %v1268 = vunpack.c.l.b16 %v583
        %v1269 = vunpack.c.h.b16 %v583
        %v1270 = vunpack.c.l.b16 %v584
        %v1271 = vunpack.c.h.b16 %v584
        %v1272 = vpack.c.b16 %v1184, %v1176
        %v1273 = vpack.c.b16 %v1185, %v1177
        %v1274 = vpack.c.b16 %v1186, %v1178
        %v1275 = vpack.c.b16 %v1187, %v1179
        %v1276 = vpack.c.b16 %v1188, %v1180
        %v1277 = vpack.c.b16 %v1189, %v1181
        %v1278 = vpack.c.b16 %v1190, %v1182
        %v1279 = vpack.c.b16 %v1191, %v1183
        %v1280 = vpack.c.b16 %v1200, %v1192
        %v1281 = vpack.c.b16 %v1201, %v1193
        %v1282 = vpack.c.b16 %v1202, %v1194
        %v1283 = vpack.c.b16 %v1203, %v1195
        %v1284 = vpack.c.b16 %v1204, %v1196
        %v1285 = vpack.c.b16 %v1205, %v1197
        %v1286 = vpack.c.b16 %v1206, %v1198
        %v1287 = vpack.c.b16 %v1207, %v1199
        %v1288 = vpack.c.b16 %v1216, %v1208
        %v1289 = vpack.c.b16 %v1217, %v1209
        %v1290 = vpack.c.b16 %v1218, %v1210
        %v1291 = vpack.c.b16 %v1219, %v1211
        %v1292 = vpack.c.b16 %v1220, %v1212
        %v1293 = vpack.c.b16 %v1221, %v1213
        %v1294 = vpack.c.b16 %v1222, %v1214
        %v1295 = vpack.c.b16 %v1223, %v1215
        %v1296 = vpack.c.b16 %v1232, %v1224
        %v1297 = vpack.c.b16 %v1233, %v1225
        %v1298 = vpack.c.b16 %v1234, %v1226
        %v1299 = vpack.c.b16 %v1235, %v1227
        %v1300 = vpack.c.b16 %v1236, %v1228
        %v1301 = vpack.c.b16 %v1237, %v1229
        %v1302 = vpack.c.b16 %v1238, %v1230
        %v1303 = vpack.c.b16 %v1239, %v1231
        %v1304 = vpack.c.b16 %v1248, %v1240
        %v1305 = vpack.c.b16 %v1249, %v1241
        %v1306 = vpack.c.b16 %v1250, %v1242
        %v1307 = vpack.c.b16 %v1251, %v1243
        %v1308 = vpack.c.b16 %v1252, %v1244
        %v1309 = vpack.c.b16 %v1253, %v1245
        %v1310 = vpack.c.b16 %v1254, %v1246
        %v1311 = vpack.c.b16 %v1255, %v1247
        %v1312 = vpack.c.b16 %v1264, %v1256
        %v1313 = vpack.c.b16 %v1265, %v1257
        %v1314 = vpack.c.b16 %v1266, %v1258
        %v1315 = vpack.c.b16 %v1267, %v1259
        %v1316 = vpack.c.b16 %v1268, %v1260
        %v1317 = vpack.c.b16 %v1269, %v1261
        %v1318 = vpack.c.b16 %v1270, %v1262
        %v1319 = vpack.c.b16 %v1271, %v1263
        %v1368 = vsel %vm909, %v645, 0
        %v1370 = vsel %vm909, %v646, 0
        %1372 = vmatprep.subr.bf16.mxu0 %v1273
        %1373 = vmatpush1.bf16.msra.mxu0 %v1272
        %1374 = vmatprep.subr.bf16.mxu0 %v1281
        %1375 = vmatpush1.bf16.msra.mxu0 %v1280
        %1376 = vmatprep.subr.bf16.mxu0 %v1289
        %1377 = vmatpush1.bf16.msra.mxu0 %v1288
        %1378 = vmatprep.subr.bf16.mxu0 %v1297
        %1379 = vmatpush1.bf16.msra.mxu0 %v1296
        %1380 = vmatprep.subr.bf16.mxu0 %v1305
        %1381 = vmatpush1.bf16.msra.mxu0 %v1304
        %1382 = vmatprep.subr.bf16.mxu0 %v1313
        %1383 = vmatpush1.bf16.msra.mxu0 %v1312
        %1384 = vmatprep.subr.bf16.mxu0 0
        %1385 = vmatpush1.bf16.msra.mxu0 0
        %1386 = vmatprep.subr.bf16.mxu0 0
        %1387 = vmatpush1.bf16.msra.mxu0 0
        %1388 = vmatprep.subr.bf16.mxu0 0
        %1389 = vmatpush1.bf16.msra.mxu0 0
        %1390 = vmatprep.subr.bf16.mxu0 0
        %1391 = vmatpush1.bf16.msra.mxu0 0
        %1392 = vmatprep.subr.bf16.mxu0 0
        %1393 = vmatpush1.bf16.msra.mxu0 0
        %1394 = vmatprep.subr.bf16.mxu0 0
        %1395 = vmatpush1.bf16.msra.mxu0 0
        %1396 = vmatprep.subr.bf16.mxu0 0
        %1397 = vmatpush1.bf16.msra.mxu0 0
        %1398 = vmatprep.subr.bf16.mxu0 0
        %1399 = vmatpush1.bf16.msra.mxu0 0
        %1400 = vmatprep.subr.bf16.mxu0 0
        %1401 = vmatpush1.bf16.msra.mxu0 0
        %1402 = vmatprep.subr.bf16.mxu0 0
        %1403 = vmatpush1.bf16.msra.mxu0 0
        %1404 = vmatprep.mubr.bf16.mxu0 0
        %1405 = vmatmul.mubr.bf16.gmra.mrb[0].mxu0 %v1368
        %v1406 = vpop.f32.mrb[0].mxu0
        %v1407 = vadd.f32 %v951, %v1406
        %v1408 = vpop.f32.mrb[0].mxu0
        %v1409 = vadd.f32 %v953, %v1408
        %v1410 = vpop.f32.mrb[0].mxu0
        %v1411 = vadd.f32 %v955, %v1410
        %v1412 = vpop.f32.mrb[0].mxu0
        %v1413 = vadd.f32 %v957, %v1412
        %1414 = vmatprep.mubr.bf16.mxu0 0
        %1415 = vmatmul.mubr.bf16.gmra.mrb[0].mxu0 %v1370
        %v1416 = vpop.f32.mrb[0].mxu0
        %v1417 = vadd.f32 %v961, %v1416
        %v1418 = vpop.f32.mrb[0].mxu0
        %v1419 = vadd.f32 %v963, %v1418
        %v1420 = vpop.f32.mrb[0].mxu0
        %v1421 = vadd.f32 %v965, %v1420
        %v1422 = vpop.f32.mrb[0].mxu0
        %v1423 = vadd.f32 %v967, %v1422
        %1424 = vdwg.mxu0
        %1425 = vmatprep.subr.bf16.mxu0 %v1275
        %1426 = vmatpush1.bf16.msra.mxu0 %v1274
        %1427 = vmatprep.subr.bf16.mxu0 %v1283
        %1428 = vmatpush1.bf16.msra.mxu0 %v1282
        %1429 = vmatprep.subr.bf16.mxu0 %v1291
        %1430 = vmatpush1.bf16.msra.mxu0 %v1290
        %1431 = vmatprep.subr.bf16.mxu0 %v1299
        %1432 = vmatpush1.bf16.msra.mxu0 %v1298
        %1433 = vmatprep.subr.bf16.mxu0 %v1307
        %1434 = vmatpush1.bf16.msra.mxu0 %v1306
        %1435 = vmatprep.subr.bf16.mxu0 %v1315
        %1436 = vmatpush1.bf16.msra.mxu0 %v1314
        %1437 = vmatprep.subr.bf16.mxu0 0
        %1438 = vmatpush1.bf16.msra.mxu0 0
        %1439 = vmatprep.subr.bf16.mxu0 0
        %1440 = vmatpush1.bf16.msra.mxu0 0
        %1441 = vmatprep.subr.bf16.mxu0 0
        %1442 = vmatpush1.bf16.msra.mxu0 0
        %1443 = vmatprep.subr.bf16.mxu0 0
        %1444 = vmatpush1.bf16.msra.mxu0 0
        %1445 = vmatprep.subr.bf16.mxu0 0
        %1446 = vmatpush1.bf16.msra.mxu0 0
        %1447 = vmatprep.subr.bf16.mxu0 0
        %1448 = vmatpush1.bf16.msra.mxu0 0
        %1449 = vmatprep.subr.bf16.mxu0 0
        %1450 = vmatpush1.bf16.msra.mxu0 0
        %1451 = vmatprep.subr.bf16.mxu0 0
        %1452 = vmatpush1.bf16.msra.mxu0 0
        %1453 = vmatprep.subr.bf16.mxu0 0
        %1454 = vmatpush1.bf16.msra.mxu0 0
        %1455 = vmatprep.subr.bf16.mxu0 0
        %1456 = vmatpush1.bf16.msra.mxu0 0
        %1457 = vmatprep.mubr.bf16.mxu0 0
        %1458 = vmatmul.mubr.bf16.gmra.mrb[0].mxu0 %v1368
        %v1459 = vpop.f32.mrb[0].mxu0
        %v1460 = vadd.f32 %v1004, %v1459
        %v1461 = vpop.f32.mrb[0].mxu0
        %v1462 = vadd.f32 %v1006, %v1461
        %v1463 = vpop.f32.mrb[0].mxu0
        %v1464 = vadd.f32 %v1008, %v1463
        %v1465 = vpop.f32.mrb[0].mxu0
        %v1466 = vadd.f32 %v1010, %v1465
        %1467 = vmatprep.mubr.bf16.mxu0 0
        %1468 = vmatmul.mubr.bf16.gmra.mrb[0].mxu0 %v1370
        %v1469 = vpop.f32.mrb[0].mxu0
        %v1470 = vadd.f32 %v1014, %v1469
        %v1471 = vpop.f32.mrb[0].mxu0
        %v1472 = vadd.f32 %v1016, %v1471
        %v1473 = vpop.f32.mrb[0].mxu0
        %v1474 = vadd.f32 %v1018, %v1473
        %v1475 = vpop.f32.mrb[0].mxu0
        %v1476 = vadd.f32 %v1020, %v1475
        %1477 = vdwg.mxu0
        %1478 = vmatprep.subr.bf16.mxu0 %v1277
        %1479 = vmatpush1.bf16.msra.mxu0 %v1276
        %1480 = vmatprep.subr.bf16.mxu0 %v1285
        %1481 = vmatpush1.bf16.msra.mxu0 %v1284
        %1482 = vmatprep.subr.bf16.mxu0 %v1293
        %1483 = vmatpush1.bf16.msra.mxu0 %v1292
        %1484 = vmatprep.subr.bf16.mxu0 %v1301
        %1485 = vmatpush1.bf16.msra.mxu0 %v1300
        %1486 = vmatprep.subr.bf16.mxu0 %v1309
        %1487 = vmatpush1.bf16.msra.mxu0 %v1308
        %1488 = vmatprep.subr.bf16.mxu0 %v1317
        %1489 = vmatpush1.bf16.msra.mxu0 %v1316
        %1490 = vmatprep.subr.bf16.mxu0 0
        %1491 = vmatpush1.bf16.msra.mxu0 0
        %1492 = vmatprep.subr.bf16.mxu0 0
        %1493 = vmatpush1.bf16.msra.mxu0 0
        %1494 = vmatprep.subr.bf16.mxu0 0
        %1495 = vmatpush1.bf16.msra.mxu0 0
        %1496 = vmatprep.subr.bf16.mxu0 0
        %1497 = vmatpush1.bf16.msra.mxu0 0
        %1498 = vmatprep.subr.bf16.mxu0 0
        %1499 = vmatpush1.bf16.msra.mxu0 0
        %1500 = vmatprep.subr.bf16.mxu0 0
        %1501 = vmatpush1.bf16.msra.mxu0 0
        %1502 = vmatprep.subr.bf16.mxu0 0
        %1503 = vmatpush1.bf16.msra.mxu0 0
        %1504 = vmatprep.subr.bf16.mxu0 0
        %1505 = vmatpush1.bf16.msra.mxu0 0
        %1506 = vmatprep.subr.bf16.mxu0 0
        %1507 = vmatpush1.bf16.msra.mxu0 0
        %1508 = vmatprep.subr.bf16.mxu0 0
        %1509 = vmatpush1.bf16.msra.mxu0 0
        %1510 = vmatprep.mubr.bf16.mxu0 0
        %1511 = vmatmul.mubr.bf16.gmra.mrb[0].mxu0 %v1368
        %v1512 = vpop.f32.mrb[0].mxu0
        %v1513 = vadd.f32 %v1057, %v1512
        %v1514 = vpop.f32.mrb[0].mxu0
        %v1515 = vadd.f32 %v1059, %v1514
        %v1516 = vpop.f32.mrb[0].mxu0
        %v1517 = vadd.f32 %v1061, %v1516
        %v1518 = vpop.f32.mrb[0].mxu0
        %v1519 = vadd.f32 %v1063, %v1518
        %1520 = vmatprep.mubr.bf16.mxu0 0
        %1521 = vmatmul.mubr.bf16.gmra.mrb[0].mxu0 %v1370
        %v1522 = vpop.f32.mrb[0].mxu0
        %v1523 = vadd.f32 %v1067, %v1522
        %v1524 = vpop.f32.mrb[0].mxu0
        %v1525 = vadd.f32 %v1069, %v1524
        %v1526 = vpop.f32.mrb[0].mxu0
        %v1527 = vadd.f32 %v1071, %v1526
        %v1528 = vpop.f32.mrb[0].mxu0
        %v1529 = vadd.f32 %v1073, %v1528
        %1530 = vdwg.mxu0
        %1531 = vmatprep.subr.bf16.mxu0 %v1279
        %1532 = vmatpush1.bf16.msra.mxu0 %v1278
        %1533 = vmatprep.subr.bf16.mxu0 %v1287
        %1534 = vmatpush1.bf16.msra.mxu0 %v1286
        %1535 = vmatprep.subr.bf16.mxu0 %v1295
        %1536 = vmatpush1.bf16.msra.mxu0 %v1294
        %1537 = vmatprep.subr.bf16.mxu0 %v1303
        %1538 = vmatpush1.bf16.msra.mxu0 %v1302
        %1539 = vmatprep.subr.bf16.mxu0 %v1311
        %1540 = vmatpush1.bf16.msra.mxu0 %v1310
        %1541 = vmatprep.subr.bf16.mxu0 %v1319
        %1542 = vmatpush1.bf16.msra.mxu0 %v1318
        %1543 = vmatprep.subr.bf16.mxu0 0
        %1544 = vmatpush1.bf16.msra.mxu0 0
        %1545 = vmatprep.subr.bf16.mxu0 0
        %1546 = vmatpush1.bf16.msra.mxu0 0
        %1547 = vmatprep.subr.bf16.mxu0 0
        %1548 = vmatpush1.bf16.msra.mxu0 0
        %1549 = vmatprep.subr.bf16.mxu0 0
        %1550 = vmatpush1.bf16.msra.mxu0 0
        %1551 = vmatprep.subr.bf16.mxu0 0
        %1552 = vmatpush1.bf16.msra.mxu0 0
        %1553 = vmatprep.subr.bf16.mxu0 0
        %1554 = vmatpush1.bf16.msra.mxu0 0
        %1555 = vmatprep.subr.bf16.mxu0 0
        %1556 = vmatpush1.bf16.msra.mxu0 0
        %1557 = vmatprep.subr.bf16.mxu0 0
        %1558 = vmatpush1.bf16.msra.mxu0 0
        %1559 = vmatprep.subr.bf16.mxu0 0
        %1560 = vmatpush1.bf16.msra.mxu0 0
        %1561 = vmatprep.subr.bf16.mxu0 0
        %1562 = vmatpush1.bf16.msra.mxu0 0
        %1563 = vmatprep.mubr.bf16.mxu0 0
        %1564 = vmatmul.mubr.bf16.gmra.mrb[0].mxu0 %v1368
        %v1565 = vpop.f32.mrb[0].mxu0
        %v1566 = vadd.f32 %v1110, %v1565
        %v1567 = vpop.f32.mrb[0].mxu0
        %v1568 = vadd.f32 %v1112, %v1567
        %v1569 = vpop.f32.mrb[0].mxu0
        %v1570 = vadd.f32 %v1114, %v1569
        %v1571 = vpop.f32.mrb[0].mxu0
        %v1572 = vadd.f32 %v1116, %v1571
        %1573 = vmatprep.mubr.bf16.mxu0 0
        %1574 = vmatmul.mubr.bf16.gmra.mrb[0].mxu0 %v1370
        %v1575 = vpop.f32.mrb[0].mxu0
        %v1576 = vadd.f32 %v1120, %v1575
        %v1577 = vpop.f32.mrb[0].mxu0
        %v1578 = vadd.f32 %v1122, %v1577
        %v1579 = vpop.f32.mrb[0].mxu0
        %v1580 = vadd.f32 %v1124, %v1579
        %v1581 = vpop.f32.mrb[0].mxu0
        %v1582 = vadd.f32 %v1126, %v1581
        %1583 = vdwg.mxu0
        %v1584 = vld [vmem:[#allocation2] sm:$0xe]
        %s1585 = scalar_lea.vmem [#allocation5], 768
        %v1586 = vld [vmem:[%s1585] sm:$0xff]
        %v1587 = vld [vmem:[%s1585 + $0x8] sm:$0xff]
        %v1588 = vld [vmem:[%s1585 + $0x10] sm:$0xff]
        %v1589 = vld [vmem:[%s1585 + $0x18] sm:$0xff]
        %v1590 = vld [vmem:[%s1585 + $0x20] sm:$0xff]
        %v1591 = vld [vmem:[%s1585 + $0x28] sm:$0xff]
        %v1592 = vld [vmem:[%s1585 + $0x30] sm:$0xff]
        %v1593 = vld [vmem:[%s1585 + $0x38] sm:$0xff]
        %v1594 = vld [vmem:[%s1585 + $0x40] sm:$0xff]
        %v1595 = vld [vmem:[%s1585 + $0x48] sm:$0xff]
        %v1596 = vld [vmem:[%s1585 + $0x50] sm:$0xff]
        %v1597 = vld [vmem:[%s1585 + $0x58] sm:$0xff]
        %v1598 = vld [vmem:[%s1585 + $0x60] sm:$0xff]
        %v1599 = vld [vmem:[%s1585 + $0x68] sm:$0xff]
        %v1600 = vld [vmem:[%s1585 + $0x70] sm:$0xff]
        %v1601 = vld [vmem:[%s1585 + $0x78] sm:$0xff]
        %v1602 = vld [vmem:[%s1585 + $0x80] sm:$0xff]
        %v1603 = vld [vmem:[%s1585 + $0x88] sm:$0xff]
        %v1604 = vld [vmem:[%s1585 + $0x90] sm:$0xff]
        %v1605 = vld [vmem:[%s1585 + $0x98] sm:$0xff]
        %v1606 = vld [vmem:[%s1585 + $0xa0] sm:$0xff]
        %v1607 = vld [vmem:[%s1585 + $0xa8] sm:$0xff]
        %v1608 = vld [vmem:[%s1585 + $0xb0] sm:$0xff]
        %v1609 = vld [vmem:[%s1585 + $0xb8] sm:$0xff]
        %v1610 = vld [vmem:[%s1585 + $0xc0] sm:$0xff]
        %v1611 = vld [vmem:[%s1585 + $0xc8] sm:$0xff]
        %v1612 = vld [vmem:[%s1585 + $0xd0] sm:$0xff]
        %v1613 = vld [vmem:[%s1585 + $0xd8] sm:$0xff]
        %v1614 = vld [vmem:[%s1585 + $0xe0] sm:$0xff]
        %v1615 = vld [vmem:[%s1585 + $0xe8] sm:$0xff]
        %v1616 = vld [vmem:[%s1585 + $0xf0] sm:$0xff]
        %v1617 = vld [vmem:[%s1585 + $0xf8] sm:$0xff]
        %v1618 = vld [vmem:[%s1585 + $0x100] sm:$0xff]
        %v1619 = vld [vmem:[%s1585 + $0x108] sm:$0xff]
        %v1620 = vld [vmem:[%s1585 + $0x110] sm:$0xff]
        %v1621 = vld [vmem:[%s1585 + $0x118] sm:$0xff]
        %v1622 = vld [vmem:[%s1585 + $0x120] sm:$0xff]
        %v1623 = vld [vmem:[%s1585 + $0x128] sm:$0xff]
        %v1624 = vld [vmem:[%s1585 + $0x130] sm:$0xff]
        %v1625 = vld [vmem:[%s1585 + $0x138] sm:$0xff]
        %v1626 = vld [vmem:[%s1585 + $0x140] sm:$0xff]
        %v1627 = vld [vmem:[%s1585 + $0x148] sm:$0xff]
        %v1628 = vld [vmem:[%s1585 + $0x150] sm:$0xff]
        %v1629 = vld [vmem:[%s1585 + $0x158] sm:$0xff]
        %v1630 = vld [vmem:[%s1585 + $0x160] sm:$0xff]
        %v1631 = vld [vmem:[%s1585 + $0x168] sm:$0xff]
        %v1632 = vld [vmem:[%s1585 + $0x170] sm:$0xff]
        %v1633 = vld [vmem:[%s1585 + $0x178] sm:$0xff]
        %v1635 = vunpack.c.l.b16 %v1584
        %v1636 = vpack.c.b16 %v641, %v1635
        %vm1637 = vcmask 1046528
        %v1638 = vrot.slane %v1636, 1
        %v1639 = vrot.slane %v646, 1
        %v1640 = vsel %vm1637, %v1638, %v1639
        %v1641 = vrot.slane %v647, 1
        %v1642 = vsel %vm1637, %v1639, %v1641
        %v1691 = vunpack.c.l.b16 %v1586
        %v1692 = vunpack.c.h.b16 %v1586
        %v1693 = vunpack.c.l.b16 %v1587
        %v1694 = vunpack.c.h.b16 %v1587
        %v1695 = vunpack.c.l.b16 %v1588
        %v1696 = vunpack.c.h.b16 %v1588
        %v1697 = vunpack.c.l.b16 %v1589
        %v1698 = vunpack.c.h.b16 %v1589
        %v1699 = vunpack.c.l.b16 %v1590
        %v1700 = vunpack.c.h.b16 %v1590
        %v1701 = vunpack.c.l.b16 %v1591
        %v1702 = vunpack.c.h.b16 %v1591
        %v1703 = vunpack.c.l.b16 %v1592
        %v1704 = vunpack.c.h.b16 %v1592
        %v1705 = vunpack.c.l.b16 %v1593
        %v1706 = vunpack.c.h.b16 %v1593
        %v1707 = vunpack.c.l.b16 %v1594
        %v1708 = vunpack.c.h.b16 %v1594
        %v1709 = vunpack.c.l.b16 %v1595
        %v1710 = vunpack.c.h.b16 %v1595
        %v1711 = vunpack.c.l.b16 %v1596
        %v1712 = vunpack.c.h.b16 %v1596
        %v1713 = vunpack.c.l.b16 %v1597
        %v1714 = vunpack.c.h.b16 %v1597
        %v1715 = vunpack.c.l.b16 %v1598
        %v1716 = vunpack.c.h.b16 %v1598
        %v1717 = vunpack.c.l.b16 %v1599
        %v1718 = vunpack.c.h.b16 %v1599
        %v1719 = vunpack.c.l.b16 %v1600
        %v1720 = vunpack.c.h.b16 %v1600
        %v1721 = vunpack.c.l.b16 %v1601
        %v1722 = vunpack.c.h.b16 %v1601
        %v1723 = vunpack.c.l.b16 %v1602
        %v1724 = vunpack.c.h.b16 %v1602
        %v1725 = vunpack.c.l.b16 %v1603
        %v1726 = vunpack.c.h.b16 %v1603
        %v1727 = vunpack.c.l.b16 %v1604
        %v1728 = vunpack.c.h.b16 %v1604
        %v1729 = vunpack.c.l.b16 %v1605
        %v1730 = vunpack.c.h.b16 %v1605
        %v1731 = vunpack.c.l.b16 %v1606
        %v1732 = vunpack.c.h.b16 %v1606
        %v1733 = vunpack.c.l.b16 %v1607
        %v1734 = vunpack.c.h.b16 %v1607
        %v1735 = vunpack.c.l.b16 %v1608
        %v1736 = vunpack.c.h.b16 %v1608
        %v1737 = vunpack.c.l.b16 %v1609
        %v1738 = vunpack.c.h.b16 %v1609
        %v1739 = vunpack.c.l.b16 %v1610
        %v1740 = vunpack.c.h.b16 %v1610
        %v1741 = vunpack.c.l.b16 %v1611
        %v1742 = vunpack.c.h.b16 %v1611
        %v1743 = vunpack.c.l.b16 %v1612
        %v1744 = vunpack.c.h.b16 %v1612
        %v1745 = vunpack.c.l.b16 %v1613
        %v1746 = vunpack.c.h.b16 %v1613
        %v1747 = vunpack.c.l.b16 %v1614
        %v1748 = vunpack.c.h.b16 %v1614
        %v1749 = vunpack.c.l.b16 %v1615
        %v1750 = vunpack.c.h.b16 %v1615
        %v1751 = vunpack.c.l.b16 %v1616
        %v1752 = vunpack.c.h.b16 %v1616
        %v1753 = vunpack.c.l.b16 %v1617
        %v1754 = vunpack.c.h.b16 %v1617
        %v1755 = vunpack.c.l.b16 %v1618
        %v1756 = vunpack.c.h.b16 %v1618
        %v1757 = vunpack.c.l.b16 %v1619
        %v1758 = vunpack.c.h.b16 %v1619
        %v1759 = vunpack.c.l.b16 %v1620
        %v1760 = vunpack.c.h.b16 %v1620
        %v1761 = vunpack.c.l.b16 %v1621
        %v1762 = vunpack.c.h.b16 %v1621
        %v1763 = vunpack.c.l.b16 %v1622
        %v1764 = vunpack.c.h.b16 %v1622
        %v1765 = vunpack.c.l.b16 %v1623
        %v1766 = vunpack.c.h.b16 %v1623
        %v1767 = vunpack.c.l.b16 %v1624
        %v1768 = vunpack.c.h.b16 %v1624
        %v1769 = vunpack.c.l.b16 %v1625
        %v1770 = vunpack.c.h.b16 %v1625
        %v1771 = vunpack.c.l.b16 %v1626
        %v1772 = vunpack.c.h.b16 %v1626
        %v1773 = vunpack.c.l.b16 %v1627
        %v1774 = vunpack.c.h.b16 %v1627
        %v1775 = vunpack.c.l.b16 %v1628
        %v1776 = vunpack.c.h.b16 %v1628
        %v1777 = vunpack.c.l.b16 %v1629
        %v1778 = vunpack.c.h.b16 %v1629
        %v1779 = vunpack.c.l.b16 %v1630
        %v1780 = vunpack.c.h.b16 %v1630
        %v1781 = vunpack.c.l.b16 %v1631
        %v1782 = vunpack.c.h.b16 %v1631
        %v1783 = vunpack.c.l.b16 %v1632
        %v1784 = vunpack.c.h.b16 %v1632
        %v1785 = vunpack.c.l.b16 %v1633
        %v1786 = vunpack.c.h.b16 %v1633
        %v1787 = vpack.c.b16 %v1699, %v1691
        %v1788 = vpack.c.b16 %v1700, %v1692
        %v1789 = vpack.c.b16 %v1701, %v1693
        %v1790 = vpack.c.b16 %v1702, %v1694
        %v1791 = vpack.c.b16 %v1703, %v1695
        %v1792 = vpack.c.b16 %v1704, %v1696
        %v1793 = vpack.c.b16 %v1705, %v1697
        %v1794 = vpack.c.b16 %v1706, %v1698
        %v1795 = vpack.c.b16 %v1715, %v1707
        %v1796 = vpack.c.b16 %v1716, %v1708
        %v1797 = vpack.c.b16 %v1717, %v1709
        %v1798 = vpack.c.b16 %v1718, %v1710
        %v1799 = vpack.c.b16 %v1719, %v1711
        %v1800 = vpack.c.b16 %v1720, %v1712
        %v1801 = vpack.c.b16 %v1721, %v1713
        %v1802 = vpack.c.b16 %v1722, %v1714
        %v1803 = vpack.c.b16 %v1731, %v1723
        %v1804 = vpack.c.b16 %v1732, %v1724
        %v1805 = vpack.c.b16 %v1733, %v1725
        %v1806 = vpack.c.b16 %v1734, %v1726
        %v1807 = vpack.c.b16 %v1735, %v1727
        %v1808 = vpack.c.b16 %v1736, %v1728
        %v1809 = vpack.c.b16 %v1737, %v1729
        %v1810 = vpack.c.b16 %v1738, %v1730
        %v1811 = vpack.c.b16 %v1747, %v1739
        %v1812 = vpack.c.b16 %v1748, %v1740
        %v1813 = vpack.c.b16 %v1749, %v1741
        %v1814 = vpack.c.b16 %v1750, %v1742
        %v1815 = vpack.c.b16 %v1751, %v1743
        %v1816 = vpack.c.b16 %v1752, %v1744
        %v1817 = vpack.c.b16 %v1753, %v1745
        %v1818 = vpack.c.b16 %v1754, %v1746
        %v1819 = vpack.c.b16 %v1763, %v1755
        %v1820 = vpack.c.b16 %v1764, %v1756
        %v1821 = vpack.c.b16 %v1765, %v1757
        %v1822 = vpack.c.b16 %v1766, %v1758
        %v1823 = vpack.c.b16 %v1767, %v1759
        %v1824 = vpack.c.b16 %v1768, %v1760
        %v1825 = vpack.c.b16 %v1769, %v1761
        %v1826 = vpack.c.b16 %v1770, %v1762
        %v1827 = vpack.c.b16 %v1779, %v1771
        %v1828 = vpack.c.b16 %v1780, %v1772
        %v1829 = vpack.c.b16 %v1781, %v1773
        %v1830 = vpack.c.b16 %v1782, %v1774
        %v1831 = vpack.c.b16 %v1783, %v1775
        %v1832 = vpack.c.b16 %v1784, %v1776
        %v1833 = vpack.c.b16 %v1785, %v1777
        %v1834 = vpack.c.b16 %v1786, %v1778
        %v1884 = vsel %vm909, %v1640, 0
        %v1887 = vsel %vm909, %v1642, 0
        %1889 = vmatprep.subr.bf16.mxu0 %v1788
        %1890 = vmatpush1.bf16.msra.mxu0 %v1787
        %1891 = vmatprep.subr.bf16.mxu0 %v1796
        %1892 = vmatpush1.bf16.msra.mxu0 %v1795
        %1893 = vmatprep.subr.bf16.mxu0 %v1804
        %1894 = vmatpush1.bf16.msra.mxu0 %v1803
        %1895 = vmatprep.subr.bf16.mxu0 %v1812
        %1896 = vmatpush1.bf16.msra.mxu0 %v1811
        %1897 = vmatprep.subr.bf16.mxu0 %v1820
        %1898 = vmatpush1.bf16.msra.mxu0 %v1819
        %1899 = vmatprep.subr.bf16.mxu0 %v1828
        %1900 = vmatpush1.bf16.msra.mxu0 %v1827
        %1901 = vmatprep.subr.bf16.mxu0 0
        %1902 = vmatpush1.bf16.msra.mxu0 0
        %1903 = vmatprep.subr.bf16.mxu0 0
        %1904 = vmatpush1.bf16.msra.mxu0 0
        %1905 = vmatprep.subr.bf16.mxu0 0
        %1906 = vmatpush1.bf16.msra.mxu0 0
        %1907 = vmatprep.subr.bf16.mxu0 0
        %1908 = vmatpush1.bf16.msra.mxu0 0
        %1909 = vmatprep.subr.bf16.mxu0 0
        %1910 = vmatpush1.bf16.msra.mxu0 0
        %1911 = vmatprep.subr.bf16.mxu0 0
        %1912 = vmatpush1.bf16.msra.mxu0 0
        %1913 = vmatprep.subr.bf16.mxu0 0
        %1914 = vmatpush1.bf16.msra.mxu0 0
        %1915 = vmatprep.subr.bf16.mxu0 0
        %1916 = vmatpush1.bf16.msra.mxu0 0
        %1917 = vmatprep.subr.bf16.mxu0 0
        %1918 = vmatpush1.bf16.msra.mxu0 0
        %1919 = vmatprep.subr.bf16.mxu0 0
        %1920 = vmatpush1.bf16.msra.mxu0 0
        %1921 = vmatprep.mubr.bf16.mxu0 0
        %1922 = vmatmul.mubr.bf16.gmra.mrb[0].mxu0 %v1884
        %v1923 = vpop.f32.mrb[0].mxu0
        %v1924 = vadd.f32 0.0, %v1923
        %v1925 = vpop.f32.mrb[0].mxu0
        %v1926 = vadd.f32 0.0, %v1925
        %v1927 = vpop.f32.mrb[0].mxu0
        %v1928 = vadd.f32 0.0, %v1927
        %v1929 = vpop.f32.mrb[0].mxu0
        %v1930 = vadd.f32 0.0, %v1929
        %1931 = vmatprep.mubr.bf16.mxu0 0
        %1932 = vmatmul.mubr.bf16.gmra.mrb[0].mxu0 %v1887
        %v1933 = vpop.f32.mrb[0].mxu0
        %v1934 = vadd.f32 0.0, %v1933
        %v1935 = vpop.f32.mrb[0].mxu0
        %v1936 = vadd.f32 0.0, %v1935
        %v1937 = vpop.f32.mrb[0].mxu0
        %v1938 = vadd.f32 0.0, %v1937
        %v1939 = vpop.f32.mrb[0].mxu0
        %v1940 = vadd.f32 0.0, %v1939
        %1941 = vdwg.mxu0
        %1942 = vmatprep.subr.bf16.mxu0 %v1790
        %1943 = vmatpush1.bf16.msra.mxu0 %v1789
        %1944 = vmatprep.subr.bf16.mxu0 %v1798
        %1945 = vmatpush1.bf16.msra.mxu0 %v1797
        %1946 = vmatprep.subr.bf16.mxu0 %v1806
        %1947 = vmatpush1.bf16.msra.mxu0 %v1805
        %1948 = vmatprep.subr.bf16.mxu0 %v1814
        %1949 = vmatpush1.bf16.msra.mxu0 %v1813
        %1950 = vmatprep.subr.bf16.mxu0 %v1822
        %1951 = vmatpush1.bf16.msra.mxu0 %v1821
        %1952 = vmatprep.subr.bf16.mxu0 %v1830
        %1953 = vmatpush1.bf16.msra.mxu0 %v1829
        %1954 = vmatprep.subr.bf16.mxu0 0
        %1955 = vmatpush1.bf16.msra.mxu0 0
        %1956 = vmatprep.subr.bf16.mxu0 0
        %1957 = vmatpush1.bf16.msra.mxu0 0
        %1958 = vmatprep.subr.bf16.mxu0 0
        %1959 = vmatpush1.bf16.msra.mxu0 0
        %1960 = vmatprep.subr.bf16.mxu0 0
        %1961 = vmatpush1.bf16.msra.mxu0 0
        %1962 = vmatprep.subr.bf16.mxu0 0
        %1963 = vmatpush1.bf16.msra.mxu0 0
        %1964 = vmatprep.subr.bf16.mxu0 0
        %1965 = vmatpush1.bf16.msra.mxu0 0
        %1966 = vmatprep.subr.bf16.mxu0 0
        %1967 = vmatpush1.bf16.msra.mxu0 0
        %1968 = vmatprep.subr.bf16.mxu0 0
        %1969 = vmatpush1.bf16.msra.mxu0 0
        %1970 = vmatprep.subr.bf16.mxu0 0
        %1971 = vmatpush1.bf16.msra.mxu0 0
        %1972 = vmatprep.subr.bf16.mxu0 0
        %1973 = vmatpush1.bf16.msra.mxu0 0
        %1974 = vmatprep.mubr.bf16.mxu0 0
        %1975 = vmatmul.mubr.bf16.gmra.mrb[0].mxu0 %v1884
        %v1976 = vpop.f32.mrb[0].mxu0
        %v1977 = vadd.f32 0.0, %v1976
        %v1978 = vpop.f32.mrb[0].mxu0
        %v1979 = vadd.f32 0.0, %v1978
        %v1980 = vpop.f32.mrb[0].mxu0
        %v1981 = vadd.f32 0.0, %v1980
        %v1982 = vpop.f32.mrb[0].mxu0
        %v1983 = vadd.f32 0.0, %v1982
        %1984 = vmatprep.mubr.bf16.mxu0 0
        %1985 = vmatmul.mubr.bf16.gmra.mrb[0].mxu0 %v1887
        %v1986 = vpop.f32.mrb[0].mxu0
        %v1987 = vadd.f32 0.0, %v1986
        %v1988 = vpop.f32.mrb[0].mxu0
        %v1989 = vadd.f32 0.0, %v1988
        %v1990 = vpop.f32.mrb[0].mxu0
        %v1991 = vadd.f32 0.0, %v1990
        %v1992 = vpop.f32.mrb[0].mxu0
        %v1993 = vadd.f32 0.0, %v1992
        %1994 = vdwg.mxu0
        %1995 = vmatprep.subr.bf16.mxu0 %v1792
        %1996 = vmatpush1.bf16.msra.mxu0 %v1791
        %1997 = vmatprep.subr.bf16.mxu0 %v1800
        %1998 = vmatpush1.bf16.msra.mxu0 %v1799
        %1999 = vmatprep.subr.bf16.mxu0 %v1808
        %2000 = vmatpush1.bf16.msra.mxu0 %v1807
        %2001 = vmatprep.subr.bf16.mxu0 %v1816
        %2002 = vmatpush1.bf16.msra.mxu0 %v1815
        %2003 = vmatprep.subr.bf16.mxu0 %v1824
        %2004 = vmatpush1.bf16.msra.mxu0 %v1823
        %2005 = vmatprep.subr.bf16.mxu0 %v1832
        %2006 = vmatpush1.bf16.msra.mxu0 %v1831
        %2007 = vmatprep.subr.bf16.mxu0 0
        %2008 = vmatpush1.bf16.msra.mxu0 0
        %2009 = vmatprep.subr.bf16.mxu0 0
        %2010 = vmatpush1.bf16.msra.mxu0 0
        %2011 = vmatprep.subr.bf16.mxu0 0
        %2012 = vmatpush1.bf16.msra.mxu0 0
        %2013 = vmatprep.subr.bf16.mxu0 0
        %2014 = vmatpush1.bf16.msra.mxu0 0
        %2015 = vmatprep.subr.bf16.mxu0 0
        %2016 = vmatpush1.bf16.msra.mxu0 0
        %2017 = vmatprep.subr.bf16.mxu0 0
        %2018 = vmatpush1.bf16.msra.mxu0 0
        %2019 = vmatprep.subr.bf16.mxu0 0
        %2020 = vmatpush1.bf16.msra.mxu0 0
        %2021 = vmatprep.subr.bf16.mxu0 0
        %2022 = vmatpush1.bf16.msra.mxu0 0
        %2023 = vmatprep.subr.bf16.mxu0 0
        %2024 = vmatpush1.bf16.msra.mxu0 0
        %2025 = vmatprep.subr.bf16.mxu0 0
        %2026 = vmatpush1.bf16.msra.mxu0 0
        %2027 = vmatprep.mubr.bf16.mxu0 0
        %2028 = vmatmul.mubr.bf16.gmra.mrb[0].mxu0 %v1884
        %v2029 = vpop.f32.mrb[0].mxu0
        %v2030 = vadd.f32 0.0, %v2029
        %v2031 = vpop.f32.mrb[0].mxu0
        %v2032 = vadd.f32 0.0, %v2031
        %v2033 = vpop.f32.mrb[0].mxu0
        %v2034 = vadd.f32 0.0, %v2033
        %v2035 = vpop.f32.mrb[0].mxu0
        %v2036 = vadd.f32 0.0, %v2035
        %2037 = vmatprep.mubr.bf16.mxu0 0
        %2038 = vmatmul.mubr.bf16.gmra.mrb[0].mxu0 %v1887
        %v2039 = vpop.f32.mrb[0].mxu0
        %v2040 = vadd.f32 0.0, %v2039
        %v2041 = vpop.f32.mrb[0].mxu0
        %v2042 = vadd.f32 0.0, %v2041
        %v2043 = vpop.f32.mrb[0].mxu0
        %v2044 = vadd.f32 0.0, %v2043
        %v2045 = vpop.f32.mrb[0].mxu0
        %v2046 = vadd.f32 0.0, %v2045
        %2047 = vdwg.mxu0
        %2048 = vmatprep.subr.bf16.mxu0 %v1794
        %2049 = vmatpush1.bf16.msra.mxu0 %v1793
        %2050 = vmatprep.subr.bf16.mxu0 %v1802
        %2051 = vmatpush1.bf16.msra.mxu0 %v1801
        %2052 = vmatprep.subr.bf16.mxu0 %v1810
        %2053 = vmatpush1.bf16.msra.mxu0 %v1809
        %2054 = vmatprep.subr.bf16.mxu0 %v1818
        %2055 = vmatpush1.bf16.msra.mxu0 %v1817
        %2056 = vmatprep.subr.bf16.mxu0 %v1826
        %2057 = vmatpush1.bf16.msra.mxu0 %v1825
        %2058 = vmatprep.subr.bf16.mxu0 %v1834
        %2059 = vmatpush1.bf16.msra.mxu0 %v1833
        %2060 = vmatprep.subr.bf16.mxu0 0
        %2061 = vmatpush1.bf16.msra.mxu0 0
        %2062 = vmatprep.subr.bf16.mxu0 0
        %2063 = vmatpush1.bf16.msra.mxu0 0
        %2064 = vmatprep.subr.bf16.mxu0 0
        %2065 = vmatpush1.bf16.msra.mxu0 0
        %2066 = vmatprep.subr.bf16.mxu0 0
        %2067 = vmatpush1.bf16.msra.mxu0 0
        %2068 = vmatprep.subr.bf16.mxu0 0
        %2069 = vmatpush1.bf16.msra.mxu0 0
        %2070 = vmatprep.subr.bf16.mxu0 0
        %2071 = vmatpush1.bf16.msra.mxu0 0
        %2072 = vmatprep.subr.bf16.mxu0 0
        %2073 = vmatpush1.bf16.msra.mxu0 0
        %2074 = vmatprep.subr.bf16.mxu0 0
        %2075 = vmatpush1.bf16.msra.mxu0 0
        %2076 = vmatprep.subr.bf16.mxu0 0
        %2077 = vmatpush1.bf16.msra.mxu0 0
        %2078 = vmatprep.subr.bf16.mxu0 0
        %2079 = vmatpush1.bf16.msra.mxu0 0
        %2080 = vmatprep.mubr.bf16.mxu0 0
        %2081 = vmatmul.mubr.bf16.gmra.mrb[0].mxu0 %v1884
        %v2082 = vpop.f32.mrb[0].mxu0
        %v2083 = vadd.f32 0.0, %v2082
        %v2084 = vpop.f32.mrb[0].mxu0
        %v2085 = vadd.f32 0.0, %v2084
        %v2086 = vpop.f32.mrb[0].mxu0
        %v2087 = vadd.f32 0.0, %v2086
        %v2088 = vpop.f32.mrb[0].mxu0
        %v2089 = vadd.f32 0.0, %v2088
        %2090 = vmatprep.mubr.bf16.mxu0 0
        %2091 = vmatmul.mubr.bf16.gmra.mrb[0].mxu0 %v1887
        %v2092 = vpop.f32.mrb[0].mxu0
        %v2093 = vadd.f32 0.0, %v2092
        %v2094 = vpop.f32.mrb[0].mxu0
        %v2095 = vadd.f32 0.0, %v2094
        %v2096 = vpop.f32.mrb[0].mxu0
        %v2097 = vadd.f32 0.0, %v2096
        %v2098 = vpop.f32.mrb[0].mxu0
        %v2099 = vadd.f32 0.0, %v2098
        %2100 = vdwg.mxu0
        %v2101 = vadd.f32 %v1407, %v1924
        %v2102 = vadd.f32 %v1409, %v1926
        %v2103 = vadd.f32 %v1460, %v1977
        %v2104 = vadd.f32 %v1462, %v1979
        %v2105 = vadd.f32 %v1513, %v2030
        %v2106 = vadd.f32 %v1515, %v2032
        %v2107 = vadd.f32 %v1566, %v2083
        %v2108 = vadd.f32 %v1568, %v2085
        %v2109 = vadd.f32 %v1411, %v1928
        %v2110 = vadd.f32 %v1413, %v1930
        %v2111 = vadd.f32 %v1464, %v1981
        %v2112 = vadd.f32 %v1466, %v1983
        %v2113 = vadd.f32 %v1517, %v2034
        %v2114 = vadd.f32 %v1519, %v2036
        %v2115 = vadd.f32 %v1570, %v2087
        %v2116 = vadd.f32 %v1572, %v2089
        %v2117 = vadd.f32 %v1417, %v1934
        %v2118 = vadd.f32 %v1419, %v1936
        %v2119 = vadd.f32 %v1470, %v1987
        %v2120 = vadd.f32 %v1472, %v1989
        %v2121 = vadd.f32 %v1523, %v2040
        %v2122 = vadd.f32 %v1525, %v2042
        %v2123 = vadd.f32 %v1576, %v2093
        %v2124 = vadd.f32 %v1578, %v2095
        %v2125 = vadd.f32 %v1421, %v1938
        %v2126 = vadd.f32 %v1423, %v1940
        %v2127 = vadd.f32 %v1474, %v1991
        %v2128 = vadd.f32 %v1476, %v1993
        %v2129 = vadd.f32 %v1527, %v2044
        %v2130 = vadd.f32 %v1529, %v2046
        %v2131 = vadd.f32 %v1580, %v2097
        %v2132 = vadd.f32 %v1582, %v2099
        %v2133 = vld [vmem:[#allocation2 + $0x10] sm:$0x3]
        %s2134 = scalar_lea.vmem [#allocation5], 1152
        %v2135 = vld [vmem:[%s2134] sm:$0xff]
        %v2136 = vld [vmem:[%s2134 + $0x8] sm:$0xff]
        %v2137 = vld [vmem:[%s2134 + $0x10] sm:$0xff]
        %v2138 = vld [vmem:[%s2134 + $0x18] sm:$0xff]
        %v2139 = vld [vmem:[%s2134 + $0x20] sm:$0xff]
        %v2140 = vld [vmem:[%s2134 + $0x28] sm:$0xff]
        %v2141 = vld [vmem:[%s2134 + $0x30] sm:$0xff]
        %v2142 = vld [vmem:[%s2134 + $0x38] sm:$0xff]
        %v2143 = vld [vmem:[%s2134 + $0x40] sm:$0xff]
        %v2144 = vld [vmem:[%s2134 + $0x48] sm:$0xff]
        %v2145 = vld [vmem:[%s2134 + $0x50] sm:$0xff]
        %v2146 = vld [vmem:[%s2134 + $0x58] sm:$0xff]
        %v2147 = vld [vmem:[%s2134 + $0x60] sm:$0xff]
        %v2148 = vld [vmem:[%s2134 + $0x68] sm:$0xff]
        %v2149 = vld [vmem:[%s2134 + $0x70] sm:$0xff]
        %v2150 = vld [vmem:[%s2134 + $0x78] sm:$0xff]
        %v2151 = vld [vmem:[%s2134 + $0x80] sm:$0xff]
        %v2152 = vld [vmem:[%s2134 + $0x88] sm:$0xff]
        %v2153 = vld [vmem:[%s2134 + $0x90] sm:$0xff]
        %v2154 = vld [vmem:[%s2134 + $0x98] sm:$0xff]
        %v2155 = vld [vmem:[%s2134 + $0xa0] sm:$0xff]
        %v2156 = vld [vmem:[%s2134 + $0xa8] sm:$0xff]
        %v2157 = vld [vmem:[%s2134 + $0xb0] sm:$0xff]
        %v2158 = vld [vmem:[%s2134 + $0xb8] sm:$0xff]
        %v2159 = vld [vmem:[%s2134 + $0xc0] sm:$0xff]
        %v2160 = vld [vmem:[%s2134 + $0xc8] sm:$0xff]
        %v2161 = vld [vmem:[%s2134 + $0xd0] sm:$0xff]
        %v2162 = vld [vmem:[%s2134 + $0xd8] sm:$0xff]
        %v2163 = vld [vmem:[%s2134 + $0xe0] sm:$0xff]
        %v2164 = vld [vmem:[%s2134 + $0xe8] sm:$0xff]
        %v2165 = vld [vmem:[%s2134 + $0xf0] sm:$0xff]
        %v2166 = vld [vmem:[%s2134 + $0xf8] sm:$0xff]
        %v2167 = vld [vmem:[%s2134 + $0x100] sm:$0xff]
        %v2168 = vld [vmem:[%s2134 + $0x108] sm:$0xff]
        %v2169 = vld [vmem:[%s2134 + $0x110] sm:$0xff]
        %v2170 = vld [vmem:[%s2134 + $0x118] sm:$0xff]
        %v2171 = vld [vmem:[%s2134 + $0x120] sm:$0xff]
        %v2172 = vld [vmem:[%s2134 + $0x128] sm:$0xff]
        %v2173 = vld [vmem:[%s2134 + $0x130] sm:$0xff]
        %v2174 = vld [vmem:[%s2134 + $0x138] sm:$0xff]
        %v2175 = vld [vmem:[%s2134 + $0x140] sm:$0xff]
        %v2176 = vld [vmem:[%s2134 + $0x148] sm:$0xff]
        %v2177 = vld [vmem:[%s2134 + $0x150] sm:$0xff]
        %v2178 = vld [vmem:[%s2134 + $0x158] sm:$0xff]
        %v2179 = vld [vmem:[%s2134 + $0x160] sm:$0xff]
        %v2180 = vld [vmem:[%s2134 + $0x168] sm:$0xff]
        %v2181 = vld [vmem:[%s2134 + $0x170] sm:$0xff]
        %v2182 = vld [vmem:[%s2134 + $0x178] sm:$0xff]
        %v2184 = vunpack.c.l.b16 %v2133
        %v2185 = vpack.c.b16 %v2184, %v2184
        %vm2186 = vsmask.f32 6400
        %v2188 = vshrl.u32 %v1636, 16
        %v2190 = vrot.slane %v2188, 1
        %v2191 = vshll.u32 %v1636, 16
        %v2193 = vrot.slane %v2191, 2
        %v2194 = vor.u32 %v2190, %v2193
        %v2195 = vrot.slane %v661, 1
        %v2196 = vrot.slane %v657, 2
        %v2197 = vor.u32 %v2195, %v2196
        %v2198 = vsel %vm2186, %v2194, %v2197
        %v2200 = vshrl.u32 %v2185, 16
        %v2202 = vrot.slane %v2200, 1
        %v2203 = vshll.u32 %v2185, 16
        %v2205 = vrot.slane %v2203, 2
        %v2206 = vor.u32 %v2202, %v2205
        %v2207 = vsel %vm2186, %v2197, %v2206
        %v2256 = vunpack.c.l.b16 %v2135
        %v2257 = vunpack.c.h.b16 %v2135
        %v2258 = vunpack.c.l.b16 %v2136
        %v2259 = vunpack.c.h.b16 %v2136
        %v2260 = vunpack.c.l.b16 %v2137
        %v2261 = vunpack.c.h.b16 %v2137
        %v2262 = vunpack.c.l.b16 %v2138
        %v2263 = vunpack.c.h.b16 %v2138
        %v2264 = vunpack.c.l.b16 %v2139
        %v2265 = vunpack.c.h.b16 %v2139
        %v2266 = vunpack.c.l.b16 %v2140
        %v2267 = vunpack.c.h.b16 %v2140
        %v2268 = vunpack.c.l.b16 %v2141
        %v2269 = vunpack.c.h.b16 %v2141
        %v2270 = vunpack.c.l.b16 %v2142
        %v2271 = vunpack.c.h.b16 %v2142
        %v2272 = vunpack.c.l.b16 %v2143
        %v2273 = vunpack.c.h.b16 %v2143
        %v2274 = vunpack.c.l.b16 %v2144
        %v2275 = vunpack.c.h.b16 %v2144
        %v2276 = vunpack.c.l.b16 %v2145
        %v2277 = vunpack.c.h.b16 %v2145
        %v2278 = vunpack.c.l.b16 %v2146
        %v2279 = vunpack.c.h.b16 %v2146
        %v2280 = vunpack.c.l.b16 %v2147
        %v2281 = vunpack.c.h.b16 %v2147
        %v2282 = vunpack.c.l.b16 %v2148
        %v2283 = vunpack.c.h.b16 %v2148
        %v2284 = vunpack.c.l.b16 %v2149
        %v2285 = vunpack.c.h.b16 %v2149
        %v2286 = vunpack.c.l.b16 %v2150
        %v2287 = vunpack.c.h.b16 %v2150
        %v2288 = vunpack.c.l.b16 %v2151
        %v2289 = vunpack.c.h.b16 %v2151
        %v2290 = vunpack.c.l.b16 %v2152
        %v2291 = vunpack.c.h.b16 %v2152
        %v2292 = vunpack.c.l.b16 %v2153
        %v2293 = vunpack.c.h.b16 %v2153
        %v2294 = vunpack.c.l.b16 %v2154
        %v2295 = vunpack.c.h.b16 %v2154
        %v2296 = vunpack.c.l.b16 %v2155
        %v2297 = vunpack.c.h.b16 %v2155
        %v2298 = vunpack.c.l.b16 %v2156
        %v2299 = vunpack.c.h.b16 %v2156
        %v2300 = vunpack.c.l.b16 %v2157
        %v2301 = vunpack.c.h.b16 %v2157
        %v2302 = vunpack.c.l.b16 %v2158
        %v2303 = vunpack.c.h.b16 %v2158
        %v2304 = vunpack.c.l.b16 %v2159
        %v2305 = vunpack.c.h.b16 %v2159
        %v2306 = vunpack.c.l.b16 %v2160
        %v2307 = vunpack.c.h.b16 %v2160
        %v2308 = vunpack.c.l.b16 %v2161
        %v2309 = vunpack.c.h.b16 %v2161
        %v2310 = vunpack.c.l.b16 %v2162
        %v2311 = vunpack.c.h.b16 %v2162
        %v2312 = vunpack.c.l.b16 %v2163
        %v2313 = vunpack.c.h.b16 %v2163
        %v2314 = vunpack.c.l.b16 %v2164
        %v2315 = vunpack.c.h.b16 %v2164
        %v2316 = vunpack.c.l.b16 %v2165
        %v2317 = vunpack.c.h.b16 %v2165
        %v2318 = vunpack.c.l.b16 %v2166
        %v2319 = vunpack.c.h.b16 %v2166
        %v2320 = vunpack.c.l.b16 %v2167
        %v2321 = vunpack.c.h.b16 %v2167
        %v2322 = vunpack.c.l.b16 %v2168
        %v2323 = vunpack.c.h.b16 %v2168
        %v2324 = vunpack.c.l.b16 %v2169
        %v2325 = vunpack.c.h.b16 %v2169
        %v2326 = vunpack.c.l.b16 %v2170
        %v2327 = vunpack.c.h.b16 %v2170
        %v2328 = vunpack.c.l.b16 %v2171
        %v2329 = vunpack.c.h.b16 %v2171
        %v2330 = vunpack.c.l.b16 %v2172
        %v2331 = vunpack.c.h.b16 %v2172
        %v2332 = vunpack.c.l.b16 %v2173
        %v2333 = vunpack.c.h.b16 %v2173
        %v2334 = vunpack.c.l.b16 %v2174
        %v2335 = vunpack.c.h.b16 %v2174
        %v2336 = vunpack.c.l.b16 %v2175
        %v2337 = vunpack.c.h.b16 %v2175
        %v2338 = vunpack.c.l.b16 %v2176
        %v2339 = vunpack.c.h.b16 %v2176
        %v2340 = vunpack.c.l.b16 %v2177
        %v2341 = vunpack.c.h.b16 %v2177
        %v2342 = vunpack.c.l.b16 %v2178
        %v2343 = vunpack.c.h.b16 %v2178
        %v2344 = vunpack.c.l.b16 %v2179
        %v2345 = vunpack.c.h.b16 %v2179
        %v2346 = vunpack.c.l.b16 %v2180
        %v2347 = vunpack.c.h.b16 %v2180
        %v2348 = vunpack.c.l.b16 %v2181
        %v2349 = vunpack.c.h.b16 %v2181
        %v2350 = vunpack.c.l.b16 %v2182
        %v2351 = vunpack.c.h.b16 %v2182
        %v2352 = vpack.c.b16 %v2264, %v2256
        %v2353 = vpack.c.b16 %v2265, %v2257
        %v2354 = vpack.c.b16 %v2266, %v2258
        %v2355 = vpack.c.b16 %v2267, %v2259
        %v2356 = vpack.c.b16 %v2268, %v2260
        %v2357 = vpack.c.b16 %v2269, %v2261
        %v2358 = vpack.c.b16 %v2270, %v2262
        %v2359 = vpack.c.b16 %v2271, %v2263
        %v2360 = vpack.c.b16 %v2280, %v2272
        %v2361 = vpack.c.b16 %v2281, %v2273
        %v2362 = vpack.c.b16 %v2282, %v2274
        %v2363 = vpack.c.b16 %v2283, %v2275
        %v2364 = vpack.c.b16 %v2284, %v2276
        %v2365 = vpack.c.b16 %v2285, %v2277
        %v2366 = vpack.c.b16 %v2286, %v2278
        %v2367 = vpack.c.b16 %v2287, %v2279
        %v2368 = vpack.c.b16 %v2296, %v2288
        %v2369 = vpack.c.b16 %v2297, %v2289
        %v2370 = vpack.c.b16 %v2298, %v2290
        %v2371 = vpack.c.b16 %v2299, %v2291
        %v2372 = vpack.c.b16 %v2300, %v2292
        %v2373 = vpack.c.b16 %v2301, %v2293
        %v2374 = vpack.c.b16 %v2302, %v2294
        %v2375 = vpack.c.b16 %v2303, %v2295
        %v2376 = vpack.c.b16 %v2312, %v2304
        %v2377 = vpack.c.b16 %v2313, %v2305
        %v2378 = vpack.c.b16 %v2314, %v2306
        %v2379 = vpack.c.b16 %v2315, %v2307
        %v2380 = vpack.c.b16 %v2316, %v2308
        %v2381 = vpack.c.b16 %v2317, %v2309
        %v2382 = vpack.c.b16 %v2318, %v2310
        %v2383 = vpack.c.b16 %v2319, %v2311
        %v2384 = vpack.c.b16 %v2328, %v2320
        %v2385 = vpack.c.b16 %v2329, %v2321
        %v2386 = vpack.c.b16 %v2330, %v2322
        %v2387 = vpack.c.b16 %v2331, %v2323
        %v2388 = vpack.c.b16 %v2332, %v2324
        %v2389 = vpack.c.b16 %v2333, %v2325
        %v2390 = vpack.c.b16 %v2334, %v2326
        %v2391 = vpack.c.b16 %v2335, %v2327
        %v2392 = vpack.c.b16 %v2344, %v2336
        %v2393 = vpack.c.b16 %v2345, %v2337
        %v2394 = vpack.c.b16 %v2346, %v2338
        %v2395 = vpack.c.b16 %v2347, %v2339
        %v2396 = vpack.c.b16 %v2348, %v2340
        %v2397 = vpack.c.b16 %v2349, %v2341
        %v2398 = vpack.c.b16 %v2350, %v2342
        %v2399 = vpack.c.b16 %v2351, %v2343
        %v2449 = vsel %vm909, %v2198, 0
        %v2452 = vsel %vm909, %v2207, 0
        %2454 = vmatprep.subr.bf16.mxu0 %v2353
        %2455 = vmatpush1.bf16.msra.mxu0 %v2352
        %2456 = vmatprep.subr.bf16.mxu0 %v2361
        %2457 = vmatpush1.bf16.msra.mxu0 %v2360
        %2458 = vmatprep.subr.bf16.mxu0 %v2369
        %2459 = vmatpush1.bf16.msra.mxu0 %v2368
        %2460 = vmatprep.subr.bf16.mxu0 %v2377
        %2461 = vmatpush1.bf16.msra.mxu0 %v2376
        %2462 = vmatprep.subr.bf16.mxu0 %v2385
        %2463 = vmatpush1.bf16.msra.mxu0 %v2384
        %2464 = vmatprep.subr.bf16.mxu0 %v2393
        %2465 = vmatpush1.bf16.msra.mxu0 %v2392
        %2466 = vmatprep.subr.bf16.mxu0 0
        %2467 = vmatpush1.bf16.msra.mxu0 0
        %2468 = vmatprep.subr.bf16.mxu0 0
        %2469 = vmatpush1.bf16.msra.mxu0 0
        %2470 = vmatprep.subr.bf16.mxu0 0
        %2471 = vmatpush1.bf16.msra.mxu0 0
        %2472 = vmatprep.subr.bf16.mxu0 0
        %2473 = vmatpush1.bf16.msra.mxu0 0
        %2474 = vmatprep.subr.bf16.mxu0 0
        %2475 = vmatpush1.bf16.msra.mxu0 0
        %2476 = vmatprep.subr.bf16.mxu0 0
        %2477 = vmatpush1.bf16.msra.mxu0 0
        %2478 = vmatprep.subr.bf16.mxu0 0
        %2479 = vmatpush1.bf16.msra.mxu0 0
        %2480 = vmatprep.subr.bf16.mxu0 0
        %2481 = vmatpush1.bf16.msra.mxu0 0
        %2482 = vmatprep.subr.bf16.mxu0 0
        %2483 = vmatpush1.bf16.msra.mxu0 0
        %2484 = vmatprep.subr.bf16.mxu0 0
        %2485 = vmatpush1.bf16.msra.mxu0 0
        %2486 = vmatprep.mubr.bf16.mxu0 0
        %2487 = vmatmul.mubr.bf16.gmra.mrb[0].mxu0 %v2449
        %v2488 = vpop.f32.mrb[0].mxu0
        %v2489 = vadd.f32 0.0, %v2488
        %v2490 = vpop.f32.mrb[0].mxu0
        %v2491 = vadd.f32 0.0, %v2490
        %v2492 = vpop.f32.mrb[0].mxu0
        %v2493 = vadd.f32 0.0, %v2492
        %v2494 = vpop.f32.mrb[0].mxu0
        %v2495 = vadd.f32 0.0, %v2494
        %2496 = vmatprep.mubr.bf16.mxu0 0
        %2497 = vmatmul.mubr.bf16.gmra.mrb[0].mxu0 %v2452
        %v2498 = vpop.f32.mrb[0].mxu0
        %v2499 = vadd.f32 0.0, %v2498
        %v2500 = vpop.f32.mrb[0].mxu0
        %v2501 = vadd.f32 0.0, %v2500
        %v2502 = vpop.f32.mrb[0].mxu0
        %v2503 = vadd.f32 0.0, %v2502
        %v2504 = vpop.f32.mrb[0].mxu0
        %v2505 = vadd.f32 0.0, %v2504
        %2506 = vdwg.mxu0
        %2507 = vmatprep.subr.bf16.mxu0 %v2355
        %2508 = vmatpush1.bf16.msra.mxu0 %v2354
        %2509 = vmatprep.subr.bf16.mxu0 %v2363
        %2510 = vmatpush1.bf16.msra.mxu0 %v2362
        %2511 = vmatprep.subr.bf16.mxu0 %v2371
        %2512 = vmatpush1.bf16.msra.mxu0 %v2370
        %2513 = vmatprep.subr.bf16.mxu0 %v2379
        %2514 = vmatpush1.bf16.msra.mxu0 %v2378
        %2515 = vmatprep.subr.bf16.mxu0 %v2387
        %2516 = vmatpush1.bf16.msra.mxu0 %v2386
        %2517 = vmatprep.subr.bf16.mxu0 %v2395
        %2518 = vmatpush1.bf16.msra.mxu0 %v2394
        %2519 = vmatprep.subr.bf16.mxu0 0
        %2520 = vmatpush1.bf16.msra.mxu0 0
        %2521 = vmatprep.subr.bf16.mxu0 0
        %2522 = vmatpush1.bf16.msra.mxu0 0
        %2523 = vmatprep.subr.bf16.mxu0 0
        %2524 = vmatpush1.bf16.msra.mxu0 0
        %2525 = vmatprep.subr.bf16.mxu0 0
        %2526 = vmatpush1.bf16.msra.mxu0 0
        %2527 = vmatprep.subr.bf16.mxu0 0
        %2528 = vmatpush1.bf16.msra.mxu0 0
        %2529 = vmatprep.subr.bf16.mxu0 0
        %2530 = vmatpush1.bf16.msra.mxu0 0
        %2531 = vmatprep.subr.bf16.mxu0 0
        %2532 = vmatpush1.bf16.msra.mxu0 0
        %2533 = vmatprep.subr.bf16.mxu0 0
        %2534 = vmatpush1.bf16.msra.mxu0 0
        %2535 = vmatprep.subr.bf16.mxu0 0
        %2536 = vmatpush1.bf16.msra.mxu0 0
        %2537 = vmatprep.subr.bf16.mxu0 0
        %2538 = vmatpush1.bf16.msra.mxu0 0
        %2539 = vmatprep.mubr.bf16.mxu0 0
        %2540 = vmatmul.mubr.bf16.gmra.mrb[0].mxu0 %v2449
        %v2541 = vpop.f32.mrb[0].mxu0
        %v2542 = vadd.f32 0.0, %v2541
        %v2543 = vpop.f32.mrb[0].mxu0
        %v2544 = vadd.f32 0.0, %v2543
        %v2545 = vpop.f32.mrb[0].mxu0
        %v2546 = vadd.f32 0.0, %v2545
        %v2547 = vpop.f32.mrb[0].mxu0
        %v2548 = vadd.f32 0.0, %v2547
        %2549 = vmatprep.mubr.bf16.mxu0 0
        %2550 = vmatmul.mubr.bf16.gmra.mrb[0].mxu0 %v2452
        %v2551 = vpop.f32.mrb[0].mxu0
        %v2552 = vadd.f32 0.0, %v2551
        %v2553 = vpop.f32.mrb[0].mxu0
        %v2554 = vadd.f32 0.0, %v2553
        %v2555 = vpop.f32.mrb[0].mxu0
        %v2556 = vadd.f32 0.0, %v2555
        %v2557 = vpop.f32.mrb[0].mxu0
        %v2558 = vadd.f32 0.0, %v2557
        %2559 = vdwg.mxu0
        %2560 = vmatprep.subr.bf16.mxu0 %v2357
        %2561 = vmatpush1.bf16.msra.mxu0 %v2356
        %2562 = vmatprep.subr.bf16.mxu0 %v2365
        %2563 = vmatpush1.bf16.msra.mxu0 %v2364
        %2564 = vmatprep.subr.bf16.mxu0 %v2373
        %2565 = vmatpush1.bf16.msra.mxu0 %v2372
        %2566 = vmatprep.subr.bf16.mxu0 %v2381
        %2567 = vmatpush1.bf16.msra.mxu0 %v2380
        %2568 = vmatprep.subr.bf16.mxu0 %v2389
        %2569 = vmatpush1.bf16.msra.mxu0 %v2388
        %2570 = vmatprep.subr.bf16.mxu0 %v2397
        %2571 = vmatpush1.bf16.msra.mxu0 %v2396
        %2572 = vmatprep.subr.bf16.mxu0 0
        %2573 = vmatpush1.bf16.msra.mxu0 0
        %2574 = vmatprep.subr.bf16.mxu0 0
        %2575 = vmatpush1.bf16.msra.mxu0 0
        %2576 = vmatprep.subr.bf16.mxu0 0
        %2577 = vmatpush1.bf16.msra.mxu0 0
        %2578 = vmatprep.subr.bf16.mxu0 0
        %2579 = vmatpush1.bf16.msra.mxu0 0
        %2580 = vmatprep.subr.bf16.mxu0 0
        %2581 = vmatpush1.bf16.msra.mxu0 0
        %2582 = vmatprep.subr.bf16.mxu0 0
        %2583 = vmatpush1.bf16.msra.mxu0 0
        %2584 = vmatprep.subr.bf16.mxu0 0
        %2585 = vmatpush1.bf16.msra.mxu0 0
        %2586 = vmatprep.subr.bf16.mxu0 0
        %2587 = vmatpush1.bf16.msra.mxu0 0
        %2588 = vmatprep.subr.bf16.mxu0 0
        %2589 = vmatpush1.bf16.msra.mxu0 0
        %2590 = vmatprep.subr.bf16.mxu0 0
        %2591 = vmatpush1.bf16.msra.mxu0 0
        %2592 = vmatprep.mubr.bf16.mxu0 0
        %2593 = vmatmul.mubr.bf16.gmra.mrb[0].mxu0 %v2449
        %v2594 = vpop.f32.mrb[0].mxu0
        %v2595 = vadd.f32 0.0, %v2594
        %v2596 = vpop.f32.mrb[0].mxu0
        %v2597 = vadd.f32 0.0, %v2596
        %v2598 = vpop.f32.mrb[0].mxu0
        %v2599 = vadd.f32 0.0, %v2598
        %v2600 = vpop.f32.mrb[0].mxu0
        %v2601 = vadd.f32 0.0, %v2600
        %2602 = vmatprep.mubr.bf16.mxu0 0
        %2603 = vmatmul.mubr.bf16.gmra.mrb[0].mxu0 %v2452
        %v2604 = vpop.f32.mrb[0].mxu0
        %v2605 = vadd.f32 0.0, %v2604
        %v2606 = vpop.f32.mrb[0].mxu0
        %v2607 = vadd.f32 0.0, %v2606
        %v2608 = vpop.f32.mrb[0].mxu0
        %v2609 = vadd.f32 0.0, %v2608
        %v2610 = vpop.f32.mrb[0].mxu0
        %v2611 = vadd.f32 0.0, %v2610
        %2612 = vdwg.mxu0
        %2613 = vmatprep.subr.bf16.mxu0 %v2359
        %2614 = vmatpush1.bf16.msra.mxu0 %v2358
        %2615 = vmatprep.subr.bf16.mxu0 %v2367
        %2616 = vmatpush1.bf16.msra.mxu0 %v2366
        %2617 = vmatprep.subr.bf16.mxu0 %v2375
        %2618 = vmatpush1.bf16.msra.mxu0 %v2374
        %2619 = vmatprep.subr.bf16.mxu0 %v2383
        %2620 = vmatpush1.bf16.msra.mxu0 %v2382
        %2621 = vmatprep.subr.bf16.mxu0 %v2391
        %2622 = vmatpush1.bf16.msra.mxu0 %v2390
        %2623 = vmatprep.subr.bf16.mxu0 %v2399
        %2624 = vmatpush1.bf16.msra.mxu0 %v2398
        %2625 = vmatprep.subr.bf16.mxu0 0
        %2626 = vmatpush1.bf16.msra.mxu0 0
        %2627 = vmatprep.subr.bf16.mxu0 0
        %2628 = vmatpush1.bf16.msra.mxu0 0
        %2629 = vmatprep.subr.bf16.mxu0 0
        %2630 = vmatpush1.bf16.msra.mxu0 0
        %2631 = vmatprep.subr.bf16.mxu0 0
        %2632 = vmatpush1.bf16.msra.mxu0 0
        %2633 = vmatprep.subr.bf16.mxu0 0
        %2634 = vmatpush1.bf16.msra.mxu0 0
        %2635 = vmatprep.subr.bf16.mxu0 0
        %2636 = vmatpush1.bf16.msra.mxu0 0
        %2637 = vmatprep.subr.bf16.mxu0 0
        %2638 = vmatpush1.bf16.msra.mxu0 0
        %2639 = vmatprep.subr.bf16.mxu0 0
        %2640 = vmatpush1.bf16.msra.mxu0 0
        %2641 = vmatprep.subr.bf16.mxu0 0
        %2642 = vmatpush1.bf16.msra.mxu0 0
        %2643 = vmatprep.subr.bf16.mxu0 0
        %2644 = vmatpush1.bf16.msra.mxu0 0
        %2645 = vmatprep.mubr.bf16.mxu0 0
        %2646 = vmatmul.mubr.bf16.gmra.mrb[0].mxu0 %v2449
        %v2647 = vpop.f32.mrb[0].mxu0
        %v2648 = vadd.f32 0.0, %v2647
        %v2649 = vpop.f32.mrb[0].mxu0
        %v2650 = vadd.f32 0.0, %v2649
        %v2651 = vpop.f32.mrb[0].mxu0
        %v2652 = vadd.f32 0.0, %v2651
        %v2653 = vpop.f32.mrb[0].mxu0
        %v2654 = vadd.f32 0.0, %v2653
        %2655 = vmatprep.mubr.bf16.mxu0 0
        %2656 = vmatmul.mubr.bf16.gmra.mrb[0].mxu0 %v2452
        %v2657 = vpop.f32.mrb[0].mxu0
        %v2658 = vadd.f32 0.0, %v2657
        %v2659 = vpop.f32.mrb[0].mxu0
        %v2660 = vadd.f32 0.0, %v2659
        %v2661 = vpop.f32.mrb[0].mxu0
        %v2662 = vadd.f32 0.0, %v2661
        %v2663 = vpop.f32.mrb[0].mxu0
        %v2664 = vadd.f32 0.0, %v2663
        %2665 = vdwg.mxu0
        %v2666 = vadd.f32 %v2101, %v2489
        %v2667 = vadd.f32 %v2102, %v2491
        %v2668 = vadd.f32 %v2103, %v2542
        %v2669 = vadd.f32 %v2104, %v2544
        %v2670 = vadd.f32 %v2105, %v2595
        %v2671 = vadd.f32 %v2106, %v2597
        %v2672 = vadd.f32 %v2107, %v2648
        %v2673 = vadd.f32 %v2108, %v2650
        %v2674 = vadd.f32 %v2109, %v2493
        %v2675 = vadd.f32 %v2110, %v2495
        %v2676 = vadd.f32 %v2111, %v2546
        %v2677 = vadd.f32 %v2112, %v2548
        %v2678 = vadd.f32 %v2113, %v2599
        %v2679 = vadd.f32 %v2114, %v2601
        %v2680 = vadd.f32 %v2115, %v2652
        %v2681 = vadd.f32 %v2116, %v2654
        %v2682 = vadd.f32 %v2117, %v2499
        %v2683 = vadd.f32 %v2118, %v2501
        %v2684 = vadd.f32 %v2119, %v2552
        %v2685 = vadd.f32 %v2120, %v2554
        %v2686 = vadd.f32 %v2121, %v2605
        %v2687 = vadd.f32 %v2122, %v2607
        %v2688 = vadd.f32 %v2123, %v2658
        %v2689 = vadd.f32 %v2124, %v2660
        %v2690 = vadd.f32 %v2125, %v2503
        %v2691 = vadd.f32 %v2126, %v2505
        %v2692 = vadd.f32 %v2127, %v2556
        %v2693 = vadd.f32 %v2128, %v2558
        %v2694 = vadd.f32 %v2129, %v2609
        %v2695 = vadd.f32 %v2130, %v2611
        %v2696 = vadd.f32 %v2131, %v2662
        %v2697 = vadd.f32 %v2132, %v2664
        %v2698 = vld [vmem:[#allocation2] sm:$0xc]
        %s2699 = scalar_lea.vmem [#allocation5], 1536
        %v2700 = vld [vmem:[%s2699] sm:$0xff]
        %v2701 = vld [vmem:[%s2699 + $0x8] sm:$0xff]
        %v2702 = vld [vmem:[%s2699 + $0x10] sm:$0xff]
        %v2703 = vld [vmem:[%s2699 + $0x18] sm:$0xff]
        %v2704 = vld [vmem:[%s2699 + $0x20] sm:$0xff]
        %v2705 = vld [vmem:[%s2699 + $0x28] sm:$0xff]
        %v2706 = vld [vmem:[%s2699 + $0x30] sm:$0xff]
        %v2707 = vld [vmem:[%s2699 + $0x38] sm:$0xff]
        %v2708 = vld [vmem:[%s2699 + $0x40] sm:$0xff]
        %v2709 = vld [vmem:[%s2699 + $0x48] sm:$0xff]
        %v2710 = vld [vmem:[%s2699 + $0x50] sm:$0xff]
        %v2711 = vld [vmem:[%s2699 + $0x58] sm:$0xff]
        %v2712 = vld [vmem:[%s2699 + $0x60] sm:$0xff]
        %v2713 = vld [vmem:[%s2699 + $0x68] sm:$0xff]
        %v2714 = vld [vmem:[%s2699 + $0x70] sm:$0xff]
        %v2715 = vld [vmem:[%s2699 + $0x78] sm:$0xff]
        %v2716 = vld [vmem:[%s2699 + $0x80] sm:$0xff]
        %v2717 = vld [vmem:[%s2699 + $0x88] sm:$0xff]
        %v2718 = vld [vmem:[%s2699 + $0x90] sm:$0xff]
        %v2719 = vld [vmem:[%s2699 + $0x98] sm:$0xff]
        %v2720 = vld [vmem:[%s2699 + $0xa0] sm:$0xff]
        %v2721 = vld [vmem:[%s2699 + $0xa8] sm:$0xff]
        %v2722 = vld [vmem:[%s2699 + $0xb0] sm:$0xff]
        %v2723 = vld [vmem:[%s2699 + $0xb8] sm:$0xff]
        %v2724 = vld [vmem:[%s2699 + $0xc0] sm:$0xff]
        %v2725 = vld [vmem:[%s2699 + $0xc8] sm:$0xff]
        %v2726 = vld [vmem:[%s2699 + $0xd0] sm:$0xff]
        %v2727 = vld [vmem:[%s2699 + $0xd8] sm:$0xff]
        %v2728 = vld [vmem:[%s2699 + $0xe0] sm:$0xff]
        %v2729 = vld [vmem:[%s2699 + $0xe8] sm:$0xff]
        %v2730 = vld [vmem:[%s2699 + $0xf0] sm:$0xff]
        %v2731 = vld [vmem:[%s2699 + $0xf8] sm:$0xff]
        %v2732 = vld [vmem:[%s2699 + $0x100] sm:$0xff]
        %v2733 = vld [vmem:[%s2699 + $0x108] sm:$0xff]
        %v2734 = vld [vmem:[%s2699 + $0x110] sm:$0xff]
        %v2735 = vld [vmem:[%s2699 + $0x118] sm:$0xff]
        %v2736 = vld [vmem:[%s2699 + $0x120] sm:$0xff]
        %v2737 = vld [vmem:[%s2699 + $0x128] sm:$0xff]
        %v2738 = vld [vmem:[%s2699 + $0x130] sm:$0xff]
        %v2739 = vld [vmem:[%s2699 + $0x138] sm:$0xff]
        %v2740 = vld [vmem:[%s2699 + $0x140] sm:$0xff]
        %v2741 = vld [vmem:[%s2699 + $0x148] sm:$0xff]
        %v2742 = vld [vmem:[%s2699 + $0x150] sm:$0xff]
        %v2743 = vld [vmem:[%s2699 + $0x158] sm:$0xff]
        %v2744 = vld [vmem:[%s2699 + $0x160] sm:$0xff]
        %v2745 = vld [vmem:[%s2699 + $0x168] sm:$0xff]
        %v2746 = vld [vmem:[%s2699 + $0x170] sm:$0xff]
        %v2747 = vld [vmem:[%s2699 + $0x178] sm:$0xff]
        %v2749 = vunpack.c.l.b16 %v2698
        %v2750 = vpack.c.b16 %v641, %v2749
        %vm2751 = vcmask 1045504
        %v2752 = vrot.slane %v2750, 2
        %v2753 = vrot.slane %v646, 2
        %v2754 = vsel %vm2751, %v2752, %v2753
        %v2755 = vrot.slane %v2185, 2
        %v2756 = vsel %vm2751, %v2753, %v2755
        %v2805 = vunpack.c.l.b16 %v2700
        %v2806 = vunpack.c.h.b16 %v2700
        %v2807 = vunpack.c.l.b16 %v2701
        %v2808 = vunpack.c.h.b16 %v2701
        %v2809 = vunpack.c.l.b16 %v2702
        %v2810 = vunpack.c.h.b16 %v2702
        %v2811 = vunpack.c.l.b16 %v2703
        %v2812 = vunpack.c.h.b16 %v2703
        %v2813 = vunpack.c.l.b16 %v2704
        %v2814 = vunpack.c.h.b16 %v2704
        %v2815 = vunpack.c.l.b16 %v2705
        %v2816 = vunpack.c.h.b16 %v2705
        %v2817 = vunpack.c.l.b16 %v2706
        %v2818 = vunpack.c.h.b16 %v2706
        %v2819 = vunpack.c.l.b16 %v2707
        %v2820 = vunpack.c.h.b16 %v2707
        %v2821 = vunpack.c.l.b16 %v2708
        %v2822 = vunpack.c.h.b16 %v2708
        %v2823 = vunpack.c.l.b16 %v2709
        %v2824 = vunpack.c.h.b16 %v2709
        %v2825 = vunpack.c.l.b16 %v2710
        %v2826 = vunpack.c.h.b16 %v2710
        %v2827 = vunpack.c.l.b16 %v2711
        %v2828 = vunpack.c.h.b16 %v2711
        %v2829 = vunpack.c.l.b16 %v2712
        %v2830 = vunpack.c.h.b16 %v2712
        %v2831 = vunpack.c.l.b16 %v2713
        %v2832 = vunpack.c.h.b16 %v2713
        %v2833 = vunpack.c.l.b16 %v2714
        %v2834 = vunpack.c.h.b16 %v2714
        %v2835 = vunpack.c.l.b16 %v2715
        %v2836 = vunpack.c.h.b16 %v2715
        %v2837 = vunpack.c.l.b16 %v2716
        %v2838 = vunpack.c.h.b16 %v2716
        %v2839 = vunpack.c.l.b16 %v2717
        %v2840 = vunpack.c.h.b16 %v2717
        %v2841 = vunpack.c.l.b16 %v2718
        %v2842 = vunpack.c.h.b16 %v2718
        %v2843 = vunpack.c.l.b16 %v2719
        %v2844 = vunpack.c.h.b16 %v2719
        %v2845 = vunpack.c.l.b16 %v2720
        %v2846 = vunpack.c.h.b16 %v2720
        %v2847 = vunpack.c.l.b16 %v2721
        %v2848 = vunpack.c.h.b16 %v2721
        %v2849 = vunpack.c.l.b16 %v2722
        %v2850 = vunpack.c.h.b16 %v2722
        %v2851 = vunpack.c.l.b16 %v2723
        %v2852 = vunpack.c.h.b16 %v2723
        %v2853 = vunpack.c.l.b16 %v2724
        %v2854 = vunpack.c.h.b16 %v2724
        %v2855 = vunpack.c.l.b16 %v2725
        %v2856 = vunpack.c.h.b16 %v2725
        %v2857 = vunpack.c.l.b16 %v2726
        %v2858 = vunpack.c.h.b16 %v2726
        %v2859 = vunpack.c.l.b16 %v2727
        %v2860 = vunpack.c.h.b16 %v2727
        %v2861 = vunpack.c.l.b16 %v2728
        %v2862 = vunpack.c.h.b16 %v2728
        %v2863 = vunpack.c.l.b16 %v2729
        %v2864 = vunpack.c.h.b16 %v2729
        %v2865 = vunpack.c.l.b16 %v2730
        %v2866 = vunpack.c.h.b16 %v2730
        %v2867 = vunpack.c.l.b16 %v2731
        %v2868 = vunpack.c.h.b16 %v2731
        %v2869 = vunpack.c.l.b16 %v2732
        %v2870 = vunpack.c.h.b16 %v2732
        %v2871 = vunpack.c.l.b16 %v2733
        %v2872 = vunpack.c.h.b16 %v2733
        %v2873 = vunpack.c.l.b16 %v2734
        %v2874 = vunpack.c.h.b16 %v2734
        %v2875 = vunpack.c.l.b16 %v2735
        %v2876 = vunpack.c.h.b16 %v2735
        %v2877 = vunpack.c.l.b16 %v2736
        %v2878 = vunpack.c.h.b16 %v2736
        %v2879 = vunpack.c.l.b16 %v2737
        %v2880 = vunpack.c.h.b16 %v2737
        %v2881 = vunpack.c.l.b16 %v2738
        %v2882 = vunpack.c.h.b16 %v2738
        %v2883 = vunpack.c.l.b16 %v2739
        %v2884 = vunpack.c.h.b16 %v2739
        %v2885 = vunpack.c.l.b16 %v2740
        %v2886 = vunpack.c.h.b16 %v2740
        %v2887 = vunpack.c.l.b16 %v2741
        %v2888 = vunpack.c.h.b16 %v2741
        %v2889 = vunpack.c.l.b16 %v2742
        %v2890 = vunpack.c.h.b16 %v2742
        %v2891 = vunpack.c.l.b16 %v2743
        %v2892 = vunpack.c.h.b16 %v2743
        %v2893 = vunpack.c.l.b16 %v2744
        %v2894 = vunpack.c.h.b16 %v2744
        %v2895 = vunpack.c.l.b16 %v2745
        %v2896 = vunpack.c.h.b16 %v2745
        %v2897 = vunpack.c.l.b16 %v2746
        %v2898 = vunpack.c.h.b16 %v2746
        %v2899 = vunpack.c.l.b16 %v2747
        %v2900 = vunpack.c.h.b16 %v2747
        %v2901 = vpack.c.b16 %v2813, %v2805
        %v2902 = vpack.c.b16 %v2814, %v2806
        %v2903 = vpack.c.b16 %v2815, %v2807
        %v2904 = vpack.c.b16 %v2816, %v2808
        %v2905 = vpack.c.b16 %v2817, %v2809
        %v2906 = vpack.c.b16 %v2818, %v2810
        %v2907 = vpack.c.b16 %v2819, %v2811
        %v2908 = vpack.c.b16 %v2820, %v2812
        %v2909 = vpack.c.b16 %v2829, %v2821
        %v2910 = vpack.c.b16 %v2830, %v2822
        %v2911 = vpack.c.b16 %v2831, %v2823
        %v2912 = vpack.c.b16 %v2832, %v2824
        %v2913 = vpack.c.b16 %v2833, %v2825
        %v2914 = vpack.c.b16 %v2834, %v2826
        %v2915 = vpack.c.b16 %v2835, %v2827
        %v2916 = vpack.c.b16 %v2836, %v2828
        %v2917 = vpack.c.b16 %v2845, %v2837
        %v2918 = vpack.c.b16 %v2846, %v2838
        %v2919 = vpack.c.b16 %v2847, %v2839
        %v2920 = vpack.c.b16 %v2848, %v2840
        %v2921 = vpack.c.b16 %v2849, %v2841
        %v2922 = vpack.c.b16 %v2850, %v2842
        %v2923 = vpack.c.b16 %v2851, %v2843
        %v2924 = vpack.c.b16 %v2852, %v2844
        %v2925 = vpack.c.b16 %v2861, %v2853
        %v2926 = vpack.c.b16 %v2862, %v2854
        %v2927 = vpack.c.b16 %v2863, %v2855
        %v2928 = vpack.c.b16 %v2864, %v2856
        %v2929 = vpack.c.b16 %v2865, %v2857
        %v2930 = vpack.c.b16 %v2866, %v2858
        %v2931 = vpack.c.b16 %v2867, %v2859
        %v2932 = vpack.c.b16 %v2868, %v2860
        %v2933 = vpack.c.b16 %v2877, %v2869
        %v2934 = vpack.c.b16 %v2878, %v2870
        %v2935 = vpack.c.b16 %v2879, %v2871
        %v2936 = vpack.c.b16 %v2880, %v2872
        %v2937 = vpack.c.b16 %v2881, %v2873
        %v2938 = vpack.c.b16 %v2882, %v2874
        %v2939 = vpack.c.b16 %v2883, %v2875
        %v2940 = vpack.c.b16 %v2884, %v2876
        %v2941 = vpack.c.b16 %v2893, %v2885
        %v2942 = vpack.c.b16 %v2894, %v2886
        %v2943 = vpack.c.b16 %v2895, %v2887
        %v2944 = vpack.c.b16 %v2896, %v2888
        %v2945 = vpack.c.b16 %v2897, %v2889
        %v2946 = vpack.c.b16 %v2898, %v2890
        %v2947 = vpack.c.b16 %v2899, %v2891
        %v2948 = vpack.c.b16 %v2900, %v2892
        %v2998 = vsel %vm909, %v2754, 0
        %v3001 = vsel %vm909, %v2756, 0
        %3003 = vmatprep.subr.bf16.mxu0 %v2902
        %3004 = vmatpush1.bf16.msra.mxu0 %v2901
        %3005 = vmatprep.subr.bf16.mxu0 %v2910
        %3006 = vmatpush1.bf16.msra.mxu0 %v2909
        %3007 = vmatprep.subr.bf16.mxu0 %v2918
        %3008 = vmatpush1.bf16.msra.mxu0 %v2917
        %3009 = vmatprep.subr.bf16.mxu0 %v2926
        %3010 = vmatpush1.bf16.msra.mxu0 %v2925
        %3011 = vmatprep.subr.bf16.mxu0 %v2934
        %3012 = vmatpush1.bf16.msra.mxu0 %v2933
        %3013 = vmatprep.subr.bf16.mxu0 %v2942
        %3014 = vmatpush1.bf16.msra.mxu0 %v2941
        %3015 = vmatprep.subr.bf16.mxu0 0
        %3016 = vmatpush1.bf16.msra.mxu0 0
        %3017 = vmatprep.subr.bf16.mxu0 0
        %3018 = vmatpush1.bf16.msra.mxu0 0
        %3019 = vmatprep.subr.bf16.mxu0 0
        %3020 = vmatpush1.bf16.msra.mxu0 0
        %3021 = vmatprep.subr.bf16.mxu0 0
        %3022 = vmatpush1.bf16.msra.mxu0 0
        %3023 = vmatprep.subr.bf16.mxu0 0
        %3024 = vmatpush1.bf16.msra.mxu0 0
        %3025 = vmatprep.subr.bf16.mxu0 0
        %3026 = vmatpush1.bf16.msra.mxu0 0
        %3027 = vmatprep.subr.bf16.mxu0 0
        %3028 = vmatpush1.bf16.msra.mxu0 0
        %3029 = vmatprep.subr.bf16.mxu0 0
        %3030 = vmatpush1.bf16.msra.mxu0 0
        %3031 = vmatprep.subr.bf16.mxu0 0
        %3032 = vmatpush1.bf16.msra.mxu0 0
        %3033 = vmatprep.subr.bf16.mxu0 0
        %3034 = vmatpush1.bf16.msra.mxu0 0
        %3035 = vmatprep.mubr.bf16.mxu0 0
        %3036 = vmatmul.mubr.bf16.gmra.mrb[0].mxu0 %v2998
        %v3037 = vpop.f32.mrb[0].mxu0
        %v3038 = vadd.f32 0.0, %v3037
        %v3039 = vpop.f32.mrb[0].mxu0
        %v3040 = vadd.f32 0.0, %v3039
        %v3041 = vpop.f32.mrb[0].mxu0
        %v3042 = vadd.f32 0.0, %v3041
        %v3043 = vpop.f32.mrb[0].mxu0
        %v3044 = vadd.f32 0.0, %v3043
        %3045 = vmatprep.mubr.bf16.mxu0 0
        %3046 = vmatmul.mubr.bf16.gmra.mrb[0].mxu0 %v3001
        %v3047 = vpop.f32.mrb[0].mxu0
        %v3048 = vadd.f32 0.0, %v3047
        %v3049 = vpop.f32.mrb[0].mxu0
        %v3050 = vadd.f32 0.0, %v3049
        %v3051 = vpop.f32.mrb[0].mxu0
        %v3052 = vadd.f32 0.0, %v3051
        %v3053 = vpop.f32.mrb[0].mxu0
        %v3054 = vadd.f32 0.0, %v3053
        %3055 = vdwg.mxu0
        %3056 = vmatprep.subr.bf16.mxu0 %v2904
        %3057 = vmatpush1.bf16.msra.mxu0 %v2903
        %3058 = vmatprep.subr.bf16.mxu0 %v2912
        %3059 = vmatpush1.bf16.msra.mxu0 %v2911
        %3060 = vmatprep.subr.bf16.mxu0 %v2920
        %3061 = vmatpush1.bf16.msra.mxu0 %v2919
        %3062 = vmatprep.subr.bf16.mxu0 %v2928
        %3063 = vmatpush1.bf16.msra.mxu0 %v2927
        %3064 = vmatprep.subr.bf16.mxu0 %v2936
        %3065 = vmatpush1.bf16.msra.mxu0 %v2935
        %3066 = vmatprep.subr.bf16.mxu0 %v2944
        %3067 = vmatpush1.bf16.msra.mxu0 %v2943
        %3068 = vmatprep.subr.bf16.mxu0 0
        %3069 = vmatpush1.bf16.msra.mxu0 0
        %3070 = vmatprep.subr.bf16.mxu0 0
        %3071 = vmatpush1.bf16.msra.mxu0 0
        %3072 = vmatprep.subr.bf16.mxu0 0
        %3073 = vmatpush1.bf16.msra.mxu0 0
        %3074 = vmatprep.subr.bf16.mxu0 0
        %3075 = vmatpush1.bf16.msra.mxu0 0
        %3076 = vmatprep.subr.bf16.mxu0 0
        %3077 = vmatpush1.bf16.msra.mxu0 0
        %3078 = vmatprep.subr.bf16.mxu0 0
        %3079 = vmatpush1.bf16.msra.mxu0 0
        %3080 = vmatprep.subr.bf16.mxu0 0
        %3081 = vmatpush1.bf16.msra.mxu0 0
        %3082 = vmatprep.subr.bf16.mxu0 0
        %3083 = vmatpush1.bf16.msra.mxu0 0
        %3084 = vmatprep.subr.bf16.mxu0 0
        %3085 = vmatpush1.bf16.msra.mxu0 0
        %3086 = vmatprep.subr.bf16.mxu0 0
        %3087 = vmatpush1.bf16.msra.mxu0 0
        %3088 = vmatprep.mubr.bf16.mxu0 0
        %3089 = vmatmul.mubr.bf16.gmra.mrb[0].mxu0 %v2998
        %v3090 = vpop.f32.mrb[0].mxu0
        %v3091 = vadd.f32 0.0, %v3090
        %v3092 = vpop.f32.mrb[0].mxu0
        %v3093 = vadd.f32 0.0, %v3092
        %v3094 = vpop.f32.mrb[0].mxu0
        %v3095 = vadd.f32 0.0, %v3094
        %v3096 = vpop.f32.mrb[0].mxu0
        %v3097 = vadd.f32 0.0, %v3096
        %3098 = vmatprep.mubr.bf16.mxu0 0
        %3099 = vmatmul.mubr.bf16.gmra.mrb[0].mxu0 %v3001
        %v3100 = vpop.f32.mrb[0].mxu0
        %v3101 = vadd.f32 0.0, %v3100
        %v3102 = vpop.f32.mrb[0].mxu0
        %v3103 = vadd.f32 0.0, %v3102
        %v3104 = vpop.f32.mrb[0].mxu0
        %v3105 = vadd.f32 0.0, %v3104
        %v3106 = vpop.f32.mrb[0].mxu0
        %v3107 = vadd.f32 0.0, %v3106
        %3108 = vdwg.mxu0
        %3109 = vmatprep.subr.bf16.mxu0 %v2906
        %3110 = vmatpush1.bf16.msra.mxu0 %v2905
        %3111 = vmatprep.subr.bf16.mxu0 %v2914
        %3112 = vmatpush1.bf16.msra.mxu0 %v2913
        %3113 = vmatprep.subr.bf16.mxu0 %v2922
        %3114 = vmatpush1.bf16.msra.mxu0 %v2921
        %3115 = vmatprep.subr.bf16.mxu0 %v2930
        %3116 = vmatpush1.bf16.msra.mxu0 %v2929
        %3117 = vmatprep.subr.bf16.mxu0 %v2938
        %3118 = vmatpush1.bf16.msra.mxu0 %v2937
        %3119 = vmatprep.subr.bf16.mxu0 %v2946
        %3120 = vmatpush1.bf16.msra.mxu0 %v2945
        %3121 = vmatprep.subr.bf16.mxu0 0
        %3122 = vmatpush1.bf16.msra.mxu0 0
        %3123 = vmatprep.subr.bf16.mxu0 0
        %3124 = vmatpush1.bf16.msra.mxu0 0
        %3125 = vmatprep.subr.bf16.mxu0 0
        %3126 = vmatpush1.bf16.msra.mxu0 0
        %3127 = vmatprep.subr.bf16.mxu0 0
        %3128 = vmatpush1.bf16.msra.mxu0 0
        %3129 = vmatprep.subr.bf16.mxu0 0
        %3130 = vmatpush1.bf16.msra.mxu0 0
        %3131 = vmatprep.subr.bf16.mxu0 0
        %3132 = vmatpush1.bf16.msra.mxu0 0
        %3133 = vmatprep.subr.bf16.mxu0 0
        %3134 = vmatpush1.bf16.msra.mxu0 0
        %3135 = vmatprep.subr.bf16.mxu0 0
        %3136 = vmatpush1.bf16.msra.mxu0 0
        %3137 = vmatprep.subr.bf16.mxu0 0
        %3138 = vmatpush1.bf16.msra.mxu0 0
        %3139 = vmatprep.subr.bf16.mxu0 0
        %3140 = vmatpush1.bf16.msra.mxu0 0
        %3141 = vmatprep.mubr.bf16.mxu0 0
        %3142 = vmatmul.mubr.bf16.gmra.mrb[0].mxu0 %v2998
        %v3143 = vpop.f32.mrb[0].mxu0
        %v3144 = vadd.f32 0.0, %v3143
        %v3145 = vpop.f32.mrb[0].mxu0
        %v3146 = vadd.f32 0.0, %v3145
        %v3147 = vpop.f32.mrb[0].mxu0
        %v3148 = vadd.f32 0.0, %v3147
        %v3149 = vpop.f32.mrb[0].mxu0
        %v3150 = vadd.f32 0.0, %v3149
        %3151 = vmatprep.mubr.bf16.mxu0 0
        %3152 = vmatmul.mubr.bf16.gmra.mrb[0].mxu0 %v3001
        %v3153 = vpop.f32.mrb[0].mxu0
        %v3154 = vadd.f32 0.0, %v3153
        %v3155 = vpop.f32.mrb[0].mxu0
        %v3156 = vadd.f32 0.0, %v3155
        %v3157 = vpop.f32.mrb[0].mxu0
        %v3158 = vadd.f32 0.0, %v3157
        %v3159 = vpop.f32.mrb[0].mxu0
        %v3160 = vadd.f32 0.0, %v3159
        %3161 = vdwg.mxu0
        %3162 = vmatprep.subr.bf16.mxu0 %v2908
        %3163 = vmatpush1.bf16.msra.mxu0 %v2907
        %3164 = vmatprep.subr.bf16.mxu0 %v2916
        %3165 = vmatpush1.bf16.msra.mxu0 %v2915
        %3166 = vmatprep.subr.bf16.mxu0 %v2924
        %3167 = vmatpush1.bf16.msra.mxu0 %v2923
        %3168 = vmatprep.subr.bf16.mxu0 %v2932
        %3169 = vmatpush1.bf16.msra.mxu0 %v2931
        %3170 = vmatprep.subr.bf16.mxu0 %v2940
        %3171 = vmatpush1.bf16.msra.mxu0 %v2939
        %3172 = vmatprep.subr.bf16.mxu0 %v2948
        %3173 = vmatpush1.bf16.msra.mxu0 %v2947
        %3174 = vmatprep.subr.bf16.mxu0 0
        %3175 = vmatpush1.bf16.msra.mxu0 0
        %3176 = vmatprep.subr.bf16.mxu0 0
        %3177 = vmatpush1.bf16.msra.mxu0 0
        %3178 = vmatprep.subr.bf16.mxu0 0
        %3179 = vmatpush1.bf16.msra.mxu0 0
        %3180 = vmatprep.subr.bf16.mxu0 0
        %3181 = vmatpush1.bf16.msra.mxu0 0
        %3182 = vmatprep.subr.bf16.mxu0 0
        %3183 = vmatpush1.bf16.msra.mxu0 0
        %3184 = vmatprep.subr.bf16.mxu0 0
        %3185 = vmatpush1.bf16.msra.mxu0 0
        %3186 = vmatprep.subr.bf16.mxu0 0
        %3187 = vmatpush1.bf16.msra.mxu0 0
        %3188 = vmatprep.subr.bf16.mxu0 0
        %3189 = vmatpush1.bf16.msra.mxu0 0
        %3190 = vmatprep.subr.bf16.mxu0 0
        %3191 = vmatpush1.bf16.msra.mxu0 0
        %3192 = vmatprep.subr.bf16.mxu0 0
        %3193 = vmatpush1.bf16.msra.mxu0 0
        %3194 = vmatprep.mubr.bf16.mxu0 0
        %3195 = vmatmul.mubr.bf16.gmra.mrb[0].mxu0 %v2998
        %v3196 = vpop.f32.mrb[0].mxu0
        %v3197 = vadd.f32 0.0, %v3196
        %v3198 = vpop.f32.mrb[0].mxu0
        %v3199 = vadd.f32 0.0, %v3198
        %v3200 = vpop.f32.mrb[0].mxu0
        %v3201 = vadd.f32 0.0, %v3200
        %v3202 = vpop.f32.mrb[0].mxu0
        %v3203 = vadd.f32 0.0, %v3202
        %3204 = vmatprep.mubr.bf16.mxu0 0
        %3205 = vmatmul.mubr.bf16.gmra.mrb[0].mxu0 %v3001
        %v3206 = vpop.f32.mrb[0].mxu0
        %v3207 = vadd.f32 0.0, %v3206
        %v3208 = vpop.f32.mrb[0].mxu0
        %v3209 = vadd.f32 0.0, %v3208
        %v3210 = vpop.f32.mrb[0].mxu0
        %v3211 = vadd.f32 0.0, %v3210
        %v3212 = vpop.f32.mrb[0].mxu0
        %v3213 = vadd.f32 0.0, %v3212
        %3214 = vdwg.mxu0
        %v3215 = vadd.f32 %v2666, %v3038
        %v3216 = vadd.f32 %v2667, %v3040
        %v3217 = vadd.f32 %v2668, %v3091
        %v3218 = vadd.f32 %v2669, %v3093
        %v3219 = vadd.f32 %v2670, %v3144
        %v3220 = vadd.f32 %v2671, %v3146
        %v3221 = vadd.f32 %v2672, %v3197
        %v3222 = vadd.f32 %v2673, %v3199
        %v3223 = vadd.f32 %v2674, %v3042
        %v3224 = vadd.f32 %v2675, %v3044
        %v3225 = vadd.f32 %v2676, %v3095
        %v3226 = vadd.f32 %v2677, %v3097
        %v3227 = vadd.f32 %v2678, %v3148
        %v3228 = vadd.f32 %v2679, %v3150
        %v3229 = vadd.f32 %v2680, %v3201
        %v3230 = vadd.f32 %v2681, %v3203
        %v3231 = vadd.f32 %v2682, %v3048
        %v3232 = vadd.f32 %v2683, %v3050
        %v3233 = vadd.f32 %v2684, %v3101
        %v3234 = vadd.f32 %v2685, %v3103
        %v3235 = vadd.f32 %v2686, %v3154
        %v3236 = vadd.f32 %v2687, %v3156
        %v3237 = vadd.f32 %v2688, %v3207
        %v3238 = vadd.f32 %v2689, %v3209
        %v3239 = vadd.f32 %v2690, %v3052
        %v3240 = vadd.f32 %v2691, %v3054
        %v3241 = vadd.f32 %v2692, %v3105
        %v3242 = vadd.f32 %v2693, %v3107
        %v3243 = vadd.f32 %v2694, %v3158
        %v3244 = vadd.f32 %v2695, %v3160
        %v3245 = vadd.f32 %v2696, %v3211
        %v3246 = vadd.f32 %v2697, %v3213
        %v3247 = vld [vmem:[#allocation8] sm:$0xff]
        %v3249 = vlaneseq
        %v3250 = vshrl.u32 %v3249, 7
        %v3251 = vsub.s32 0, %v3250
        %v3252 = vrot.slane %v3247, %v3251
        %v3253 = vlaneseq
        %v3254 = vshrl.u32 %v3253, 7
        %v3255 = vsub.s32 1, %v3254
        %v3256 = vrot.slane %v3247, %v3255
        %v3257 = vlaneseq
        %v3258 = vshrl.u32 %v3257, 7
        %v3259 = vsub.s32 2, %v3258
        %v3260 = vrot.slane %v3247, %v3259
        %v3261 = vlaneseq
        %v3262 = vshrl.u32 %v3261, 7
        %v3263 = vsub.s32 3, %v3262
        %v3264 = vrot.slane %v3247, %v3263
        %v3265 = vlaneseq
        %v3266 = vshrl.u32 %v3265, 7
        %v3267 = vsub.s32 4, %v3266
        %v3268 = vrot.slane %v3247, %v3267
        %v3269 = vlaneseq
        %v3270 = vshrl.u32 %v3269, 7
        %v3271 = vsub.s32 5, %v3270
        %v3272 = vrot.slane %v3247, %v3271
        %v3273 = vlaneseq
        %v3274 = vshrl.u32 %v3273, 7
        %v3275 = vsub.s32 6, %v3274
        %v3276 = vrot.slane %v3247, %v3275
        %v3277 = vlaneseq
        %v3278 = vshrl.u32 %v3277, 7
        %v3279 = vsub.s32 7, %v3278
        %v3280 = vrot.slane %v3247, %v3279
        %v3289 = vadd.f32 %v3215, %v3252
        %v3290 = vadd.f32 %v3216, %v3256
        %v3291 = vadd.f32 %v3217, %v3260
        %v3292 = vadd.f32 %v3218, %v3264
        %v3293 = vadd.f32 %v3219, %v3268
        %v3294 = vadd.f32 %v3220, %v3272
        %v3295 = vadd.f32 %v3221, %v3276
        %v3296 = vadd.f32 %v3222, %v3280
        %v3297 = vadd.f32 %v3223, %v3252
        %v3298 = vadd.f32 %v3224, %v3256
        %v3299 = vadd.f32 %v3225, %v3260
        %v3300 = vadd.f32 %v3226, %v3264
        %v3301 = vadd.f32 %v3227, %v3268
        %v3302 = vadd.f32 %v3228, %v3272
        %v3303 = vadd.f32 %v3229, %v3276
        %v3304 = vadd.f32 %v3230, %v3280
        %v3305 = vadd.f32 %v3231, %v3252
        %v3306 = vadd.f32 %v3232, %v3256
        %v3307 = vadd.f32 %v3233, %v3260
        %v3308 = vadd.f32 %v3234, %v3264
        %v3309 = vadd.f32 %v3235, %v3268
        %v3310 = vadd.f32 %v3236, %v3272
        %v3311 = vadd.f32 %v3237, %v3276
        %v3312 = vadd.f32 %v3238, %v3280
        %v3313 = vadd.f32 %v3239, %v3252
        %v3314 = vadd.f32 %v3240, %v3256
        %v3315 = vadd.f32 %v3241, %v3260
        %v3316 = vadd.f32 %v3242, %v3264
        %v3317 = vadd.f32 %v3243, %v3268
        %v3318 = vadd.f32 %v3244, %v3272
        %v3319 = vadd.f32 %v3245, %v3276
        %v3320 = vadd.f32 %v3246, %v3280
        %v3353 = vcombine.low %v3289, %v3290
        %v3354 = vcombine.high %v3289, %v3290
        %v3355 = vcombine.low %v3291, %v3292
        %v3356 = vcombine.high %v3291, %v3292
        %v3358 = vunpack.c.l.s4 1983009808
        %v3359 = vunpack.c.0.s8 %v3358
        %v3360 = vlaneseq
        %v3361 = vshrl.u32 %v3360, 7
        %v3362 = vsub.s32 %v3359, %v3361
        %v3363 = vrot.slane %v3353, %v3362
        %v3365 = vunpack.c.l.s4 1983009808
        %v3366 = vunpack.c.0.s8 %v3365
        %v3367 = vlaneseq
        %v3368 = vshrl.u32 %v3367, 7
        %v3369 = vsub.s32 %v3366, %v3368
        %v3370 = vrot.slane %v3354, %v3369
        %v3372 = vunpack.c.l.s4 1983009808
        %v3373 = vunpack.c.0.s8 %v3372
        %v3374 = vlaneseq
        %v3375 = vshrl.u32 %v3374, 7
        %v3376 = vsub.s32 %v3373, %v3375
        %v3377 = vrot.slane %v3355, %v3376
        %v3379 = vunpack.c.l.s4 1983009808
        %v3380 = vunpack.c.0.s8 %v3379
        %v3381 = vlaneseq
        %v3382 = vshrl.u32 %v3381, 7
        %v3383 = vsub.s32 %v3380, %v3382
        %v3384 = vrot.slane %v3356, %v3383
        %v3385 = vcombine.low %v3363, %v3377
        %v3386 = vcombine.high %v3363, %v3377
        %v3387 = vcombine.low %v3370, %v3384
        %v3388 = vcombine.high %v3370, %v3384
        %v3389 = vcombine.low %v3293, %v3294
        %v3390 = vcombine.high %v3293, %v3294
        %v3391 = vcombine.low %v3295, %v3296
        %v3392 = vcombine.high %v3295, %v3296
        %v3394 = vunpack.c.l.s4 1983009808
        %v3395 = vunpack.c.0.s8 %v3394
        %v3396 = vlaneseq
        %v3397 = vshrl.u32 %v3396, 7
        %v3398 = vsub.s32 %v3395, %v3397
        %v3399 = vrot.slane %v3389, %v3398
        %v3401 = vunpack.c.l.s4 1983009808
        %v3402 = vunpack.c.0.s8 %v3401
        %v3403 = vlaneseq
        %v3404 = vshrl.u32 %v3403, 7
        %v3405 = vsub.s32 %v3402, %v3404
        %v3406 = vrot.slane %v3390, %v3405
        %v3408 = vunpack.c.l.s4 1983009808
        %v3409 = vunpack.c.0.s8 %v3408
        %v3410 = vlaneseq
        %v3411 = vshrl.u32 %v3410, 7
        %v3412 = vsub.s32 %v3409, %v3411
        %v3413 = vrot.slane %v3391, %v3412
        %v3415 = vunpack.c.l.s4 1983009808
        %v3416 = vunpack.c.0.s8 %v3415
        %v3417 = vlaneseq
        %v3418 = vshrl.u32 %v3417, 7
        %v3419 = vsub.s32 %v3416, %v3418
        %v3420 = vrot.slane %v3392, %v3419
        %v3421 = vcombine.low %v3399, %v3413
        %v3422 = vcombine.high %v3399, %v3413
        %v3423 = vcombine.low %v3406, %v3420
        %v3424 = vcombine.high %v3406, %v3420
        %v3425 = vcombine.low %v3297, %v3298
        %v3426 = vcombine.high %v3297, %v3298
        %v3427 = vcombine.low %v3299, %v3300
        %v3428 = vcombine.high %v3299, %v3300
        %v3430 = vunpack.c.l.s4 1983009808
        %v3431 = vunpack.c.0.s8 %v3430
        %v3432 = vlaneseq
        %v3433 = vshrl.u32 %v3432, 7
        %v3434 = vsub.s32 %v3431, %v3433
        %v3435 = vrot.slane %v3425, %v3434
        %v3437 = vunpack.c.l.s4 1983009808
        %v3438 = vunpack.c.0.s8 %v3437
        %v3439 = vlaneseq
        %v3440 = vshrl.u32 %v3439, 7
        %v3441 = vsub.s32 %v3438, %v3440
        %v3442 = vrot.slane %v3426, %v3441
        %v3444 = vunpack.c.l.s4 1983009808
        %v3445 = vunpack.c.0.s8 %v3444
        %v3446 = vlaneseq
        %v3447 = vshrl.u32 %v3446, 7
        %v3448 = vsub.s32 %v3445, %v3447
        %v3449 = vrot.slane %v3427, %v3448
        %v3451 = vunpack.c.l.s4 1983009808
        %v3452 = vunpack.c.0.s8 %v3451
        %v3453 = vlaneseq
        %v3454 = vshrl.u32 %v3453, 7
        %v3455 = vsub.s32 %v3452, %v3454
        %v3456 = vrot.slane %v3428, %v3455
        %v3457 = vcombine.low %v3435, %v3449
        %v3458 = vcombine.high %v3435, %v3449
        %v3459 = vcombine.low %v3442, %v3456
        %v3460 = vcombine.high %v3442, %v3456
        %v3461 = vcombine.low %v3301, %v3302
        %v3462 = vcombine.high %v3301, %v3302
        %v3463 = vcombine.low %v3303, %v3304
        %v3464 = vcombine.high %v3303, %v3304
        %v3466 = vunpack.c.l.s4 1983009808
        %v3467 = vunpack.c.0.s8 %v3466
        %v3468 = vlaneseq
        %v3469 = vshrl.u32 %v3468, 7
        %v3470 = vsub.s32 %v3467, %v3469
        %v3471 = vrot.slane %v3461, %v3470
        %v3473 = vunpack.c.l.s4 1983009808
        %v3474 = vunpack.c.0.s8 %v3473
        %v3475 = vlaneseq
        %v3476 = vshrl.u32 %v3475, 7
        %v3477 = vsub.s32 %v3474, %v3476
        %v3478 = vrot.slane %v3462, %v3477
        %v3480 = vunpack.c.l.s4 1983009808
        %v3481 = vunpack.c.0.s8 %v3480
        %v3482 = vlaneseq
        %v3483 = vshrl.u32 %v3482, 7
        %v3484 = vsub.s32 %v3481, %v3483
        %v3485 = vrot.slane %v3463, %v3484
        %v3487 = vunpack.c.l.s4 1983009808
        %v3488 = vunpack.c.0.s8 %v3487
        %v3489 = vlaneseq
        %v3490 = vshrl.u32 %v3489, 7
        %v3491 = vsub.s32 %v3488, %v3490
        %v3492 = vrot.slane %v3464, %v3491
        %v3493 = vcombine.low %v3471, %v3485
        %v3494 = vcombine.high %v3471, %v3485
        %v3495 = vcombine.low %v3478, %v3492
        %v3496 = vcombine.high %v3478, %v3492
        %v3497 = vcombine.low %v3305, %v3306
        %v3498 = vcombine.high %v3305, %v3306
        %v3499 = vcombine.low %v3307, %v3308
        %v3500 = vcombine.high %v3307, %v3308
        %v3502 = vunpack.c.l.s4 1983009808
        %v3503 = vunpack.c.0.s8 %v3502
        %v3504 = vlaneseq
        %v3505 = vshrl.u32 %v3504, 7
        %v3506 = vsub.s32 %v3503, %v3505
        %v3507 = vrot.slane %v3497, %v3506
        %v3509 = vunpack.c.l.s4 1983009808
        %v3510 = vunpack.c.0.s8 %v3509
        %v3511 = vlaneseq
        %v3512 = vshrl.u32 %v3511, 7
        %v3513 = vsub.s32 %v3510, %v3512
        %v3514 = vrot.slane %v3498, %v3513
        %v3516 = vunpack.c.l.s4 1983009808
        %v3517 = vunpack.c.0.s8 %v3516
        %v3518 = vlaneseq
        %v3519 = vshrl.u32 %v3518, 7
        %v3520 = vsub.s32 %v3517, %v3519
        %v3521 = vrot.slane %v3499, %v3520
        %v3523 = vunpack.c.l.s4 1983009808
        %v3524 = vunpack.c.0.s8 %v3523
        %v3525 = vlaneseq
        %v3526 = vshrl.u32 %v3525, 7
        %v3527 = vsub.s32 %v3524, %v3526
        %v3528 = vrot.slane %v3500, %v3527
        %v3529 = vcombine.low %v3507, %v3521
        %v3530 = vcombine.high %v3507, %v3521
        %v3531 = vcombine.low %v3514, %v3528
        %v3532 = vcombine.high %v3514, %v3528
        %v3533 = vcombine.low %v3309, %v3310
        %v3534 = vcombine.high %v3309, %v3310
        %v3535 = vcombine.low %v3311, %v3312
        %v3536 = vcombine.high %v3311, %v3312
        %v3538 = vunpack.c.l.s4 1983009808
        %v3539 = vunpack.c.0.s8 %v3538
        %v3540 = vlaneseq
        %v3541 = vshrl.u32 %v3540, 7
        %v3542 = vsub.s32 %v3539, %v3541
        %v3543 = vrot.slane %v3533, %v3542
        %v3545 = vunpack.c.l.s4 1983009808
        %v3546 = vunpack.c.0.s8 %v3545
        %v3547 = vlaneseq
        %v3548 = vshrl.u32 %v3547, 7
        %v3549 = vsub.s32 %v3546, %v3548
        %v3550 = vrot.slane %v3534, %v3549
        %v3552 = vunpack.c.l.s4 1983009808
        %v3553 = vunpack.c.0.s8 %v3552
        %v3554 = vlaneseq
        %v3555 = vshrl.u32 %v3554, 7
        %v3556 = vsub.s32 %v3553, %v3555
        %v3557 = vrot.slane %v3535, %v3556
        %v3559 = vunpack.c.l.s4 1983009808
        %v3560 = vunpack.c.0.s8 %v3559
        %v3561 = vlaneseq
        %v3562 = vshrl.u32 %v3561, 7
        %v3563 = vsub.s32 %v3560, %v3562
        %v3564 = vrot.slane %v3536, %v3563
        %v3565 = vcombine.low %v3543, %v3557
        %v3566 = vcombine.high %v3543, %v3557
        %v3567 = vcombine.low %v3550, %v3564
        %v3568 = vcombine.high %v3550, %v3564
        %v3569 = vcombine.low %v3313, %v3314
        %v3570 = vcombine.high %v3313, %v3314
        %v3571 = vcombine.low %v3315, %v3316
        %v3572 = vcombine.high %v3315, %v3316
        %v3574 = vunpack.c.l.s4 1983009808
        %v3575 = vunpack.c.0.s8 %v3574
        %v3576 = vlaneseq
        %v3577 = vshrl.u32 %v3576, 7
        %v3578 = vsub.s32 %v3575, %v3577
        %v3579 = vrot.slane %v3569, %v3578
        %v3581 = vunpack.c.l.s4 1983009808
        %v3582 = vunpack.c.0.s8 %v3581
        %v3583 = vlaneseq
        %v3584 = vshrl.u32 %v3583, 7
        %v3585 = vsub.s32 %v3582, %v3584
        %v3586 = vrot.slane %v3570, %v3585
        %v3588 = vunpack.c.l.s4 1983009808
        %v3589 = vunpack.c.0.s8 %v3588
        %v3590 = vlaneseq
        %v3591 = vshrl.u32 %v3590, 7
        %v3592 = vsub.s32 %v3589, %v3591
        %v3593 = vrot.slane %v3571, %v3592
        %v3595 = vunpack.c.l.s4 1983009808
        %v3596 = vunpack.c.0.s8 %v3595
        %v3597 = vlaneseq
        %v3598 = vshrl.u32 %v3597, 7
        %v3599 = vsub.s32 %v3596, %v3598
        %v3600 = vrot.slane %v3572, %v3599
        %v3601 = vcombine.low %v3579, %v3593
        %v3602 = vcombine.high %v3579, %v3593
        %v3603 = vcombine.low %v3586, %v3600
        %v3604 = vcombine.high %v3586, %v3600
        %v3605 = vcombine.low %v3317, %v3318
        %v3606 = vcombine.high %v3317, %v3318
        %v3607 = vcombine.low %v3319, %v3320
        %v3608 = vcombine.high %v3319, %v3320
        %v3610 = vunpack.c.l.s4 1983009808
        %v3611 = vunpack.c.0.s8 %v3610
        %v3612 = vlaneseq
        %v3613 = vshrl.u32 %v3612, 7
        %v3614 = vsub.s32 %v3611, %v3613
        %v3615 = vrot.slane %v3605, %v3614
        %v3617 = vunpack.c.l.s4 1983009808
        %v3618 = vunpack.c.0.s8 %v3617
        %v3619 = vlaneseq
        %v3620 = vshrl.u32 %v3619, 7
        %v3621 = vsub.s32 %v3618, %v3620
        %v3622 = vrot.slane %v3606, %v3621
        %v3624 = vunpack.c.l.s4 1983009808
        %v3625 = vunpack.c.0.s8 %v3624
        %v3626 = vlaneseq
        %v3627 = vshrl.u32 %v3626, 7
        %v3628 = vsub.s32 %v3625, %v3627
        %v3629 = vrot.slane %v3607, %v3628
        %v3631 = vunpack.c.l.s4 1983009808
        %v3632 = vunpack.c.0.s8 %v3631
        %v3633 = vlaneseq
        %v3634 = vshrl.u32 %v3633, 7
        %v3635 = vsub.s32 %v3632, %v3634
        %v3636 = vrot.slane %v3608, %v3635
        %v3637 = vcombine.low %v3615, %v3629
        %v3638 = vcombine.high %v3615, %v3629
        %v3639 = vcombine.low %v3622, %v3636
        %v3640 = vcombine.high %v3622, %v3636
        %v3673 = vrot.slane %v3385, 7
        %v3674 = vrot.slane %v3673, 2
        %v3675 = vrot.slane %v3421, 7
        %v3676 = vrot.slane %v3675, 2
        %v3677 = vrot.slane %v3386, 7
        %v3678 = vrot.slane %v3677, 2
        %v3679 = vrot.slane %v3422, 7
        %v3680 = vrot.slane %v3679, 2
        %v3681 = vrot.slane %v3387, 7
        %v3682 = vrot.slane %v3681, 2
        %v3683 = vrot.slane %v3423, 7
        %v3684 = vrot.slane %v3683, 2
        %v3685 = vrot.slane %v3388, 7
        %v3686 = vrot.slane %v3685, 2
        %v3687 = vrot.slane %v3424, 7
        %v3688 = vrot.slane %v3687, 2
        %v3689 = vrot.slane %v3457, 7
        %v3690 = vrot.slane %v3689, 2
        %v3691 = vrot.slane %v3493, 7
        %v3692 = vrot.slane %v3691, 2
        %v3693 = vrot.slane %v3458, 7
        %v3694 = vrot.slane %v3693, 2
        %v3695 = vrot.slane %v3494, 7
        %v3696 = vrot.slane %v3695, 2
        %v3697 = vrot.slane %v3459, 7
        %v3698 = vrot.slane %v3697, 2
        %v3699 = vrot.slane %v3495, 7
        %v3700 = vrot.slane %v3699, 2
        %v3701 = vrot.slane %v3460, 7
        %v3702 = vrot.slane %v3701, 2
        %v3703 = vrot.slane %v3496, 7
        %v3704 = vrot.slane %v3703, 2
        %v3705 = vrot.slane %v3529, 7
        %v3706 = vrot.slane %v3705, 2
        %v3707 = vrot.slane %v3565, 7
        %v3708 = vrot.slane %v3707, 2
        %v3709 = vrot.slane %v3530, 7
        %v3710 = vrot.slane %v3709, 2
        %v3711 = vrot.slane %v3566, 7
        %v3712 = vrot.slane %v3711, 2
        %v3713 = vrot.slane %v3531, 7
        %v3714 = vrot.slane %v3713, 2
        %v3715 = vrot.slane %v3567, 7
        %v3716 = vrot.slane %v3715, 2
        %v3717 = vrot.slane %v3532, 7
        %v3718 = vrot.slane %v3717, 2
        %v3719 = vrot.slane %v3568, 7
        %v3720 = vrot.slane %v3719, 2
        %v3721 = vrot.slane %v3601, 7
        %v3722 = vrot.slane %v3721, 2
        %v3723 = vrot.slane %v3637, 7
        %v3724 = vrot.slane %v3723, 2
        %v3725 = vrot.slane %v3602, 7
        %v3726 = vrot.slane %v3725, 2
        %v3727 = vrot.slane %v3638, 7
        %v3728 = vrot.slane %v3727, 2
        %v3729 = vrot.slane %v3603, 7
        %v3730 = vrot.slane %v3729, 2
        %v3731 = vrot.slane %v3639, 7
        %v3732 = vrot.slane %v3731, 2
        %v3733 = vrot.slane %v3604, 7
        %v3734 = vrot.slane %v3733, 2
        %v3735 = vrot.slane %v3640, 7
        %v3736 = vrot.slane %v3735, 2
        %v3769 = vmax.f32 %v3385, %v3674
        %v3770 = vmax.f32 %v3421, %v3676
        %v3771 = vmax.f32 %v3386, %v3678
        %v3772 = vmax.f32 %v3422, %v3680
        %v3773 = vmax.f32 %v3387, %v3682
        %v3774 = vmax.f32 %v3423, %v3684
        %v3775 = vmax.f32 %v3388, %v3686
        %v3776 = vmax.f32 %v3424, %v3688
        %v3777 = vmax.f32 %v3457, %v3690
        %v3778 = vmax.f32 %v3493, %v3692
        %v3779 = vmax.f32 %v3458, %v3694
        %v3780 = vmax.f32 %v3494, %v3696
        %v3781 = vmax.f32 %v3459, %v3698
        %v3782 = vmax.f32 %v3495, %v3700
        %v3783 = vmax.f32 %v3460, %v3702
        %v3784 = vmax.f32 %v3496, %v3704
        %v3785 = vmax.f32 %v3529, %v3706
        %v3786 = vmax.f32 %v3565, %v3708
        %v3787 = vmax.f32 %v3530, %v3710
        %v3788 = vmax.f32 %v3566, %v3712
        %v3789 = vmax.f32 %v3531, %v3714
        %v3790 = vmax.f32 %v3567, %v3716
        %v3791 = vmax.f32 %v3532, %v3718
        %v3792 = vmax.f32 %v3568, %v3720
        %v3793 = vmax.f32 %v3601, %v3722
        %v3794 = vmax.f32 %v3637, %v3724
        %v3795 = vmax.f32 %v3602, %v3726
        %v3796 = vmax.f32 %v3638, %v3728
        %v3797 = vmax.f32 %v3603, %v3730
        %v3798 = vmax.f32 %v3639, %v3732
        %v3799 = vmax.f32 %v3604, %v3734
        %v3800 = vmax.f32 %v3640, %v3736
        %v3801 = vmax.f32 %v3769, %v3770
        %v3802 = vmax.f32 %v3771, %v3772
        %v3803 = vmax.f32 %v3773, %v3774
        %v3804 = vmax.f32 %v3775, %v3776
        %v3805 = vmax.f32 %v3777, %v3778
        %v3806 = vmax.f32 %v3779, %v3780
        %v3807 = vmax.f32 %v3781, %v3782
        %v3808 = vmax.f32 %v3783, %v3784
        %v3809 = vmax.f32 %v3785, %v3786
        %v3810 = vmax.f32 %v3787, %v3788
        %v3811 = vmax.f32 %v3789, %v3790
        %v3812 = vmax.f32 %v3791, %v3792
        %v3813 = vmax.f32 %v3793, %v3794
        %v3814 = vmax.f32 %v3795, %v3796
        %v3815 = vmax.f32 %v3797, %v3798
        %v3816 = vmax.f32 %v3799, %v3800
        %3817 = vst [vmem:[#allocation3] sm:$0xff] 0
        %3818 = vst [vmem:[#allocation3 + $0x8] sm:$0xff] 0
        %3819 = vst [vmem:[#allocation3 + $0x10] sm:$0xff] 0
        %3820 = vst [vmem:[#allocation3 + $0x18] sm:$0xff] 0
        %3821 = vst [vmem:[#allocation3 + $0x20] sm:$0x33] 0
        %3822 = vst [vmem:[#allocation3 + $0x28] sm:$0x33] 0
        %v3839 = vlaneseq
        %v3840 = vshrl.u32 %v3839, 7
        %v3841 = vsub.s32 0, %v3840
        %v3842 = vrot.slane %v3801, %v3841
        %v3843 = vlaneseq
        %v3844 = vshrl.u32 %v3843, 7
        %v3845 = vsub.s32 2, %v3844
        %v3846 = vrot.slane %v3801, %v3845
        %v3847 = vlaneseq
        %v3848 = vshrl.u32 %v3847, 7
        %v3849 = vsub.s32 4, %v3848
        %v3850 = vrot.slane %v3801, %v3849
        %v3851 = vlaneseq
        %v3852 = vshrl.u32 %v3851, 7
        %v3853 = vsub.s32 6, %v3852
        %v3854 = vrot.slane %v3801, %v3853
        %v3855 = vlaneseq
        %v3856 = vshrl.u32 %v3855, 7
        %v3857 = vsub.s32 0, %v3856
        %v3858 = vrot.slane %v3802, %v3857
        %v3859 = vlaneseq
        %v3860 = vshrl.u32 %v3859, 7
        %v3861 = vsub.s32 2, %v3860
        %v3862 = vrot.slane %v3802, %v3861
        %v3863 = vlaneseq
        %v3864 = vshrl.u32 %v3863, 7
        %v3865 = vsub.s32 4, %v3864
        %v3866 = vrot.slane %v3802, %v3865
        %v3867 = vlaneseq
        %v3868 = vshrl.u32 %v3867, 7
        %v3869 = vsub.s32 6, %v3868
        %v3870 = vrot.slane %v3802, %v3869
        %v3871 = vlaneseq
        %v3872 = vshrl.u32 %v3871, 7
        %v3873 = vsub.s32 0, %v3872
        %v3874 = vrot.slane %v3803, %v3873
        %v3875 = vlaneseq
        %v3876 = vshrl.u32 %v3875, 7
        %v3877 = vsub.s32 2, %v3876
        %v3878 = vrot.slane %v3803, %v3877
        %v3879 = vlaneseq
        %v3880 = vshrl.u32 %v3879, 7
        %v3881 = vsub.s32 4, %v3880
        %v3882 = vrot.slane %v3803, %v3881
        %v3883 = vlaneseq
        %v3884 = vshrl.u32 %v3883, 7
        %v3885 = vsub.s32 6, %v3884
        %v3886 = vrot.slane %v3803, %v3885
        %v3887 = vlaneseq
        %v3888 = vshrl.u32 %v3887, 7
        %v3889 = vsub.s32 0, %v3888
        %v3890 = vrot.slane %v3804, %v3889
        %v3891 = vlaneseq
        %v3892 = vshrl.u32 %v3891, 7
        %v3893 = vsub.s32 2, %v3892
        %v3894 = vrot.slane %v3804, %v3893
        %v3895 = vlaneseq
        %v3896 = vshrl.u32 %v3895, 7
        %v3897 = vsub.s32 4, %v3896
        %v3898 = vrot.slane %v3804, %v3897
        %v3899 = vlaneseq
        %v3900 = vshrl.u32 %v3899, 7
        %v3901 = vsub.s32 6, %v3900
        %v3902 = vrot.slane %v3804, %v3901
        %v3903 = vlaneseq
        %v3904 = vshrl.u32 %v3903, 7
        %v3905 = vsub.s32 0, %v3904
        %v3906 = vrot.slane %v3805, %v3905
        %v3907 = vlaneseq
        %v3908 = vshrl.u32 %v3907, 7
        %v3909 = vsub.s32 2, %v3908
        %v3910 = vrot.slane %v3805, %v3909
        %v3911 = vlaneseq
        %v3912 = vshrl.u32 %v3911, 7
        %v3913 = vsub.s32 4, %v3912
        %v3914 = vrot.slane %v3805, %v3913
        %v3915 = vlaneseq
        %v3916 = vshrl.u32 %v3915, 7
        %v3917 = vsub.s32 6, %v3916
        %v3918 = vrot.slane %v3805, %v3917
        %v3919 = vlaneseq
        %v3920 = vshrl.u32 %v3919, 7
        %v3921 = vsub.s32 0, %v3920
        %v3922 = vrot.slane %v3806, %v3921
        %v3923 = vlaneseq
        %v3924 = vshrl.u32 %v3923, 7
        %v3925 = vsub.s32 2, %v3924
        %v3926 = vrot.slane %v3806, %v3925
        %v3927 = vlaneseq
        %v3928 = vshrl.u32 %v3927, 7
        %v3929 = vsub.s32 4, %v3928
        %v3930 = vrot.slane %v3806, %v3929
        %v3931 = vlaneseq
        %v3932 = vshrl.u32 %v3931, 7
        %v3933 = vsub.s32 6, %v3932
        %v3934 = vrot.slane %v3806, %v3933
        %v3935 = vlaneseq
        %v3936 = vshrl.u32 %v3935, 7
        %v3937 = vsub.s32 0, %v3936
        %v3938 = vrot.slane %v3807, %v3937
        %v3939 = vlaneseq
        %v3940 = vshrl.u32 %v3939, 7
        %v3941 = vsub.s32 2, %v3940
        %v3942 = vrot.slane %v3807, %v3941
        %v3943 = vlaneseq
        %v3944 = vshrl.u32 %v3943, 7
        %v3945 = vsub.s32 4, %v3944
        %v3946 = vrot.slane %v3807, %v3945
        %v3947 = vlaneseq
        %v3948 = vshrl.u32 %v3947, 7
        %v3949 = vsub.s32 6, %v3948
        %v3950 = vrot.slane %v3807, %v3949
        %v3951 = vlaneseq
        %v3952 = vshrl.u32 %v3951, 7
        %v3953 = vsub.s32 0, %v3952
        %v3954 = vrot.slane %v3808, %v3953
        %v3955 = vlaneseq
        %v3956 = vshrl.u32 %v3955, 7
        %v3957 = vsub.s32 2, %v3956
        %v3958 = vrot.slane %v3808, %v3957
        %v3959 = vlaneseq
        %v3960 = vshrl.u32 %v3959, 7
        %v3961 = vsub.s32 4, %v3960
        %v3962 = vrot.slane %v3808, %v3961
        %v3963 = vlaneseq
        %v3964 = vshrl.u32 %v3963, 7
        %v3965 = vsub.s32 6, %v3964
        %v3966 = vrot.slane %v3808, %v3965
        %v3967 = vlaneseq
        %v3968 = vshrl.u32 %v3967, 7
        %v3969 = vsub.s32 0, %v3968
        %v3970 = vrot.slane %v3809, %v3969
        %v3971 = vlaneseq
        %v3972 = vshrl.u32 %v3971, 7
        %v3973 = vsub.s32 2, %v3972
        %v3974 = vrot.slane %v3809, %v3973
        %v3975 = vlaneseq
        %v3976 = vshrl.u32 %v3975, 7
        %v3977 = vsub.s32 4, %v3976
        %v3978 = vrot.slane %v3809, %v3977
        %v3979 = vlaneseq
        %v3980 = vshrl.u32 %v3979, 7
        %v3981 = vsub.s32 6, %v3980
        %v3982 = vrot.slane %v3809, %v3981
        %v3983 = vlaneseq
        %v3984 = vshrl.u32 %v3983, 7
        %v3985 = vsub.s32 0, %v3984
        %v3986 = vrot.slane %v3810, %v3985
        %v3987 = vlaneseq
        %v3988 = vshrl.u32 %v3987, 7
        %v3989 = vsub.s32 2, %v3988
        %v3990 = vrot.slane %v3810, %v3989
        %v3991 = vlaneseq
        %v3992 = vshrl.u32 %v3991, 7
        %v3993 = vsub.s32 4, %v3992
        %v3994 = vrot.slane %v3810, %v3993
        %v3995 = vlaneseq
        %v3996 = vshrl.u32 %v3995, 7
        %v3997 = vsub.s32 6, %v3996
        %v3998 = vrot.slane %v3810, %v3997
        %v3999 = vlaneseq
        %v4000 = vshrl.u32 %v3999, 7
        %v4001 = vsub.s32 0, %v4000
        %v4002 = vrot.slane %v3811, %v4001
        %v4003 = vlaneseq
        %v4004 = vshrl.u32 %v4003, 7
        %v4005 = vsub.s32 2, %v4004
        %v4006 = vrot.slane %v3811, %v4005
        %v4007 = vlaneseq
        %v4008 = vshrl.u32 %v4007, 7
        %v4009 = vsub.s32 4, %v4008
        %v4010 = vrot.slane %v3811, %v4009
        %v4011 = vlaneseq
        %v4012 = vshrl.u32 %v4011, 7
        %v4013 = vsub.s32 6, %v4012
        %v4014 = vrot.slane %v3811, %v4013
        %v4015 = vlaneseq
        %v4016 = vshrl.u32 %v4015, 7
        %v4017 = vsub.s32 0, %v4016
        %v4018 = vrot.slane %v3812, %v4017
        %v4019 = vlaneseq
        %v4020 = vshrl.u32 %v4019, 7
        %v4021 = vsub.s32 2, %v4020
        %v4022 = vrot.slane %v3812, %v4021
        %v4023 = vlaneseq
        %v4024 = vshrl.u32 %v4023, 7
        %v4025 = vsub.s32 4, %v4024
        %v4026 = vrot.slane %v3812, %v4025
        %v4027 = vlaneseq
        %v4028 = vshrl.u32 %v4027, 7
        %v4029 = vsub.s32 6, %v4028
        %v4030 = vrot.slane %v3812, %v4029
        %v4031 = vlaneseq
        %v4032 = vshrl.u32 %v4031, 7
        %v4033 = vsub.s32 0, %v4032
        %v4034 = vrot.slane %v3813, %v4033
        %v4035 = vlaneseq
        %v4036 = vshrl.u32 %v4035, 7
        %v4037 = vsub.s32 2, %v4036
        %v4038 = vrot.slane %v3813, %v4037
        %v4039 = vlaneseq
        %v4040 = vshrl.u32 %v4039, 7
        %v4041 = vsub.s32 4, %v4040
        %v4042 = vrot.slane %v3813, %v4041
        %v4043 = vlaneseq
        %v4044 = vshrl.u32 %v4043, 7
        %v4045 = vsub.s32 6, %v4044
        %v4046 = vrot.slane %v3813, %v4045
        %v4047 = vlaneseq
        %v4048 = vshrl.u32 %v4047, 7
        %v4049 = vsub.s32 0, %v4048
        %v4050 = vrot.slane %v3814, %v4049
        %v4051 = vlaneseq
        %v4052 = vshrl.u32 %v4051, 7
        %v4053 = vsub.s32 2, %v4052
        %v4054 = vrot.slane %v3814, %v4053
        %v4055 = vlaneseq
        %v4056 = vshrl.u32 %v4055, 7
        %v4057 = vsub.s32 4, %v4056
        %v4058 = vrot.slane %v3814, %v4057
        %v4059 = vlaneseq
        %v4060 = vshrl.u32 %v4059, 7
        %v4061 = vsub.s32 6, %v4060
        %v4062 = vrot.slane %v3814, %v4061
        %v4063 = vlaneseq
        %v4064 = vshrl.u32 %v4063, 7
        %v4065 = vsub.s32 0, %v4064
        %v4066 = vrot.slane %v3815, %v4065
        %v4067 = vlaneseq
        %v4068 = vshrl.u32 %v4067, 7
        %v4069 = vsub.s32 2, %v4068
        %v4070 = vrot.slane %v3815, %v4069
        %v4071 = vlaneseq
        %v4072 = vshrl.u32 %v4071, 7
        %v4073 = vsub.s32 4, %v4072
        %v4074 = vrot.slane %v3815, %v4073
        %v4075 = vlaneseq
        %v4076 = vshrl.u32 %v4075, 7
        %v4077 = vsub.s32 6, %v4076
        %v4078 = vrot.slane %v3815, %v4077
        %v4079 = vlaneseq
        %v4080 = vshrl.u32 %v4079, 7
        %v4081 = vsub.s32 0, %v4080
        %v4082 = vrot.slane %v3816, %v4081
        %v4083 = vlaneseq
        %v4084 = vshrl.u32 %v4083, 7
        %v4085 = vsub.s32 2, %v4084
        %v4086 = vrot.slane %v3816, %v4085
        %v4087 = vlaneseq
        %v4088 = vshrl.u32 %v4087, 7
        %v4089 = vsub.s32 4, %v4088
        %v4090 = vrot.slane %v3816, %v4089
        %v4091 = vlaneseq
        %v4092 = vshrl.u32 %v4091, 7
        %v4093 = vsub.s32 6, %v4092
        %v4094 = vrot.slane %v3816, %v4093
        %v4159 = vpack.c.bf16 %v3842, %v3842
        %v4160 = vpack.c.bf16 %v3846, %v3846
        %v4161 = vpack.c.bf16 %v3850, %v3850
        %v4162 = vpack.c.bf16 %v3854, %v3854
        %v4163 = vpack.c.bf16 %v3858, %v3858
        %v4164 = vpack.c.bf16 %v3862, %v3862
        %v4165 = vpack.c.bf16 %v3866, %v3866
        %v4166 = vpack.c.bf16 %v3870, %v3870
        %v4167 = vpack.c.bf16 %v3874, %v3874
        %v4168 = vpack.c.bf16 %v3878, %v3878
        %v4169 = vpack.c.bf16 %v3882, %v3882
        %v4170 = vpack.c.bf16 %v3886, %v3886
        %v4171 = vpack.c.bf16 %v3890, %v3890
        %v4172 = vpack.c.bf16 %v3894, %v3894
        %v4173 = vpack.c.bf16 %v3898, %v3898
        %v4174 = vpack.c.bf16 %v3902, %v3902
        %v4175 = vpack.c.bf16 %v3906, %v3906
        %v4176 = vpack.c.bf16 %v3910, %v3910
        %v4177 = vpack.c.bf16 %v3914, %v3914
        %v4178 = vpack.c.bf16 %v3918, %v3918
        %v4179 = vpack.c.bf16 %v3922, %v3922
        %v4180 = vpack.c.bf16 %v3926, %v3926
        %v4181 = vpack.c.bf16 %v3930, %v3930
        %v4182 = vpack.c.bf16 %v3934, %v3934
        %v4183 = vpack.c.bf16 %v3938, %v3938
        %v4184 = vpack.c.bf16 %v3942, %v3942
        %v4185 = vpack.c.bf16 %v3946, %v3946
        %v4186 = vpack.c.bf16 %v3950, %v3950
        %v4187 = vpack.c.bf16 %v3954, %v3954
        %v4188 = vpack.c.bf16 %v3958, %v3958
        %v4189 = vpack.c.bf16 %v3962, %v3962
        %v4190 = vpack.c.bf16 %v3966, %v3966
        %v4191 = vpack.c.bf16 %v3970, %v3970
        %v4192 = vpack.c.bf16 %v3974, %v3974
        %v4193 = vpack.c.bf16 %v3978, %v3978
        %v4194 = vpack.c.bf16 %v3982, %v3982
        %v4195 = vpack.c.bf16 %v3986, %v3986
        %v4196 = vpack.c.bf16 %v3990, %v3990
        %v4197 = vpack.c.bf16 %v3994, %v3994
        %v4198 = vpack.c.bf16 %v3998, %v3998
        %v4199 = vpack.c.bf16 %v4002, %v4002
        %v4200 = vpack.c.bf16 %v4006, %v4006
        %v4201 = vpack.c.bf16 %v4010, %v4010
        %v4202 = vpack.c.bf16 %v4014, %v4014
        %v4203 = vpack.c.bf16 %v4018, %v4018
        %v4204 = vpack.c.bf16 %v4022, %v4022
        %v4205 = vpack.c.bf16 %v4026, %v4026
        %v4206 = vpack.c.bf16 %v4030, %v4030
        %v4207 = vpack.c.bf16 %v4034, %v4034
        %v4208 = vpack.c.bf16 %v4038, %v4038
        %v4209 = vpack.c.bf16 %v4042, %v4042
        %v4210 = vpack.c.bf16 %v4046, %v4046
        %v4211 = vpack.c.bf16 %v4050, %v4050
        %v4212 = vpack.c.bf16 %v4054, %v4054
        %v4213 = vpack.c.bf16 %v4058, %v4058
        %v4214 = vpack.c.bf16 %v4062, %v4062
        %v4215 = vpack.c.bf16 %v4066, %v4066
        %v4216 = vpack.c.bf16 %v4070, %v4070
        %v4217 = vpack.c.bf16 %v4074, %v4074
        %v4218 = vpack.c.bf16 %v4078, %v4078
        %v4219 = vpack.c.bf16 %v4082, %v4082
        %v4220 = vpack.c.bf16 %v4086, %v4086
        %v4221 = vpack.c.bf16 %v4090, %v4090
        %v4222 = vpack.c.bf16 %v4094, %v4094
        %v4287 = vunpack.c.l.b16 %v4159
        %v4288 = vunpack.c.l.b16 %v4160
        %v4289 = vunpack.c.l.b16 %v4161
        %v4290 = vunpack.c.l.b16 %v4162
        %v4291 = vunpack.c.l.b16 %v4163
        %v4292 = vunpack.c.l.b16 %v4164
        %v4293 = vunpack.c.l.b16 %v4165
        %v4294 = vunpack.c.l.b16 %v4166
        %v4295 = vunpack.c.l.b16 %v4167
        %v4296 = vunpack.c.l.b16 %v4168
        %v4297 = vunpack.c.l.b16 %v4169
        %v4298 = vunpack.c.l.b16 %v4170
        %v4299 = vunpack.c.l.b16 %v4171
        %v4300 = vunpack.c.l.b16 %v4172
        %v4301 = vunpack.c.l.b16 %v4173
        %v4302 = vunpack.c.l.b16 %v4174
        %v4303 = vunpack.c.l.b16 %v4175
        %v4304 = vunpack.c.l.b16 %v4176
        %v4305 = vunpack.c.l.b16 %v4177
        %v4306 = vunpack.c.l.b16 %v4178
        %v4307 = vunpack.c.l.b16 %v4179
        %v4308 = vunpack.c.l.b16 %v4180
        %v4309 = vunpack.c.l.b16 %v4181
        %v4310 = vunpack.c.l.b16 %v4182
        %v4311 = vunpack.c.l.b16 %v4183
        %v4312 = vunpack.c.l.b16 %v4184
        %v4313 = vunpack.c.l.b16 %v4185
        %v4314 = vunpack.c.l.b16 %v4186
        %v4315 = vunpack.c.l.b16 %v4187
        %v4316 = vunpack.c.l.b16 %v4188
        %v4317 = vunpack.c.l.b16 %v4189
        %v4318 = vunpack.c.l.b16 %v4190
        %v4319 = vunpack.c.l.b16 %v4191
        %v4320 = vunpack.c.l.b16 %v4192
        %v4321 = vunpack.c.l.b16 %v4193
        %v4322 = vunpack.c.l.b16 %v4194
        %v4323 = vunpack.c.l.b16 %v4195
        %v4324 = vunpack.c.l.b16 %v4196
        %v4325 = vunpack.c.l.b16 %v4197
        %v4326 = vunpack.c.l.b16 %v4198
        %v4327 = vunpack.c.l.b16 %v4199
        %v4328 = vunpack.c.l.b16 %v4200
        %v4329 = vunpack.c.l.b16 %v4201
        %v4330 = vunpack.c.l.b16 %v4202
        %v4331 = vunpack.c.l.b16 %v4203
        %v4332 = vunpack.c.l.b16 %v4204
        %v4333 = vunpack.c.l.b16 %v4205
        %v4334 = vunpack.c.l.b16 %v4206
        %v4335 = vunpack.c.l.b16 %v4207
        %v4336 = vunpack.c.l.b16 %v4208
        %v4337 = vunpack.c.l.b16 %v4209
        %v4338 = vunpack.c.l.b16 %v4210
        %v4339 = vunpack.c.l.b16 %v4211
        %v4340 = vunpack.c.l.b16 %v4212
        %v4341 = vunpack.c.l.b16 %v4213
        %v4342 = vunpack.c.l.b16 %v4214
        %v4343 = vunpack.c.l.b16 %v4215
        %v4344 = vunpack.c.l.b16 %v4216
        %v4345 = vunpack.c.l.b16 %v4217
        %v4346 = vunpack.c.l.b16 %v4218
        %v4347 = vunpack.c.l.b16 %v4219
        %v4348 = vunpack.c.l.b16 %v4220
        %v4349 = vunpack.c.l.b16 %v4221
        %v4350 = vunpack.c.l.b16 %v4222
        %v4351 = vpack.c.b16 %v4288, %v4287
        %v4352 = vpack.c.b16 %v4290, %v4289
        %v4353 = vpack.c.b16 %v4292, %v4291
        %v4354 = vpack.c.b16 %v4294, %v4293
        %v4355 = vpack.c.b16 %v4296, %v4295
        %v4356 = vpack.c.b16 %v4298, %v4297
        %v4357 = vpack.c.b16 %v4300, %v4299
        %v4358 = vpack.c.b16 %v4302, %v4301
        %v4359 = vpack.c.b16 %v4304, %v4303
        %v4360 = vpack.c.b16 %v4306, %v4305
        %v4361 = vpack.c.b16 %v4308, %v4307
        %v4362 = vpack.c.b16 %v4310, %v4309
        %v4363 = vpack.c.b16 %v4312, %v4311
        %v4364 = vpack.c.b16 %v4314, %v4313
        %v4365 = vpack.c.b16 %v4316, %v4315
        %v4366 = vpack.c.b16 %v4318, %v4317
        %v4367 = vpack.c.b16 %v4320, %v4319
        %v4368 = vpack.c.b16 %v4322, %v4321
        %v4369 = vpack.c.b16 %v4324, %v4323
        %v4370 = vpack.c.b16 %v4326, %v4325
        %v4371 = vpack.c.b16 %v4328, %v4327
        %v4372 = vpack.c.b16 %v4330, %v4329
        %v4373 = vpack.c.b16 %v4332, %v4331
        %v4374 = vpack.c.b16 %v4334, %v4333
        %v4375 = vpack.c.b16 %v4336, %v4335
        %v4376 = vpack.c.b16 %v4338, %v4337
        %v4377 = vpack.c.b16 %v4340, %v4339
        %v4378 = vpack.c.b16 %v4342, %v4341
        %v4379 = vpack.c.b16 %v4344, %v4343
        %v4380 = vpack.c.b16 %v4346, %v4345
        %v4381 = vpack.c.b16 %v4348, %v4347
        %v4382 = vpack.c.b16 %v4350, %v4349
        %v4383 = vunpack.c.l.b16 %v4351
        %v4384 = vunpack.c.h.b16 %v4351
        %v4385 = vunpack.c.l.b16 %v4352
        %v4386 = vunpack.c.h.b16 %v4352
        %v4387 = vunpack.c.l.b16 %v4353
        %v4388 = vunpack.c.h.b16 %v4353
        %v4389 = vunpack.c.l.b16 %v4354
        %v4390 = vunpack.c.h.b16 %v4354
        %v4391 = vunpack.c.l.b16 %v4355
        %v4392 = vunpack.c.h.b16 %v4355
        %v4393 = vunpack.c.l.b16 %v4356
        %v4394 = vunpack.c.h.b16 %v4356
        %v4395 = vunpack.c.l.b16 %v4357
        %v4396 = vunpack.c.h.b16 %v4357
        %v4397 = vunpack.c.l.b16 %v4358
        %v4398 = vunpack.c.h.b16 %v4358
        %v4399 = vunpack.c.l.b16 %v4359
        %v4400 = vunpack.c.h.b16 %v4359
        %v4401 = vunpack.c.l.b16 %v4360
        %v4402 = vunpack.c.h.b16 %v4360
        %v4403 = vunpack.c.l.b16 %v4361
        %v4404 = vunpack.c.h.b16 %v4361
        %v4405 = vunpack.c.l.b16 %v4362
        %v4406 = vunpack.c.h.b16 %v4362
        %v4407 = vunpack.c.l.b16 %v4363
        %v4408 = vunpack.c.h.b16 %v4363
        %v4409 = vunpack.c.l.b16 %v4364
        %v4410 = vunpack.c.h.b16 %v4364
        %v4411 = vunpack.c.l.b16 %v4365
        %v4412 = vunpack.c.h.b16 %v4365
        %v4413 = vunpack.c.l.b16 %v4366
        %v4414 = vunpack.c.h.b16 %v4366
        %v4415 = vunpack.c.l.b16 %v4367
        %v4416 = vunpack.c.h.b16 %v4367
        %v4417 = vunpack.c.l.b16 %v4368
        %v4418 = vunpack.c.h.b16 %v4368
        %v4419 = vunpack.c.l.b16 %v4369
        %v4420 = vunpack.c.h.b16 %v4369
        %v4421 = vunpack.c.l.b16 %v4370
        %v4422 = vunpack.c.h.b16 %v4370
        %v4423 = vunpack.c.l.b16 %v4371
        %v4424 = vunpack.c.h.b16 %v4371
        %v4425 = vunpack.c.l.b16 %v4372
        %v4426 = vunpack.c.h.b16 %v4372
        %v4427 = vunpack.c.l.b16 %v4373
        %v4428 = vunpack.c.h.b16 %v4373
        %v4429 = vunpack.c.l.b16 %v4374
        %v4430 = vunpack.c.h.b16 %v4374
        %v4431 = vunpack.c.l.b16 %v4375
        %v4432 = vunpack.c.h.b16 %v4375
        %v4433 = vunpack.c.l.b16 %v4376
        %v4434 = vunpack.c.h.b16 %v4376
        %v4435 = vunpack.c.l.b16 %v4377
        %v4436 = vunpack.c.h.b16 %v4377
        %v4437 = vunpack.c.l.b16 %v4378
        %v4438 = vunpack.c.h.b16 %v4378
        %v4439 = vunpack.c.l.b16 %v4379
        %v4440 = vunpack.c.h.b16 %v4379
        %v4441 = vunpack.c.l.b16 %v4380
        %v4442 = vunpack.c.h.b16 %v4380
        %v4443 = vunpack.c.l.b16 %v4381
        %v4444 = vunpack.c.h.b16 %v4381
        %v4445 = vunpack.c.l.b16 %v4382
        %v4446 = vunpack.c.h.b16 %v4382
        %v4447 = vrot.slane %v4383, 6
        %v4448 = vrot.slane %v4387, 5
        %vm4449 = vcmask 1043459
        %v4450 = vsel %vm4449, %v4448, %v4447
        %v4451 = vrot.slane %v4391, 4
        %vm4452 = vcmask 1044484
        %v4453 = vsel %vm4452, %v4451, %v4450
        %v4454 = vrot.slane %v4395, 3
        %vm4455 = vcmask 1045509
        %v4456 = vsel %vm4455, %v4454, %v4453
        %v4457 = vrot.slane %v4399, 2
        %vm4458 = vcmask 1046534
        %v4459 = vsel %vm4458, %v4457, %v4456
        %v4460 = vrot.slane %v4403, 1
        %vm4461 = vcmask 1047559
        %v4462 = vsel %vm4461, %v4460, %v4459
        %v4463 = vrot.slane %v4384, 6
        %v4464 = vrot.slane %v4388, 5
        %v4465 = vsel %vm4449, %v4464, %v4463
        %v4466 = vrot.slane %v4392, 4
        %v4467 = vsel %vm4452, %v4466, %v4465
        %v4468 = vrot.slane %v4396, 3
        %v4469 = vsel %vm4455, %v4468, %v4467
        %v4470 = vrot.slane %v4400, 2
        %v4471 = vsel %vm4458, %v4470, %v4469
        %v4472 = vrot.slane %v4404, 1
        %v4473 = vsel %vm4461, %v4472, %v4471
        %v4474 = vrot.slane %v4385, 6
        %v4475 = vrot.slane %v4389, 5
        %v4476 = vsel %vm4449, %v4475, %v4474
        %v4477 = vrot.slane %v4393, 4
        %v4478 = vsel %vm4452, %v4477, %v4476
        %v4479 = vrot.slane %v4397, 3
        %v4480 = vsel %vm4455, %v4479, %v4478
        %v4481 = vrot.slane %v4401, 2
        %v4482 = vsel %vm4458, %v4481, %v4480
        %v4483 = vrot.slane %v4405, 1
        %v4484 = vsel %vm4461, %v4483, %v4482
        %v4485 = vrot.slane %v4386, 6
        %v4486 = vrot.slane %v4390, 5
        %v4487 = vsel %vm4449, %v4486, %v4485
        %v4488 = vrot.slane %v4394, 4
        %v4489 = vsel %vm4452, %v4488, %v4487
        %v4490 = vrot.slane %v4398, 3
        %v4491 = vsel %vm4455, %v4490, %v4489
        %v4492 = vrot.slane %v4402, 2
        %v4493 = vsel %vm4458, %v4492, %v4491
        %v4494 = vrot.slane %v4406, 1
        %v4495 = vsel %vm4461, %v4494, %v4493
        %v4496 = vrot.slane %v4411, 7
        %vm4497 = vcmask 1041409
        %v4498 = vsel %vm4497, %v4496, %v4407
        %v4499 = vrot.slane %v4415, 6
        %vm4500 = vcmask 1042434
        %v4501 = vsel %vm4500, %v4499, %v4498
        %v4502 = vrot.slane %v4419, 5
        %v4503 = vsel %vm4449, %v4502, %v4501
        %v4504 = vrot.slane %v4423, 4
        %v4505 = vsel %vm4452, %v4504, %v4503
        %v4506 = vrot.slane %v4427, 3
        %v4507 = vsel %vm4455, %v4506, %v4505
        %v4508 = vrot.slane %v4431, 2
        %v4509 = vsel %vm4458, %v4508, %v4507
        %v4510 = vrot.slane %v4435, 1
        %v4511 = vsel %vm4461, %v4510, %v4509
        %v4512 = vrot.slane %v4412, 7
        %v4513 = vsel %vm4497, %v4512, %v4408
        %v4514 = vrot.slane %v4416, 6
        %v4515 = vsel %vm4500, %v4514, %v4513
        %v4516 = vrot.slane %v4420, 5
        %v4517 = vsel %vm4449, %v4516, %v4515
        %v4518 = vrot.slane %v4424, 4
        %v4519 = vsel %vm4452, %v4518, %v4517
        %v4520 = vrot.slane %v4428, 3
        %v4521 = vsel %vm4455, %v4520, %v4519
        %v4522 = vrot.slane %v4432, 2
        %v4523 = vsel %vm4458, %v4522, %v4521
        %v4524 = vrot.slane %v4436, 1
        %v4525 = vsel %vm4461, %v4524, %v4523
        %v4526 = vrot.slane %v4413, 7
        %v4527 = vsel %vm4497, %v4526, %v4409
        %v4528 = vrot.slane %v4417, 6
        %v4529 = vsel %vm4500, %v4528, %v4527
        %v4530 = vrot.slane %v4421, 5
        %v4531 = vsel %vm4449, %v4530, %v4529
        %v4532 = vrot.slane %v4425, 4
        %v4533 = vsel %vm4452, %v4532, %v4531
        %v4534 = vrot.slane %v4429, 3
        %v4535 = vsel %vm4455, %v4534, %v4533
        %v4536 = vrot.slane %v4433, 2
        %v4537 = vsel %vm4458, %v4536, %v4535
        %v4538 = vrot.slane %v4437, 1
        %v4539 = vsel %vm4461, %v4538, %v4537
        %v4540 = vrot.slane %v4414, 7
        %v4541 = vsel %vm4497, %v4540, %v4410
        %v4542 = vrot.slane %v4418, 6
        %v4543 = vsel %vm4500, %v4542, %v4541
        %v4544 = vrot.slane %v4422, 5
        %v4545 = vsel %vm4449, %v4544, %v4543
        %v4546 = vrot.slane %v4426, 4
        %v4547 = vsel %vm4452, %v4546, %v4545
        %v4548 = vrot.slane %v4430, 3
        %v4549 = vsel %vm4455, %v4548, %v4547
        %v4550 = vrot.slane %v4434, 2
        %v4551 = vsel %vm4458, %v4550, %v4549
        %v4552 = vrot.slane %v4438, 1
        %v4553 = vsel %vm4461, %v4552, %v4551
        %v4554 = vrot.slane %v4443, 7
        %v4555 = vsel %vm4497, %v4554, %v4439
        %v4556 = vrot.slane %v4444, 7
        %v4557 = vsel %vm4497, %v4556, %v4440
        %v4558 = vrot.slane %v4445, 7
        %v4559 = vsel %vm4497, %v4558, %v4441
        %v4560 = vrot.slane %v4446, 7
        %v4561 = vsel %vm4497, %v4560, %v4442
        %v4562 = vpack.c.b16 %v4473, %v4462
        %v4563 = vpack.c.b16 %v4495, %v4484
        %v4564 = vpack.c.b16 %v4525, %v4511
        %v4565 = vpack.c.b16 %v4553, %v4539
        %v4566 = vpack.c.b16 %v4557, %v4555
        %v4567 = vpack.c.b16 %v4561, %v4559
        %4574 = vst [vmem:[#allocation3] sm:$0xee] %v4562
        %4575 = vst [vmem:[#allocation3 + $0x8] sm:$0xee] %v4563
        %4576 = vst [vmem:[#allocation3 + $0x10] sm:$0xff] %v4564
        %4577 = vst [vmem:[#allocation3 + $0x18] sm:$0xff] %v4565
        %4578 = vst [vmem:[#allocation3 + $0x20] sm:$0x11] %v4566
        %4579 = vst [vmem:[#allocation3 + $0x28] sm:$0x11] %v4567
        %v4580 = vld [vmem:[#allocation3] sm:$0xff]
        %v4581 = vld [vmem:[#allocation3 + $0x8] sm:$0xff]
        %v4582 = vld [vmem:[#allocation3 + $0x10] sm:$0xff]
        %v4583 = vld [vmem:[#allocation3 + $0x18] sm:$0xff]
        %v4584 = vld [vmem:[#allocation10] sm:$0xff]
        %v4585 = vld [vmem:[#allocation10 + $0x8] sm:$0xff]
        %v4586 = vld [vmem:[#allocation10 + $0x10] sm:$0xff]
        %v4587 = vld [vmem:[#allocation10 + $0x18] sm:$0xff]
        %v4588 = vld [vmem:[#allocation10 + $0x20] sm:$0xff]
        %v4589 = vld [vmem:[#allocation10 + $0x28] sm:$0xff]
        %v4590 = vld [vmem:[#allocation10 + $0x30] sm:$0xff]
        %v4591 = vld [vmem:[#allocation10 + $0x38] sm:$0xff]
        %v4592 = vld [vmem:[#allocation10 + $0x40] sm:$0xff]
        %v4593 = vld [vmem:[#allocation10 + $0x48] sm:$0xff]
        %v4594 = vld [vmem:[#allocation10 + $0x50] sm:$0xff]
        %v4595 = vld [vmem:[#allocation10 + $0x58] sm:$0xff]
        %v4596 = vld [vmem:[#allocation10 + $0x60] sm:$0xff]
        %v4597 = vld [vmem:[#allocation10 + $0x68] sm:$0xff]
        %v4598 = vld [vmem:[#allocation10 + $0x70] sm:$0xff]
        %v4599 = vld [vmem:[#allocation10 + $0x78] sm:$0xff]
        %v4600 = vld [vmem:[#allocation10 + $0x80] sm:$0xff]
        %v4601 = vld [vmem:[#allocation10 + $0x88] sm:$0xff]
        %v4602 = vld [vmem:[#allocation10 + $0x90] sm:$0xff]
        %v4603 = vld [vmem:[#allocation10 + $0x98] sm:$0xff]
        %v4604 = vld [vmem:[#allocation10 + $0xa0] sm:$0xff]
        %v4605 = vld [vmem:[#allocation10 + $0xa8] sm:$0xff]
        %v4606 = vld [vmem:[#allocation10 + $0xb0] sm:$0xff]
        %v4607 = vld [vmem:[#allocation10 + $0xb8] sm:$0xff]
        %v4608 = vld [vmem:[#allocation10 + $0xc0] sm:$0xff]
        %v4609 = vld [vmem:[#allocation10 + $0xc8] sm:$0xff]
        %v4610 = vld [vmem:[#allocation10 + $0xd0] sm:$0xff]
        %v4611 = vld [vmem:[#allocation10 + $0xd8] sm:$0xff]
        %v4612 = vld [vmem:[#allocation10 + $0xe0] sm:$0xff]
        %v4613 = vld [vmem:[#allocation10 + $0xe8] sm:$0xff]
        %v4614 = vld [vmem:[#allocation10 + $0xf0] sm:$0xff]
        %v4615 = vld [vmem:[#allocation10 + $0xf8] sm:$0xff]
        %v4616 = vld [vmem:[#allocation10 + $0x100] sm:$0xff]
        %v4617 = vld [vmem:[#allocation10 + $0x108] sm:$0xff]
        %v4618 = vld [vmem:[#allocation10 + $0x110] sm:$0xff]
        %v4619 = vld [vmem:[#allocation10 + $0x118] sm:$0xff]
        %v4620 = vld [vmem:[#allocation10 + $0x120] sm:$0xff]
        %v4621 = vld [vmem:[#allocation10 + $0x128] sm:$0xff]
        %v4622 = vld [vmem:[#allocation10 + $0x130] sm:$0xff]
        %v4623 = vld [vmem:[#allocation10 + $0x138] sm:$0xff]
        %v4624 = vld [vmem:[#allocation10 + $0x140] sm:$0xff]
        %v4625 = vld [vmem:[#allocation10 + $0x148] sm:$0xff]
        %v4626 = vld [vmem:[#allocation10 + $0x150] sm:$0xff]
        %v4627 = vld [vmem:[#allocation10 + $0x158] sm:$0xff]
        %v4628 = vld [vmem:[#allocation10 + $0x160] sm:$0xff]
        %v4629 = vld [vmem:[#allocation10 + $0x168] sm:$0xff]
        %v4630 = vld [vmem:[#allocation10 + $0x170] sm:$0xff]
        %v4631 = vld [vmem:[#allocation10 + $0x178] sm:$0xff]
        %v4632 = vld [vmem:[#allocation10 + $0x180] sm:$0xff]
        %v4633 = vld [vmem:[#allocation10 + $0x188] sm:$0xff]
        %v4634 = vld [vmem:[#allocation10 + $0x190] sm:$0xff]
        %v4635 = vld [vmem:[#allocation10 + $0x198] sm:$0xff]
        %v4636 = vld [vmem:[#allocation10 + $0x1a0] sm:$0xff]
        %v4637 = vld [vmem:[#allocation10 + $0x1a8] sm:$0xff]
        %v4638 = vld [vmem:[#allocation10 + $0x1b0] sm:$0xff]
        %v4639 = vld [vmem:[#allocation10 + $0x1b8] sm:$0xff]
        %v4640 = vld [vmem:[#allocation10 + $0x1c0] sm:$0xff]
        %v4641 = vld [vmem:[#allocation10 + $0x1c8] sm:$0xff]
        %v4642 = vld [vmem:[#allocation10 + $0x1d0] sm:$0xff]
        %v4643 = vld [vmem:[#allocation10 + $0x1d8] sm:$0xff]
        %v4644 = vld [vmem:[#allocation10 + $0x1e0] sm:$0xff]
        %v4645 = vld [vmem:[#allocation10 + $0x1e8] sm:$0xff]
        %v4646 = vld [vmem:[#allocation10 + $0x1f0] sm:$0xff]
        %v4647 = vld [vmem:[#allocation10 + $0x1f8] sm:$0xff]
        %v4648 = vld [vmem:[#allocation10 + $0x200] sm:$0xff]
        %v4649 = vld [vmem:[#allocation10 + $0x208] sm:$0xff]
        %v4650 = vld [vmem:[#allocation10 + $0x210] sm:$0xff]
        %v4651 = vld [vmem:[#allocation10 + $0x218] sm:$0xff]
        %v4652 = vld [vmem:[#allocation10 + $0x220] sm:$0xff]
        %v4653 = vld [vmem:[#allocation10 + $0x228] sm:$0xff]
        %v4654 = vld [vmem:[#allocation10 + $0x230] sm:$0xff]
        %v4655 = vld [vmem:[#allocation10 + $0x238] sm:$0xff]
        %v4656 = vld [vmem:[#allocation10 + $0x240] sm:$0xff]
        %v4657 = vld [vmem:[#allocation10 + $0x248] sm:$0xff]
        %v4658 = vld [vmem:[#allocation10 + $0x250] sm:$0xff]
        %v4659 = vld [vmem:[#allocation10 + $0x258] sm:$0xff]
        %v4660 = vld [vmem:[#allocation10 + $0x260] sm:$0xff]
        %v4661 = vld [vmem:[#allocation10 + $0x268] sm:$0xff]
        %v4662 = vld [vmem:[#allocation10 + $0x270] sm:$0xff]
        %v4663 = vld [vmem:[#allocation10 + $0x278] sm:$0xff]
        %v4664 = vld [vmem:[#allocation10 + $0x280] sm:$0xff]
        %v4665 = vld [vmem:[#allocation10 + $0x288] sm:$0xff]
        %v4666 = vld [vmem:[#allocation10 + $0x290] sm:$0xff]
        %v4667 = vld [vmem:[#allocation10 + $0x298] sm:$0xff]
        %v4668 = vld [vmem:[#allocation10 + $0x2a0] sm:$0xff]
        %v4669 = vld [vmem:[#allocation10 + $0x2a8] sm:$0xff]
        %v4670 = vld [vmem:[#allocation10 + $0x2b0] sm:$0xff]
        %v4671 = vld [vmem:[#allocation10 + $0x2b8] sm:$0xff]
        %v4672 = vld [vmem:[#allocation10 + $0x2c0] sm:$0xff]
        %v4673 = vld [vmem:[#allocation10 + $0x2c8] sm:$0xff]
        %v4674 = vld [vmem:[#allocation10 + $0x2d0] sm:$0xff]
        %v4675 = vld [vmem:[#allocation10 + $0x2d8] sm:$0xff]
        %v4676 = vld [vmem:[#allocation10 + $0x2e0] sm:$0xff]
        %v4677 = vld [vmem:[#allocation10 + $0x2e8] sm:$0xff]
        %v4678 = vld [vmem:[#allocation10 + $0x2f0] sm:$0xff]
        %v4679 = vld [vmem:[#allocation10 + $0x2f8] sm:$0xff]
        %v4680 = vld [vmem:[#allocation10 + $0x300] sm:$0xff]
        %v4681 = vld [vmem:[#allocation10 + $0x308] sm:$0xff]
        %v4682 = vld [vmem:[#allocation10 + $0x310] sm:$0xff]
        %v4683 = vld [vmem:[#allocation10 + $0x318] sm:$0xff]
        %v4684 = vld [vmem:[#allocation10 + $0x320] sm:$0xff]
        %v4685 = vld [vmem:[#allocation10 + $0x328] sm:$0xff]
        %v4686 = vld [vmem:[#allocation10 + $0x330] sm:$0xff]
        %v4687 = vld [vmem:[#allocation10 + $0x338] sm:$0xff]
        %v4688 = vld [vmem:[#allocation10 + $0x340] sm:$0xff]
        %v4689 = vld [vmem:[#allocation10 + $0x348] sm:$0xff]
        %v4690 = vld [vmem:[#allocation10 + $0x350] sm:$0xff]
        %v4691 = vld [vmem:[#allocation10 + $0x358] sm:$0xff]
        %v4692 = vld [vmem:[#allocation10 + $0x360] sm:$0xff]
        %v4693 = vld [vmem:[#allocation10 + $0x368] sm:$0xff]
        %v4694 = vld [vmem:[#allocation10 + $0x370] sm:$0xff]
        %v4695 = vld [vmem:[#allocation10 + $0x378] sm:$0xff]
        %v4696 = vld [vmem:[#allocation10 + $0x380] sm:$0xff]
        %v4697 = vld [vmem:[#allocation10 + $0x388] sm:$0xff]
        %v4698 = vld [vmem:[#allocation10 + $0x390] sm:$0xff]
        %v4699 = vld [vmem:[#allocation10 + $0x398] sm:$0xff]
        %v4700 = vld [vmem:[#allocation10 + $0x3a0] sm:$0xff]
        %v4701 = vld [vmem:[#allocation10 + $0x3a8] sm:$0xff]
        %v4702 = vld [vmem:[#allocation10 + $0x3b0] sm:$0xff]
        %v4703 = vld [vmem:[#allocation10 + $0x3b8] sm:$0xff]
        %v4704 = vld [vmem:[#allocation10 + $0x3c0] sm:$0xff]
        %v4705 = vld [vmem:[#allocation10 + $0x3c8] sm:$0xff]
        %v4706 = vld [vmem:[#allocation10 + $0x3d0] sm:$0xff]
        %v4707 = vld [vmem:[#allocation10 + $0x3d8] sm:$0xff]
        %v4708 = vld [vmem:[#allocation10 + $0x3e0] sm:$0xff]
        %v4709 = vld [vmem:[#allocation10 + $0x3e8] sm:$0xff]
        %v4710 = vld [vmem:[#allocation10 + $0x3f0] sm:$0xff]
        %v4711 = vld [vmem:[#allocation10 + $0x3f8] sm:$0xff]
        %v4712 = vld [vmem:[#allocation3 + $0x20] sm:$0x11]
        %v4713 = vld [vmem:[#allocation3 + $0x28] sm:$0x11]
        %s4714 = scalar_lea.vmem [#allocation10], 1024
        %v4715 = vld [vmem:[%s4714] sm:$0xff]
        %v4716 = vld [vmem:[%s4714 + $0x8] sm:$0xff]
        %v4717 = vld [vmem:[%s4714 + $0x10] sm:$0xff]
        %v4718 = vld [vmem:[%s4714 + $0x18] sm:$0xff]
        %v4719 = vld [vmem:[%s4714 + $0x20] sm:$0xff]
        %v4720 = vld [vmem:[%s4714 + $0x28] sm:$0xff]
        %v4721 = vld [vmem:[%s4714 + $0x30] sm:$0xff]
        %v4722 = vld [vmem:[%s4714 + $0x38] sm:$0xff]
        %v4723 = vld [vmem:[%s4714 + $0x40] sm:$0xff]
        %v4724 = vld [vmem:[%s4714 + $0x48] sm:$0xff]
        %v4725 = vld [vmem:[%s4714 + $0x50] sm:$0xff]
        %v4726 = vld [vmem:[%s4714 + $0x58] sm:$0xff]
        %v4727 = vld [vmem:[%s4714 + $0x60] sm:$0xff]
        %v4728 = vld [vmem:[%s4714 + $0x68] sm:$0xff]
        %v4729 = vld [vmem:[%s4714 + $0x70] sm:$0xff]
        %v4730 = vld [vmem:[%s4714 + $0x78] sm:$0xff]
        %v4731 = vld [vmem:[%s4714 + $0x80] sm:$0xff]
        %v4732 = vld [vmem:[%s4714 + $0x88] sm:$0xff]
        %v4733 = vld [vmem:[%s4714 + $0x90] sm:$0xff]
        %v4734 = vld [vmem:[%s4714 + $0x98] sm:$0xff]
        %v4735 = vld [vmem:[%s4714 + $0xa0] sm:$0xff]
        %v4736 = vld [vmem:[%s4714 + $0xa8] sm:$0xff]
        %v4737 = vld [vmem:[%s4714 + $0xb0] sm:$0xff]
        %v4738 = vld [vmem:[%s4714 + $0xb8] sm:$0xff]
        %v4739 = vld [vmem:[%s4714 + $0xc0] sm:$0xff]
        %v4740 = vld [vmem:[%s4714 + $0xc8] sm:$0xff]
        %v4741 = vld [vmem:[%s4714 + $0xd0] sm:$0xff]
        %v4742 = vld [vmem:[%s4714 + $0xd8] sm:$0xff]
        %v4743 = vld [vmem:[%s4714 + $0xe0] sm:$0xff]
        %v4744 = vld [vmem:[%s4714 + $0xe8] sm:$0xff]
        %v4745 = vld [vmem:[%s4714 + $0xf0] sm:$0xff]
        %v4746 = vld [vmem:[%s4714 + $0xf8] sm:$0xff]
        %v4747 = vld [vmem:[%s4714 + $0x100] sm:$0xff]
        %v4748 = vld [vmem:[%s4714 + $0x108] sm:$0xff]
        %v4749 = vld [vmem:[%s4714 + $0x110] sm:$0xff]
        %v4750 = vld [vmem:[%s4714 + $0x118] sm:$0xff]
        %v4751 = vld [vmem:[%s4714 + $0x120] sm:$0xff]
        %v4752 = vld [vmem:[%s4714 + $0x128] sm:$0xff]
        %v4753 = vld [vmem:[%s4714 + $0x130] sm:$0xff]
        %v4754 = vld [vmem:[%s4714 + $0x138] sm:$0xff]
        %v4755 = vld [vmem:[%s4714 + $0x140] sm:$0xff]
        %v4756 = vld [vmem:[%s4714 + $0x148] sm:$0xff]
        %v4757 = vld [vmem:[%s4714 + $0x150] sm:$0xff]
        %v4758 = vld [vmem:[%s4714 + $0x158] sm:$0xff]
        %v4759 = vld [vmem:[%s4714 + $0x160] sm:$0xff]
        %v4760 = vld [vmem:[%s4714 + $0x168] sm:$0xff]
        %v4761 = vld [vmem:[%s4714 + $0x170] sm:$0xff]
        %v4762 = vld [vmem:[%s4714 + $0x178] sm:$0xff]
        %v4763 = vld [vmem:[%s4714 + $0x180] sm:$0xff]
        %v4764 = vld [vmem:[%s4714 + $0x188] sm:$0xff]
        %v4765 = vld [vmem:[%s4714 + $0x190] sm:$0xff]
        %v4766 = vld [vmem:[%s4714 + $0x198] sm:$0xff]
        %v4767 = vld [vmem:[%s4714 + $0x1a0] sm:$0xff]
        %v4768 = vld [vmem:[%s4714 + $0x1a8] sm:$0xff]
        %v4769 = vld [vmem:[%s4714 + $0x1b0] sm:$0xff]
        %v4770 = vld [vmem:[%s4714 + $0x1b8] sm:$0xff]
        %v4771 = vld [vmem:[%s4714 + $0x1c0] sm:$0xff]
        %v4772 = vld [vmem:[%s4714 + $0x1c8] sm:$0xff]
        %v4773 = vld [vmem:[%s4714 + $0x1d0] sm:$0xff]
        %v4774 = vld [vmem:[%s4714 + $0x1d8] sm:$0xff]
        %v4775 = vld [vmem:[%s4714 + $0x1e0] sm:$0xff]
        %v4776 = vld [vmem:[%s4714 + $0x1e8] sm:$0xff]
        %v4777 = vld [vmem:[%s4714 + $0x1f0] sm:$0xff]
        %v4778 = vld [vmem:[%s4714 + $0x1f8] sm:$0xff]
        %v4779 = vld [vmem:[%s4714 + $0x200] sm:$0xff]
        %v4780 = vld [vmem:[%s4714 + $0x208] sm:$0xff]
        %v4781 = vld [vmem:[%s4714 + $0x210] sm:$0xff]
        %v4782 = vld [vmem:[%s4714 + $0x218] sm:$0xff]
        %v4783 = vld [vmem:[%s4714 + $0x220] sm:$0xff]
        %v4784 = vld [vmem:[%s4714 + $0x228] sm:$0xff]
        %v4785 = vld [vmem:[%s4714 + $0x230] sm:$0xff]
        %v4786 = vld [vmem:[%s4714 + $0x238] sm:$0xff]
        %v4787 = vld [vmem:[%s4714 + $0x240] sm:$0xff]
        %v4788 = vld [vmem:[%s4714 + $0x248] sm:$0xff]
        %v4789 = vld [vmem:[%s4714 + $0x250] sm:$0xff]
        %v4790 = vld [vmem:[%s4714 + $0x258] sm:$0xff]
        %v4791 = vld [vmem:[%s4714 + $0x260] sm:$0xff]
        %v4792 = vld [vmem:[%s4714 + $0x268] sm:$0xff]
        %v4793 = vld [vmem:[%s4714 + $0x270] sm:$0xff]
        %v4794 = vld [vmem:[%s4714 + $0x278] sm:$0xff]
        %v4795 = vld [vmem:[%s4714 + $0x280] sm:$0xff]
        %v4796 = vld [vmem:[%s4714 + $0x288] sm:$0xff]
        %v4797 = vld [vmem:[%s4714 + $0x290] sm:$0xff]
        %v4798 = vld [vmem:[%s4714 + $0x298] sm:$0xff]
        %v4799 = vld [vmem:[%s4714 + $0x2a0] sm:$0xff]
        %v4800 = vld [vmem:[%s4714 + $0x2a8] sm:$0xff]
        %v4801 = vld [vmem:[%s4714 + $0x2b0] sm:$0xff]
        %v4802 = vld [vmem:[%s4714 + $0x2b8] sm:$0xff]
        %v4803 = vld [vmem:[%s4714 + $0x2c0] sm:$0xff]
        %v4804 = vld [vmem:[%s4714 + $0x2c8] sm:$0xff]
        %v4805 = vld [vmem:[%s4714 + $0x2d0] sm:$0xff]
        %v4806 = vld [vmem:[%s4714 + $0x2d8] sm:$0xff]
        %v4807 = vld [vmem:[%s4714 + $0x2e0] sm:$0xff]
        %v4808 = vld [vmem:[%s4714 + $0x2e8] sm:$0xff]
        %v4809 = vld [vmem:[%s4714 + $0x2f0] sm:$0xff]
        %v4810 = vld [vmem:[%s4714 + $0x2f8] sm:$0xff]
        %v4811 = vld [vmem:[%s4714 + $0x300] sm:$0xff]
        %v4812 = vld [vmem:[%s4714 + $0x308] sm:$0xff]
        %v4813 = vld [vmem:[%s4714 + $0x310] sm:$0xff]
        %v4814 = vld [vmem:[%s4714 + $0x318] sm:$0xff]
        %v4815 = vld [vmem:[%s4714 + $0x320] sm:$0xff]
        %v4816 = vld [vmem:[%s4714 + $0x328] sm:$0xff]
        %v4817 = vld [vmem:[%s4714 + $0x330] sm:$0xff]
        %v4818 = vld [vmem:[%s4714 + $0x338] sm:$0xff]
        %v4819 = vld [vmem:[%s4714 + $0x340] sm:$0xff]
        %v4820 = vld [vmem:[%s4714 + $0x348] sm:$0xff]
        %v4821 = vld [vmem:[%s4714 + $0x350] sm:$0xff]
        %v4822 = vld [vmem:[%s4714 + $0x358] sm:$0xff]
        %v4823 = vld [vmem:[%s4714 + $0x360] sm:$0xff]
        %v4824 = vld [vmem:[%s4714 + $0x368] sm:$0xff]
        %v4825 = vld [vmem:[%s4714 + $0x370] sm:$0xff]
        %v4826 = vld [vmem:[%s4714 + $0x378] sm:$0xff]
        %v4827 = vld [vmem:[%s4714 + $0x380] sm:$0xff]
        %v4828 = vld [vmem:[%s4714 + $0x388] sm:$0xff]
        %v4829 = vld [vmem:[%s4714 + $0x390] sm:$0xff]
        %v4830 = vld [vmem:[%s4714 + $0x398] sm:$0xff]
        %v4831 = vld [vmem:[%s4714 + $0x3a0] sm:$0xff]
        %v4832 = vld [vmem:[%s4714 + $0x3a8] sm:$0xff]
        %v4833 = vld [vmem:[%s4714 + $0x3b0] sm:$0xff]
        %v4834 = vld [vmem:[%s4714 + $0x3b8] sm:$0xff]
        %v4835 = vld [vmem:[%s4714 + $0x3c0] sm:$0xff]
        %v4836 = vld [vmem:[%s4714 + $0x3c8] sm:$0xff]
        %v4837 = vld [vmem:[%s4714 + $0x3d0] sm:$0xff]
        %v4838 = vld [vmem:[%s4714 + $0x3d8] sm:$0xff]
        %v4839 = vld [vmem:[%s4714 + $0x3e0] sm:$0xff]
        %v4840 = vld [vmem:[%s4714 + $0x3e8] sm:$0xff]
        %v4841 = vld [vmem:[%s4714 + $0x3f0] sm:$0xff]
        %v4842 = vld [vmem:[%s4714 + $0x3f8] sm:$0xff]
        %v4849 = vunpack.c.l.b16 %v4580
        %v4850 = vunpack.c.h.b16 %v4580
        %v4851 = vunpack.c.l.b16 %v4581
        %v4852 = vunpack.c.h.b16 %v4581
        %v4853 = vunpack.c.l.b16 %v4582
        %v4854 = vunpack.c.h.b16 %v4582
        %v4855 = vunpack.c.l.b16 %v4583
        %v4856 = vunpack.c.h.b16 %v4583
        %v4857 = vunpack.c.l.b16 %v4712
        %v4858 = vunpack.c.h.b16 %v4712
        %v4859 = vunpack.c.l.b16 %v4713
        %v4860 = vunpack.c.h.b16 %v4713
        %v4861 = vpack.c.b16 %v4853, %v4849
        %v4862 = vpack.c.b16 %v4854, %v4850
        %v4863 = vpack.c.b16 %v4855, %v4851
        %v4864 = vpack.c.b16 %v4856, %v4852
        %v4865 = vpack.c.b16 %v4857, %v4857
        %v4866 = vpack.c.b16 %v4858, %v4858
        %v4867 = vpack.c.b16 %v4859, %v4859
        %v4868 = vpack.c.b16 %v4860, %v4860
        %v4870 = vshrl.u32 %v4861, 16
        %v4872 = vshll.u32 %v4861, 16
        %v4874 = vrot.slane %v4872, 1
        %v4875 = vor.u32 %v4870, %v4874
        %v4877 = vshll.u32 %v4865, 16
        %v4879 = vrot.slane %v4877, 1
        %v4880 = vsel %vm648, %v4875, %v4879
        %v4882 = vshrl.u32 %v4862, 16
        %v4884 = vshll.u32 %v4862, 16
        %v4886 = vrot.slane %v4884, 1
        %v4887 = vor.u32 %v4882, %v4886
        %v4889 = vshll.u32 %v4866, 16
        %v4891 = vrot.slane %v4889, 1
        %v4892 = vsel %vm648, %v4887, %v4891
        %v4894 = vshrl.u32 %v4863, 16
        %v4896 = vshll.u32 %v4863, 16
        %v4898 = vrot.slane %v4896, 1
        %v4899 = vor.u32 %v4894, %v4898
        %v4901 = vshll.u32 %v4867, 16
        %v4903 = vrot.slane %v4901, 1
        %v4904 = vsel %vm648, %v4899, %v4903
        %v4906 = vshrl.u32 %v4864, 16
        %v4908 = vshll.u32 %v4864, 16
        %v4910 = vrot.slane %v4908, 1
        %v4911 = vor.u32 %v4906, %v4910
        %v4913 = vshll.u32 %v4868, 16
        %v4915 = vrot.slane %v4913, 1
        %v4916 = vsel %vm648, %v4911, %v4915
        %v5049 = vunpack.c.l.b16 %v4715
        %v5050 = vunpack.c.h.b16 %v4715
        %v5051 = vunpack.c.l.b16 %v4716
        %v5052 = vunpack.c.h.b16 %v4716
        %v5053 = vunpack.c.l.b16 %v4717
        %v5054 = vunpack.c.h.b16 %v4717
        %v5055 = vunpack.c.l.b16 %v4718
        %v5056 = vunpack.c.h.b16 %v4718
        %v5057 = vunpack.c.l.b16 %v4719
        %v5058 = vunpack.c.h.b16 %v4719
        %v5059 = vunpack.c.l.b16 %v4720
        %v5060 = vunpack.c.h.b16 %v4720
        %v5061 = vunpack.c.l.b16 %v4721
        %v5062 = vunpack.c.h.b16 %v4721
        %v5063 = vunpack.c.l.b16 %v4722
        %v5064 = vunpack.c.h.b16 %v4722
        %v5065 = vunpack.c.l.b16 %v4723
        %v5066 = vunpack.c.h.b16 %v4723
        %v5067 = vunpack.c.l.b16 %v4724
        %v5068 = vunpack.c.h.b16 %v4724
        %v5069 = vunpack.c.l.b16 %v4725
        %v5070 = vunpack.c.h.b16 %v4725
        %v5071 = vunpack.c.l.b16 %v4726
        %v5072 = vunpack.c.h.b16 %v4726
        %v5073 = vunpack.c.l.b16 %v4727
        %v5074 = vunpack.c.h.b16 %v4727
        %v5075 = vunpack.c.l.b16 %v4728
        %v5076 = vunpack.c.h.b16 %v4728
        %v5077 = vunpack.c.l.b16 %v4729
        %v5078 = vunpack.c.h.b16 %v4729
        %v5079 = vunpack.c.l.b16 %v4730
        %v5080 = vunpack.c.h.b16 %v4730
        %v5081 = vunpack.c.l.b16 %v4731
        %v5082 = vunpack.c.h.b16 %v4731
        %v5083 = vunpack.c.l.b16 %v4732
        %v5084 = vunpack.c.h.b16 %v4732
        %v5085 = vunpack.c.l.b16 %v4733
        %v5086 = vunpack.c.h.b16 %v4733
        %v5087 = vunpack.c.l.b16 %v4734
        %v5088 = vunpack.c.h.b16 %v4734
        %v5089 = vunpack.c.l.b16 %v4735
        %v5090 = vunpack.c.h.b16 %v4735
        %v5091 = vunpack.c.l.b16 %v4736
        %v5092 = vunpack.c.h.b16 %v4736
        %v5093 = vunpack.c.l.b16 %v4737
        %v5094 = vunpack.c.h.b16 %v4737
        %v5095 = vunpack.c.l.b16 %v4738
        %v5096 = vunpack.c.h.b16 %v4738
        %v5097 = vunpack.c.l.b16 %v4739
        %v5098 = vunpack.c.h.b16 %v4739
        %v5099 = vunpack.c.l.b16 %v4740
        %v5100 = vunpack.c.h.b16 %v4740
        %v5101 = vunpack.c.l.b16 %v4741
        %v5102 = vunpack.c.h.b16 %v4741
        %v5103 = vunpack.c.l.b16 %v4742
        %v5104 = vunpack.c.h.b16 %v4742
        %v5105 = vunpack.c.l.b16 %v4743
        %v5106 = vunpack.c.h.b16 %v4743
        %v5107 = vunpack.c.l.b16 %v4744
        %v5108 = vunpack.c.h.b16 %v4744
        %v5109 = vunpack.c.l.b16 %v4745
        %v5110 = vunpack.c.h.b16 %v4745
        %v5111 = vunpack.c.l.b16 %v4746
        %v5112 = vunpack.c.h.b16 %v4746
        %v5113 = vunpack.c.l.b16 %v4747
        %v5114 = vunpack.c.h.b16 %v4747
        %v5115 = vunpack.c.l.b16 %v4748
        %v5116 = vunpack.c.h.b16 %v4748
        %v5117 = vunpack.c.l.b16 %v4749
        %v5118 = vunpack.c.h.b16 %v4749
        %v5119 = vunpack.c.l.b16 %v4750
        %v5120 = vunpack.c.h.b16 %v4750
        %v5121 = vunpack.c.l.b16 %v4751
        %v5122 = vunpack.c.h.b16 %v4751
        %v5123 = vunpack.c.l.b16 %v4752
        %v5124 = vunpack.c.h.b16 %v4752
        %v5125 = vunpack.c.l.b16 %v4753
        %v5126 = vunpack.c.h.b16 %v4753
        %v5127 = vunpack.c.l.b16 %v4754
        %v5128 = vunpack.c.h.b16 %v4754
        %v5129 = vunpack.c.l.b16 %v4755
        %v5130 = vunpack.c.h.b16 %v4755
        %v5131 = vunpack.c.l.b16 %v4756
        %v5132 = vunpack.c.h.b16 %v4756
        %v5133 = vunpack.c.l.b16 %v4757
        %v5134 = vunpack.c.h.b16 %v4757
        %v5135 = vunpack.c.l.b16 %v4758
        %v5136 = vunpack.c.h.b16 %v4758
        %v5137 = vunpack.c.l.b16 %v4759
        %v5138 = vunpack.c.h.b16 %v4759
        %v5139 = vunpack.c.l.b16 %v4760
        %v5140 = vunpack.c.h.b16 %v4760
        %v5141 = vunpack.c.l.b16 %v4761
        %v5142 = vunpack.c.h.b16 %v4761
        %v5143 = vunpack.c.l.b16 %v4762
        %v5144 = vunpack.c.h.b16 %v4762
        %v5145 = vunpack.c.l.b16 %v4763
        %v5146 = vunpack.c.h.b16 %v4763
        %v5147 = vunpack.c.l.b16 %v4764
        %v5148 = vunpack.c.h.b16 %v4764
        %v5149 = vunpack.c.l.b16 %v4765
        %v5150 = vunpack.c.h.b16 %v4765
        %v5151 = vunpack.c.l.b16 %v4766
        %v5152 = vunpack.c.h.b16 %v4766
        %v5153 = vunpack.c.l.b16 %v4767
        %v5154 = vunpack.c.h.b16 %v4767
        %v5155 = vunpack.c.l.b16 %v4768
        %v5156 = vunpack.c.h.b16 %v4768
        %v5157 = vunpack.c.l.b16 %v4769
        %v5158 = vunpack.c.h.b16 %v4769
        %v5159 = vunpack.c.l.b16 %v4770
        %v5160 = vunpack.c.h.b16 %v4770
        %v5161 = vunpack.c.l.b16 %v4771
        %v5162 = vunpack.c.h.b16 %v4771
        %v5163 = vunpack.c.l.b16 %v4772
        %v5164 = vunpack.c.h.b16 %v4772
        %v5165 = vunpack.c.l.b16 %v4773
        %v5166 = vunpack.c.h.b16 %v4773
        %v5167 = vunpack.c.l.b16 %v4774
        %v5168 = vunpack.c.h.b16 %v4774
        %v5169 = vunpack.c.l.b16 %v4775
        %v5170 = vunpack.c.h.b16 %v4775
        %v5171 = vunpack.c.l.b16 %v4776
        %v5172 = vunpack.c.h.b16 %v4776
        %v5173 = vunpack.c.l.b16 %v4777
        %v5174 = vunpack.c.h.b16 %v4777
        %v5175 = vunpack.c.l.b16 %v4778
        %v5176 = vunpack.c.h.b16 %v4778
        %v5177 = vunpack.c.l.b16 %v4779
        %v5178 = vunpack.c.h.b16 %v4779
        %v5179 = vunpack.c.l.b16 %v4780
        %v5180 = vunpack.c.h.b16 %v4780
        %v5181 = vunpack.c.l.b16 %v4781
        %v5182 = vunpack.c.h.b16 %v4781
        %v5183 = vunpack.c.l.b16 %v4782
        %v5184 = vunpack.c.h.b16 %v4782
        %v5185 = vunpack.c.l.b16 %v4783
        %v5186 = vunpack.c.h.b16 %v4783
        %v5187 = vunpack.c.l.b16 %v4784
        %v5188 = vunpack.c.h.b16 %v4784
        %v5189 = vunpack.c.l.b16 %v4785
        %v5190 = vunpack.c.h.b16 %v4785
        %v5191 = vunpack.c.l.b16 %v4786
        %v5192 = vunpack.c.h.b16 %v4786
        %v5193 = vunpack.c.l.b16 %v4787
        %v5194 = vunpack.c.h.b16 %v4787
        %v5195 = vunpack.c.l.b16 %v4788
        %v5196 = vunpack.c.h.b16 %v4788
        %v5197 = vunpack.c.l.b16 %v4789
        %v5198 = vunpack.c.h.b16 %v4789
        %v5199 = vunpack.c.l.b16 %v4790
        %v5200 = vunpack.c.h.b16 %v4790
        %v5201 = vunpack.c.l.b16 %v4791
        %v5202 = vunpack.c.h.b16 %v4791
        %v5203 = vunpack.c.l.b16 %v4792
        %v5204 = vunpack.c.h.b16 %v4792
        %v5205 = vunpack.c.l.b16 %v4793
        %v5206 = vunpack.c.h.b16 %v4793
        %v5207 = vunpack.c.l.b16 %v4794
        %v5208 = vunpack.c.h.b16 %v4794
        %v5209 = vunpack.c.l.b16 %v4795
        %v5210 = vunpack.c.h.b16 %v4795
        %v5211 = vunpack.c.l.b16 %v4796
        %v5212 = vunpack.c.h.b16 %v4796
        %v5213 = vunpack.c.l.b16 %v4797
        %v5214 = vunpack.c.h.b16 %v4797
        %v5215 = vunpack.c.l.b16 %v4798
        %v5216 = vunpack.c.h.b16 %v4798
        %v5217 = vunpack.c.l.b16 %v4799
        %v5218 = vunpack.c.h.b16 %v4799
        %v5219 = vunpack.c.l.b16 %v4800
        %v5220 = vunpack.c.h.b16 %v4800
        %v5221 = vunpack.c.l.b16 %v4801
        %v5222 = vunpack.c.h.b16 %v4801
        %v5223 = vunpack.c.l.b16 %v4802
        %v5224 = vunpack.c.h.b16 %v4802
        %v5225 = vunpack.c.l.b16 %v4803
        %v5226 = vunpack.c.h.b16 %v4803
        %v5227 = vunpack.c.l.b16 %v4804
        %v5228 = vunpack.c.h.b16 %v4804
        %v5229 = vunpack.c.l.b16 %v4805
        %v5230 = vunpack.c.h.b16 %v4805
        %v5231 = vunpack.c.l.b16 %v4806
        %v5232 = vunpack.c.h.b16 %v4806
        %v5233 = vunpack.c.l.b16 %v4807
        %v5234 = vunpack.c.h.b16 %v4807
        %v5235 = vunpack.c.l.b16 %v4808
        %v5236 = vunpack.c.h.b16 %v4808
        %v5237 = vunpack.c.l.b16 %v4809
        %v5238 = vunpack.c.h.b16 %v4809
        %v5239 = vunpack.c.l.b16 %v4810
        %v5240 = vunpack.c.h.b16 %v4810
        %v5241 = vunpack.c.l.b16 %v4811
        %v5242 = vunpack.c.h.b16 %v4811
        %v5243 = vunpack.c.l.b16 %v4812
        %v5244 = vunpack.c.h.b16 %v4812
        %v5245 = vunpack.c.l.b16 %v4813
        %v5246 = vunpack.c.h.b16 %v4813
        %v5247 = vunpack.c.l.b16 %v4814
        %v5248 = vunpack.c.h.b16 %v4814
        %v5249 = vunpack.c.l.b16 %v4815
        %v5250 = vunpack.c.h.b16 %v4815
        %v5251 = vunpack.c.l.b16 %v4816
        %v5252 = vunpack.c.h.b16 %v4816
        %v5253 = vunpack.c.l.b16 %v4817
        %v5254 = vunpack.c.h.b16 %v4817
        %v5255 = vunpack.c.l.b16 %v4818
        %v5256 = vunpack.c.h.b16 %v4818
        %v5257 = vunpack.c.l.b16 %v4819
        %v5258 = vunpack.c.h.b16 %v4819
        %v5259 = vunpack.c.l.b16 %v4820
        %v5260 = vunpack.c.h.b16 %v4820
        %v5261 = vunpack.c.l.b16 %v4821
        %v5262 = vunpack.c.h.b16 %v4821
        %v5263 = vunpack.c.l.b16 %v4822
        %v5264 = vunpack.c.h.b16 %v4822
        %v5265 = vunpack.c.l.b16 %v4823
        %v5266 = vunpack.c.h.b16 %v4823
        %v5267 = vunpack.c.l.b16 %v4824
        %v5268 = vunpack.c.h.b16 %v4824
        %v5269 = vunpack.c.l.b16 %v4825
        %v5270 = vunpack.c.h.b16 %v4825
        %v5271 = vunpack.c.l.b16 %v4826
        %v5272 = vunpack.c.h.b16 %v4826
        %v5273 = vunpack.c.l.b16 %v4827
        %v5274 = vunpack.c.h.b16 %v4827
        %v5275 = vunpack.c.l.b16 %v4828
        %v5276 = vunpack.c.h.b16 %v4828
        %v5277 = vunpack.c.l.b16 %v4829
        %v5278 = vunpack.c.h.b16 %v4829
        %v5279 = vunpack.c.l.b16 %v4830
        %v5280 = vunpack.c.h.b16 %v4830
        %v5281 = vunpack.c.l.b16 %v4831
        %v5282 = vunpack.c.h.b16 %v4831
        %v5283 = vunpack.c.l.b16 %v4832
        %v5284 = vunpack.c.h.b16 %v4832
        %v5285 = vunpack.c.l.b16 %v4833
        %v5286 = vunpack.c.h.b16 %v4833
        %v5287 = vunpack.c.l.b16 %v4834
        %v5288 = vunpack.c.h.b16 %v4834
        %v5289 = vunpack.c.l.b16 %v4835
        %v5290 = vunpack.c.h.b16 %v4835
        %v5291 = vunpack.c.l.b16 %v4836
        %v5292 = vunpack.c.h.b16 %v4836
        %v5293 = vunpack.c.l.b16 %v4837
        %v5294 = vunpack.c.h.b16 %v4837
        %v5295 = vunpack.c.l.b16 %v4838
        %v5296 = vunpack.c.h.b16 %v4838
        %v5297 = vunpack.c.l.b16 %v4839
        %v5298 = vunpack.c.h.b16 %v4839
        %v5299 = vunpack.c.l.b16 %v4840
        %v5300 = vunpack.c.h.b16 %v4840
        %v5301 = vunpack.c.l.b16 %v4841
        %v5302 = vunpack.c.h.b16 %v4841
        %v5303 = vunpack.c.l.b16 %v4842
        %v5304 = vunpack.c.h.b16 %v4842
        %v5305 = vpack.c.b16 %v5053, %v5049
        %v5306 = vpack.c.b16 %v5054, %v5050
        %v5307 = vpack.c.b16 %v5055, %v5051
        %v5308 = vpack.c.b16 %v5056, %v5052
        %v5309 = vpack.c.b16 %v5061, %v5057
        %v5310 = vpack.c.b16 %v5062, %v5058
        %v5311 = vpack.c.b16 %v5063, %v5059
        %v5312 = vpack.c.b16 %v5064, %v5060
        %v5313 = vpack.c.b16 %v5069, %v5065
        %v5314 = vpack.c.b16 %v5070, %v5066
        %v5315 = vpack.c.b16 %v5071, %v5067
        %v5316 = vpack.c.b16 %v5072, %v5068
        %v5317 = vpack.c.b16 %v5077, %v5073
        %v5318 = vpack.c.b16 %v5078, %v5074
        %v5319 = vpack.c.b16 %v5079, %v5075
        %v5320 = vpack.c.b16 %v5080, %v5076
        %v5321 = vpack.c.b16 %v5085, %v5081
        %v5322 = vpack.c.b16 %v5086, %v5082
        %v5323 = vpack.c.b16 %v5087, %v5083
        %v5324 = vpack.c.b16 %v5088, %v5084
        %v5325 = vpack.c.b16 %v5093, %v5089
        %v5326 = vpack.c.b16 %v5094, %v5090
        %v5327 = vpack.c.b16 %v5095, %v5091
        %v5328 = vpack.c.b16 %v5096, %v5092
        %v5329 = vpack.c.b16 %v5101, %v5097
        %v5330 = vpack.c.b16 %v5102, %v5098
        %v5331 = vpack.c.b16 %v5103, %v5099
        %v5332 = vpack.c.b16 %v5104, %v5100
        %v5333 = vpack.c.b16 %v5109, %v5105
        %v5334 = vpack.c.b16 %v5110, %v5106
        %v5335 = vpack.c.b16 %v5111, %v5107
        %v5336 = vpack.c.b16 %v5112, %v5108
        %v5337 = vpack.c.b16 %v5117, %v5113
        %v5338 = vpack.c.b16 %v5118, %v5114
        %v5339 = vpack.c.b16 %v5119, %v5115
        %v5340 = vpack.c.b16 %v5120, %v5116
        %v5341 = vpack.c.b16 %v5125, %v5121
        %v5342 = vpack.c.b16 %v5126, %v5122
        %v5343 = vpack.c.b16 %v5127, %v5123
        %v5344 = vpack.c.b16 %v5128, %v5124
        %v5345 = vpack.c.b16 %v5133, %v5129
        %v5346 = vpack.c.b16 %v5134, %v5130
        %v5347 = vpack.c.b16 %v5135, %v5131
        %v5348 = vpack.c.b16 %v5136, %v5132
        %v5349 = vpack.c.b16 %v5141, %v5137
        %v5350 = vpack.c.b16 %v5142, %v5138
        %v5351 = vpack.c.b16 %v5143, %v5139
        %v5352 = vpack.c.b16 %v5144, %v5140
        %v5353 = vpack.c.b16 %v5149, %v5145
        %v5354 = vpack.c.b16 %v5150, %v5146
        %v5355 = vpack.c.b16 %v5151, %v5147
        %v5356 = vpack.c.b16 %v5152, %v5148
        %v5357 = vpack.c.b16 %v5157, %v5153
        %v5358 = vpack.c.b16 %v5158, %v5154
        %v5359 = vpack.c.b16 %v5159, %v5155
        %v5360 = vpack.c.b16 %v5160, %v5156
        %v5361 = vpack.c.b16 %v5165, %v5161
        %v5362 = vpack.c.b16 %v5166, %v5162
        %v5363 = vpack.c.b16 %v5167, %v5163
        %v5364 = vpack.c.b16 %v5168, %v5164
        %v5365 = vpack.c.b16 %v5173, %v5169
        %v5366 = vpack.c.b16 %v5174, %v5170
        %v5367 = vpack.c.b16 %v5175, %v5171
        %v5368 = vpack.c.b16 %v5176, %v5172
        %v5369 = vpack.c.b16 %v5181, %v5177
        %v5370 = vpack.c.b16 %v5182, %v5178
        %v5371 = vpack.c.b16 %v5183, %v5179
        %v5372 = vpack.c.b16 %v5184, %v5180
        %v5373 = vpack.c.b16 %v5189, %v5185
        %v5374 = vpack.c.b16 %v5190, %v5186
        %v5375 = vpack.c.b16 %v5191, %v5187
        %v5376 = vpack.c.b16 %v5192, %v5188
        %v5377 = vpack.c.b16 %v5197, %v5193
        %v5378 = vpack.c.b16 %v5198, %v5194
        %v5379 = vpack.c.b16 %v5199, %v5195
        %v5380 = vpack.c.b16 %v5200, %v5196
        %v5381 = vpack.c.b16 %v5205, %v5201
        %v5382 = vpack.c.b16 %v5206, %v5202
        %v5383 = vpack.c.b16 %v5207, %v5203
        %v5384 = vpack.c.b16 %v5208, %v5204
        %v5385 = vpack.c.b16 %v5213, %v5209
        %v5386 = vpack.c.b16 %v5214, %v5210
        %v5387 = vpack.c.b16 %v5215, %v5211
        %v5388 = vpack.c.b16 %v5216, %v5212
        %v5389 = vpack.c.b16 %v5221, %v5217
        %v5390 = vpack.c.b16 %v5222, %v5218
        %v5391 = vpack.c.b16 %v5223, %v5219
        %v5392 = vpack.c.b16 %v5224, %v5220
        %v5393 = vpack.c.b16 %v5229, %v5225
        %v5394 = vpack.c.b16 %v5230, %v5226
        %v5395 = vpack.c.b16 %v5231, %v5227
        %v5396 = vpack.c.b16 %v5232, %v5228
        %v5397 = vpack.c.b16 %v5237, %v5233
        %v5398 = vpack.c.b16 %v5238, %v5234
        %v5399 = vpack.c.b16 %v5239, %v5235
        %v5400 = vpack.c.b16 %v5240, %v5236
        %v5401 = vpack.c.b16 %v5245, %v5241
        %v5402 = vpack.c.b16 %v5246, %v5242
        %v5403 = vpack.c.b16 %v5247, %v5243
        %v5404 = vpack.c.b16 %v5248, %v5244
        %v5405 = vpack.c.b16 %v5253, %v5249
        %v5406 = vpack.c.b16 %v5254, %v5250
        %v5407 = vpack.c.b16 %v5255, %v5251
        %v5408 = vpack.c.b16 %v5256, %v5252
        %v5409 = vpack.c.b16 %v5261, %v5257
        %v5410 = vpack.c.b16 %v5262, %v5258
        %v5411 = vpack.c.b16 %v5263, %v5259
        %v5412 = vpack.c.b16 %v5264, %v5260
        %v5413 = vpack.c.b16 %v5269, %v5265
        %v5414 = vpack.c.b16 %v5270, %v5266
        %v5415 = vpack.c.b16 %v5271, %v5267
        %v5416 = vpack.c.b16 %v5272, %v5268
        %v5417 = vpack.c.b16 %v5277, %v5273
        %v5418 = vpack.c.b16 %v5278, %v5274
        %v5419 = vpack.c.b16 %v5279, %v5275
        %v5420 = vpack.c.b16 %v5280, %v5276
        %v5421 = vpack.c.b16 %v5285, %v5281
        %v5422 = vpack.c.b16 %v5286, %v5282
        %v5423 = vpack.c.b16 %v5287, %v5283
        %v5424 = vpack.c.b16 %v5288, %v5284
        %v5425 = vpack.c.b16 %v5293, %v5289
        %v5426 = vpack.c.b16 %v5294, %v5290
        %v5427 = vpack.c.b16 %v5295, %v5291
        %v5428 = vpack.c.b16 %v5296, %v5292
        %v5429 = vpack.c.b16 %v5301, %v5297
        %v5430 = vpack.c.b16 %v5302, %v5298
        %v5431 = vpack.c.b16 %v5303, %v5299
        %v5432 = vpack.c.b16 %v5304, %v5300
        %5561 = vmatprep.subr.bf16.mxu0 %v5306
        %5562 = vmatpush1.bf16.msra.mxu0 %v5305
        %5563 = vmatprep.subr.bf16.mxu0 %v5310
        %5564 = vmatpush1.bf16.msra.mxu0 %v5309
        %5565 = vmatprep.subr.bf16.mxu0 %v5314
        %5566 = vmatpush1.bf16.msra.mxu0 %v5313
        %5567 = vmatprep.subr.bf16.mxu0 %v5318
        %5568 = vmatpush1.bf16.msra.mxu0 %v5317
        %5569 = vmatprep.subr.bf16.mxu0 %v5322
        %5570 = vmatpush1.bf16.msra.mxu0 %v5321
        %5571 = vmatprep.subr.bf16.mxu0 %v5326
        %5572 = vmatpush1.bf16.msra.mxu0 %v5325
        %5573 = vmatprep.subr.bf16.mxu0 %v5330
        %5574 = vmatpush1.bf16.msra.mxu0 %v5329
        %5575 = vmatprep.subr.bf16.mxu0 %v5334
        %5576 = vmatpush1.bf16.msra.mxu0 %v5333
        %5577 = vmatprep.subr.bf16.mxu0 %v5338
        %5578 = vmatpush1.bf16.msra.mxu0 %v5337
        %5579 = vmatprep.subr.bf16.mxu0 %v5342
        %5580 = vmatpush1.bf16.msra.mxu0 %v5341
        %5581 = vmatprep.subr.bf16.mxu0 %v5346
        %5582 = vmatpush1.bf16.msra.mxu0 %v5345
        %5583 = vmatprep.subr.bf16.mxu0 %v5350
        %5584 = vmatpush1.bf16.msra.mxu0 %v5349
        %5585 = vmatprep.subr.bf16.mxu0 %v5354
        %5586 = vmatpush1.bf16.msra.mxu0 %v5353
        %5587 = vmatprep.subr.bf16.mxu0 %v5358
        %5588 = vmatpush1.bf16.msra.mxu0 %v5357
        %5589 = vmatprep.subr.bf16.mxu0 %v5362
        %5590 = vmatpush1.bf16.msra.mxu0 %v5361
        %5591 = vmatprep.subr.bf16.mxu0 %v5366
        %5592 = vmatpush1.bf16.msra.mxu0 %v5365
        %5593 = vmatprep.mubr.bf16.mxu0 %v4892
        %5594 = vmatmul.mubr.bf16.gmra.mrb[0].mxu0 %v4880
        %v5595 = vpop.f32.mrb[0].mxu0
        %v5596 = vadd.f32 0.0, %v5595
        %v5597 = vpop.f32.mrb[0].mxu0
        %v5598 = vadd.f32 0.0, %v5597
        %v5599 = vpop.f32.mrb[0].mxu0
        %v5600 = vadd.f32 0.0, %v5599
        %v5601 = vpop.f32.mrb[0].mxu0
        %v5602 = vadd.f32 0.0, %v5601
        %5603 = vdwg.mxu0
        %5604 = vmatprep.subr.bf16.mxu0 %v5370
        %5605 = vmatpush1.bf16.msra.mxu0 %v5369
        %5606 = vmatprep.subr.bf16.mxu0 %v5374
        %5607 = vmatpush1.bf16.msra.mxu0 %v5373
        %5608 = vmatprep.subr.bf16.mxu0 %v5378
        %5609 = vmatpush1.bf16.msra.mxu0 %v5377
        %5610 = vmatprep.subr.bf16.mxu0 %v5382
        %5611 = vmatpush1.bf16.msra.mxu0 %v5381
        %5612 = vmatprep.subr.bf16.mxu0 %v5386
        %5613 = vmatpush1.bf16.msra.mxu0 %v5385
        %5614 = vmatprep.subr.bf16.mxu0 %v5390
        %5615 = vmatpush1.bf16.msra.mxu0 %v5389
        %5616 = vmatprep.subr.bf16.mxu0 %v5394
        %5617 = vmatpush1.bf16.msra.mxu0 %v5393
        %5618 = vmatprep.subr.bf16.mxu0 %v5398
        %5619 = vmatpush1.bf16.msra.mxu0 %v5397
        %5620 = vmatprep.subr.bf16.mxu0 %v5402
        %5621 = vmatpush1.bf16.msra.mxu0 %v5401
        %5622 = vmatprep.subr.bf16.mxu0 %v5406
        %5623 = vmatpush1.bf16.msra.mxu0 %v5405
        %5624 = vmatprep.subr.bf16.mxu0 %v5410
        %5625 = vmatpush1.bf16.msra.mxu0 %v5409
        %5626 = vmatprep.subr.bf16.mxu0 %v5414
        %5627 = vmatpush1.bf16.msra.mxu0 %v5413
        %5628 = vmatprep.subr.bf16.mxu0 %v5418
        %5629 = vmatpush1.bf16.msra.mxu0 %v5417
        %5630 = vmatprep.subr.bf16.mxu0 %v5422
        %5631 = vmatpush1.bf16.msra.mxu0 %v5421
        %5632 = vmatprep.subr.bf16.mxu0 %v5426
        %5633 = vmatpush1.bf16.msra.mxu0 %v5425
        %5634 = vmatprep.subr.bf16.mxu0 %v5430
        %5635 = vmatpush1.bf16.msra.mxu0 %v5429
        %5636 = vmatprep.mubr.bf16.mxu0 %v4916
        %5637 = vmatmul.mubr.bf16.gmra.mrb[0].mxu0 %v4904
        %v5638 = vpop.f32.mrb[0].mxu0
        %v5639 = vadd.f32 %v5596, %v5638
        %v5640 = vpop.f32.mrb[0].mxu0
        %v5641 = vadd.f32 %v5598, %v5640
        %v5642 = vpop.f32.mrb[0].mxu0
        %v5643 = vadd.f32 %v5600, %v5642
        %v5644 = vpop.f32.mrb[0].mxu0
        %v5645 = vadd.f32 %v5602, %v5644
        %5646 = vdwg.mxu0
        %5647 = vmatprep.subr.bf16.mxu0 %v5308
        %5648 = vmatpush1.bf16.msra.mxu0 %v5307
        %5649 = vmatprep.subr.bf16.mxu0 %v5312
        %5650 = vmatpush1.bf16.msra.mxu0 %v5311
        %5651 = vmatprep.subr.bf16.mxu0 %v5316
        %5652 = vmatpush1.bf16.msra.mxu0 %v5315
        %5653 = vmatprep.subr.bf16.mxu0 %v5320
        %5654 = vmatpush1.bf16.msra.mxu0 %v5319
        %5655 = vmatprep.subr.bf16.mxu0 %v5324
        %5656 = vmatpush1.bf16.msra.mxu0 %v5323
        %5657 = vmatprep.subr.bf16.mxu0 %v5328
        %5658 = vmatpush1.bf16.msra.mxu0 %v5327
        %5659 = vmatprep.subr.bf16.mxu0 %v5332
        %5660 = vmatpush1.bf16.msra.mxu0 %v5331
        %5661 = vmatprep.subr.bf16.mxu0 %v5336
        %5662 = vmatpush1.bf16.msra.mxu0 %v5335
        %5663 = vmatprep.subr.bf16.mxu0 %v5340
        %5664 = vmatpush1.bf16.msra.mxu0 %v5339
        %5665 = vmatprep.subr.bf16.mxu0 %v5344
        %5666 = vmatpush1.bf16.msra.mxu0 %v5343
        %5667 = vmatprep.subr.bf16.mxu0 %v5348
        %5668 = vmatpush1.bf16.msra.mxu0 %v5347
        %5669 = vmatprep.subr.bf16.mxu0 %v5352
        %5670 = vmatpush1.bf16.msra.mxu0 %v5351
        %5671 = vmatprep.subr.bf16.mxu0 %v5356
        %5672 = vmatpush1.bf16.msra.mxu0 %v5355
        %5673 = vmatprep.subr.bf16.mxu0 %v5360
        %5674 = vmatpush1.bf16.msra.mxu0 %v5359
        %5675 = vmatprep.subr.bf16.mxu0 %v5364
        %5676 = vmatpush1.bf16.msra.mxu0 %v5363
        %5677 = vmatprep.subr.bf16.mxu0 %v5368
        %5678 = vmatpush1.bf16.msra.mxu0 %v5367
        %5679 = vmatprep.mubr.bf16.mxu0 %v4892
        %5680 = vmatmul.mubr.bf16.gmra.mrb[0].mxu0 %v4880
        %v5681 = vpop.f32.mrb[0].mxu0
        %v5682 = vadd.f32 0.0, %v5681
        %v5683 = vpop.f32.mrb[0].mxu0
        %v5684 = vadd.f32 0.0, %v5683
        %v5685 = vpop.f32.mrb[0].mxu0
        %v5686 = vadd.f32 0.0, %v5685
        %v5687 = vpop.f32.mrb[0].mxu0
        %v5688 = vadd.f32 0.0, %v5687
        %5689 = vdwg.mxu0
        %5690 = vmatprep.subr.bf16.mxu0 %v5372
        %5691 = vmatpush1.bf16.msra.mxu0 %v5371
        %5692 = vmatprep.subr.bf16.mxu0 %v5376
        %5693 = vmatpush1.bf16.msra.mxu0 %v5375
        %5694 = vmatprep.subr.bf16.mxu0 %v5380
        %5695 = vmatpush1.bf16.msra.mxu0 %v5379
        %5696 = vmatprep.subr.bf16.mxu0 %v5384
        %5697 = vmatpush1.bf16.msra.mxu0 %v5383
        %5698 = vmatprep.subr.bf16.mxu0 %v5388
        %5699 = vmatpush1.bf16.msra.mxu0 %v5387
        %5700 = vmatprep.subr.bf16.mxu0 %v5392
        %5701 = vmatpush1.bf16.msra.mxu0 %v5391
        %5702 = vmatprep.subr.bf16.mxu0 %v5396
        %5703 = vmatpush1.bf16.msra.mxu0 %v5395
        %5704 = vmatprep.subr.bf16.mxu0 %v5400
        %5705 = vmatpush1.bf16.msra.mxu0 %v5399
        %5706 = vmatprep.subr.bf16.mxu0 %v5404
        %5707 = vmatpush1.bf16.msra.mxu0 %v5403
        %5708 = vmatprep.subr.bf16.mxu0 %v5408
        %5709 = vmatpush1.bf16.msra.mxu0 %v5407
        %5710 = vmatprep.subr.bf16.mxu0 %v5412
        %5711 = vmatpush1.bf16.msra.mxu0 %v5411
        %5712 = vmatprep.subr.bf16.mxu0 %v5416
        %5713 = vmatpush1.bf16.msra.mxu0 %v5415
        %5714 = vmatprep.subr.bf16.mxu0 %v5420
        %5715 = vmatpush1.bf16.msra.mxu0 %v5419
        %5716 = vmatprep.subr.bf16.mxu0 %v5424
        %5717 = vmatpush1.bf16.msra.mxu0 %v5423
        %5718 = vmatprep.subr.bf16.mxu0 %v5428
        %5719 = vmatpush1.bf16.msra.mxu0 %v5427
        %5720 = vmatprep.subr.bf16.mxu0 %v5432
        %5721 = vmatpush1.bf16.msra.mxu0 %v5431
        %5722 = vmatprep.mubr.bf16.mxu0 %v4916
        %5723 = vmatmul.mubr.bf16.gmra.mrb[0].mxu0 %v4904
        %v5724 = vpop.f32.mrb[0].mxu0
        %v5725 = vadd.f32 %v5682, %v5724
        %v5726 = vpop.f32.mrb[0].mxu0
        %v5727 = vadd.f32 %v5684, %v5726
        %v5728 = vpop.f32.mrb[0].mxu0
        %v5729 = vadd.f32 %v5686, %v5728
        %v5730 = vpop.f32.mrb[0].mxu0
        %v5731 = vadd.f32 %v5688, %v5730
        %5732 = vdwg.mxu0
        %v5865 = vunpack.c.l.b16 %v4584
        %v5866 = vunpack.c.h.b16 %v4584
        %v5867 = vunpack.c.l.b16 %v4585
        %v5868 = vunpack.c.h.b16 %v4585
        %v5869 = vunpack.c.l.b16 %v4586
        %v5870 = vunpack.c.h.b16 %v4586
        %v5871 = vunpack.c.l.b16 %v4587
        %v5872 = vunpack.c.h.b16 %v4587
        %v5873 = vunpack.c.l.b16 %v4588
        %v5874 = vunpack.c.h.b16 %v4588
        %v5875 = vunpack.c.l.b16 %v4589
        %v5876 = vunpack.c.h.b16 %v4589
        %v5877 = vunpack.c.l.b16 %v4590
        %v5878 = vunpack.c.h.b16 %v4590
        %v5879 = vunpack.c.l.b16 %v4591
        %v5880 = vunpack.c.h.b16 %v4591
        %v5881 = vunpack.c.l.b16 %v4592
        %v5882 = vunpack.c.h.b16 %v4592
        %v5883 = vunpack.c.l.b16 %v4593
        %v5884 = vunpack.c.h.b16 %v4593
        %v5885 = vunpack.c.l.b16 %v4594
        %v5886 = vunpack.c.h.b16 %v4594
        %v5887 = vunpack.c.l.b16 %v4595
        %v5888 = vunpack.c.h.b16 %v4595
        %v5889 = vunpack.c.l.b16 %v4596
        %v5890 = vunpack.c.h.b16 %v4596
        %v5891 = vunpack.c.l.b16 %v4597
        %v5892 = vunpack.c.h.b16 %v4597
        %v5893 = vunpack.c.l.b16 %v4598
        %v5894 = vunpack.c.h.b16 %v4598
        %v5895 = vunpack.c.l.b16 %v4599
        %v5896 = vunpack.c.h.b16 %v4599
        %v5897 = vunpack.c.l.b16 %v4600
        %v5898 = vunpack.c.h.b16 %v4600
        %v5899 = vunpack.c.l.b16 %v4601
        %v5900 = vunpack.c.h.b16 %v4601
        %v5901 = vunpack.c.l.b16 %v4602
        %v5902 = vunpack.c.h.b16 %v4602
        %v5903 = vunpack.c.l.b16 %v4603
        %v5904 = vunpack.c.h.b16 %v4603
        %v5905 = vunpack.c.l.b16 %v4604
        %v5906 = vunpack.c.h.b16 %v4604
        %v5907 = vunpack.c.l.b16 %v4605
        %v5908 = vunpack.c.h.b16 %v4605
        %v5909 = vunpack.c.l.b16 %v4606
        %v5910 = vunpack.c.h.b16 %v4606
        %v5911 = vunpack.c.l.b16 %v4607
        %v5912 = vunpack.c.h.b16 %v4607
        %v5913 = vunpack.c.l.b16 %v4608
        %v5914 = vunpack.c.h.b16 %v4608
        %v5915 = vunpack.c.l.b16 %v4609
        %v5916 = vunpack.c.h.b16 %v4609
        %v5917 = vunpack.c.l.b16 %v4610
        %v5918 = vunpack.c.h.b16 %v4610
        %v5919 = vunpack.c.l.b16 %v4611
        %v5920 = vunpack.c.h.b16 %v4611
        %v5921 = vunpack.c.l.b16 %v4612
        %v5922 = vunpack.c.h.b16 %v4612
        %v5923 = vunpack.c.l.b16 %v4613
        %v5924 = vunpack.c.h.b16 %v4613
        %v5925 = vunpack.c.l.b16 %v4614
        %v5926 = vunpack.c.h.b16 %v4614
        %v5927 = vunpack.c.l.b16 %v4615
        %v5928 = vunpack.c.h.b16 %v4615
        %v5929 = vunpack.c.l.b16 %v4616
        %v5930 = vunpack.c.h.b16 %v4616
        %v5931 = vunpack.c.l.b16 %v4617
        %v5932 = vunpack.c.h.b16 %v4617
        %v5933 = vunpack.c.l.b16 %v4618
        %v5934 = vunpack.c.h.b16 %v4618
        %v5935 = vunpack.c.l.b16 %v4619
        %v5936 = vunpack.c.h.b16 %v4619
        %v5937 = vunpack.c.l.b16 %v4620
        %v5938 = vunpack.c.h.b16 %v4620
        %v5939 = vunpack.c.l.b16 %v4621
        %v5940 = vunpack.c.h.b16 %v4621
        %v5941 = vunpack.c.l.b16 %v4622
        %v5942 = vunpack.c.h.b16 %v4622
        %v5943 = vunpack.c.l.b16 %v4623
        %v5944 = vunpack.c.h.b16 %v4623
        %v5945 = vunpack.c.l.b16 %v4624
        %v5946 = vunpack.c.h.b16 %v4624
        %v5947 = vunpack.c.l.b16 %v4625
        %v5948 = vunpack.c.h.b16 %v4625
        %v5949 = vunpack.c.l.b16 %v4626
        %v5950 = vunpack.c.h.b16 %v4626
        %v5951 = vunpack.c.l.b16 %v4627
        %v5952 = vunpack.c.h.b16 %v4627
        %v5953 = vunpack.c.l.b16 %v4628
        %v5954 = vunpack.c.h.b16 %v4628
        %v5955 = vunpack.c.l.b16 %v4629
        %v5956 = vunpack.c.h.b16 %v4629
        %v5957 = vunpack.c.l.b16 %v4630
        %v5958 = vunpack.c.h.b16 %v4630
        %v5959 = vunpack.c.l.b16 %v4631
        %v5960 = vunpack.c.h.b16 %v4631
        %v5961 = vunpack.c.l.b16 %v4632
        %v5962 = vunpack.c.h.b16 %v4632
        %v5963 = vunpack.c.l.b16 %v4633
        %v5964 = vunpack.c.h.b16 %v4633
        %v5965 = vunpack.c.l.b16 %v4634
        %v5966 = vunpack.c.h.b16 %v4634
        %v5967 = vunpack.c.l.b16 %v4635
        %v5968 = vunpack.c.h.b16 %v4635
        %v5969 = vunpack.c.l.b16 %v4636
        %v5970 = vunpack.c.h.b16 %v4636
        %v5971 = vunpack.c.l.b16 %v4637
        %v5972 = vunpack.c.h.b16 %v4637
        %v5973 = vunpack.c.l.b16 %v4638
        %v5974 = vunpack.c.h.b16 %v4638
        %v5975 = vunpack.c.l.b16 %v4639
        %v5976 = vunpack.c.h.b16 %v4639
        %v5977 = vunpack.c.l.b16 %v4640
        %v5978 = vunpack.c.h.b16 %v4640
        %v5979 = vunpack.c.l.b16 %v4641
        %v5980 = vunpack.c.h.b16 %v4641
        %v5981 = vunpack.c.l.b16 %v4642
        %v5982 = vunpack.c.h.b16 %v4642
        %v5983 = vunpack.c.l.b16 %v4643
        %v5984 = vunpack.c.h.b16 %v4643
        %v5985 = vunpack.c.l.b16 %v4644
        %v5986 = vunpack.c.h.b16 %v4644
        %v5987 = vunpack.c.l.b16 %v4645
        %v5988 = vunpack.c.h.b16 %v4645
        %v5989 = vunpack.c.l.b16 %v4646
        %v5990 = vunpack.c.h.b16 %v4646
        %v5991 = vunpack.c.l.b16 %v4647
        %v5992 = vunpack.c.h.b16 %v4647
        %v5993 = vunpack.c.l.b16 %v4648
        %v5994 = vunpack.c.h.b16 %v4648
        %v5995 = vunpack.c.l.b16 %v4649
        %v5996 = vunpack.c.h.b16 %v4649
        %v5997 = vunpack.c.l.b16 %v4650
        %v5998 = vunpack.c.h.b16 %v4650
        %v5999 = vunpack.c.l.b16 %v4651
        %v6000 = vunpack.c.h.b16 %v4651
        %v6001 = vunpack.c.l.b16 %v4652
        %v6002 = vunpack.c.h.b16 %v4652
        %v6003 = vunpack.c.l.b16 %v4653
        %v6004 = vunpack.c.h.b16 %v4653
        %v6005 = vunpack.c.l.b16 %v4654
        %v6006 = vunpack.c.h.b16 %v4654
        %v6007 = vunpack.c.l.b16 %v4655
        %v6008 = vunpack.c.h.b16 %v4655
        %v6009 = vunpack.c.l.b16 %v4656
        %v6010 = vunpack.c.h.b16 %v4656
        %v6011 = vunpack.c.l.b16 %v4657
        %v6012 = vunpack.c.h.b16 %v4657
        %v6013 = vunpack.c.l.b16 %v4658
        %v6014 = vunpack.c.h.b16 %v4658
        %v6015 = vunpack.c.l.b16 %v4659
        %v6016 = vunpack.c.h.b16 %v4659
        %v6017 = vunpack.c.l.b16 %v4660
        %v6018 = vunpack.c.h.b16 %v4660
        %v6019 = vunpack.c.l.b16 %v4661
        %v6020 = vunpack.c.h.b16 %v4661
        %v6021 = vunpack.c.l.b16 %v4662
        %v6022 = vunpack.c.h.b16 %v4662
        %v6023 = vunpack.c.l.b16 %v4663
        %v6024 = vunpack.c.h.b16 %v4663
        %v6025 = vunpack.c.l.b16 %v4664
        %v6026 = vunpack.c.h.b16 %v4664
        %v6027 = vunpack.c.l.b16 %v4665
        %v6028 = vunpack.c.h.b16 %v4665
        %v6029 = vunpack.c.l.b16 %v4666
        %v6030 = vunpack.c.h.b16 %v4666
        %v6031 = vunpack.c.l.b16 %v4667
        %v6032 = vunpack.c.h.b16 %v4667
        %v6033 = vunpack.c.l.b16 %v4668
        %v6034 = vunpack.c.h.b16 %v4668
        %v6035 = vunpack.c.l.b16 %v4669
        %v6036 = vunpack.c.h.b16 %v4669
        %v6037 = vunpack.c.l.b16 %v4670
        %v6038 = vunpack.c.h.b16 %v4670
        %v6039 = vunpack.c.l.b16 %v4671
        %v6040 = vunpack.c.h.b16 %v4671
        %v6041 = vunpack.c.l.b16 %v4672
        %v6042 = vunpack.c.h.b16 %v4672
        %v6043 = vunpack.c.l.b16 %v4673
        %v6044 = vunpack.c.h.b16 %v4673
        %v6045 = vunpack.c.l.b16 %v4674
        %v6046 = vunpack.c.h.b16 %v4674
        %v6047 = vunpack.c.l.b16 %v4675
        %v6048 = vunpack.c.h.b16 %v4675
        %v6049 = vunpack.c.l.b16 %v4676
        %v6050 = vunpack.c.h.b16 %v4676
        %v6051 = vunpack.c.l.b16 %v4677
        %v6052 = vunpack.c.h.b16 %v4677
        %v6053 = vunpack.c.l.b16 %v4678
        %v6054 = vunpack.c.h.b16 %v4678
        %v6055 = vunpack.c.l.b16 %v4679
        %v6056 = vunpack.c.h.b16 %v4679
        %v6057 = vunpack.c.l.b16 %v4680
        %v6058 = vunpack.c.h.b16 %v4680
        %v6059 = vunpack.c.l.b16 %v4681
        %v6060 = vunpack.c.h.b16 %v4681
        %v6061 = vunpack.c.l.b16 %v4682
        %v6062 = vunpack.c.h.b16 %v4682
        %v6063 = vunpack.c.l.b16 %v4683
        %v6064 = vunpack.c.h.b16 %v4683
        %v6065 = vunpack.c.l.b16 %v4684
        %v6066 = vunpack.c.h.b16 %v4684
        %v6067 = vunpack.c.l.b16 %v4685
        %v6068 = vunpack.c.h.b16 %v4685
        %v6069 = vunpack.c.l.b16 %v4686
        %v6070 = vunpack.c.h.b16 %v4686
        %v6071 = vunpack.c.l.b16 %v4687
        %v6072 = vunpack.c.h.b16 %v4687
        %v6073 = vunpack.c.l.b16 %v4688
        %v6074 = vunpack.c.h.b16 %v4688
        %v6075 = vunpack.c.l.b16 %v4689
        %v6076 = vunpack.c.h.b16 %v4689
        %v6077 = vunpack.c.l.b16 %v4690
        %v6078 = vunpack.c.h.b16 %v4690
        %v6079 = vunpack.c.l.b16 %v4691
        %v6080 = vunpack.c.h.b16 %v4691
        %v6081 = vunpack.c.l.b16 %v4692
        %v6082 = vunpack.c.h.b16 %v4692
        %v6083 = vunpack.c.l.b16 %v4693
        %v6084 = vunpack.c.h.b16 %v4693
        %v6085 = vunpack.c.l.b16 %v4694
        %v6086 = vunpack.c.h.b16 %v4694
        %v6087 = vunpack.c.l.b16 %v4695
        %v6088 = vunpack.c.h.b16 %v4695
        %v6089 = vunpack.c.l.b16 %v4696
        %v6090 = vunpack.c.h.b16 %v4696
        %v6091 = vunpack.c.l.b16 %v4697
        %v6092 = vunpack.c.h.b16 %v4697
        %v6093 = vunpack.c.l.b16 %v4698
        %v6094 = vunpack.c.h.b16 %v4698
        %v6095 = vunpack.c.l.b16 %v4699
        %v6096 = vunpack.c.h.b16 %v4699
        %v6097 = vunpack.c.l.b16 %v4700
        %v6098 = vunpack.c.h.b16 %v4700
        %v6099 = vunpack.c.l.b16 %v4701
        %v6100 = vunpack.c.h.b16 %v4701
        %v6101 = vunpack.c.l.b16 %v4702
        %v6102 = vunpack.c.h.b16 %v4702
        %v6103 = vunpack.c.l.b16 %v4703
        %v6104 = vunpack.c.h.b16 %v4703
        %v6105 = vunpack.c.l.b16 %v4704
        %v6106 = vunpack.c.h.b16 %v4704
        %v6107 = vunpack.c.l.b16 %v4705
        %v6108 = vunpack.c.h.b16 %v4705
        %v6109 = vunpack.c.l.b16 %v4706
        %v6110 = vunpack.c.h.b16 %v4706
        %v6111 = vunpack.c.l.b16 %v4707
        %v6112 = vunpack.c.h.b16 %v4707
        %v6113 = vunpack.c.l.b16 %v4708
        %v6114 = vunpack.c.h.b16 %v4708
        %v6115 = vunpack.c.l.b16 %v4709
        %v6116 = vunpack.c.h.b16 %v4709
        %v6117 = vunpack.c.l.b16 %v4710
        %v6118 = vunpack.c.h.b16 %v4710
        %v6119 = vunpack.c.l.b16 %v4711
        %v6120 = vunpack.c.h.b16 %v4711
        %v6121 = vpack.c.b16 %v5869, %v5865
        %v6122 = vpack.c.b16 %v5870, %v5866
        %v6123 = vpack.c.b16 %v5871, %v5867
        %v6124 = vpack.c.b16 %v5872, %v5868
        %v6125 = vpack.c.b16 %v5877, %v5873
        %v6126 = vpack.c.b16 %v5878, %v5874
        %v6127 = vpack.c.b16 %v5879, %v5875
        %v6128 = vpack.c.b16 %v5880, %v5876
        %v6129 = vpack.c.b16 %v5885, %v5881
        %v6130 = vpack.c.b16 %v5886, %v5882
        %v6131 = vpack.c.b16 %v5887, %v5883
        %v6132 = vpack.c.b16 %v5888, %v5884
        %v6133 = vpack.c.b16 %v5893, %v5889
        %v6134 = vpack.c.b16 %v5894, %v5890
        %v6135 = vpack.c.b16 %v5895, %v5891
        %v6136 = vpack.c.b16 %v5896, %v5892
        %v6137 = vpack.c.b16 %v5901, %v5897
        %v6138 = vpack.c.b16 %v5902, %v5898
        %v6139 = vpack.c.b16 %v5903, %v5899
        %v6140 = vpack.c.b16 %v5904, %v5900
        %v6141 = vpack.c.b16 %v5909, %v5905
        %v6142 = vpack.c.b16 %v5910, %v5906
        %v6143 = vpack.c.b16 %v5911, %v5907
        %v6144 = vpack.c.b16 %v5912, %v5908
        %v6145 = vpack.c.b16 %v5917, %v5913
        %v6146 = vpack.c.b16 %v5918, %v5914
        %v6147 = vpack.c.b16 %v5919, %v5915
        %v6148 = vpack.c.b16 %v5920, %v5916
        %v6149 = vpack.c.b16 %v5925, %v5921
        %v6150 = vpack.c.b16 %v5926, %v5922
        %v6151 = vpack.c.b16 %v5927, %v5923
        %v6152 = vpack.c.b16 %v5928, %v5924
        %v6153 = vpack.c.b16 %v5933, %v5929
        %v6154 = vpack.c.b16 %v5934, %v5930
        %v6155 = vpack.c.b16 %v5935, %v5931
        %v6156 = vpack.c.b16 %v5936, %v5932
        %v6157 = vpack.c.b16 %v5941, %v5937
        %v6158 = vpack.c.b16 %v5942, %v5938
        %v6159 = vpack.c.b16 %v5943, %v5939
        %v6160 = vpack.c.b16 %v5944, %v5940
        %v6161 = vpack.c.b16 %v5949, %v5945
        %v6162 = vpack.c.b16 %v5950, %v5946
        %v6163 = vpack.c.b16 %v5951, %v5947
        %v6164 = vpack.c.b16 %v5952, %v5948
        %v6165 = vpack.c.b16 %v5957, %v5953
        %v6166 = vpack.c.b16 %v5958, %v5954
        %v6167 = vpack.c.b16 %v5959, %v5955
        %v6168 = vpack.c.b16 %v5960, %v5956
        %v6169 = vpack.c.b16 %v5965, %v5961
        %v6170 = vpack.c.b16 %v5966, %v5962
        %v6171 = vpack.c.b16 %v5967, %v5963
        %v6172 = vpack.c.b16 %v5968, %v5964
        %v6173 = vpack.c.b16 %v5973, %v5969
        %v6174 = vpack.c.b16 %v5974, %v5970
        %v6175 = vpack.c.b16 %v5975, %v5971
        %v6176 = vpack.c.b16 %v5976, %v5972
        %v6177 = vpack.c.b16 %v5981, %v5977
        %v6178 = vpack.c.b16 %v5982, %v5978
        %v6179 = vpack.c.b16 %v5983, %v5979
        %v6180 = vpack.c.b16 %v5984, %v5980
        %v6181 = vpack.c.b16 %v5989, %v5985
        %v6182 = vpack.c.b16 %v5990, %v5986
        %v6183 = vpack.c.b16 %v5991, %v5987
        %v6184 = vpack.c.b16 %v5992, %v5988
        %v6185 = vpack.c.b16 %v5997, %v5993
        %v6186 = vpack.c.b16 %v5998, %v5994
        %v6187 = vpack.c.b16 %v5999, %v5995
        %v6188 = vpack.c.b16 %v6000, %v5996
        %v6189 = vpack.c.b16 %v6005, %v6001
        %v6190 = vpack.c.b16 %v6006, %v6002
        %v6191 = vpack.c.b16 %v6007, %v6003
        %v6192 = vpack.c.b16 %v6008, %v6004
        %v6193 = vpack.c.b16 %v6013, %v6009
        %v6194 = vpack.c.b16 %v6014, %v6010
        %v6195 = vpack.c.b16 %v6015, %v6011
        %v6196 = vpack.c.b16 %v6016, %v6012
        %v6197 = vpack.c.b16 %v6021, %v6017
        %v6198 = vpack.c.b16 %v6022, %v6018
        %v6199 = vpack.c.b16 %v6023, %v6019
        %v6200 = vpack.c.b16 %v6024, %v6020
        %v6201 = vpack.c.b16 %v6029, %v6025
        %v6202 = vpack.c.b16 %v6030, %v6026
        %v6203 = vpack.c.b16 %v6031, %v6027
        %v6204 = vpack.c.b16 %v6032, %v6028
        %v6205 = vpack.c.b16 %v6037, %v6033
        %v6206 = vpack.c.b16 %v6038, %v6034
        %v6207 = vpack.c.b16 %v6039, %v6035
        %v6208 = vpack.c.b16 %v6040, %v6036
        %v6209 = vpack.c.b16 %v6045, %v6041
        %v6210 = vpack.c.b16 %v6046, %v6042
        %v6211 = vpack.c.b16 %v6047, %v6043
        %v6212 = vpack.c.b16 %v6048, %v6044
        %v6213 = vpack.c.b16 %v6053, %v6049
        %v6214 = vpack.c.b16 %v6054, %v6050
        %v6215 = vpack.c.b16 %v6055, %v6051
        %v6216 = vpack.c.b16 %v6056, %v6052
        %v6217 = vpack.c.b16 %v6061, %v6057
        %v6218 = vpack.c.b16 %v6062, %v6058
        %v6219 = vpack.c.b16 %v6063, %v6059
        %v6220 = vpack.c.b16 %v6064, %v6060
        %v6221 = vpack.c.b16 %v6069, %v6065
        %v6222 = vpack.c.b16 %v6070, %v6066
        %v6223 = vpack.c.b16 %v6071, %v6067
        %v6224 = vpack.c.b16 %v6072, %v6068
        %v6225 = vpack.c.b16 %v6077, %v6073
        %v6226 = vpack.c.b16 %v6078, %v6074
        %v6227 = vpack.c.b16 %v6079, %v6075
        %v6228 = vpack.c.b16 %v6080, %v6076
        %v6229 = vpack.c.b16 %v6085, %v6081
        %v6230 = vpack.c.b16 %v6086, %v6082
        %v6231 = vpack.c.b16 %v6087, %v6083
        %v6232 = vpack.c.b16 %v6088, %v6084
        %v6233 = vpack.c.b16 %v6093, %v6089
        %v6234 = vpack.c.b16 %v6094, %v6090
        %v6235 = vpack.c.b16 %v6095, %v6091
        %v6236 = vpack.c.b16 %v6096, %v6092
        %v6237 = vpack.c.b16 %v6101, %v6097
        %v6238 = vpack.c.b16 %v6102, %v6098
        %v6239 = vpack.c.b16 %v6103, %v6099
        %v6240 = vpack.c.b16 %v6104, %v6100
        %v6241 = vpack.c.b16 %v6109, %v6105
        %v6242 = vpack.c.b16 %v6110, %v6106
        %v6243 = vpack.c.b16 %v6111, %v6107
        %v6244 = vpack.c.b16 %v6112, %v6108
        %v6245 = vpack.c.b16 %v6117, %v6113
        %v6246 = vpack.c.b16 %v6118, %v6114
        %v6247 = vpack.c.b16 %v6119, %v6115
        %v6248 = vpack.c.b16 %v6120, %v6116
        %6377 = vmatprep.subr.bf16.mxu0 %v6122
        %6378 = vmatpush1.bf16.msra.mxu0 %v6121
        %6379 = vmatprep.subr.bf16.mxu0 %v6126
        %6380 = vmatpush1.bf16.msra.mxu0 %v6125
        %6381 = vmatprep.subr.bf16.mxu0 %v6130
        %6382 = vmatpush1.bf16.msra.mxu0 %v6129
        %6383 = vmatprep.subr.bf16.mxu0 %v6134
        %6384 = vmatpush1.bf16.msra.mxu0 %v6133
        %6385 = vmatprep.subr.bf16.mxu0 %v6138
        %6386 = vmatpush1.bf16.msra.mxu0 %v6137
        %6387 = vmatprep.subr.bf16.mxu0 %v6142
        %6388 = vmatpush1.bf16.msra.mxu0 %v6141
        %6389 = vmatprep.subr.bf16.mxu0 %v6146
        %6390 = vmatpush1.bf16.msra.mxu0 %v6145
        %6391 = vmatprep.subr.bf16.mxu0 %v6150
        %6392 = vmatpush1.bf16.msra.mxu0 %v6149
        %6393 = vmatprep.subr.bf16.mxu0 %v6154
        %6394 = vmatpush1.bf16.msra.mxu0 %v6153
        %6395 = vmatprep.subr.bf16.mxu0 %v6158
        %6396 = vmatpush1.bf16.msra.mxu0 %v6157
        %6397 = vmatprep.subr.bf16.mxu0 %v6162
        %6398 = vmatpush1.bf16.msra.mxu0 %v6161
        %6399 = vmatprep.subr.bf16.mxu0 %v6166
        %6400 = vmatpush1.bf16.msra.mxu0 %v6165
        %6401 = vmatprep.subr.bf16.mxu0 %v6170
        %6402 = vmatpush1.bf16.msra.mxu0 %v6169
        %6403 = vmatprep.subr.bf16.mxu0 %v6174
        %6404 = vmatpush1.bf16.msra.mxu0 %v6173
        %6405 = vmatprep.subr.bf16.mxu0 %v6178
        %6406 = vmatpush1.bf16.msra.mxu0 %v6177
        %6407 = vmatprep.subr.bf16.mxu0 %v6182
        %6408 = vmatpush1.bf16.msra.mxu0 %v6181
        %6409 = vmatprep.mubr.bf16.mxu0 %v4862
        %6410 = vmatmul.mubr.bf16.gmra.mrb[0].mxu0 %v4861
        %v6411 = vpop.f32.mrb[0].mxu0
        %v6412 = vadd.f32 %v5639, %v6411
        %v6413 = vpop.f32.mrb[0].mxu0
        %v6414 = vadd.f32 %v5641, %v6413
        %v6415 = vpop.f32.mrb[0].mxu0
        %v6416 = vadd.f32 %v5643, %v6415
        %v6417 = vpop.f32.mrb[0].mxu0
        %v6418 = vadd.f32 %v5645, %v6417
        %6419 = vdwg.mxu0
        %6420 = vmatprep.subr.bf16.mxu0 %v6186
        %6421 = vmatpush1.bf16.msra.mxu0 %v6185
        %6422 = vmatprep.subr.bf16.mxu0 %v6190
        %6423 = vmatpush1.bf16.msra.mxu0 %v6189
        %6424 = vmatprep.subr.bf16.mxu0 %v6194
        %6425 = vmatpush1.bf16.msra.mxu0 %v6193
        %6426 = vmatprep.subr.bf16.mxu0 %v6198
        %6427 = vmatpush1.bf16.msra.mxu0 %v6197
        %6428 = vmatprep.subr.bf16.mxu0 %v6202
        %6429 = vmatpush1.bf16.msra.mxu0 %v6201
        %6430 = vmatprep.subr.bf16.mxu0 %v6206
        %6431 = vmatpush1.bf16.msra.mxu0 %v6205
        %6432 = vmatprep.subr.bf16.mxu0 %v6210
        %6433 = vmatpush1.bf16.msra.mxu0 %v6209
        %6434 = vmatprep.subr.bf16.mxu0 %v6214
        %6435 = vmatpush1.bf16.msra.mxu0 %v6213
        %6436 = vmatprep.subr.bf16.mxu0 %v6218
        %6437 = vmatpush1.bf16.msra.mxu0 %v6217
        %6438 = vmatprep.subr.bf16.mxu0 %v6222
        %6439 = vmatpush1.bf16.msra.mxu0 %v6221
        %6440 = vmatprep.subr.bf16.mxu0 %v6226
        %6441 = vmatpush1.bf16.msra.mxu0 %v6225
        %6442 = vmatprep.subr.bf16.mxu0 %v6230
        %6443 = vmatpush1.bf16.msra.mxu0 %v6229
        %6444 = vmatprep.subr.bf16.mxu0 %v6234
        %6445 = vmatpush1.bf16.msra.mxu0 %v6233
        %6446 = vmatprep.subr.bf16.mxu0 %v6238
        %6447 = vmatpush1.bf16.msra.mxu0 %v6237
        %6448 = vmatprep.subr.bf16.mxu0 %v6242
        %6449 = vmatpush1.bf16.msra.mxu0 %v6241
        %6450 = vmatprep.subr.bf16.mxu0 %v6246
        %6451 = vmatpush1.bf16.msra.mxu0 %v6245
        %6452 = vmatprep.mubr.bf16.mxu0 %v4864
        %6453 = vmatmul.mubr.bf16.gmra.mrb[0].mxu0 %v4863
        %v6454 = vpop.f32.mrb[0].mxu0
        %v6455 = vadd.f32 %v6412, %v6454
        %v6456 = vpop.f32.mrb[0].mxu0
        %v6457 = vadd.f32 %v6414, %v6456
        %v6458 = vpop.f32.mrb[0].mxu0
        %v6459 = vadd.f32 %v6416, %v6458
        %v6460 = vpop.f32.mrb[0].mxu0
        %v6461 = vadd.f32 %v6418, %v6460
        %6462 = vdwg.mxu0
        %6463 = vmatprep.subr.bf16.mxu0 %v6124
        %6464 = vmatpush1.bf16.msra.mxu0 %v6123
        %6465 = vmatprep.subr.bf16.mxu0 %v6128
        %6466 = vmatpush1.bf16.msra.mxu0 %v6127
        %6467 = vmatprep.subr.bf16.mxu0 %v6132
        %6468 = vmatpush1.bf16.msra.mxu0 %v6131
        %6469 = vmatprep.subr.bf16.mxu0 %v6136
        %6470 = vmatpush1.bf16.msra.mxu0 %v6135
        %6471 = vmatprep.subr.bf16.mxu0 %v6140
        %6472 = vmatpush1.bf16.msra.mxu0 %v6139
        %6473 = vmatprep.subr.bf16.mxu0 %v6144
        %6474 = vmatpush1.bf16.msra.mxu0 %v6143
        %6475 = vmatprep.subr.bf16.mxu0 %v6148
        %6476 = vmatpush1.bf16.msra.mxu0 %v6147
        %6477 = vmatprep.subr.bf16.mxu0 %v6152
        %6478 = vmatpush1.bf16.msra.mxu0 %v6151
        %6479 = vmatprep.subr.bf16.mxu0 %v6156
        %6480 = vmatpush1.bf16.msra.mxu0 %v6155
        %6481 = vmatprep.subr.bf16.mxu0 %v6160
        %6482 = vmatpush1.bf16.msra.mxu0 %v6159
        %6483 = vmatprep.subr.bf16.mxu0 %v6164
        %6484 = vmatpush1.bf16.msra.mxu0 %v6163
        %6485 = vmatprep.subr.bf16.mxu0 %v6168
        %6486 = vmatpush1.bf16.msra.mxu0 %v6167
        %6487 = vmatprep.subr.bf16.mxu0 %v6172
        %6488 = vmatpush1.bf16.msra.mxu0 %v6171
        %6489 = vmatprep.subr.bf16.mxu0 %v6176
        %6490 = vmatpush1.bf16.msra.mxu0 %v6175
        %6491 = vmatprep.subr.bf16.mxu0 %v6180
        %6492 = vmatpush1.bf16.msra.mxu0 %v6179
        %6493 = vmatprep.subr.bf16.mxu0 %v6184
        %6494 = vmatpush1.bf16.msra.mxu0 %v6183
        %6495 = vmatprep.mubr.bf16.mxu0 %v4862
        %6496 = vmatmul.mubr.bf16.gmra.mrb[0].mxu0 %v4861
        %v6497 = vpop.f32.mrb[0].mxu0
        %v6498 = vadd.f32 %v5725, %v6497
        %v6499 = vpop.f32.mrb[0].mxu0
        %v6500 = vadd.f32 %v5727, %v6499
        %v6501 = vpop.f32.mrb[0].mxu0
        %v6502 = vadd.f32 %v5729, %v6501
        %v6503 = vpop.f32.mrb[0].mxu0
        %v6504 = vadd.f32 %v5731, %v6503
        %6505 = vdwg.mxu0
        %6506 = vmatprep.subr.bf16.mxu0 %v6188
        %6507 = vmatpush1.bf16.msra.mxu0 %v6187
        %6508 = vmatprep.subr.bf16.mxu0 %v6192
        %6509 = vmatpush1.bf16.msra.mxu0 %v6191
        %6510 = vmatprep.subr.bf16.mxu0 %v6196
        %6511 = vmatpush1.bf16.msra.mxu0 %v6195
        %6512 = vmatprep.subr.bf16.mxu0 %v6200
        %6513 = vmatpush1.bf16.msra.mxu0 %v6199
        %6514 = vmatprep.subr.bf16.mxu0 %v6204
        %6515 = vmatpush1.bf16.msra.mxu0 %v6203
        %6516 = vmatprep.subr.bf16.mxu0 %v6208
        %6517 = vmatpush1.bf16.msra.mxu0 %v6207
        %6518 = vmatprep.subr.bf16.mxu0 %v6212
        %6519 = vmatpush1.bf16.msra.mxu0 %v6211
        %6520 = vmatprep.subr.bf16.mxu0 %v6216
        %6521 = vmatpush1.bf16.msra.mxu0 %v6215
        %6522 = vmatprep.subr.bf16.mxu0 %v6220
        %6523 = vmatpush1.bf16.msra.mxu0 %v6219
        %6524 = vmatprep.subr.bf16.mxu0 %v6224
        %6525 = vmatpush1.bf16.msra.mxu0 %v6223
        %6526 = vmatprep.subr.bf16.mxu0 %v6228
        %6527 = vmatpush1.bf16.msra.mxu0 %v6227
        %6528 = vmatprep.subr.bf16.mxu0 %v6232
        %6529 = vmatpush1.bf16.msra.mxu0 %v6231
        %6530 = vmatprep.subr.bf16.mxu0 %v6236
        %6531 = vmatpush1.bf16.msra.mxu0 %v6235
        %6532 = vmatprep.subr.bf16.mxu0 %v6240
        %6533 = vmatpush1.bf16.msra.mxu0 %v6239
        %6534 = vmatprep.subr.bf16.mxu0 %v6244
        %6535 = vmatpush1.bf16.msra.mxu0 %v6243
        %6536 = vmatprep.subr.bf16.mxu0 %v6248
        %6537 = vmatpush1.bf16.msra.mxu0 %v6247
        %6538 = vmatprep.mubr.bf16.mxu0 %v4864
        %6539 = vmatmul.mubr.bf16.gmra.mrb[0].mxu0 %v4863
        %v6540 = vpop.f32.mrb[0].mxu0
        %v6541 = vadd.f32 %v6498, %v6540
        %v6542 = vpop.f32.mrb[0].mxu0
        %v6543 = vadd.f32 %v6500, %v6542
        %v6544 = vpop.f32.mrb[0].mxu0
        %v6545 = vadd.f32 %v6502, %v6544
        %v6546 = vpop.f32.mrb[0].mxu0
        %v6547 = vadd.f32 %v6504, %v6546
        %6548 = vdwg.mxu0
        %v6549 = vld [vmem:[#allocation3] sm:$0xee]
        %v6550 = vld [vmem:[#allocation3 + $0x8] sm:$0xee]
        %s6551 = scalar_lea.vmem [#allocation10], 2048
        %v6552 = vld [vmem:[%s6551] sm:$0xff]
        %v6553 = vld [vmem:[%s6551 + $0x8] sm:$0xff]
        %v6554 = vld [vmem:[%s6551 + $0x10] sm:$0xff]
        %v6555 = vld [vmem:[%s6551 + $0x18] sm:$0xff]
        %v6556 = vld [vmem:[%s6551 + $0x20] sm:$0xff]
        %v6557 = vld [vmem:[%s6551 + $0x28] sm:$0xff]
        %v6558 = vld [vmem:[%s6551 + $0x30] sm:$0xff]
        %v6559 = vld [vmem:[%s6551 + $0x38] sm:$0xff]
        %v6560 = vld [vmem:[%s6551 + $0x40] sm:$0xff]
        %v6561 = vld [vmem:[%s6551 + $0x48] sm:$0xff]
        %v6562 = vld [vmem:[%s6551 + $0x50] sm:$0xff]
        %v6563 = vld [vmem:[%s6551 + $0x58] sm:$0xff]
        %v6564 = vld [vmem:[%s6551 + $0x60] sm:$0xff]
        %v6565 = vld [vmem:[%s6551 + $0x68] sm:$0xff]
        %v6566 = vld [vmem:[%s6551 + $0x70] sm:$0xff]
        %v6567 = vld [vmem:[%s6551 + $0x78] sm:$0xff]
        %v6568 = vld [vmem:[%s6551 + $0x80] sm:$0xff]
        %v6569 = vld [vmem:[%s6551 + $0x88] sm:$0xff]
        %v6570 = vld [vmem:[%s6551 + $0x90] sm:$0xff]
        %v6571 = vld [vmem:[%s6551 + $0x98] sm:$0xff]
        %v6572 = vld [vmem:[%s6551 + $0xa0] sm:$0xff]
        %v6573 = vld [vmem:[%s6551 + $0xa8] sm:$0xff]
        %v6574 = vld [vmem:[%s6551 + $0xb0] sm:$0xff]
        %v6575 = vld [vmem:[%s6551 + $0xb8] sm:$0xff]
        %v6576 = vld [vmem:[%s6551 + $0xc0] sm:$0xff]
        %v6577 = vld [vmem:[%s6551 + $0xc8] sm:$0xff]
        %v6578 = vld [vmem:[%s6551 + $0xd0] sm:$0xff]
        %v6579 = vld [vmem:[%s6551 + $0xd8] sm:$0xff]
        %v6580 = vld [vmem:[%s6551 + $0xe0] sm:$0xff]
        %v6581 = vld [vmem:[%s6551 + $0xe8] sm:$0xff]
        %v6582 = vld [vmem:[%s6551 + $0xf0] sm:$0xff]
        %v6583 = vld [vmem:[%s6551 + $0xf8] sm:$0xff]
        %v6584 = vld [vmem:[%s6551 + $0x100] sm:$0xff]
        %v6585 = vld [vmem:[%s6551 + $0x108] sm:$0xff]
        %v6586 = vld [vmem:[%s6551 + $0x110] sm:$0xff]
        %v6587 = vld [vmem:[%s6551 + $0x118] sm:$0xff]
        %v6588 = vld [vmem:[%s6551 + $0x120] sm:$0xff]
        %v6589 = vld [vmem:[%s6551 + $0x128] sm:$0xff]
        %v6590 = vld [vmem:[%s6551 + $0x130] sm:$0xff]
        %v6591 = vld [vmem:[%s6551 + $0x138] sm:$0xff]
        %v6592 = vld [vmem:[%s6551 + $0x140] sm:$0xff]
        %v6593 = vld [vmem:[%s6551 + $0x148] sm:$0xff]
        %v6594 = vld [vmem:[%s6551 + $0x150] sm:$0xff]
        %v6595 = vld [vmem:[%s6551 + $0x158] sm:$0xff]
        %v6596 = vld [vmem:[%s6551 + $0x160] sm:$0xff]
        %v6597 = vld [vmem:[%s6551 + $0x168] sm:$0xff]
        %v6598 = vld [vmem:[%s6551 + $0x170] sm:$0xff]
        %v6599 = vld [vmem:[%s6551 + $0x178] sm:$0xff]
        %v6600 = vld [vmem:[%s6551 + $0x180] sm:$0xff]
        %v6601 = vld [vmem:[%s6551 + $0x188] sm:$0xff]
        %v6602 = vld [vmem:[%s6551 + $0x190] sm:$0xff]
        %v6603 = vld [vmem:[%s6551 + $0x198] sm:$0xff]
        %v6604 = vld [vmem:[%s6551 + $0x1a0] sm:$0xff]
        %v6605 = vld [vmem:[%s6551 + $0x1a8] sm:$0xff]
        %v6606 = vld [vmem:[%s6551 + $0x1b0] sm:$0xff]
        %v6607 = vld [vmem:[%s6551 + $0x1b8] sm:$0xff]
        %v6608 = vld [vmem:[%s6551 + $0x1c0] sm:$0xff]
        %v6609 = vld [vmem:[%s6551 + $0x1c8] sm:$0xff]
        %v6610 = vld [vmem:[%s6551 + $0x1d0] sm:$0xff]
        %v6611 = vld [vmem:[%s6551 + $0x1d8] sm:$0xff]
        %v6612 = vld [vmem:[%s6551 + $0x1e0] sm:$0xff]
        %v6613 = vld [vmem:[%s6551 + $0x1e8] sm:$0xff]
        %v6614 = vld [vmem:[%s6551 + $0x1f0] sm:$0xff]
        %v6615 = vld [vmem:[%s6551 + $0x1f8] sm:$0xff]
        %v6616 = vld [vmem:[%s6551 + $0x200] sm:$0xff]
        %v6617 = vld [vmem:[%s6551 + $0x208] sm:$0xff]
        %v6618 = vld [vmem:[%s6551 + $0x210] sm:$0xff]
        %v6619 = vld [vmem:[%s6551 + $0x218] sm:$0xff]
        %v6620 = vld [vmem:[%s6551 + $0x220] sm:$0xff]
        %v6621 = vld [vmem:[%s6551 + $0x228] sm:$0xff]
        %v6622 = vld [vmem:[%s6551 + $0x230] sm:$0xff]
        %v6623 = vld [vmem:[%s6551 + $0x238] sm:$0xff]
        %v6624 = vld [vmem:[%s6551 + $0x240] sm:$0xff]
        %v6625 = vld [vmem:[%s6551 + $0x248] sm:$0xff]
        %v6626 = vld [vmem:[%s6551 + $0x250] sm:$0xff]
        %v6627 = vld [vmem:[%s6551 + $0x258] sm:$0xff]
        %v6628 = vld [vmem:[%s6551 + $0x260] sm:$0xff]
        %v6629 = vld [vmem:[%s6551 + $0x268] sm:$0xff]
        %v6630 = vld [vmem:[%s6551 + $0x270] sm:$0xff]
        %v6631 = vld [vmem:[%s6551 + $0x278] sm:$0xff]
        %v6632 = vld [vmem:[%s6551 + $0x280] sm:$0xff]
        %v6633 = vld [vmem:[%s6551 + $0x288] sm:$0xff]
        %v6634 = vld [vmem:[%s6551 + $0x290] sm:$0xff]
        %v6635 = vld [vmem:[%s6551 + $0x298] sm:$0xff]
        %v6636 = vld [vmem:[%s6551 + $0x2a0] sm:$0xff]
        %v6637 = vld [vmem:[%s6551 + $0x2a8] sm:$0xff]
        %v6638 = vld [vmem:[%s6551 + $0x2b0] sm:$0xff]
        %v6639 = vld [vmem:[%s6551 + $0x2b8] sm:$0xff]
        %v6640 = vld [vmem:[%s6551 + $0x2c0] sm:$0xff]
        %v6641 = vld [vmem:[%s6551 + $0x2c8] sm:$0xff]
        %v6642 = vld [vmem:[%s6551 + $0x2d0] sm:$0xff]
        %v6643 = vld [vmem:[%s6551 + $0x2d8] sm:$0xff]
        %v6644 = vld [vmem:[%s6551 + $0x2e0] sm:$0xff]
        %v6645 = vld [vmem:[%s6551 + $0x2e8] sm:$0xff]
        %v6646 = vld [vmem:[%s6551 + $0x2f0] sm:$0xff]
        %v6647 = vld [vmem:[%s6551 + $0x2f8] sm:$0xff]
        %v6648 = vld [vmem:[%s6551 + $0x300] sm:$0xff]
        %v6649 = vld [vmem:[%s6551 + $0x308] sm:$0xff]
        %v6650 = vld [vmem:[%s6551 + $0x310] sm:$0xff]
        %v6651 = vld [vmem:[%s6551 + $0x318] sm:$0xff]
        %v6652 = vld [vmem:[%s6551 + $0x320] sm:$0xff]
        %v6653 = vld [vmem:[%s6551 + $0x328] sm:$0xff]
        %v6654 = vld [vmem:[%s6551 + $0x330] sm:$0xff]
        %v6655 = vld [vmem:[%s6551 + $0x338] sm:$0xff]
        %v6656 = vld [vmem:[%s6551 + $0x340] sm:$0xff]
        %v6657 = vld [vmem:[%s6551 + $0x348] sm:$0xff]
        %v6658 = vld [vmem:[%s6551 + $0x350] sm:$0xff]
        %v6659 = vld [vmem:[%s6551 + $0x358] sm:$0xff]
        %v6660 = vld [vmem:[%s6551 + $0x360] sm:$0xff]
        %v6661 = vld [vmem:[%s6551 + $0x368] sm:$0xff]
        %v6662 = vld [vmem:[%s6551 + $0x370] sm:$0xff]
        %v6663 = vld [vmem:[%s6551 + $0x378] sm:$0xff]
        %v6664 = vld [vmem:[%s6551 + $0x380] sm:$0xff]
        %v6665 = vld [vmem:[%s6551 + $0x388] sm:$0xff]
        %v6666 = vld [vmem:[%s6551 + $0x390] sm:$0xff]
        %v6667 = vld [vmem:[%s6551 + $0x398] sm:$0xff]
        %v6668 = vld [vmem:[%s6551 + $0x3a0] sm:$0xff]
        %v6669 = vld [vmem:[%s6551 + $0x3a8] sm:$0xff]
        %v6670 = vld [vmem:[%s6551 + $0x3b0] sm:$0xff]
        %v6671 = vld [vmem:[%s6551 + $0x3b8] sm:$0xff]
        %v6672 = vld [vmem:[%s6551 + $0x3c0] sm:$0xff]
        %v6673 = vld [vmem:[%s6551 + $0x3c8] sm:$0xff]
        %v6674 = vld [vmem:[%s6551 + $0x3d0] sm:$0xff]
        %v6675 = vld [vmem:[%s6551 + $0x3d8] sm:$0xff]
        %v6676 = vld [vmem:[%s6551 + $0x3e0] sm:$0xff]
        %v6677 = vld [vmem:[%s6551 + $0x3e8] sm:$0xff]
        %v6678 = vld [vmem:[%s6551 + $0x3f0] sm:$0xff]
        %v6679 = vld [vmem:[%s6551 + $0x3f8] sm:$0xff]
        %v6682 = vunpack.c.l.b16 %v6549
        %v6683 = vunpack.c.h.b16 %v6549
        %v6684 = vunpack.c.l.b16 %v6550
        %v6685 = vunpack.c.h.b16 %v6550
        %v6686 = vpack.c.b16 %v4853, %v6682
        %v6687 = vpack.c.b16 %v4854, %v6683
        %v6688 = vpack.c.b16 %v4855, %v6684
        %v6689 = vpack.c.b16 %v4856, %v6685
        %v6690 = vrot.slane %v6686, 1
        %v6691 = vrot.slane %v4865, 1
        %v6692 = vsel %vm1637, %v6690, %v6691
        %v6693 = vrot.slane %v6687, 1
        %v6694 = vrot.slane %v4866, 1
        %v6695 = vsel %vm1637, %v6693, %v6694
        %v6696 = vrot.slane %v6688, 1
        %v6697 = vrot.slane %v4867, 1
        %v6698 = vsel %vm1637, %v6696, %v6697
        %v6699 = vrot.slane %v6689, 1
        %v6700 = vrot.slane %v4868, 1
        %v6701 = vsel %vm1637, %v6699, %v6700
        %v6834 = vunpack.c.l.b16 %v6552
        %v6835 = vunpack.c.h.b16 %v6552
        %v6836 = vunpack.c.l.b16 %v6553
        %v6837 = vunpack.c.h.b16 %v6553
        %v6838 = vunpack.c.l.b16 %v6554
        %v6839 = vunpack.c.h.b16 %v6554
        %v6840 = vunpack.c.l.b16 %v6555
        %v6841 = vunpack.c.h.b16 %v6555
        %v6842 = vunpack.c.l.b16 %v6556
        %v6843 = vunpack.c.h.b16 %v6556
        %v6844 = vunpack.c.l.b16 %v6557
        %v6845 = vunpack.c.h.b16 %v6557
        %v6846 = vunpack.c.l.b16 %v6558
        %v6847 = vunpack.c.h.b16 %v6558
        %v6848 = vunpack.c.l.b16 %v6559
        %v6849 = vunpack.c.h.b16 %v6559
        %v6850 = vunpack.c.l.b16 %v6560
        %v6851 = vunpack.c.h.b16 %v6560
        %v6852 = vunpack.c.l.b16 %v6561
        %v6853 = vunpack.c.h.b16 %v6561
        %v6854 = vunpack.c.l.b16 %v6562
        %v6855 = vunpack.c.h.b16 %v6562
        %v6856 = vunpack.c.l.b16 %v6563
        %v6857 = vunpack.c.h.b16 %v6563
        %v6858 = vunpack.c.l.b16 %v6564
        %v6859 = vunpack.c.h.b16 %v6564
        %v6860 = vunpack.c.l.b16 %v6565
        %v6861 = vunpack.c.h.b16 %v6565
        %v6862 = vunpack.c.l.b16 %v6566
        %v6863 = vunpack.c.h.b16 %v6566
        %v6864 = vunpack.c.l.b16 %v6567
        %v6865 = vunpack.c.h.b16 %v6567
        %v6866 = vunpack.c.l.b16 %v6568
        %v6867 = vunpack.c.h.b16 %v6568
        %v6868 = vunpack.c.l.b16 %v6569
        %v6869 = vunpack.c.h.b16 %v6569
        %v6870 = vunpack.c.l.b16 %v6570
        %v6871 = vunpack.c.h.b16 %v6570
        %v6872 = vunpack.c.l.b16 %v6571
        %v6873 = vunpack.c.h.b16 %v6571
        %v6874 = vunpack.c.l.b16 %v6572
        %v6875 = vunpack.c.h.b16 %v6572
        %v6876 = vunpack.c.l.b16 %v6573
        %v6877 = vunpack.c.h.b16 %v6573
        %v6878 = vunpack.c.l.b16 %v6574
        %v6879 = vunpack.c.h.b16 %v6574
        %v6880 = vunpack.c.l.b16 %v6575
        %v6881 = vunpack.c.h.b16 %v6575
        %v6882 = vunpack.c.l.b16 %v6576
        %v6883 = vunpack.c.h.b16 %v6576
        %v6884 = vunpack.c.l.b16 %v6577
        %v6885 = vunpack.c.h.b16 %v6577
        %v6886 = vunpack.c.l.b16 %v6578
        %v6887 = vunpack.c.h.b16 %v6578
        %v6888 = vunpack.c.l.b16 %v6579
        %v6889 = vunpack.c.h.b16 %v6579
        %v6890 = vunpack.c.l.b16 %v6580
        %v6891 = vunpack.c.h.b16 %v6580
        %v6892 = vunpack.c.l.b16 %v6581
        %v6893 = vunpack.c.h.b16 %v6581
        %v6894 = vunpack.c.l.b16 %v6582
        %v6895 = vunpack.c.h.b16 %v6582
        %v6896 = vunpack.c.l.b16 %v6583
        %v6897 = vunpack.c.h.b16 %v6583
        %v6898 = vunpack.c.l.b16 %v6584
        %v6899 = vunpack.c.h.b16 %v6584
        %v6900 = vunpack.c.l.b16 %v6585
        %v6901 = vunpack.c.h.b16 %v6585
        %v6902 = vunpack.c.l.b16 %v6586
        %v6903 = vunpack.c.h.b16 %v6586
        %v6904 = vunpack.c.l.b16 %v6587
        %v6905 = vunpack.c.h.b16 %v6587
        %v6906 = vunpack.c.l.b16 %v6588
        %v6907 = vunpack.c.h.b16 %v6588
        %v6908 = vunpack.c.l.b16 %v6589
        %v6909 = vunpack.c.h.b16 %v6589
        %v6910 = vunpack.c.l.b16 %v6590
        %v6911 = vunpack.c.h.b16 %v6590
        %v6912 = vunpack.c.l.b16 %v6591
        %v6913 = vunpack.c.h.b16 %v6591
        %v6914 = vunpack.c.l.b16 %v6592
        %v6915 = vunpack.c.h.b16 %v6592
        %v6916 = vunpack.c.l.b16 %v6593
        %v6917 = vunpack.c.h.b16 %v6593
        %v6918 = vunpack.c.l.b16 %v6594
        %v6919 = vunpack.c.h.b16 %v6594
        %v6920 = vunpack.c.l.b16 %v6595
        %v6921 = vunpack.c.h.b16 %v6595
        %v6922 = vunpack.c.l.b16 %v6596
        %v6923 = vunpack.c.h.b16 %v6596
        %v6924 = vunpack.c.l.b16 %v6597
        %v6925 = vunpack.c.h.b16 %v6597
        %v6926 = vunpack.c.l.b16 %v6598
        %v6927 = vunpack.c.h.b16 %v6598
        %v6928 = vunpack.c.l.b16 %v6599
        %v6929 = vunpack.c.h.b16 %v6599
        %v6930 = vunpack.c.l.b16 %v6600
        %v6931 = vunpack.c.h.b16 %v6600
        %v6932 = vunpack.c.l.b16 %v6601
        %v6933 = vunpack.c.h.b16 %v6601
        %v6934 = vunpack.c.l.b16 %v6602
        %v6935 = vunpack.c.h.b16 %v6602
        %v6936 = vunpack.c.l.b16 %v6603
        %v6937 = vunpack.c.h.b16 %v6603
        %v6938 = vunpack.c.l.b16 %v6604
        %v6939 = vunpack.c.h.b16 %v6604
        %v6940 = vunpack.c.l.b16 %v6605
        %v6941 = vunpack.c.h.b16 %v6605
        %v6942 = vunpack.c.l.b16 %v6606
        %v6943 = vunpack.c.h.b16 %v6606
        %v6944 = vunpack.c.l.b16 %v6607
        %v6945 = vunpack.c.h.b16 %v6607
        %v6946 = vunpack.c.l.b16 %v6608
        %v6947 = vunpack.c.h.b16 %v6608
        %v6948 = vunpack.c.l.b16 %v6609
        %v6949 = vunpack.c.h.b16 %v6609
        %v6950 = vunpack.c.l.b16 %v6610
        %v6951 = vunpack.c.h.b16 %v6610
        %v6952 = vunpack.c.l.b16 %v6611
        %v6953 = vunpack.c.h.b16 %v6611
        %v6954 = vunpack.c.l.b16 %v6612
        %v6955 = vunpack.c.h.b16 %v6612
        %v6956 = vunpack.c.l.b16 %v6613
        %v6957 = vunpack.c.h.b16 %v6613
        %v6958 = vunpack.c.l.b16 %v6614
        %v6959 = vunpack.c.h.b16 %v6614
        %v6960 = vunpack.c.l.b16 %v6615
        %v6961 = vunpack.c.h.b16 %v6615
        %v6962 = vunpack.c.l.b16 %v6616
        %v6963 = vunpack.c.h.b16 %v6616
        %v6964 = vunpack.c.l.b16 %v6617
        %v6965 = vunpack.c.h.b16 %v6617
        %v6966 = vunpack.c.l.b16 %v6618
        %v6967 = vunpack.c.h.b16 %v6618
        %v6968 = vunpack.c.l.b16 %v6619
        %v6969 = vunpack.c.h.b16 %v6619
        %v6970 = vunpack.c.l.b16 %v6620
        %v6971 = vunpack.c.h.b16 %v6620
        %v6972 = vunpack.c.l.b16 %v6621
        %v6973 = vunpack.c.h.b16 %v6621
        %v6974 = vunpack.c.l.b16 %v6622
        %v6975 = vunpack.c.h.b16 %v6622
        %v6976 = vunpack.c.l.b16 %v6623
        %v6977 = vunpack.c.h.b16 %v6623
        %v6978 = vunpack.c.l.b16 %v6624
        %v6979 = vunpack.c.h.b16 %v6624
        %v6980 = vunpack.c.l.b16 %v6625
        %v6981 = vunpack.c.h.b16 %v6625
        %v6982 = vunpack.c.l.b16 %v6626
        %v6983 = vunpack.c.h.b16 %v6626
        %v6984 = vunpack.c.l.b16 %v6627
        %v6985 = vunpack.c.h.b16 %v6627
        %v6986 = vunpack.c.l.b16 %v6628
        %v6987 = vunpack.c.h.b16 %v6628
        %v6988 = vunpack.c.l.b16 %v6629
        %v6989 = vunpack.c.h.b16 %v6629
        %v6990 = vunpack.c.l.b16 %v6630
        %v6991 = vunpack.c.h.b16 %v6630
        %v6992 = vunpack.c.l.b16 %v6631
        %v6993 = vunpack.c.h.b16 %v6631
        %v6994 = vunpack.c.l.b16 %v6632
        %v6995 = vunpack.c.h.b16 %v6632
        %v6996 = vunpack.c.l.b16 %v6633
        %v6997 = vunpack.c.h.b16 %v6633
        %v6998 = vunpack.c.l.b16 %v6634
        %v6999 = vunpack.c.h.b16 %v6634
        %v7000 = vunpack.c.l.b16 %v6635
        %v7001 = vunpack.c.h.b16 %v6635
        %v7002 = vunpack.c.l.b16 %v6636
        %v7003 = vunpack.c.h.b16 %v6636
        %v7004 = vunpack.c.l.b16 %v6637
        %v7005 = vunpack.c.h.b16 %v6637
        %v7006 = vunpack.c.l.b16 %v6638
        %v7007 = vunpack.c.h.b16 %v6638
        %v7008 = vunpack.c.l.b16 %v6639
        %v7009 = vunpack.c.h.b16 %v6639
        %v7010 = vunpack.c.l.b16 %v6640
        %v7011 = vunpack.c.h.b16 %v6640
        %v7012 = vunpack.c.l.b16 %v6641
        %v7013 = vunpack.c.h.b16 %v6641
        %v7014 = vunpack.c.l.b16 %v6642
        %v7015 = vunpack.c.h.b16 %v6642
        %v7016 = vunpack.c.l.b16 %v6643
        %v7017 = vunpack.c.h.b16 %v6643
        %v7018 = vunpack.c.l.b16 %v6644
        %v7019 = vunpack.c.h.b16 %v6644
        %v7020 = vunpack.c.l.b16 %v6645
        %v7021 = vunpack.c.h.b16 %v6645
        %v7022 = vunpack.c.l.b16 %v6646
        %v7023 = vunpack.c.h.b16 %v6646
        %v7024 = vunpack.c.l.b16 %v6647
        %v7025 = vunpack.c.h.b16 %v6647
        %v7026 = vunpack.c.l.b16 %v6648
        %v7027 = vunpack.c.h.b16 %v6648
        %v7028 = vunpack.c.l.b16 %v6649
        %v7029 = vunpack.c.h.b16 %v6649
        %v7030 = vunpack.c.l.b16 %v6650
        %v7031 = vunpack.c.h.b16 %v6650
        %v7032 = vunpack.c.l.b16 %v6651
        %v7033 = vunpack.c.h.b16 %v6651
        %v7034 = vunpack.c.l.b16 %v6652
        %v7035 = vunpack.c.h.b16 %v6652
        %v7036 = vunpack.c.l.b16 %v6653
        %v7037 = vunpack.c.h.b16 %v6653
        %v7038 = vunpack.c.l.b16 %v6654
        %v7039 = vunpack.c.h.b16 %v6654
        %v7040 = vunpack.c.l.b16 %v6655
        %v7041 = vunpack.c.h.b16 %v6655
        %v7042 = vunpack.c.l.b16 %v6656
        %v7043 = vunpack.c.h.b16 %v6656
        %v7044 = vunpack.c.l.b16 %v6657
        %v7045 = vunpack.c.h.b16 %v6657
        %v7046 = vunpack.c.l.b16 %v6658
        %v7047 = vunpack.c.h.b16 %v6658
        %v7048 = vunpack.c.l.b16 %v6659
        %v7049 = vunpack.c.h.b16 %v6659
        %v7050 = vunpack.c.l.b16 %v6660
        %v7051 = vunpack.c.h.b16 %v6660
        %v7052 = vunpack.c.l.b16 %v6661
        %v7053 = vunpack.c.h.b16 %v6661
        %v7054 = vunpack.c.l.b16 %v6662
        %v7055 = vunpack.c.h.b16 %v6662
        %v7056 = vunpack.c.l.b16 %v6663
        %v7057 = vunpack.c.h.b16 %v6663
        %v7058 = vunpack.c.l.b16 %v6664
        %v7059 = vunpack.c.h.b16 %v6664
        %v7060 = vunpack.c.l.b16 %v6665
        %v7061 = vunpack.c.h.b16 %v6665
        %v7062 = vunpack.c.l.b16 %v6666
        %v7063 = vunpack.c.h.b16 %v6666
        %v7064 = vunpack.c.l.b16 %v6667
        %v7065 = vunpack.c.h.b16 %v6667
        %v7066 = vunpack.c.l.b16 %v6668
        %v7067 = vunpack.c.h.b16 %v6668
        %v7068 = vunpack.c.l.b16 %v6669
        %v7069 = vunpack.c.h.b16 %v6669
        %v7070 = vunpack.c.l.b16 %v6670
        %v7071 = vunpack.c.h.b16 %v6670
        %v7072 = vunpack.c.l.b16 %v6671
        %v7073 = vunpack.c.h.b16 %v6671
        %v7074 = vunpack.c.l.b16 %v6672
        %v7075 = vunpack.c.h.b16 %v6672
        %v7076 = vunpack.c.l.b16 %v6673
        %v7077 = vunpack.c.h.b16 %v6673
        %v7078 = vunpack.c.l.b16 %v6674
        %v7079 = vunpack.c.h.b16 %v6674
        %v7080 = vunpack.c.l.b16 %v6675
        %v7081 = vunpack.c.h.b16 %v6675
        %v7082 = vunpack.c.l.b16 %v6676
        %v7083 = vunpack.c.h.b16 %v6676
        %v7084 = vunpack.c.l.b16 %v6677
        %v7085 = vunpack.c.h.b16 %v6677
        %v7086 = vunpack.c.l.b16 %v6678
        %v7087 = vunpack.c.h.b16 %v6678
        %v7088 = vunpack.c.l.b16 %v6679
        %v7089 = vunpack.c.h.b16 %v6679
        %v7090 = vpack.c.b16 %v6838, %v6834
        %v7091 = vpack.c.b16 %v6839, %v6835
        %v7092 = vpack.c.b16 %v6840, %v6836
        %v7093 = vpack.c.b16 %v6841, %v6837
        %v7094 = vpack.c.b16 %v6846, %v6842
        %v7095 = vpack.c.b16 %v6847, %v6843
        %v7096 = vpack.c.b16 %v6848, %v6844
        %v7097 = vpack.c.b16 %v6849, %v6845
        %v7098 = vpack.c.b16 %v6854, %v6850
        %v7099 = vpack.c.b16 %v6855, %v6851
        %v7100 = vpack.c.b16 %v6856, %v6852
        %v7101 = vpack.c.b16 %v6857, %v6853
        %v7102 = vpack.c.b16 %v6862, %v6858
        %v7103 = vpack.c.b16 %v6863, %v6859
        %v7104 = vpack.c.b16 %v6864, %v6860
        %v7105 = vpack.c.b16 %v6865, %v6861
        %v7106 = vpack.c.b16 %v6870, %v6866
        %v7107 = vpack.c.b16 %v6871, %v6867
        %v7108 = vpack.c.b16 %v6872, %v6868
        %v7109 = vpack.c.b16 %v6873, %v6869
        %v7110 = vpack.c.b16 %v6878, %v6874
        %v7111 = vpack.c.b16 %v6879, %v6875
        %v7112 = vpack.c.b16 %v6880, %v6876
        %v7113 = vpack.c.b16 %v6881, %v6877
        %v7114 = vpack.c.b16 %v6886, %v6882
        %v7115 = vpack.c.b16 %v6887, %v6883
        %v7116 = vpack.c.b16 %v6888, %v6884
        %v7117 = vpack.c.b16 %v6889, %v6885
        %v7118 = vpack.c.b16 %v6894, %v6890
        %v7119 = vpack.c.b16 %v6895, %v6891
        %v7120 = vpack.c.b16 %v6896, %v6892
        %v7121 = vpack.c.b16 %v6897, %v6893
        %v7122 = vpack.c.b16 %v6902, %v6898
        %v7123 = vpack.c.b16 %v6903, %v6899
        %v7124 = vpack.c.b16 %v6904, %v6900
        %v7125 = vpack.c.b16 %v6905, %v6901
        %v7126 = vpack.c.b16 %v6910, %v6906
        %v7127 = vpack.c.b16 %v6911, %v6907
        %v7128 = vpack.c.b16 %v6912, %v6908
        %v7129 = vpack.c.b16 %v6913, %v6909
        %v7130 = vpack.c.b16 %v6918, %v6914
        %v7131 = vpack.c.b16 %v6919, %v6915
        %v7132 = vpack.c.b16 %v6920, %v6916
        %v7133 = vpack.c.b16 %v6921, %v6917
        %v7134 = vpack.c.b16 %v6926, %v6922
        %v7135 = vpack.c.b16 %v6927, %v6923
        %v7136 = vpack.c.b16 %v6928, %v6924
        %v7137 = vpack.c.b16 %v6929, %v6925
        %v7138 = vpack.c.b16 %v6934, %v6930
        %v7139 = vpack.c.b16 %v6935, %v6931
        %v7140 = vpack.c.b16 %v6936, %v6932
        %v7141 = vpack.c.b16 %v6937, %v6933
        %v7142 = vpack.c.b16 %v6942, %v6938
        %v7143 = vpack.c.b16 %v6943, %v6939
        %v7144 = vpack.c.b16 %v6944, %v6940
        %v7145 = vpack.c.b16 %v6945, %v6941
        %v7146 = vpack.c.b16 %v6950, %v6946
        %v7147 = vpack.c.b16 %v6951, %v6947
        %v7148 = vpack.c.b16 %v6952, %v6948
        %v7149 = vpack.c.b16 %v6953, %v6949
        %v7150 = vpack.c.b16 %v6958, %v6954
        %v7151 = vpack.c.b16 %v6959, %v6955
        %v7152 = vpack.c.b16 %v6960, %v6956
        %v7153 = vpack.c.b16 %v6961, %v6957
        %v7154 = vpack.c.b16 %v6966, %v6962
        %v7155 = vpack.c.b16 %v6967, %v6963
        %v7156 = vpack.c.b16 %v6968, %v6964
        %v7157 = vpack.c.b16 %v6969, %v6965
        %v7158 = vpack.c.b16 %v6974, %v6970
        %v7159 = vpack.c.b16 %v6975, %v6971
        %v7160 = vpack.c.b16 %v6976, %v6972
        %v7161 = vpack.c.b16 %v6977, %v6973
        %v7162 = vpack.c.b16 %v6982, %v6978
        %v7163 = vpack.c.b16 %v6983, %v6979
        %v7164 = vpack.c.b16 %v6984, %v6980
        %v7165 = vpack.c.b16 %v6985, %v6981
        %v7166 = vpack.c.b16 %v6990, %v6986
        %v7167 = vpack.c.b16 %v6991, %v6987
        %v7168 = vpack.c.b16 %v6992, %v6988
        %v7169 = vpack.c.b16 %v6993, %v6989
        %v7170 = vpack.c.b16 %v6998, %v6994
        %v7171 = vpack.c.b16 %v6999, %v6995
        %v7172 = vpack.c.b16 %v7000, %v6996
        %v7173 = vpack.c.b16 %v7001, %v6997
        %v7174 = vpack.c.b16 %v7006, %v7002
        %v7175 = vpack.c.b16 %v7007, %v7003
        %v7176 = vpack.c.b16 %v7008, %v7004
        %v7177 = vpack.c.b16 %v7009, %v7005
        %v7178 = vpack.c.b16 %v7014, %v7010
        %v7179 = vpack.c.b16 %v7015, %v7011
        %v7180 = vpack.c.b16 %v7016, %v7012
        %v7181 = vpack.c.b16 %v7017, %v7013
        %v7182 = vpack.c.b16 %v7022, %v7018
        %v7183 = vpack.c.b16 %v7023, %v7019
        %v7184 = vpack.c.b16 %v7024, %v7020
        %v7185 = vpack.c.b16 %v7025, %v7021
        %v7186 = vpack.c.b16 %v7030, %v7026
        %v7187 = vpack.c.b16 %v7031, %v7027
        %v7188 = vpack.c.b16 %v7032, %v7028
        %v7189 = vpack.c.b16 %v7033, %v7029
        %v7190 = vpack.c.b16 %v7038, %v7034
        %v7191 = vpack.c.b16 %v7039, %v7035
        %v7192 = vpack.c.b16 %v7040, %v7036
        %v7193 = vpack.c.b16 %v7041, %v7037
        %v7194 = vpack.c.b16 %v7046, %v7042
        %v7195 = vpack.c.b16 %v7047, %v7043
        %v7196 = vpack.c.b16 %v7048, %v7044
        %v7197 = vpack.c.b16 %v7049, %v7045
        %v7198 = vpack.c.b16 %v7054, %v7050
        %v7199 = vpack.c.b16 %v7055, %v7051
        %v7200 = vpack.c.b16 %v7056, %v7052
        %v7201 = vpack.c.b16 %v7057, %v7053
        %v7202 = vpack.c.b16 %v7062, %v7058
        %v7203 = vpack.c.b16 %v7063, %v7059
        %v7204 = vpack.c.b16 %v7064, %v7060
        %v7205 = vpack.c.b16 %v7065, %v7061
        %v7206 = vpack.c.b16 %v7070, %v7066
        %v7207 = vpack.c.b16 %v7071, %v7067
        %v7208 = vpack.c.b16 %v7072, %v7068
        %v7209 = vpack.c.b16 %v7073, %v7069
        %v7210 = vpack.c.b16 %v7078, %v7074
        %v7211 = vpack.c.b16 %v7079, %v7075
        %v7212 = vpack.c.b16 %v7080, %v7076
        %v7213 = vpack.c.b16 %v7081, %v7077
        %v7214 = vpack.c.b16 %v7086, %v7082
        %v7215 = vpack.c.b16 %v7087, %v7083
        %v7216 = vpack.c.b16 %v7088, %v7084
        %v7217 = vpack.c.b16 %v7089, %v7085
        %7346 = vmatprep.subr.bf16.mxu0 %v7091
        %7347 = vmatpush1.bf16.msra.mxu0 %v7090
        %7348 = vmatprep.subr.bf16.mxu0 %v7095
        %7349 = vmatpush1.bf16.msra.mxu0 %v7094
        %7350 = vmatprep.subr.bf16.mxu0 %v7099
        %7351 = vmatpush1.bf16.msra.mxu0 %v7098
        %7352 = vmatprep.subr.bf16.mxu0 %v7103
        %7353 = vmatpush1.bf16.msra.mxu0 %v7102
        %7354 = vmatprep.subr.bf16.mxu0 %v7107
        %7355 = vmatpush1.bf16.msra.mxu0 %v7106
        %7356 = vmatprep.subr.bf16.mxu0 %v7111
        %7357 = vmatpush1.bf16.msra.mxu0 %v7110
        %7358 = vmatprep.subr.bf16.mxu0 %v7115
        %7359 = vmatpush1.bf16.msra.mxu0 %v7114
        %7360 = vmatprep.subr.bf16.mxu0 %v7119
        %7361 = vmatpush1.bf16.msra.mxu0 %v7118
        %7362 = vmatprep.subr.bf16.mxu0 %v7123
        %7363 = vmatpush1.bf16.msra.mxu0 %v7122
        %7364 = vmatprep.subr.bf16.mxu0 %v7127
        %7365 = vmatpush1.bf16.msra.mxu0 %v7126
        %7366 = vmatprep.subr.bf16.mxu0 %v7131
        %7367 = vmatpush1.bf16.msra.mxu0 %v7130
        %7368 = vmatprep.subr.bf16.mxu0 %v7135
        %7369 = vmatpush1.bf16.msra.mxu0 %v7134
        %7370 = vmatprep.subr.bf16.mxu0 %v7139
        %7371 = vmatpush1.bf16.msra.mxu0 %v7138
        %7372 = vmatprep.subr.bf16.mxu0 %v7143
        %7373 = vmatpush1.bf16.msra.mxu0 %v7142
        %7374 = vmatprep.subr.bf16.mxu0 %v7147
        %7375 = vmatpush1.bf16.msra.mxu0 %v7146
        %7376 = vmatprep.subr.bf16.mxu0 %v7151
        %7377 = vmatpush1.bf16.msra.mxu0 %v7150
        %7378 = vmatprep.mubr.bf16.mxu0 %v6695
        %7379 = vmatmul.mubr.bf16.gmra.mrb[0].mxu0 %v6692
        %v7380 = vpop.f32.mrb[0].mxu0
        %v7381 = vadd.f32 0.0, %v7380
        %v7382 = vpop.f32.mrb[0].mxu0
        %v7383 = vadd.f32 0.0, %v7382
        %v7384 = vpop.f32.mrb[0].mxu0
        %v7385 = vadd.f32 0.0, %v7384
        %v7386 = vpop.f32.mrb[0].mxu0
        %v7387 = vadd.f32 0.0, %v7386
        %7388 = vdwg.mxu0
        %7389 = vmatprep.subr.bf16.mxu0 %v7155
        %7390 = vmatpush1.bf16.msra.mxu0 %v7154
        %7391 = vmatprep.subr.bf16.mxu0 %v7159
        %7392 = vmatpush1.bf16.msra.mxu0 %v7158
        %7393 = vmatprep.subr.bf16.mxu0 %v7163
        %7394 = vmatpush1.bf16.msra.mxu0 %v7162
        %7395 = vmatprep.subr.bf16.mxu0 %v7167
        %7396 = vmatpush1.bf16.msra.mxu0 %v7166
        %7397 = vmatprep.subr.bf16.mxu0 %v7171
        %7398 = vmatpush1.bf16.msra.mxu0 %v7170
        %7399 = vmatprep.subr.bf16.mxu0 %v7175
        %7400 = vmatpush1.bf16.msra.mxu0 %v7174
        %7401 = vmatprep.subr.bf16.mxu0 %v7179
        %7402 = vmatpush1.bf16.msra.mxu0 %v7178
        %7403 = vmatprep.subr.bf16.mxu0 %v7183
        %7404 = vmatpush1.bf16.msra.mxu0 %v7182
        %7405 = vmatprep.subr.bf16.mxu0 %v7187
        %7406 = vmatpush1.bf16.msra.mxu0 %v7186
        %7407 = vmatprep.subr.bf16.mxu0 %v7191
        %7408 = vmatpush1.bf16.msra.mxu0 %v7190
        %7409 = vmatprep.subr.bf16.mxu0 %v7195
        %7410 = vmatpush1.bf16.msra.mxu0 %v7194
        %7411 = vmatprep.subr.bf16.mxu0 %v7199
        %7412 = vmatpush1.bf16.msra.mxu0 %v7198
        %7413 = vmatprep.subr.bf16.mxu0 %v7203
        %7414 = vmatpush1.bf16.msra.mxu0 %v7202
        %7415 = vmatprep.subr.bf16.mxu0 %v7207
        %7416 = vmatpush1.bf16.msra.mxu0 %v7206
        %7417 = vmatprep.subr.bf16.mxu0 %v7211
        %7418 = vmatpush1.bf16.msra.mxu0 %v7210
        %7419 = vmatprep.subr.bf16.mxu0 %v7215
        %7420 = vmatpush1.bf16.msra.mxu0 %v7214
        %7421 = vmatprep.mubr.bf16.mxu0 %v6701
        %7422 = vmatmul.mubr.bf16.gmra.mrb[0].mxu0 %v6698
        %v7423 = vpop.f32.mrb[0].mxu0
        %v7424 = vadd.f32 %v7381, %v7423
        %v7425 = vpop.f32.mrb[0].mxu0
        %v7426 = vadd.f32 %v7383, %v7425
        %v7427 = vpop.f32.mrb[0].mxu0
        %v7428 = vadd.f32 %v7385, %v7427
        %v7429 = vpop.f32.mrb[0].mxu0
        %v7430 = vadd.f32 %v7387, %v7429
        %7431 = vdwg.mxu0
        %7432 = vmatprep.subr.bf16.mxu0 %v7093
        %7433 = vmatpush1.bf16.msra.mxu0 %v7092
        %7434 = vmatprep.subr.bf16.mxu0 %v7097
        %7435 = vmatpush1.bf16.msra.mxu0 %v7096
        %7436 = vmatprep.subr.bf16.mxu0 %v7101
        %7437 = vmatpush1.bf16.msra.mxu0 %v7100
        %7438 = vmatprep.subr.bf16.mxu0 %v7105
        %7439 = vmatpush1.bf16.msra.mxu0 %v7104
        %7440 = vmatprep.subr.bf16.mxu0 %v7109
        %7441 = vmatpush1.bf16.msra.mxu0 %v7108
        %7442 = vmatprep.subr.bf16.mxu0 %v7113
        %7443 = vmatpush1.bf16.msra.mxu0 %v7112
        %7444 = vmatprep.subr.bf16.mxu0 %v7117
        %7445 = vmatpush1.bf16.msra.mxu0 %v7116
        %7446 = vmatprep.subr.bf16.mxu0 %v7121
        %7447 = vmatpush1.bf16.msra.mxu0 %v7120
        %7448 = vmatprep.subr.bf16.mxu0 %v7125
        %7449 = vmatpush1.bf16.msra.mxu0 %v7124
        %7450 = vmatprep.subr.bf16.mxu0 %v7129
        %7451 = vmatpush1.bf16.msra.mxu0 %v7128
        %7452 = vmatprep.subr.bf16.mxu0 %v7133
        %7453 = vmatpush1.bf16.msra.mxu0 %v7132
        %7454 = vmatprep.subr.bf16.mxu0 %v7137
        %7455 = vmatpush1.bf16.msra.mxu0 %v7136
        %7456 = vmatprep.subr.bf16.mxu0 %v7141
        %7457 = vmatpush1.bf16.msra.mxu0 %v7140
        %7458 = vmatprep.subr.bf16.mxu0 %v7145
        %7459 = vmatpush1.bf16.msra.mxu0 %v7144
        %7460 = vmatprep.subr.bf16.mxu0 %v7149
        %7461 = vmatpush1.bf16.msra.mxu0 %v7148
        %7462 = vmatprep.subr.bf16.mxu0 %v7153
        %7463 = vmatpush1.bf16.msra.mxu0 %v7152
        %7464 = vmatprep.mubr.bf16.mxu0 %v6695
        %7465 = vmatmul.mubr.bf16.gmra.mrb[0].mxu0 %v6692
        %v7466 = vpop.f32.mrb[0].mxu0
        %v7467 = vadd.f32 0.0, %v7466
        %v7468 = vpop.f32.mrb[0].mxu0
        %v7469 = vadd.f32 0.0, %v7468
        %v7470 = vpop.f32.mrb[0].mxu0
        %v7471 = vadd.f32 0.0, %v7470
        %v7472 = vpop.f32.mrb[0].mxu0
        %v7473 = vadd.f32 0.0, %v7472
        %7474 = vdwg.mxu0
        %7475 = vmatprep.subr.bf16.mxu0 %v7157
        %7476 = vmatpush1.bf16.msra.mxu0 %v7156
        %7477 = vmatprep.subr.bf16.mxu0 %v7161
        %7478 = vmatpush1.bf16.msra.mxu0 %v7160
        %7479 = vmatprep.subr.bf16.mxu0 %v7165
        %7480 = vmatpush1.bf16.msra.mxu0 %v7164
        %7481 = vmatprep.subr.bf16.mxu0 %v7169
        %7482 = vmatpush1.bf16.msra.mxu0 %v7168
        %7483 = vmatprep.subr.bf16.mxu0 %v7173
        %7484 = vmatpush1.bf16.msra.mxu0 %v7172
        %7485 = vmatprep.subr.bf16.mxu0 %v7177
        %7486 = vmatpush1.bf16.msra.mxu0 %v7176
        %7487 = vmatprep.subr.bf16.mxu0 %v7181
        %7488 = vmatpush1.bf16.msra.mxu0 %v7180
        %7489 = vmatprep.subr.bf16.mxu0 %v7185
        %7490 = vmatpush1.bf16.msra.mxu0 %v7184
        %7491 = vmatprep.subr.bf16.mxu0 %v7189
        %7492 = vmatpush1.bf16.msra.mxu0 %v7188
        %7493 = vmatprep.subr.bf16.mxu0 %v7193
        %7494 = vmatpush1.bf16.msra.mxu0 %v7192
        %7495 = vmatprep.subr.bf16.mxu0 %v7197
        %7496 = vmatpush1.bf16.msra.mxu0 %v7196
        %7497 = vmatprep.subr.bf16.mxu0 %v7201
        %7498 = vmatpush1.bf16.msra.mxu0 %v7200
        %7499 = vmatprep.subr.bf16.mxu0 %v7205
        %7500 = vmatpush1.bf16.msra.mxu0 %v7204
        %7501 = vmatprep.subr.bf16.mxu0 %v7209
        %7502 = vmatpush1.bf16.msra.mxu0 %v7208
        %7503 = vmatprep.subr.bf16.mxu0 %v7213
        %7504 = vmatpush1.bf16.msra.mxu0 %v7212
        %7505 = vmatprep.subr.bf16.mxu0 %v7217
        %7506 = vmatpush1.bf16.msra.mxu0 %v7216
        %7507 = vmatprep.mubr.bf16.mxu0 %v6701
        %7508 = vmatmul.mubr.bf16.gmra.mrb[0].mxu0 %v6698
        %v7509 = vpop.f32.mrb[0].mxu0
        %v7510 = vadd.f32 %v7467, %v7509
        %v7511 = vpop.f32.mrb[0].mxu0
        %v7512 = vadd.f32 %v7469, %v7511
        %v7513 = vpop.f32.mrb[0].mxu0
        %v7514 = vadd.f32 %v7471, %v7513
        %v7515 = vpop.f32.mrb[0].mxu0
        %v7516 = vadd.f32 %v7473, %v7515
        %7517 = vdwg.mxu0
        %v7518 = vadd.f32 %v6455, %v7424
        %v7519 = vadd.f32 %v6457, %v7426
        %v7520 = vadd.f32 %v6541, %v7510
        %v7521 = vadd.f32 %v6543, %v7512
        %v7522 = vadd.f32 %v6459, %v7428
        %v7523 = vadd.f32 %v6461, %v7430
        %v7524 = vadd.f32 %v6545, %v7514
        %v7525 = vadd.f32 %v6547, %v7516
        %v7526 = vld [vmem:[#allocation3 + $0x20] sm:$0x33]
        %v7527 = vld [vmem:[#allocation3 + $0x28] sm:$0x33]
        %s7528 = scalar_lea.vmem [#allocation10], 3072
        %v7529 = vld [vmem:[%s7528] sm:$0xff]
        %v7530 = vld [vmem:[%s7528 + $0x8] sm:$0xff]
        %v7531 = vld [vmem:[%s7528 + $0x10] sm:$0xff]
        %v7532 = vld [vmem:[%s7528 + $0x18] sm:$0xff]
        %v7533 = vld [vmem:[%s7528 + $0x20] sm:$0xff]
        %v7534 = vld [vmem:[%s7528 + $0x28] sm:$0xff]
        %v7535 = vld [vmem:[%s7528 + $0x30] sm:$0xff]
        %v7536 = vld [vmem:[%s7528 + $0x38] sm:$0xff]
        %v7537 = vld [vmem:[%s7528 + $0x40] sm:$0xff]
        %v7538 = vld [vmem:[%s7528 + $0x48] sm:$0xff]
        %v7539 = vld [vmem:[%s7528 + $0x50] sm:$0xff]
        %v7540 = vld [vmem:[%s7528 + $0x58] sm:$0xff]
        %v7541 = vld [vmem:[%s7528 + $0x60] sm:$0xff]
        %v7542 = vld [vmem:[%s7528 + $0x68] sm:$0xff]
        %v7543 = vld [vmem:[%s7528 + $0x70] sm:$0xff]
        %v7544 = vld [vmem:[%s7528 + $0x78] sm:$0xff]
        %v7545 = vld [vmem:[%s7528 + $0x80] sm:$0xff]
        %v7546 = vld [vmem:[%s7528 + $0x88] sm:$0xff]
        %v7547 = vld [vmem:[%s7528 + $0x90] sm:$0xff]
        %v7548 = vld [vmem:[%s7528 + $0x98] sm:$0xff]
        %v7549 = vld [vmem:[%s7528 + $0xa0] sm:$0xff]
        %v7550 = vld [vmem:[%s7528 + $0xa8] sm:$0xff]
        %v7551 = vld [vmem:[%s7528 + $0xb0] sm:$0xff]
        %v7552 = vld [vmem:[%s7528 + $0xb8] sm:$0xff]
        %v7553 = vld [vmem:[%s7528 + $0xc0] sm:$0xff]
        %v7554 = vld [vmem:[%s7528 + $0xc8] sm:$0xff]
        %v7555 = vld [vmem:[%s7528 + $0xd0] sm:$0xff]
        %v7556 = vld [vmem:[%s7528 + $0xd8] sm:$0xff]
        %v7557 = vld [vmem:[%s7528 + $0xe0] sm:$0xff]
        %v7558 = vld [vmem:[%s7528 + $0xe8] sm:$0xff]
        %v7559 = vld [vmem:[%s7528 + $0xf0] sm:$0xff]
        %v7560 = vld [vmem:[%s7528 + $0xf8] sm:$0xff]
        %v7561 = vld [vmem:[%s7528 + $0x100] sm:$0xff]
        %v7562 = vld [vmem:[%s7528 + $0x108] sm:$0xff]
        %v7563 = vld [vmem:[%s7528 + $0x110] sm:$0xff]
        %v7564 = vld [vmem:[%s7528 + $0x118] sm:$0xff]
        %v7565 = vld [vmem:[%s7528 + $0x120] sm:$0xff]
        %v7566 = vld [vmem:[%s7528 + $0x128] sm:$0xff]
        %v7567 = vld [vmem:[%s7528 + $0x130] sm:$0xff]
        %v7568 = vld [vmem:[%s7528 + $0x138] sm:$0xff]
        %v7569 = vld [vmem:[%s7528 + $0x140] sm:$0xff]
        %v7570 = vld [vmem:[%s7528 + $0x148] sm:$0xff]
        %v7571 = vld [vmem:[%s7528 + $0x150] sm:$0xff]
        %v7572 = vld [vmem:[%s7528 + $0x158] sm:$0xff]
        %v7573 = vld [vmem:[%s7528 + $0x160] sm:$0xff]
        %v7574 = vld [vmem:[%s7528 + $0x168] sm:$0xff]
        %v7575 = vld [vmem:[%s7528 + $0x170] sm:$0xff]
        %v7576 = vld [vmem:[%s7528 + $0x178] sm:$0xff]
        %v7577 = vld [vmem:[%s7528 + $0x180] sm:$0xff]
        %v7578 = vld [vmem:[%s7528 + $0x188] sm:$0xff]
        %v7579 = vld [vmem:[%s7528 + $0x190] sm:$0xff]
        %v7580 = vld [vmem:[%s7528 + $0x198] sm:$0xff]
        %v7581 = vld [vmem:[%s7528 + $0x1a0] sm:$0xff]
        %v7582 = vld [vmem:[%s7528 + $0x1a8] sm:$0xff]
        %v7583 = vld [vmem:[%s7528 + $0x1b0] sm:$0xff]
        %v7584 = vld [vmem:[%s7528 + $0x1b8] sm:$0xff]
        %v7585 = vld [vmem:[%s7528 + $0x1c0] sm:$0xff]
        %v7586 = vld [vmem:[%s7528 + $0x1c8] sm:$0xff]
        %v7587 = vld [vmem:[%s7528 + $0x1d0] sm:$0xff]
        %v7588 = vld [vmem:[%s7528 + $0x1d8] sm:$0xff]
        %v7589 = vld [vmem:[%s7528 + $0x1e0] sm:$0xff]
        %v7590 = vld [vmem:[%s7528 + $0x1e8] sm:$0xff]
        %v7591 = vld [vmem:[%s7528 + $0x1f0] sm:$0xff]
        %v7592 = vld [vmem:[%s7528 + $0x1f8] sm:$0xff]
        %v7593 = vld [vmem:[%s7528 + $0x200] sm:$0xff]
        %v7594 = vld [vmem:[%s7528 + $0x208] sm:$0xff]
        %v7595 = vld [vmem:[%s7528 + $0x210] sm:$0xff]
        %v7596 = vld [vmem:[%s7528 + $0x218] sm:$0xff]
        %v7597 = vld [vmem:[%s7528 + $0x220] sm:$0xff]
        %v7598 = vld [vmem:[%s7528 + $0x228] sm:$0xff]
        %v7599 = vld [vmem:[%s7528 + $0x230] sm:$0xff]
        %v7600 = vld [vmem:[%s7528 + $0x238] sm:$0xff]
        %v7601 = vld [vmem:[%s7528 + $0x240] sm:$0xff]
        %v7602 = vld [vmem:[%s7528 + $0x248] sm:$0xff]
        %v7603 = vld [vmem:[%s7528 + $0x250] sm:$0xff]
        %v7604 = vld [vmem:[%s7528 + $0x258] sm:$0xff]
        %v7605 = vld [vmem:[%s7528 + $0x260] sm:$0xff]
        %v7606 = vld [vmem:[%s7528 + $0x268] sm:$0xff]
        %v7607 = vld [vmem:[%s7528 + $0x270] sm:$0xff]
        %v7608 = vld [vmem:[%s7528 + $0x278] sm:$0xff]
        %v7609 = vld [vmem:[%s7528 + $0x280] sm:$0xff]
        %v7610 = vld [vmem:[%s7528 + $0x288] sm:$0xff]
        %v7611 = vld [vmem:[%s7528 + $0x290] sm:$0xff]
        %v7612 = vld [vmem:[%s7528 + $0x298] sm:$0xff]
        %v7613 = vld [vmem:[%s7528 + $0x2a0] sm:$0xff]
        %v7614 = vld [vmem:[%s7528 + $0x2a8] sm:$0xff]
        %v7615 = vld [vmem:[%s7528 + $0x2b0] sm:$0xff]
        %v7616 = vld [vmem:[%s7528 + $0x2b8] sm:$0xff]
        %v7617 = vld [vmem:[%s7528 + $0x2c0] sm:$0xff]
        %v7618 = vld [vmem:[%s7528 + $0x2c8] sm:$0xff]
        %v7619 = vld [vmem:[%s7528 + $0x2d0] sm:$0xff]
        %v7620 = vld [vmem:[%s7528 + $0x2d8] sm:$0xff]
        %v7621 = vld [vmem:[%s7528 + $0x2e0] sm:$0xff]
        %v7622 = vld [vmem:[%s7528 + $0x2e8] sm:$0xff]
        %v7623 = vld [vmem:[%s7528 + $0x2f0] sm:$0xff]
        %v7624 = vld [vmem:[%s7528 + $0x2f8] sm:$0xff]
        %v7625 = vld [vmem:[%s7528 + $0x300] sm:$0xff]
        %v7626 = vld [vmem:[%s7528 + $0x308] sm:$0xff]
        %v7627 = vld [vmem:[%s7528 + $0x310] sm:$0xff]
        %v7628 = vld [vmem:[%s7528 + $0x318] sm:$0xff]
        %v7629 = vld [vmem:[%s7528 + $0x320] sm:$0xff]
        %v7630 = vld [vmem:[%s7528 + $0x328] sm:$0xff]
        %v7631 = vld [vmem:[%s7528 + $0x330] sm:$0xff]
        %v7632 = vld [vmem:[%s7528 + $0x338] sm:$0xff]
        %v7633 = vld [vmem:[%s7528 + $0x340] sm:$0xff]
        %v7634 = vld [vmem:[%s7528 + $0x348] sm:$0xff]
        %v7635 = vld [vmem:[%s7528 + $0x350] sm:$0xff]
        %v7636 = vld [vmem:[%s7528 + $0x358] sm:$0xff]
        %v7637 = vld [vmem:[%s7528 + $0x360] sm:$0xff]
        %v7638 = vld [vmem:[%s7528 + $0x368] sm:$0xff]
        %v7639 = vld [vmem:[%s7528 + $0x370] sm:$0xff]
        %v7640 = vld [vmem:[%s7528 + $0x378] sm:$0xff]
        %v7641 = vld [vmem:[%s7528 + $0x380] sm:$0xff]
        %v7642 = vld [vmem:[%s7528 + $0x388] sm:$0xff]
        %v7643 = vld [vmem:[%s7528 + $0x390] sm:$0xff]
        %v7644 = vld [vmem:[%s7528 + $0x398] sm:$0xff]
        %v7645 = vld [vmem:[%s7528 + $0x3a0] sm:$0xff]
        %v7646 = vld [vmem:[%s7528 + $0x3a8] sm:$0xff]
        %v7647 = vld [vmem:[%s7528 + $0x3b0] sm:$0xff]
        %v7648 = vld [vmem:[%s7528 + $0x3b8] sm:$0xff]
        %v7649 = vld [vmem:[%s7528 + $0x3c0] sm:$0xff]
        %v7650 = vld [vmem:[%s7528 + $0x3c8] sm:$0xff]
        %v7651 = vld [vmem:[%s7528 + $0x3d0] sm:$0xff]
        %v7652 = vld [vmem:[%s7528 + $0x3d8] sm:$0xff]
        %v7653 = vld [vmem:[%s7528 + $0x3e0] sm:$0xff]
        %v7654 = vld [vmem:[%s7528 + $0x3e8] sm:$0xff]
        %v7655 = vld [vmem:[%s7528 + $0x3f0] sm:$0xff]
        %v7656 = vld [vmem:[%s7528 + $0x3f8] sm:$0xff]
        %v7659 = vunpack.c.l.b16 %v7526
        %v7660 = vunpack.c.h.b16 %v7526
        %v7661 = vunpack.c.l.b16 %v7527
        %v7662 = vunpack.c.h.b16 %v7527
        %v7663 = vpack.c.b16 %v7659, %v7659
        %v7664 = vpack.c.b16 %v7660, %v7660
        %v7665 = vpack.c.b16 %v7661, %v7661
        %v7666 = vpack.c.b16 %v7662, %v7662
        %v7668 = vshrl.u32 %v6686, 16
        %v7670 = vrot.slane %v7668, 1
        %v7671 = vshll.u32 %v6686, 16
        %v7673 = vrot.slane %v7671, 2
        %v7674 = vor.u32 %v7670, %v7673
        %v7676 = vshrl.u32 %v7663, 16
        %v7678 = vrot.slane %v7676, 1
        %v7679 = vshll.u32 %v7663, 16
        %v7681 = vrot.slane %v7679, 2
        %v7682 = vor.u32 %v7678, %v7681
        %v7683 = vsel %vm2186, %v7674, %v7682
        %v7685 = vshrl.u32 %v6687, 16
        %v7687 = vrot.slane %v7685, 1
        %v7688 = vshll.u32 %v6687, 16
        %v7690 = vrot.slane %v7688, 2
        %v7691 = vor.u32 %v7687, %v7690
        %v7693 = vshrl.u32 %v7664, 16
        %v7695 = vrot.slane %v7693, 1
        %v7696 = vshll.u32 %v7664, 16
        %v7698 = vrot.slane %v7696, 2
        %v7699 = vor.u32 %v7695, %v7698
        %v7700 = vsel %vm2186, %v7691, %v7699
        %v7702 = vshrl.u32 %v6688, 16
        %v7704 = vrot.slane %v7702, 1
        %v7705 = vshll.u32 %v6688, 16
        %v7707 = vrot.slane %v7705, 2
        %v7708 = vor.u32 %v7704, %v7707
        %v7710 = vshrl.u32 %v7665, 16
        %v7712 = vrot.slane %v7710, 1
        %v7713 = vshll.u32 %v7665, 16
        %v7715 = vrot.slane %v7713, 2
        %v7716 = vor.u32 %v7712, %v7715
        %v7717 = vsel %vm2186, %v7708, %v7716
        %v7719 = vshrl.u32 %v6689, 16
        %v7721 = vrot.slane %v7719, 1
        %v7722 = vshll.u32 %v6689, 16
        %v7724 = vrot.slane %v7722, 2
        %v7725 = vor.u32 %v7721, %v7724
        %v7727 = vshrl.u32 %v7666, 16
        %v7729 = vrot.slane %v7727, 1
        %v7730 = vshll.u32 %v7666, 16
        %v7732 = vrot.slane %v7730, 2
        %v7733 = vor.u32 %v7729, %v7732
        %v7734 = vsel %vm2186, %v7725, %v7733
        %v7867 = vunpack.c.l.b16 %v7529
        %v7868 = vunpack.c.h.b16 %v7529
        %v7869 = vunpack.c.l.b16 %v7530
        %v7870 = vunpack.c.h.b16 %v7530
        %v7871 = vunpack.c.l.b16 %v7531
        %v7872 = vunpack.c.h.b16 %v7531
        %v7873 = vunpack.c.l.b16 %v7532
        %v7874 = vunpack.c.h.b16 %v7532
        %v7875 = vunpack.c.l.b16 %v7533
        %v7876 = vunpack.c.h.b16 %v7533
        %v7877 = vunpack.c.l.b16 %v7534
        %v7878 = vunpack.c.h.b16 %v7534
        %v7879 = vunpack.c.l.b16 %v7535
        %v7880 = vunpack.c.h.b16 %v7535
        %v7881 = vunpack.c.l.b16 %v7536
        %v7882 = vunpack.c.h.b16 %v7536
        %v7883 = vunpack.c.l.b16 %v7537
        %v7884 = vunpack.c.h.b16 %v7537
        %v7885 = vunpack.c.l.b16 %v7538
        %v7886 = vunpack.c.h.b16 %v7538
        %v7887 = vunpack.c.l.b16 %v7539
        %v7888 = vunpack.c.h.b16 %v7539
        %v7889 = vunpack.c.l.b16 %v7540
        %v7890 = vunpack.c.h.b16 %v7540
        %v7891 = vunpack.c.l.b16 %v7541
        %v7892 = vunpack.c.h.b16 %v7541
        %v7893 = vunpack.c.l.b16 %v7542
        %v7894 = vunpack.c.h.b16 %v7542
        %v7895 = vunpack.c.l.b16 %v7543
        %v7896 = vunpack.c.h.b16 %v7543
        %v7897 = vunpack.c.l.b16 %v7544
        %v7898 = vunpack.c.h.b16 %v7544
        %v7899 = vunpack.c.l.b16 %v7545
        %v7900 = vunpack.c.h.b16 %v7545
        %v7901 = vunpack.c.l.b16 %v7546
        %v7902 = vunpack.c.h.b16 %v7546
        %v7903 = vunpack.c.l.b16 %v7547
        %v7904 = vunpack.c.h.b16 %v7547
        %v7905 = vunpack.c.l.b16 %v7548
        %v7906 = vunpack.c.h.b16 %v7548
        %v7907 = vunpack.c.l.b16 %v7549
        %v7908 = vunpack.c.h.b16 %v7549
        %v7909 = vunpack.c.l.b16 %v7550
        %v7910 = vunpack.c.h.b16 %v7550
        %v7911 = vunpack.c.l.b16 %v7551
        %v7912 = vunpack.c.h.b16 %v7551
        %v7913 = vunpack.c.l.b16 %v7552
        %v7914 = vunpack.c.h.b16 %v7552
        %v7915 = vunpack.c.l.b16 %v7553
        %v7916 = vunpack.c.h.b16 %v7553
        %v7917 = vunpack.c.l.b16 %v7554
        %v7918 = vunpack.c.h.b16 %v7554
        %v7919 = vunpack.c.l.b16 %v7555
        %v7920 = vunpack.c.h.b16 %v7555
        %v7921 = vunpack.c.l.b16 %v7556
        %v7922 = vunpack.c.h.b16 %v7556
        %v7923 = vunpack.c.l.b16 %v7557
        %v7924 = vunpack.c.h.b16 %v7557
        %v7925 = vunpack.c.l.b16 %v7558
        %v7926 = vunpack.c.h.b16 %v7558
        %v7927 = vunpack.c.l.b16 %v7559
        %v7928 = vunpack.c.h.b16 %v7559
        %v7929 = vunpack.c.l.b16 %v7560
        %v7930 = vunpack.c.h.b16 %v7560
        %v7931 = vunpack.c.l.b16 %v7561
        %v7932 = vunpack.c.h.b16 %v7561
        %v7933 = vunpack.c.l.b16 %v7562
        %v7934 = vunpack.c.h.b16 %v7562
        %v7935 = vunpack.c.l.b16 %v7563
        %v7936 = vunpack.c.h.b16 %v7563
        %v7937 = vunpack.c.l.b16 %v7564
        %v7938 = vunpack.c.h.b16 %v7564
        %v7939 = vunpack.c.l.b16 %v7565
        %v7940 = vunpack.c.h.b16 %v7565
        %v7941 = vunpack.c.l.b16 %v7566
        %v7942 = vunpack.c.h.b16 %v7566
        %v7943 = vunpack.c.l.b16 %v7567
        %v7944 = vunpack.c.h.b16 %v7567
        %v7945 = vunpack.c.l.b16 %v7568
        %v7946 = vunpack.c.h.b16 %v7568
        %v7947 = vunpack.c.l.b16 %v7569
        %v7948 = vunpack.c.h.b16 %v7569
        %v7949 = vunpack.c.l.b16 %v7570
        %v7950 = vunpack.c.h.b16 %v7570
        %v7951 = vunpack.c.l.b16 %v7571
        %v7952 = vunpack.c.h.b16 %v7571
        %v7953 = vunpack.c.l.b16 %v7572
        %v7954 = vunpack.c.h.b16 %v7572
        %v7955 = vunpack.c.l.b16 %v7573
        %v7956 = vunpack.c.h.b16 %v7573
        %v7957 = vunpack.c.l.b16 %v7574
        %v7958 = vunpack.c.h.b16 %v7574
        %v7959 = vunpack.c.l.b16 %v7575
        %v7960 = vunpack.c.h.b16 %v7575
        %v7961 = vunpack.c.l.b16 %v7576
        %v7962 = vunpack.c.h.b16 %v7576
        %v7963 = vunpack.c.l.b16 %v7577
        %v7964 = vunpack.c.h.b16 %v7577
        %v7965 = vunpack.c.l.b16 %v7578
        %v7966 = vunpack.c.h.b16 %v7578
        %v7967 = vunpack.c.l.b16 %v7579
        %v7968 = vunpack.c.h.b16 %v7579
        %v7969 = vunpack.c.l.b16 %v7580
        %v7970 = vunpack.c.h.b16 %v7580
        %v7971 = vunpack.c.l.b16 %v7581
        %v7972 = vunpack.c.h.b16 %v7581
        %v7973 = vunpack.c.l.b16 %v7582
        %v7974 = vunpack.c.h.b16 %v7582
        %v7975 = vunpack.c.l.b16 %v7583
        %v7976 = vunpack.c.h.b16 %v7583
        %v7977 = vunpack.c.l.b16 %v7584
        %v7978 = vunpack.c.h.b16 %v7584
        %v7979 = vunpack.c.l.b16 %v7585
        %v7980 = vunpack.c.h.b16 %v7585
        %v7981 = vunpack.c.l.b16 %v7586
        %v7982 = vunpack.c.h.b16 %v7586
        %v7983 = vunpack.c.l.b16 %v7587
        %v7984 = vunpack.c.h.b16 %v7587
        %v7985 = vunpack.c.l.b16 %v7588
        %v7986 = vunpack.c.h.b16 %v7588
        %v7987 = vunpack.c.l.b16 %v7589
        %v7988 = vunpack.c.h.b16 %v7589
        %v7989 = vunpack.c.l.b16 %v7590
        %v7990 = vunpack.c.h.b16 %v7590
        %v7991 = vunpack.c.l.b16 %v7591
        %v7992 = vunpack.c.h.b16 %v7591
        %v7993 = vunpack.c.l.b16 %v7592
        %v7994 = vunpack.c.h.b16 %v7592
        %v7995 = vunpack.c.l.b16 %v7593
        %v7996 = vunpack.c.h.b16 %v7593
        %v7997 = vunpack.c.l.b16 %v7594
        %v7998 = vunpack.c.h.b16 %v7594
        %v7999 = vunpack.c.l.b16 %v7595
        %v8000 = vunpack.c.h.b16 %v7595
        %v8001 = vunpack.c.l.b16 %v7596
        %v8002 = vunpack.c.h.b16 %v7596
        %v8003 = vunpack.c.l.b16 %v7597
        %v8004 = vunpack.c.h.b16 %v7597
        %v8005 = vunpack.c.l.b16 %v7598
        %v8006 = vunpack.c.h.b16 %v7598
        %v8007 = vunpack.c.l.b16 %v7599
        %v8008 = vunpack.c.h.b16 %v7599
        %v8009 = vunpack.c.l.b16 %v7600
        %v8010 = vunpack.c.h.b16 %v7600
        %v8011 = vunpack.c.l.b16 %v7601
        %v8012 = vunpack.c.h.b16 %v7601
        %v8013 = vunpack.c.l.b16 %v7602
        %v8014 = vunpack.c.h.b16 %v7602
        %v8015 = vunpack.c.l.b16 %v7603
        %v8016 = vunpack.c.h.b16 %v7603
        %v8017 = vunpack.c.l.b16 %v7604
        %v8018 = vunpack.c.h.b16 %v7604
        %v8019 = vunpack.c.l.b16 %v7605
        %v8020 = vunpack.c.h.b16 %v7605
        %v8021 = vunpack.c.l.b16 %v7606
        %v8022 = vunpack.c.h.b16 %v7606
        %v8023 = vunpack.c.l.b16 %v7607
        %v8024 = vunpack.c.h.b16 %v7607
        %v8025 = vunpack.c.l.b16 %v7608
        %v8026 = vunpack.c.h.b16 %v7608
        %v8027 = vunpack.c.l.b16 %v7609
        %v8028 = vunpack.c.h.b16 %v7609
        %v8029 = vunpack.c.l.b16 %v7610
        %v8030 = vunpack.c.h.b16 %v7610
        %v8031 = vunpack.c.l.b16 %v7611
        %v8032 = vunpack.c.h.b16 %v7611
        %v8033 = vunpack.c.l.b16 %v7612
        %v8034 = vunpack.c.h.b16 %v7612
        %v8035 = vunpack.c.l.b16 %v7613
        %v8036 = vunpack.c.h.b16 %v7613
        %v8037 = vunpack.c.l.b16 %v7614
        %v8038 = vunpack.c.h.b16 %v7614
        %v8039 = vunpack.c.l.b16 %v7615
        %v8040 = vunpack.c.h.b16 %v7615
        %v8041 = vunpack.c.l.b16 %v7616
        %v8042 = vunpack.c.h.b16 %v7616
        %v8043 = vunpack.c.l.b16 %v7617
        %v8044 = vunpack.c.h.b16 %v7617
        %v8045 = vunpack.c.l.b16 %v7618
        %v8046 = vunpack.c.h.b16 %v7618
        %v8047 = vunpack.c.l.b16 %v7619
        %v8048 = vunpack.c.h.b16 %v7619
        %v8049 = vunpack.c.l.b16 %v7620
        %v8050 = vunpack.c.h.b16 %v7620
        %v8051 = vunpack.c.l.b16 %v7621
        %v8052 = vunpack.c.h.b16 %v7621
        %v8053 = vunpack.c.l.b16 %v7622
        %v8054 = vunpack.c.h.b16 %v7622
        %v8055 = vunpack.c.l.b16 %v7623
        %v8056 = vunpack.c.h.b16 %v7623
        %v8057 = vunpack.c.l.b16 %v7624
        %v8058 = vunpack.c.h.b16 %v7624
        %v8059 = vunpack.c.l.b16 %v7625
        %v8060 = vunpack.c.h.b16 %v7625
        %v8061 = vunpack.c.l.b16 %v7626
        %v8062 = vunpack.c.h.b16 %v7626
        %v8063 = vunpack.c.l.b16 %v7627
        %v8064 = vunpack.c.h.b16 %v7627
        %v8065 = vunpack.c.l.b16 %v7628
        %v8066 = vunpack.c.h.b16 %v7628
        %v8067 = vunpack.c.l.b16 %v7629
        %v8068 = vunpack.c.h.b16 %v7629
        %v8069 = vunpack.c.l.b16 %v7630
        %v8070 = vunpack.c.h.b16 %v7630
        %v8071 = vunpack.c.l.b16 %v7631
        %v8072 = vunpack.c.h.b16 %v7631
        %v8073 = vunpack.c.l.b16 %v7632
        %v8074 = vunpack.c.h.b16 %v7632
        %v8075 = vunpack.c.l.b16 %v7633
        %v8076 = vunpack.c.h.b16 %v7633
        %v8077 = vunpack.c.l.b16 %v7634
        %v8078 = vunpack.c.h.b16 %v7634
        %v8079 = vunpack.c.l.b16 %v7635
        %v8080 = vunpack.c.h.b16 %v7635
        %v8081 = vunpack.c.l.b16 %v7636
        %v8082 = vunpack.c.h.b16 %v7636
        %v8083 = vunpack.c.l.b16 %v7637
        %v8084 = vunpack.c.h.b16 %v7637
        %v8085 = vunpack.c.l.b16 %v7638
        %v8086 = vunpack.c.h.b16 %v7638
        %v8087 = vunpack.c.l.b16 %v7639
        %v8088 = vunpack.c.h.b16 %v7639
        %v8089 = vunpack.c.l.b16 %v7640
        %v8090 = vunpack.c.h.b16 %v7640
        %v8091 = vunpack.c.l.b16 %v7641
        %v8092 = vunpack.c.h.b16 %v7641
        %v8093 = vunpack.c.l.b16 %v7642
        %v8094 = vunpack.c.h.b16 %v7642
        %v8095 = vunpack.c.l.b16 %v7643
        %v8096 = vunpack.c.h.b16 %v7643
        %v8097 = vunpack.c.l.b16 %v7644
        %v8098 = vunpack.c.h.b16 %v7644
        %v8099 = vunpack.c.l.b16 %v7645
        %v8100 = vunpack.c.h.b16 %v7645
        %v8101 = vunpack.c.l.b16 %v7646
        %v8102 = vunpack.c.h.b16 %v7646
        %v8103 = vunpack.c.l.b16 %v7647
        %v8104 = vunpack.c.h.b16 %v7647
        %v8105 = vunpack.c.l.b16 %v7648
        %v8106 = vunpack.c.h.b16 %v7648
        %v8107 = vunpack.c.l.b16 %v7649
        %v8108 = vunpack.c.h.b16 %v7649
        %v8109 = vunpack.c.l.b16 %v7650
        %v8110 = vunpack.c.h.b16 %v7650
        %v8111 = vunpack.c.l.b16 %v7651
        %v8112 = vunpack.c.h.b16 %v7651
        %v8113 = vunpack.c.l.b16 %v7652
        %v8114 = vunpack.c.h.b16 %v7652
        %v8115 = vunpack.c.l.b16 %v7653
        %v8116 = vunpack.c.h.b16 %v7653
        %v8117 = vunpack.c.l.b16 %v7654
        %v8118 = vunpack.c.h.b16 %v7654
        %v8119 = vunpack.c.l.b16 %v7655
        %v8120 = vunpack.c.h.b16 %v7655
        %v8121 = vunpack.c.l.b16 %v7656
        %v8122 = vunpack.c.h.b16 %v7656
        %v8123 = vpack.c.b16 %v7871, %v7867
        %v8124 = vpack.c.b16 %v7872, %v7868
        %v8125 = vpack.c.b16 %v7873, %v7869
        %v8126 = vpack.c.b16 %v7874, %v7870
        %v8127 = vpack.c.b16 %v7879, %v7875
        %v8128 = vpack.c.b16 %v7880, %v7876
        %v8129 = vpack.c.b16 %v7881, %v7877
        %v8130 = vpack.c.b16 %v7882, %v7878
        %v8131 = vpack.c.b16 %v7887, %v7883
        %v8132 = vpack.c.b16 %v7888, %v7884
        %v8133 = vpack.c.b16 %v7889, %v7885
        %v8134 = vpack.c.b16 %v7890, %v7886
        %v8135 = vpack.c.b16 %v7895, %v7891
        %v8136 = vpack.c.b16 %v7896, %v7892
        %v8137 = vpack.c.b16 %v7897, %v7893
        %v8138 = vpack.c.b16 %v7898, %v7894
        %v8139 = vpack.c.b16 %v7903, %v7899
        %v8140 = vpack.c.b16 %v7904, %v7900
        %v8141 = vpack.c.b16 %v7905, %v7901
        %v8142 = vpack.c.b16 %v7906, %v7902
        %v8143 = vpack.c.b16 %v7911, %v7907
        %v8144 = vpack.c.b16 %v7912, %v7908
        %v8145 = vpack.c.b16 %v7913, %v7909
        %v8146 = vpack.c.b16 %v7914, %v7910
        %v8147 = vpack.c.b16 %v7919, %v7915
        %v8148 = vpack.c.b16 %v7920, %v7916
        %v8149 = vpack.c.b16 %v7921, %v7917
        %v8150 = vpack.c.b16 %v7922, %v7918
        %v8151 = vpack.c.b16 %v7927, %v7923
        %v8152 = vpack.c.b16 %v7928, %v7924
        %v8153 = vpack.c.b16 %v7929, %v7925
        %v8154 = vpack.c.b16 %v7930, %v7926
        %v8155 = vpack.c.b16 %v7935, %v7931
        %v8156 = vpack.c.b16 %v7936, %v7932
        %v8157 = vpack.c.b16 %v7937, %v7933
        %v8158 = vpack.c.b16 %v7938, %v7934
        %v8159 = vpack.c.b16 %v7943, %v7939
        %v8160 = vpack.c.b16 %v7944, %v7940
        %v8161 = vpack.c.b16 %v7945, %v7941
        %v8162 = vpack.c.b16 %v7946, %v7942
        %v8163 = vpack.c.b16 %v7951, %v7947
        %v8164 = vpack.c.b16 %v7952, %v7948
        %v8165 = vpack.c.b16 %v7953, %v7949
        %v8166 = vpack.c.b16 %v7954, %v7950
        %v8167 = vpack.c.b16 %v7959, %v7955
        %v8168 = vpack.c.b16 %v7960, %v7956
        %v8169 = vpack.c.b16 %v7961, %v7957
        %v8170 = vpack.c.b16 %v7962, %v7958
        %v8171 = vpack.c.b16 %v7967, %v7963
        %v8172 = vpack.c.b16 %v7968, %v7964
        %v8173 = vpack.c.b16 %v7969, %v7965
        %v8174 = vpack.c.b16 %v7970, %v7966
        %v8175 = vpack.c.b16 %v7975, %v7971
        %v8176 = vpack.c.b16 %v7976, %v7972
        %v8177 = vpack.c.b16 %v7977, %v7973
        %v8178 = vpack.c.b16 %v7978, %v7974
        %v8179 = vpack.c.b16 %v7983, %v7979
        %v8180 = vpack.c.b16 %v7984, %v7980
        %v8181 = vpack.c.b16 %v7985, %v7981
        %v8182 = vpack.c.b16 %v7986, %v7982
        %v8183 = vpack.c.b16 %v7991, %v7987
        %v8184 = vpack.c.b16 %v7992, %v7988
        %v8185 = vpack.c.b16 %v7993, %v7989
        %v8186 = vpack.c.b16 %v7994, %v7990
        %v8187 = vpack.c.b16 %v7999, %v7995
        %v8188 = vpack.c.b16 %v8000, %v7996
        %v8189 = vpack.c.b16 %v8001, %v7997
        %v8190 = vpack.c.b16 %v8002, %v7998
        %v8191 = vpack.c.b16 %v8007, %v8003
        %v8192 = vpack.c.b16 %v8008, %v8004
        %v8193 = vpack.c.b16 %v8009, %v8005
        %v8194 = vpack.c.b16 %v8010, %v8006
        %v8195 = vpack.c.b16 %v8015, %v8011
        %v8196 = vpack.c.b16 %v8016, %v8012
        %v8197 = vpack.c.b16 %v8017, %v8013
        %v8198 = vpack.c.b16 %v8018, %v8014
        %v8199 = vpack.c.b16 %v8023, %v8019
        %v8200 = vpack.c.b16 %v8024, %v8020
        %v8201 = vpack.c.b16 %v8025, %v8021
        %v8202 = vpack.c.b16 %v8026, %v8022
        %v8203 = vpack.c.b16 %v8031, %v8027
        %v8204 = vpack.c.b16 %v8032, %v8028
        %v8205 = vpack.c.b16 %v8033, %v8029
        %v8206 = vpack.c.b16 %v8034, %v8030
        %v8207 = vpack.c.b16 %v8039, %v8035
        %v8208 = vpack.c.b16 %v8040, %v8036
        %v8209 = vpack.c.b16 %v8041, %v8037
        %v8210 = vpack.c.b16 %v8042, %v8038
        %v8211 = vpack.c.b16 %v8047, %v8043
        %v8212 = vpack.c.b16 %v8048, %v8044
        %v8213 = vpack.c.b16 %v8049, %v8045
        %v8214 = vpack.c.b16 %v8050, %v8046
        %v8215 = vpack.c.b16 %v8055, %v8051
        %v8216 = vpack.c.b16 %v8056, %v8052
        %v8217 = vpack.c.b16 %v8057, %v8053
        %v8218 = vpack.c.b16 %v8058, %v8054
        %v8219 = vpack.c.b16 %v8063, %v8059
        %v8220 = vpack.c.b16 %v8064, %v8060
        %v8221 = vpack.c.b16 %v8065, %v8061
        %v8222 = vpack.c.b16 %v8066, %v8062
        %v8223 = vpack.c.b16 %v8071, %v8067
        %v8224 = vpack.c.b16 %v8072, %v8068
        %v8225 = vpack.c.b16 %v8073, %v8069
        %v8226 = vpack.c.b16 %v8074, %v8070
        %v8227 = vpack.c.b16 %v8079, %v8075
        %v8228 = vpack.c.b16 %v8080, %v8076
        %v8229 = vpack.c.b16 %v8081, %v8077
        %v8230 = vpack.c.b16 %v8082, %v8078
        %v8231 = vpack.c.b16 %v8087, %v8083
        %v8232 = vpack.c.b16 %v8088, %v8084
        %v8233 = vpack.c.b16 %v8089, %v8085
        %v8234 = vpack.c.b16 %v8090, %v8086
        %v8235 = vpack.c.b16 %v8095, %v8091
        %v8236 = vpack.c.b16 %v8096, %v8092
        %v8237 = vpack.c.b16 %v8097, %v8093
        %v8238 = vpack.c.b16 %v8098, %v8094
        %v8239 = vpack.c.b16 %v8103, %v8099
        %v8240 = vpack.c.b16 %v8104, %v8100
        %v8241 = vpack.c.b16 %v8105, %v8101
        %v8242 = vpack.c.b16 %v8106, %v8102
        %v8243 = vpack.c.b16 %v8111, %v8107
        %v8244 = vpack.c.b16 %v8112, %v8108
        %v8245 = vpack.c.b16 %v8113, %v8109
        %v8246 = vpack.c.b16 %v8114, %v8110
        %v8247 = vpack.c.b16 %v8119, %v8115
        %v8248 = vpack.c.b16 %v8120, %v8116
        %v8249 = vpack.c.b16 %v8121, %v8117
        %v8250 = vpack.c.b16 %v8122, %v8118
        %8379 = vmatprep.subr.bf16.mxu0 %v8124
        %8380 = vmatpush1.bf16.msra.mxu0 %v8123
        %8381 = vmatprep.subr.bf16.mxu0 %v8128
        %8382 = vmatpush1.bf16.msra.mxu0 %v8127
        %8383 = vmatprep.subr.bf16.mxu0 %v8132
        %8384 = vmatpush1.bf16.msra.mxu0 %v8131
        %8385 = vmatprep.subr.bf16.mxu0 %v8136
        %8386 = vmatpush1.bf16.msra.mxu0 %v8135
        %8387 = vmatprep.subr.bf16.mxu0 %v8140
        %8388 = vmatpush1.bf16.msra.mxu0 %v8139
        %8389 = vmatprep.subr.bf16.mxu0 %v8144
        %8390 = vmatpush1.bf16.msra.mxu0 %v8143
        %8391 = vmatprep.subr.bf16.mxu0 %v8148
        %8392 = vmatpush1.bf16.msra.mxu0 %v8147
        %8393 = vmatprep.subr.bf16.mxu0 %v8152
        %8394 = vmatpush1.bf16.msra.mxu0 %v8151
        %8395 = vmatprep.subr.bf16.mxu0 %v8156
        %8396 = vmatpush1.bf16.msra.mxu0 %v8155
        %8397 = vmatprep.subr.bf16.mxu0 %v8160
        %8398 = vmatpush1.bf16.msra.mxu0 %v8159
        %8399 = vmatprep.subr.bf16.mxu0 %v8164
        %8400 = vmatpush1.bf16.msra.mxu0 %v8163
        %8401 = vmatprep.subr.bf16.mxu0 %v8168
        %8402 = vmatpush1.bf16.msra.mxu0 %v8167
        %8403 = vmatprep.subr.bf16.mxu0 %v8172
        %8404 = vmatpush1.bf16.msra.mxu0 %v8171
        %8405 = vmatprep.subr.bf16.mxu0 %v8176
        %8406 = vmatpush1.bf16.msra.mxu0 %v8175
        %8407 = vmatprep.subr.bf16.mxu0 %v8180
        %8408 = vmatpush1.bf16.msra.mxu0 %v8179
        %8409 = vmatprep.subr.bf16.mxu0 %v8184
        %8410 = vmatpush1.bf16.msra.mxu0 %v8183
        %8411 = vmatprep.mubr.bf16.mxu0 %v7700
        %8412 = vmatmul.mubr.bf16.gmra.mrb[0].mxu0 %v7683
        %v8413 = vpop.f32.mrb[0].mxu0
        %v8414 = vadd.f32 0.0, %v8413
        %v8415 = vpop.f32.mrb[0].mxu0
        %v8416 = vadd.f32 0.0, %v8415
        %v8417 = vpop.f32.mrb[0].mxu0
        %v8418 = vadd.f32 0.0, %v8417
        %v8419 = vpop.f32.mrb[0].mxu0
        %v8420 = vadd.f32 0.0, %v8419
        %8421 = vdwg.mxu0
        %8422 = vmatprep.subr.bf16.mxu0 %v8188
        %8423 = vmatpush1.bf16.msra.mxu0 %v8187
        %8424 = vmatprep.subr.bf16.mxu0 %v8192
        %8425 = vmatpush1.bf16.msra.mxu0 %v8191
        %8426 = vmatprep.subr.bf16.mxu0 %v8196
        %8427 = vmatpush1.bf16.msra.mxu0 %v8195
        %8428 = vmatprep.subr.bf16.mxu0 %v8200
        %8429 = vmatpush1.bf16.msra.mxu0 %v8199
        %8430 = vmatprep.subr.bf16.mxu0 %v8204
        %8431 = vmatpush1.bf16.msra.mxu0 %v8203
        %8432 = vmatprep.subr.bf16.mxu0 %v8208
        %8433 = vmatpush1.bf16.msra.mxu0 %v8207
        %8434 = vmatprep.subr.bf16.mxu0 %v8212
        %8435 = vmatpush1.bf16.msra.mxu0 %v8211
        %8436 = vmatprep.subr.bf16.mxu0 %v8216
        %8437 = vmatpush1.bf16.msra.mxu0 %v8215
        %8438 = vmatprep.subr.bf16.mxu0 %v8220
        %8439 = vmatpush1.bf16.msra.mxu0 %v8219
        %8440 = vmatprep.subr.bf16.mxu0 %v8224
        %8441 = vmatpush1.bf16.msra.mxu0 %v8223
        %8442 = vmatprep.subr.bf16.mxu0 %v8228
        %8443 = vmatpush1.bf16.msra.mxu0 %v8227
        %8444 = vmatprep.subr.bf16.mxu0 %v8232
        %8445 = vmatpush1.bf16.msra.mxu0 %v8231
        %8446 = vmatprep.subr.bf16.mxu0 %v8236
        %8447 = vmatpush1.bf16.msra.mxu0 %v8235
        %8448 = vmatprep.subr.bf16.mxu0 %v8240
        %8449 = vmatpush1.bf16.msra.mxu0 %v8239
        %8450 = vmatprep.subr.bf16.mxu0 %v8244
        %8451 = vmatpush1.bf16.msra.mxu0 %v8243
        %8452 = vmatprep.subr.bf16.mxu0 %v8248
        %8453 = vmatpush1.bf16.msra.mxu0 %v8247
        %8454 = vmatprep.mubr.bf16.mxu0 %v7734
        %8455 = vmatmul.mubr.bf16.gmra.mrb[0].mxu0 %v7717
        %v8456 = vpop.f32.mrb[0].mxu0
        %v8457 = vadd.f32 %v8414, %v8456
        %v8458 = vpop.f32.mrb[0].mxu0
        %v8459 = vadd.f32 %v8416, %v8458
        %v8460 = vpop.f32.mrb[0].mxu0
        %v8461 = vadd.f32 %v8418, %v8460
        %v8462 = vpop.f32.mrb[0].mxu0
        %v8463 = vadd.f32 %v8420, %v8462
        %8464 = vdwg.mxu0
        %8465 = vmatprep.subr.bf16.mxu0 %v8126
        %8466 = vmatpush1.bf16.msra.mxu0 %v8125
        %8467 = vmatprep.subr.bf16.mxu0 %v8130
        %8468 = vmatpush1.bf16.msra.mxu0 %v8129
        %8469 = vmatprep.subr.bf16.mxu0 %v8134
        %8470 = vmatpush1.bf16.msra.mxu0 %v8133
        %8471 = vmatprep.subr.bf16.mxu0 %v8138
        %8472 = vmatpush1.bf16.msra.mxu0 %v8137
        %8473 = vmatprep.subr.bf16.mxu0 %v8142
        %8474 = vmatpush1.bf16.msra.mxu0 %v8141
        %8475 = vmatprep.subr.bf16.mxu0 %v8146
        %8476 = vmatpush1.bf16.msra.mxu0 %v8145
        %8477 = vmatprep.subr.bf16.mxu0 %v8150
        %8478 = vmatpush1.bf16.msra.mxu0 %v8149
        %8479 = vmatprep.subr.bf16.mxu0 %v8154
        %8480 = vmatpush1.bf16.msra.mxu0 %v8153
        %8481 = vmatprep.subr.bf16.mxu0 %v8158
        %8482 = vmatpush1.bf16.msra.mxu0 %v8157
        %8483 = vmatprep.subr.bf16.mxu0 %v8162
        %8484 = vmatpush1.bf16.msra.mxu0 %v8161
        %8485 = vmatprep.subr.bf16.mxu0 %v8166
        %8486 = vmatpush1.bf16.msra.mxu0 %v8165
        %8487 = vmatprep.subr.bf16.mxu0 %v8170
        %8488 = vmatpush1.bf16.msra.mxu0 %v8169
        %8489 = vmatprep.subr.bf16.mxu0 %v8174
        %8490 = vmatpush1.bf16.msra.mxu0 %v8173
        %8491 = vmatprep.subr.bf16.mxu0 %v8178
        %8492 = vmatpush1.bf16.msra.mxu0 %v8177
        %8493 = vmatprep.subr.bf16.mxu0 %v8182
        %8494 = vmatpush1.bf16.msra.mxu0 %v8181
        %8495 = vmatprep.subr.bf16.mxu0 %v8186
        %8496 = vmatpush1.bf16.msra.mxu0 %v8185
        %8497 = vmatprep.mubr.bf16.mxu0 %v7700
        %8498 = vmatmul.mubr.bf16.gmra.mrb[0].mxu0 %v7683
        %v8499 = vpop.f32.mrb[0].mxu0
        %v8500 = vadd.f32 0.0, %v8499
        %v8501 = vpop.f32.mrb[0].mxu0
        %v8502 = vadd.f32 0.0, %v8501
        %v8503 = vpop.f32.mrb[0].mxu0
        %v8504 = vadd.f32 0.0, %v8503
        %v8505 = vpop.f32.mrb[0].mxu0
        %v8506 = vadd.f32 0.0, %v8505
        %8507 = vdwg.mxu0
        %8508 = vmatprep.subr.bf16.mxu0 %v8190
        %8509 = vmatpush1.bf16.msra.mxu0 %v8189
        %8510 = vmatprep.subr.bf16.mxu0 %v8194
        %8511 = vmatpush1.bf16.msra.mxu0 %v8193
        %8512 = vmatprep.subr.bf16.mxu0 %v8198
        %8513 = vmatpush1.bf16.msra.mxu0 %v8197
        %8514 = vmatprep.subr.bf16.mxu0 %v8202
        %8515 = vmatpush1.bf16.msra.mxu0 %v8201
        %8516 = vmatprep.subr.bf16.mxu0 %v8206
        %8517 = vmatpush1.bf16.msra.mxu0 %v8205
        %8518 = vmatprep.subr.bf16.mxu0 %v8210
        %8519 = vmatpush1.bf16.msra.mxu0 %v8209
        %8520 = vmatprep.subr.bf16.mxu0 %v8214
        %8521 = vmatpush1.bf16.msra.mxu0 %v8213
        %8522 = vmatprep.subr.bf16.mxu0 %v8218
        %8523 = vmatpush1.bf16.msra.mxu0 %v8217
        %8524 = vmatprep.subr.bf16.mxu0 %v8222
        %8525 = vmatpush1.bf16.msra.mxu0 %v8221
        %8526 = vmatprep.subr.bf16.mxu0 %v8226
        %8527 = vmatpush1.bf16.msra.mxu0 %v8225
        %8528 = vmatprep.subr.bf16.mxu0 %v8230
        %8529 = vmatpush1.bf16.msra.mxu0 %v8229
        %8530 = vmatprep.subr.bf16.mxu0 %v8234
        %8531 = vmatpush1.bf16.msra.mxu0 %v8233
        %8532 = vmatprep.subr.bf16.mxu0 %v8238
        %8533 = vmatpush1.bf16.msra.mxu0 %v8237
        %8534 = vmatprep.subr.bf16.mxu0 %v8242
        %8535 = vmatpush1.bf16.msra.mxu0 %v8241
        %8536 = vmatprep.subr.bf16.mxu0 %v8246
        %8537 = vmatpush1.bf16.msra.mxu0 %v8245
        %8538 = vmatprep.subr.bf16.mxu0 %v8250
        %8539 = vmatpush1.bf16.msra.mxu0 %v8249
        %8540 = vmatprep.mubr.bf16.mxu0 %v7734
        %8541 = vmatmul.mubr.bf16.gmra.mrb[0].mxu0 %v7717
        %v8542 = vpop.f32.mrb[0].mxu0
        %v8543 = vadd.f32 %v8500, %v8542
        %v8544 = vpop.f32.mrb[0].mxu0
        %v8545 = vadd.f32 %v8502, %v8544
        %v8546 = vpop.f32.mrb[0].mxu0
        %v8547 = vadd.f32 %v8504, %v8546
        %v8548 = vpop.f32.mrb[0].mxu0
        %v8549 = vadd.f32 %v8506, %v8548
        %8550 = vdwg.mxu0
        %v8551 = vadd.f32 %v7518, %v8457
        %v8552 = vadd.f32 %v7519, %v8459
        %v8553 = vadd.f32 %v7520, %v8543
        %v8554 = vadd.f32 %v7521, %v8545
        %v8555 = vadd.f32 %v7522, %v8461
        %v8556 = vadd.f32 %v7523, %v8463
        %v8557 = vadd.f32 %v7524, %v8547
        %v8558 = vadd.f32 %v7525, %v8549
        %v8559 = vld [vmem:[#allocation3] sm:$0xcc]
        %v8560 = vld [vmem:[#allocation3 + $0x8] sm:$0xcc]
        %s8561 = scalar_lea.vmem [#allocation10], 4096
        %v8562 = vld [vmem:[%s8561] sm:$0xff]
        %v8563 = vld [vmem:[%s8561 + $0x8] sm:$0xff]
        %v8564 = vld [vmem:[%s8561 + $0x10] sm:$0xff]
        %v8565 = vld [vmem:[%s8561 + $0x18] sm:$0xff]
        %v8566 = vld [vmem:[%s8561 + $0x20] sm:$0xff]
        %v8567 = vld [vmem:[%s8561 + $0x28] sm:$0xff]
        %v8568 = vld [vmem:[%s8561 + $0x30] sm:$0xff]
        %v8569 = vld [vmem:[%s8561 + $0x38] sm:$0xff]
        %v8570 = vld [vmem:[%s8561 + $0x40] sm:$0xff]
        %v8571 = vld [vmem:[%s8561 + $0x48] sm:$0xff]
        %v8572 = vld [vmem:[%s8561 + $0x50] sm:$0xff]
        %v8573 = vld [vmem:[%s8561 + $0x58] sm:$0xff]
        %v8574 = vld [vmem:[%s8561 + $0x60] sm:$0xff]
        %v8575 = vld [vmem:[%s8561 + $0x68] sm:$0xff]
        %v8576 = vld [vmem:[%s8561 + $0x70] sm:$0xff]
        %v8577 = vld [vmem:[%s8561 + $0x78] sm:$0xff]
        %v8578 = vld [vmem:[%s8561 + $0x80] sm:$0xff]
        %v8579 = vld [vmem:[%s8561 + $0x88] sm:$0xff]
        %v8580 = vld [vmem:[%s8561 + $0x90] sm:$0xff]
        %v8581 = vld [vmem:[%s8561 + $0x98] sm:$0xff]
        %v8582 = vld [vmem:[%s8561 + $0xa0] sm:$0xff]
        %v8583 = vld [vmem:[%s8561 + $0xa8] sm:$0xff]
        %v8584 = vld [vmem:[%s8561 + $0xb0] sm:$0xff]
        %v8585 = vld [vmem:[%s8561 + $0xb8] sm:$0xff]
        %v8586 = vld [vmem:[%s8561 + $0xc0] sm:$0xff]
        %v8587 = vld [vmem:[%s8561 + $0xc8] sm:$0xff]
        %v8588 = vld [vmem:[%s8561 + $0xd0] sm:$0xff]
        %v8589 = vld [vmem:[%s8561 + $0xd8] sm:$0xff]
        %v8590 = vld [vmem:[%s8561 + $0xe0] sm:$0xff]
        %v8591 = vld [vmem:[%s8561 + $0xe8] sm:$0xff]
        %v8592 = vld [vmem:[%s8561 + $0xf0] sm:$0xff]
        %v8593 = vld [vmem:[%s8561 + $0xf8] sm:$0xff]
        %v8594 = vld [vmem:[%s8561 + $0x100] sm:$0xff]
        %v8595 = vld [vmem:[%s8561 + $0x108] sm:$0xff]
        %v8596 = vld [vmem:[%s8561 + $0x110] sm:$0xff]
        %v8597 = vld [vmem:[%s8561 + $0x118] sm:$0xff]
        %v8598 = vld [vmem:[%s8561 + $0x120] sm:$0xff]
        %v8599 = vld [vmem:[%s8561 + $0x128] sm:$0xff]
        %v8600 = vld [vmem:[%s8561 + $0x130] sm:$0xff]
        %v8601 = vld [vmem:[%s8561 + $0x138] sm:$0xff]
        %v8602 = vld [vmem:[%s8561 + $0x140] sm:$0xff]
        %v8603 = vld [vmem:[%s8561 + $0x148] sm:$0xff]
        %v8604 = vld [vmem:[%s8561 + $0x150] sm:$0xff]
        %v8605 = vld [vmem:[%s8561 + $0x158] sm:$0xff]
        %v8606 = vld [vmem:[%s8561 + $0x160] sm:$0xff]
        %v8607 = vld [vmem:[%s8561 + $0x168] sm:$0xff]
        %v8608 = vld [vmem:[%s8561 + $0x170] sm:$0xff]
        %v8609 = vld [vmem:[%s8561 + $0x178] sm:$0xff]
        %v8610 = vld [vmem:[%s8561 + $0x180] sm:$0xff]
        %v8611 = vld [vmem:[%s8561 + $0x188] sm:$0xff]
        %v8612 = vld [vmem:[%s8561 + $0x190] sm:$0xff]
        %v8613 = vld [vmem:[%s8561 + $0x198] sm:$0xff]
        %v8614 = vld [vmem:[%s8561 + $0x1a0] sm:$0xff]
        %v8615 = vld [vmem:[%s8561 + $0x1a8] sm:$0xff]
        %v8616 = vld [vmem:[%s8561 + $0x1b0] sm:$0xff]
        %v8617 = vld [vmem:[%s8561 + $0x1b8] sm:$0xff]
        %v8618 = vld [vmem:[%s8561 + $0x1c0] sm:$0xff]
        %v8619 = vld [vmem:[%s8561 + $0x1c8] sm:$0xff]
        %v8620 = vld [vmem:[%s8561 + $0x1d0] sm:$0xff]
        %v8621 = vld [vmem:[%s8561 + $0x1d8] sm:$0xff]
        %v8622 = vld [vmem:[%s8561 + $0x1e0] sm:$0xff]
        %v8623 = vld [vmem:[%s8561 + $0x1e8] sm:$0xff]
        %v8624 = vld [vmem:[%s8561 + $0x1f0] sm:$0xff]
        %v8625 = vld [vmem:[%s8561 + $0x1f8] sm:$0xff]
        %v8626 = vld [vmem:[%s8561 + $0x200] sm:$0xff]
        %v8627 = vld [vmem:[%s8561 + $0x208] sm:$0xff]
        %v8628 = vld [vmem:[%s8561 + $0x210] sm:$0xff]
        %v8629 = vld [vmem:[%s8561 + $0x218] sm:$0xff]
        %v8630 = vld [vmem:[%s8561 + $0x220] sm:$0xff]
        %v8631 = vld [vmem:[%s8561 + $0x228] sm:$0xff]
        %v8632 = vld [vmem:[%s8561 + $0x230] sm:$0xff]
        %v8633 = vld [vmem:[%s8561 + $0x238] sm:$0xff]
        %v8634 = vld [vmem:[%s8561 + $0x240] sm:$0xff]
        %v8635 = vld [vmem:[%s8561 + $0x248] sm:$0xff]
        %v8636 = vld [vmem:[%s8561 + $0x250] sm:$0xff]
        %v8637 = vld [vmem:[%s8561 + $0x258] sm:$0xff]
        %v8638 = vld [vmem:[%s8561 + $0x260] sm:$0xff]
        %v8639 = vld [vmem:[%s8561 + $0x268] sm:$0xff]
        %v8640 = vld [vmem:[%s8561 + $0x270] sm:$0xff]
        %v8641 = vld [vmem:[%s8561 + $0x278] sm:$0xff]
        %v8642 = vld [vmem:[%s8561 + $0x280] sm:$0xff]
        %v8643 = vld [vmem:[%s8561 + $0x288] sm:$0xff]
        %v8644 = vld [vmem:[%s8561 + $0x290] sm:$0xff]
        %v8645 = vld [vmem:[%s8561 + $0x298] sm:$0xff]
        %v8646 = vld [vmem:[%s8561 + $0x2a0] sm:$0xff]
        %v8647 = vld [vmem:[%s8561 + $0x2a8] sm:$0xff]
        %v8648 = vld [vmem:[%s8561 + $0x2b0] sm:$0xff]
        %v8649 = vld [vmem:[%s8561 + $0x2b8] sm:$0xff]
        %v8650 = vld [vmem:[%s8561 + $0x2c0] sm:$0xff]
        %v8651 = vld [vmem:[%s8561 + $0x2c8] sm:$0xff]
        %v8652 = vld [vmem:[%s8561 + $0x2d0] sm:$0xff]
        %v8653 = vld [vmem:[%s8561 + $0x2d8] sm:$0xff]
        %v8654 = vld [vmem:[%s8561 + $0x2e0] sm:$0xff]
        %v8655 = vld [vmem:[%s8561 + $0x2e8] sm:$0xff]
        %v8656 = vld [vmem:[%s8561 + $0x2f0] sm:$0xff]
        %v8657 = vld [vmem:[%s8561 + $0x2f8] sm:$0xff]
        %v8658 = vld [vmem:[%s8561 + $0x300] sm:$0xff]
        %v8659 = vld [vmem:[%s8561 + $0x308] sm:$0xff]
        %v8660 = vld [vmem:[%s8561 + $0x310] sm:$0xff]
        %v8661 = vld [vmem:[%s8561 + $0x318] sm:$0xff]
        %v8662 = vld [vmem:[%s8561 + $0x320] sm:$0xff]
        %v8663 = vld [vmem:[%s8561 + $0x328] sm:$0xff]
        %v8664 = vld [vmem:[%s8561 + $0x330] sm:$0xff]
        %v8665 = vld [vmem:[%s8561 + $0x338] sm:$0xff]
        %v8666 = vld [vmem:[%s8561 + $0x340] sm:$0xff]
        %v8667 = vld [vmem:[%s8561 + $0x348] sm:$0xff]
        %v8668 = vld [vmem:[%s8561 + $0x350] sm:$0xff]
        %v8669 = vld [vmem:[%s8561 + $0x358] sm:$0xff]
        %v8670 = vld [vmem:[%s8561 + $0x360] sm:$0xff]
        %v8671 = vld [vmem:[%s8561 + $0x368] sm:$0xff]
        %v8672 = vld [vmem:[%s8561 + $0x370] sm:$0xff]
        %v8673 = vld [vmem:[%s8561 + $0x378] sm:$0xff]
        %v8674 = vld [vmem:[%s8561 + $0x380] sm:$0xff]
        %v8675 = vld [vmem:[%s8561 + $0x388] sm:$0xff]
        %v8676 = vld [vmem:[%s8561 + $0x390] sm:$0xff]
        %v8677 = vld [vmem:[%s8561 + $0x398] sm:$0xff]
        %v8678 = vld [vmem:[%s8561 + $0x3a0] sm:$0xff]
        %v8679 = vld [vmem:[%s8561 + $0x3a8] sm:$0xff]
        %v8680 = vld [vmem:[%s8561 + $0x3b0] sm:$0xff]
        %v8681 = vld [vmem:[%s8561 + $0x3b8] sm:$0xff]
        %v8682 = vld [vmem:[%s8561 + $0x3c0] sm:$0xff]
        %v8683 = vld [vmem:[%s8561 + $0x3c8] sm:$0xff]
        %v8684 = vld [vmem:[%s8561 + $0x3d0] sm:$0xff]
        %v8685 = vld [vmem:[%s8561 + $0x3d8] sm:$0xff]
        %v8686 = vld [vmem:[%s8561 + $0x3e0] sm:$0xff]
        %v8687 = vld [vmem:[%s8561 + $0x3e8] sm:$0xff]
        %v8688 = vld [vmem:[%s8561 + $0x3f0] sm:$0xff]
        %v8689 = vld [vmem:[%s8561 + $0x3f8] sm:$0xff]
        %v8692 = vunpack.c.l.b16 %v8559
        %v8693 = vunpack.c.h.b16 %v8559
        %v8694 = vunpack.c.l.b16 %v8560
        %v8695 = vunpack.c.h.b16 %v8560
        %v8696 = vpack.c.b16 %v4853, %v8692
        %v8697 = vpack.c.b16 %v4854, %v8693
        %v8698 = vpack.c.b16 %v4855, %v8694
        %v8699 = vpack.c.b16 %v4856, %v8695
        %v8700 = vrot.slane %v8696, 2
        %v8701 = vrot.slane %v7663, 2
        %v8702 = vsel %vm2751, %v8700, %v8701
        %v8703 = vrot.slane %v8697, 2
        %v8704 = vrot.slane %v7664, 2
        %v8705 = vsel %vm2751, %v8703, %v8704
        %v8706 = vrot.slane %v8698, 2
        %v8707 = vrot.slane %v7665, 2
        %v8708 = vsel %vm2751, %v8706, %v8707
        %v8709 = vrot.slane %v8699, 2
        %v8710 = vrot.slane %v7666, 2
        %v8711 = vsel %vm2751, %v8709, %v8710
        %v8844 = vunpack.c.l.b16 %v8562
        %v8845 = vunpack.c.h.b16 %v8562
        %v8846 = vunpack.c.l.b16 %v8563
        %v8847 = vunpack.c.h.b16 %v8563
        %v8848 = vunpack.c.l.b16 %v8564
        %v8849 = vunpack.c.h.b16 %v8564
        %v8850 = vunpack.c.l.b16 %v8565
        %v8851 = vunpack.c.h.b16 %v8565
        %v8852 = vunpack.c.l.b16 %v8566
        %v8853 = vunpack.c.h.b16 %v8566
        %v8854 = vunpack.c.l.b16 %v8567
        %v8855 = vunpack.c.h.b16 %v8567
        %v8856 = vunpack.c.l.b16 %v8568
        %v8857 = vunpack.c.h.b16 %v8568
        %v8858 = vunpack.c.l.b16 %v8569
        %v8859 = vunpack.c.h.b16 %v8569
        %v8860 = vunpack.c.l.b16 %v8570
        %v8861 = vunpack.c.h.b16 %v8570
        %v8862 = vunpack.c.l.b16 %v8571
        %v8863 = vunpack.c.h.b16 %v8571
        %v8864 = vunpack.c.l.b16 %v8572
        %v8865 = vunpack.c.h.b16 %v8572
        %v8866 = vunpack.c.l.b16 %v8573
        %v8867 = vunpack.c.h.b16 %v8573
        %v8868 = vunpack.c.l.b16 %v8574
        %v8869 = vunpack.c.h.b16 %v8574
        %v8870 = vunpack.c.l.b16 %v8575
        %v8871 = vunpack.c.h.b16 %v8575
        %v8872 = vunpack.c.l.b16 %v8576
        %v8873 = vunpack.c.h.b16 %v8576
        %v8874 = vunpack.c.l.b16 %v8577
        %v8875 = vunpack.c.h.b16 %v8577
        %v8876 = vunpack.c.l.b16 %v8578
        %v8877 = vunpack.c.h.b16 %v8578
        %v8878 = vunpack.c.l.b16 %v8579
        %v8879 = vunpack.c.h.b16 %v8579
        %v8880 = vunpack.c.l.b16 %v8580
        %v8881 = vunpack.c.h.b16 %v8580
        %v8882 = vunpack.c.l.b16 %v8581
        %v8883 = vunpack.c.h.b16 %v8581
        %v8884 = vunpack.c.l.b16 %v8582
        %v8885 = vunpack.c.h.b16 %v8582
        %v8886 = vunpack.c.l.b16 %v8583
        %v8887 = vunpack.c.h.b16 %v8583
        %v8888 = vunpack.c.l.b16 %v8584
        %v8889 = vunpack.c.h.b16 %v8584
        %v8890 = vunpack.c.l.b16 %v8585
        %v8891 = vunpack.c.h.b16 %v8585
        %v8892 = vunpack.c.l.b16 %v8586
        %v8893 = vunpack.c.h.b16 %v8586
        %v8894 = vunpack.c.l.b16 %v8587
        %v8895 = vunpack.c.h.b16 %v8587
        %v8896 = vunpack.c.l.b16 %v8588
        %v8897 = vunpack.c.h.b16 %v8588
        %v8898 = vunpack.c.l.b16 %v8589
        %v8899 = vunpack.c.h.b16 %v8589
        %v8900 = vunpack.c.l.b16 %v8590
        %v8901 = vunpack.c.h.b16 %v8590
        %v8902 = vunpack.c.l.b16 %v8591
        %v8903 = vunpack.c.h.b16 %v8591
        %v8904 = vunpack.c.l.b16 %v8592
        %v8905 = vunpack.c.h.b16 %v8592
        %v8906 = vunpack.c.l.b16 %v8593
        %v8907 = vunpack.c.h.b16 %v8593
        %v8908 = vunpack.c.l.b16 %v8594
        %v8909 = vunpack.c.h.b16 %v8594
        %v8910 = vunpack.c.l.b16 %v8595
        %v8911 = vunpack.c.h.b16 %v8595
        %v8912 = vunpack.c.l.b16 %v8596
        %v8913 = vunpack.c.h.b16 %v8596
        %v8914 = vunpack.c.l.b16 %v8597
        %v8915 = vunpack.c.h.b16 %v8597
        %v8916 = vunpack.c.l.b16 %v8598
        %v8917 = vunpack.c.h.b16 %v8598
        %v8918 = vunpack.c.l.b16 %v8599
        %v8919 = vunpack.c.h.b16 %v8599
        %v8920 = vunpack.c.l.b16 %v8600
        %v8921 = vunpack.c.h.b16 %v8600
        %v8922 = vunpack.c.l.b16 %v8601
        %v8923 = vunpack.c.h.b16 %v8601
        %v8924 = vunpack.c.l.b16 %v8602
        %v8925 = vunpack.c.h.b16 %v8602
        %v8926 = vunpack.c.l.b16 %v8603
        %v8927 = vunpack.c.h.b16 %v8603
        %v8928 = vunpack.c.l.b16 %v8604
        %v8929 = vunpack.c.h.b16 %v8604
        %v8930 = vunpack.c.l.b16 %v8605
        %v8931 = vunpack.c.h.b16 %v8605
        %v8932 = vunpack.c.l.b16 %v8606
        %v8933 = vunpack.c.h.b16 %v8606
        %v8934 = vunpack.c.l.b16 %v8607
        %v8935 = vunpack.c.h.b16 %v8607
        %v8936 = vunpack.c.l.b16 %v8608
        %v8937 = vunpack.c.h.b16 %v8608
        %v8938 = vunpack.c.l.b16 %v8609
        %v8939 = vunpack.c.h.b16 %v8609
        %v8940 = vunpack.c.l.b16 %v8610
        %v8941 = vunpack.c.h.b16 %v8610
        %v8942 = vunpack.c.l.b16 %v8611
        %v8943 = vunpack.c.h.b16 %v8611
        %v8944 = vunpack.c.l.b16 %v8612
        %v8945 = vunpack.c.h.b16 %v8612
        %v8946 = vunpack.c.l.b16 %v8613
        %v8947 = vunpack.c.h.b16 %v8613
        %v8948 = vunpack.c.l.b16 %v8614
        %v8949 = vunpack.c.h.b16 %v8614
        %v8950 = vunpack.c.l.b16 %v8615
        %v8951 = vunpack.c.h.b16 %v8615
        %v8952 = vunpack.c.l.b16 %v8616
        %v8953 = vunpack.c.h.b16 %v8616
        %v8954 = vunpack.c.l.b16 %v8617
        %v8955 = vunpack.c.h.b16 %v8617
        %v8956 = vunpack.c.l.b16 %v8618
        %v8957 = vunpack.c.h.b16 %v8618
        %v8958 = vunpack.c.l.b16 %v8619
        %v8959 = vunpack.c.h.b16 %v8619
        %v8960 = vunpack.c.l.b16 %v8620
        %v8961 = vunpack.c.h.b16 %v8620
        %v8962 = vunpack.c.l.b16 %v8621
        %v8963 = vunpack.c.h.b16 %v8621
        %v8964 = vunpack.c.l.b16 %v8622
        %v8965 = vunpack.c.h.b16 %v8622
        %v8966 = vunpack.c.l.b16 %v8623
        %v8967 = vunpack.c.h.b16 %v8623
        %v8968 = vunpack.c.l.b16 %v8624
        %v8969 = vunpack.c.h.b16 %v8624
        %v8970 = vunpack.c.l.b16 %v8625
        %v8971 = vunpack.c.h.b16 %v8625
        %v8972 = vunpack.c.l.b16 %v8626
        %v8973 = vunpack.c.h.b16 %v8626
        %v8974 = vunpack.c.l.b16 %v8627
        %v8975 = vunpack.c.h.b16 %v8627
        %v8976 = vunpack.c.l.b16 %v8628
        %v8977 = vunpack.c.h.b16 %v8628
        %v8978 = vunpack.c.l.b16 %v8629
        %v8979 = vunpack.c.h.b16 %v8629
        %v8980 = vunpack.c.l.b16 %v8630
        %v8981 = vunpack.c.h.b16 %v8630
        %v8982 = vunpack.c.l.b16 %v8631
        %v8983 = vunpack.c.h.b16 %v8631
        %v8984 = vunpack.c.l.b16 %v8632
        %v8985 = vunpack.c.h.b16 %v8632
        %v8986 = vunpack.c.l.b16 %v8633
        %v8987 = vunpack.c.h.b16 %v8633
        %v8988 = vunpack.c.l.b16 %v8634
        %v8989 = vunpack.c.h.b16 %v8634
        %v8990 = vunpack.c.l.b16 %v8635
        %v8991 = vunpack.c.h.b16 %v8635
        %v8992 = vunpack.c.l.b16 %v8636
        %v8993 = vunpack.c.h.b16 %v8636
        %v8994 = vunpack.c.l.b16 %v8637
        %v8995 = vunpack.c.h.b16 %v8637
        %v8996 = vunpack.c.l.b16 %v8638
        %v8997 = vunpack.c.h.b16 %v8638
        %v8998 = vunpack.c.l.b16 %v8639
        %v8999 = vunpack.c.h.b16 %v8639
        %v9000 = vunpack.c.l.b16 %v8640
        %v9001 = vunpack.c.h.b16 %v8640
        %v9002 = vunpack.c.l.b16 %v8641
        %v9003 = vunpack.c.h.b16 %v8641
        %v9004 = vunpack.c.l.b16 %v8642
        %v9005 = vunpack.c.h.b16 %v8642
        %v9006 = vunpack.c.l.b16 %v8643
        %v9007 = vunpack.c.h.b16 %v8643
        %v9008 = vunpack.c.l.b16 %v8644
        %v9009 = vunpack.c.h.b16 %v8644
        %v9010 = vunpack.c.l.b16 %v8645
        %v9011 = vunpack.c.h.b16 %v8645
        %v9012 = vunpack.c.l.b16 %v8646
        %v9013 = vunpack.c.h.b16 %v8646
        %v9014 = vunpack.c.l.b16 %v8647
        %v9015 = vunpack.c.h.b16 %v8647
        %v9016 = vunpack.c.l.b16 %v8648
        %v9017 = vunpack.c.h.b16 %v8648
        %v9018 = vunpack.c.l.b16 %v8649
        %v9019 = vunpack.c.h.b16 %v8649
        %v9020 = vunpack.c.l.b16 %v8650
        %v9021 = vunpack.c.h.b16 %v8650
        %v9022 = vunpack.c.l.b16 %v8651
        %v9023 = vunpack.c.h.b16 %v8651
        %v9024 = vunpack.c.l.b16 %v8652
        %v9025 = vunpack.c.h.b16 %v8652
        %v9026 = vunpack.c.l.b16 %v8653
        %v9027 = vunpack.c.h.b16 %v8653
        %v9028 = vunpack.c.l.b16 %v8654
        %v9029 = vunpack.c.h.b16 %v8654
        %v9030 = vunpack.c.l.b16 %v8655
        %v9031 = vunpack.c.h.b16 %v8655
        %v9032 = vunpack.c.l.b16 %v8656
        %v9033 = vunpack.c.h.b16 %v8656
        %v9034 = vunpack.c.l.b16 %v8657
        %v9035 = vunpack.c.h.b16 %v8657
        %v9036 = vunpack.c.l.b16 %v8658
        %v9037 = vunpack.c.h.b16 %v8658
        %v9038 = vunpack.c.l.b16 %v8659
        %v9039 = vunpack.c.h.b16 %v8659
        %v9040 = vunpack.c.l.b16 %v8660
        %v9041 = vunpack.c.h.b16 %v8660
        %v9042 = vunpack.c.l.b16 %v8661
        %v9043 = vunpack.c.h.b16 %v8661
        %v9044 = vunpack.c.l.b16 %v8662
        %v9045 = vunpack.c.h.b16 %v8662
        %v9046 = vunpack.c.l.b16 %v8663
        %v9047 = vunpack.c.h.b16 %v8663
        %v9048 = vunpack.c.l.b16 %v8664
        %v9049 = vunpack.c.h.b16 %v8664
        %v9050 = vunpack.c.l.b16 %v8665
        %v9051 = vunpack.c.h.b16 %v8665
        %v9052 = vunpack.c.l.b16 %v8666
        %v9053 = vunpack.c.h.b16 %v8666
        %v9054 = vunpack.c.l.b16 %v8667
        %v9055 = vunpack.c.h.b16 %v8667
        %v9056 = vunpack.c.l.b16 %v8668
        %v9057 = vunpack.c.h.b16 %v8668
        %v9058 = vunpack.c.l.b16 %v8669
        %v9059 = vunpack.c.h.b16 %v8669
        %v9060 = vunpack.c.l.b16 %v8670
        %v9061 = vunpack.c.h.b16 %v8670
        %v9062 = vunpack.c.l.b16 %v8671
        %v9063 = vunpack.c.h.b16 %v8671
        %v9064 = vunpack.c.l.b16 %v8672
        %v9065 = vunpack.c.h.b16 %v8672
        %v9066 = vunpack.c.l.b16 %v8673
        %v9067 = vunpack.c.h.b16 %v8673
        %v9068 = vunpack.c.l.b16 %v8674
        %v9069 = vunpack.c.h.b16 %v8674
        %v9070 = vunpack.c.l.b16 %v8675
        %v9071 = vunpack.c.h.b16 %v8675
        %v9072 = vunpack.c.l.b16 %v8676
        %v9073 = vunpack.c.h.b16 %v8676
        %v9074 = vunpack.c.l.b16 %v8677
        %v9075 = vunpack.c.h.b16 %v8677
        %v9076 = vunpack.c.l.b16 %v8678
        %v9077 = vunpack.c.h.b16 %v8678
        %v9078 = vunpack.c.l.b16 %v8679
        %v9079 = vunpack.c.h.b16 %v8679
        %v9080 = vunpack.c.l.b16 %v8680
        %v9081 = vunpack.c.h.b16 %v8680
        %v9082 = vunpack.c.l.b16 %v8681
        %v9083 = vunpack.c.h.b16 %v8681
        %v9084 = vunpack.c.l.b16 %v8682
        %v9085 = vunpack.c.h.b16 %v8682
        %v9086 = vunpack.c.l.b16 %v8683
        %v9087 = vunpack.c.h.b16 %v8683
        %v9088 = vunpack.c.l.b16 %v8684
        %v9089 = vunpack.c.h.b16 %v8684
        %v9090 = vunpack.c.l.b16 %v8685
        %v9091 = vunpack.c.h.b16 %v8685
        %v9092 = vunpack.c.l.b16 %v8686
        %v9093 = vunpack.c.h.b16 %v8686
        %v9094 = vunpack.c.l.b16 %v8687
        %v9095 = vunpack.c.h.b16 %v8687
        %v9096 = vunpack.c.l.b16 %v8688
        %v9097 = vunpack.c.h.b16 %v8688
        %v9098 = vunpack.c.l.b16 %v8689
        %v9099 = vunpack.c.h.b16 %v8689
        %v9100 = vpack.c.b16 %v8848, %v8844
        %v9101 = vpack.c.b16 %v8849, %v8845
        %v9102 = vpack.c.b16 %v8850, %v8846
        %v9103 = vpack.c.b16 %v8851, %v8847
        %v9104 = vpack.c.b16 %v8856, %v8852
        %v9105 = vpack.c.b16 %v8857, %v8853
        %v9106 = vpack.c.b16 %v8858, %v8854
        %v9107 = vpack.c.b16 %v8859, %v8855
        %v9108 = vpack.c.b16 %v8864, %v8860
        %v9109 = vpack.c.b16 %v8865, %v8861
        %v9110 = vpack.c.b16 %v8866, %v8862
        %v9111 = vpack.c.b16 %v8867, %v8863
        %v9112 = vpack.c.b16 %v8872, %v8868
        %v9113 = vpack.c.b16 %v8873, %v8869
        %v9114 = vpack.c.b16 %v8874, %v8870
        %v9115 = vpack.c.b16 %v8875, %v8871
        %v9116 = vpack.c.b16 %v8880, %v8876
        %v9117 = vpack.c.b16 %v8881, %v8877
        %v9118 = vpack.c.b16 %v8882, %v8878
        %v9119 = vpack.c.b16 %v8883, %v8879
        %v9120 = vpack.c.b16 %v8888, %v8884
        %v9121 = vpack.c.b16 %v8889, %v8885
        %v9122 = vpack.c.b16 %v8890, %v8886
        %v9123 = vpack.c.b16 %v8891, %v8887
        %v9124 = vpack.c.b16 %v8896, %v8892
        %v9125 = vpack.c.b16 %v8897, %v8893
        %v9126 = vpack.c.b16 %v8898, %v8894
        %v9127 = vpack.c.b16 %v8899, %v8895
        %v9128 = vpack.c.b16 %v8904, %v8900
        %v9129 = vpack.c.b16 %v8905, %v8901
        %v9130 = vpack.c.b16 %v8906, %v8902
        %v9131 = vpack.c.b16 %v8907, %v8903
        %v9132 = vpack.c.b16 %v8912, %v8908
        %v9133 = vpack.c.b16 %v8913, %v8909
        %v9134 = vpack.c.b16 %v8914, %v8910
        %v9135 = vpack.c.b16 %v8915, %v8911
        %v9136 = vpack.c.b16 %v8920, %v8916
        %v9137 = vpack.c.b16 %v8921, %v8917
        %v9138 = vpack.c.b16 %v8922, %v8918
        %v9139 = vpack.c.b16 %v8923, %v8919
        %v9140 = vpack.c.b16 %v8928, %v8924
        %v9141 = vpack.c.b16 %v8929, %v8925
        %v9142 = vpack.c.b16 %v8930, %v8926
        %v9143 = vpack.c.b16 %v8931, %v8927
        %v9144 = vpack.c.b16 %v8936, %v8932
        %v9145 = vpack.c.b16 %v8937, %v8933
        %v9146 = vpack.c.b16 %v8938, %v8934
        %v9147 = vpack.c.b16 %v8939, %v8935
        %v9148 = vpack.c.b16 %v8944, %v8940
        %v9149 = vpack.c.b16 %v8945, %v8941
        %v9150 = vpack.c.b16 %v8946, %v8942
        %v9151 = vpack.c.b16 %v8947, %v8943
        %v9152 = vpack.c.b16 %v8952, %v8948
        %v9153 = vpack.c.b16 %v8953, %v8949
        %v9154 = vpack.c.b16 %v8954, %v8950
        %v9155 = vpack.c.b16 %v8955, %v8951
        %v9156 = vpack.c.b16 %v8960, %v8956
        %v9157 = vpack.c.b16 %v8961, %v8957
        %v9158 = vpack.c.b16 %v8962, %v8958
        %v9159 = vpack.c.b16 %v8963, %v8959
        %v9160 = vpack.c.b16 %v8968, %v8964
        %v9161 = vpack.c.b16 %v8969, %v8965
        %v9162 = vpack.c.b16 %v8970, %v8966
        %v9163 = vpack.c.b16 %v8971, %v8967
        %v9164 = vpack.c.b16 %v8976, %v8972
        %v9165 = vpack.c.b16 %v8977, %v8973
        %v9166 = vpack.c.b16 %v8978, %v8974
        %v9167 = vpack.c.b16 %v8979, %v8975
        %v9168 = vpack.c.b16 %v8984, %v8980
        %v9169 = vpack.c.b16 %v8985, %v8981
        %v9170 = vpack.c.b16 %v8986, %v8982
        %v9171 = vpack.c.b16 %v8987, %v8983
        %v9172 = vpack.c.b16 %v8992, %v8988
        %v9173 = vpack.c.b16 %v8993, %v8989
        %v9174 = vpack.c.b16 %v8994, %v8990
        %v9175 = vpack.c.b16 %v8995, %v8991
        %v9176 = vpack.c.b16 %v9000, %v8996
        %v9177 = vpack.c.b16 %v9001, %v8997
        %v9178 = vpack.c.b16 %v9002, %v8998
        %v9179 = vpack.c.b16 %v9003, %v8999
        %v9180 = vpack.c.b16 %v9008, %v9004
        %v9181 = vpack.c.b16 %v9009, %v9005
        %v9182 = vpack.c.b16 %v9010, %v9006
        %v9183 = vpack.c.b16 %v9011, %v9007
        %v9184 = vpack.c.b16 %v9016, %v9012
        %v9185 = vpack.c.b16 %v9017, %v9013
        %v9186 = vpack.c.b16 %v9018, %v9014
        %v9187 = vpack.c.b16 %v9019, %v9015
        %v9188 = vpack.c.b16 %v9024, %v9020
        %v9189 = vpack.c.b16 %v9025, %v9021
        %v9190 = vpack.c.b16 %v9026, %v9022
        %v9191 = vpack.c.b16 %v9027, %v9023
        %v9192 = vpack.c.b16 %v9032, %v9028
        %v9193 = vpack.c.b16 %v9033, %v9029
        %v9194 = vpack.c.b16 %v9034, %v9030
        %v9195 = vpack.c.b16 %v9035, %v9031
        %v9196 = vpack.c.b16 %v9040, %v9036
        %v9197 = vpack.c.b16 %v9041, %v9037
        %v9198 = vpack.c.b16 %v9042, %v9038
        %v9199 = vpack.c.b16 %v9043, %v9039
        %v9200 = vpack.c.b16 %v9048, %v9044
        %v9201 = vpack.c.b16 %v9049, %v9045
        %v9202 = vpack.c.b16 %v9050, %v9046
        %v9203 = vpack.c.b16 %v9051, %v9047
        %v9204 = vpack.c.b16 %v9056, %v9052
        %v9205 = vpack.c.b16 %v9057, %v9053
        %v9206 = vpack.c.b16 %v9058, %v9054
        %v9207 = vpack.c.b16 %v9059, %v9055
        %v9208 = vpack.c.b16 %v9064, %v9060
        %v9209 = vpack.c.b16 %v9065, %v9061
        %v9210 = vpack.c.b16 %v9066, %v9062
        %v9211 = vpack.c.b16 %v9067, %v9063
        %v9212 = vpack.c.b16 %v9072, %v9068
        %v9213 = vpack.c.b16 %v9073, %v9069
        %v9214 = vpack.c.b16 %v9074, %v9070
        %v9215 = vpack.c.b16 %v9075, %v9071
        %v9216 = vpack.c.b16 %v9080, %v9076
        %v9217 = vpack.c.b16 %v9081, %v9077
        %v9218 = vpack.c.b16 %v9082, %v9078
        %v9219 = vpack.c.b16 %v9083, %v9079
        %v9220 = vpack.c.b16 %v9088, %v9084
        %v9221 = vpack.c.b16 %v9089, %v9085
        %v9222 = vpack.c.b16 %v9090, %v9086
        %v9223 = vpack.c.b16 %v9091, %v9087
        %v9224 = vpack.c.b16 %v9096, %v9092
        %v9225 = vpack.c.b16 %v9097, %v9093
        %v9226 = vpack.c.b16 %v9098, %v9094
        %v9227 = vpack.c.b16 %v9099, %v9095
        %9356 = vmatprep.subr.bf16.mxu0 %v9101
        %9357 = vmatpush1.bf16.msra.mxu0 %v9100
        %9358 = vmatprep.subr.bf16.mxu0 %v9105
        %9359 = vmatpush1.bf16.msra.mxu0 %v9104
        %9360 = vmatprep.subr.bf16.mxu0 %v9109
        %9361 = vmatpush1.bf16.msra.mxu0 %v9108
        %9362 = vmatprep.subr.bf16.mxu0 %v9113
        %9363 = vmatpush1.bf16.msra.mxu0 %v9112
        %9364 = vmatprep.subr.bf16.mxu0 %v9117
        %9365 = vmatpush1.bf16.msra.mxu0 %v9116
        %9366 = vmatprep.subr.bf16.mxu0 %v9121
        %9367 = vmatpush1.bf16.msra.mxu0 %v9120
        %9368 = vmatprep.subr.bf16.mxu0 %v9125
        %9369 = vmatpush1.bf16.msra.mxu0 %v9124
        %9370 = vmatprep.subr.bf16.mxu0 %v9129
        %9371 = vmatpush1.bf16.msra.mxu0 %v9128
        %9372 = vmatprep.subr.bf16.mxu0 %v9133
        %9373 = vmatpush1.bf16.msra.mxu0 %v9132
        %9374 = vmatprep.subr.bf16.mxu0 %v9137
        %9375 = vmatpush1.bf16.msra.mxu0 %v9136
        %9376 = vmatprep.subr.bf16.mxu0 %v9141
        %9377 = vmatpush1.bf16.msra.mxu0 %v9140
        %9378 = vmatprep.subr.bf16.mxu0 %v9145
        %9379 = vmatpush1.bf16.msra.mxu0 %v9144
        %9380 = vmatprep.subr.bf16.mxu0 %v9149
        %9381 = vmatpush1.bf16.msra.mxu0 %v9148
        %9382 = vmatprep.subr.bf16.mxu0 %v9153
        %9383 = vmatpush1.bf16.msra.mxu0 %v9152
        %9384 = vmatprep.subr.bf16.mxu0 %v9157
        %9385 = vmatpush1.bf16.msra.mxu0 %v9156
        %9386 = vmatprep.subr.bf16.mxu0 %v9161
        %9387 = vmatpush1.bf16.msra.mxu0 %v9160
        %9388 = vmatprep.mubr.bf16.mxu0 %v8705
        %9389 = vmatmul.mubr.bf16.gmra.mrb[0].mxu0 %v8702
        %v9390 = vpop.f32.mrb[0].mxu0
        %v9391 = vadd.f32 0.0, %v9390
        %v9392 = vpop.f32.mrb[0].mxu0
        %v9393 = vadd.f32 0.0, %v9392
        %v9394 = vpop.f32.mrb[0].mxu0
        %v9395 = vadd.f32 0.0, %v9394
        %v9396 = vpop.f32.mrb[0].mxu0
        %v9397 = vadd.f32 0.0, %v9396
        %9398 = vdwg.mxu0
        %9399 = vmatprep.subr.bf16.mxu0 %v9165
        %9400 = vmatpush1.bf16.msra.mxu0 %v9164
        %9401 = vmatprep.subr.bf16.mxu0 %v9169
        %9402 = vmatpush1.bf16.msra.mxu0 %v9168
        %9403 = vmatprep.subr.bf16.mxu0 %v9173
        %9404 = vmatpush1.bf16.msra.mxu0 %v9172
        %9405 = vmatprep.subr.bf16.mxu0 %v9177
        %9406 = vmatpush1.bf16.msra.mxu0 %v9176
        %9407 = vmatprep.subr.bf16.mxu0 %v9181
        %9408 = vmatpush1.bf16.msra.mxu0 %v9180
        %9409 = vmatprep.subr.bf16.mxu0 %v9185
        %9410 = vmatpush1.bf16.msra.mxu0 %v9184
        %9411 = vmatprep.subr.bf16.mxu0 %v9189
        %9412 = vmatpush1.bf16.msra.mxu0 %v9188
        %9413 = vmatprep.subr.bf16.mxu0 %v9193
        %9414 = vmatpush1.bf16.msra.mxu0 %v9192
        %9415 = vmatprep.subr.bf16.mxu0 %v9197
        %9416 = vmatpush1.bf16.msra.mxu0 %v9196
        %9417 = vmatprep.subr.bf16.mxu0 %v9201
        %9418 = vmatpush1.bf16.msra.mxu0 %v9200
        %9419 = vmatprep.subr.bf16.mxu0 %v9205
        %9420 = vmatpush1.bf16.msra.mxu0 %v9204
        %9421 = vmatprep.subr.bf16.mxu0 %v9209
        %9422 = vmatpush1.bf16.msra.mxu0 %v9208
        %9423 = vmatprep.subr.bf16.mxu0 %v9213
        %9424 = vmatpush1.bf16.msra.mxu0 %v9212
        %9425 = vmatprep.subr.bf16.mxu0 %v9217
        %9426 = vmatpush1.bf16.msra.mxu0 %v9216
        %9427 = vmatprep.subr.bf16.mxu0 %v9221
        %9428 = vmatpush1.bf16.msra.mxu0 %v9220
        %9429 = vmatprep.subr.bf16.mxu0 %v9225
        %9430 = vmatpush1.bf16.msra.mxu0 %v9224
        %9431 = vmatprep.mubr.bf16.mxu0 %v8711
        %9432 = vmatmul.mubr.bf16.gmra.mrb[0].mxu0 %v8708
        %v9433 = vpop.f32.mrb[0].mxu0
        %v9434 = vadd.f32 %v9391, %v9433
        %v9435 = vpop.f32.mrb[0].mxu0
        %v9436 = vadd.f32 %v9393, %v9435
        %v9437 = vpop.f32.mrb[0].mxu0
        %v9438 = vadd.f32 %v9395, %v9437
        %v9439 = vpop.f32.mrb[0].mxu0
        %v9440 = vadd.f32 %v9397, %v9439
        %9441 = vdwg.mxu0
        %9442 = vmatprep.subr.bf16.mxu0 %v9103
        %9443 = vmatpush1.bf16.msra.mxu0 %v9102
        %9444 = vmatprep.subr.bf16.mxu0 %v9107
        %9445 = vmatpush1.bf16.msra.mxu0 %v9106
        %9446 = vmatprep.subr.bf16.mxu0 %v9111
        %9447 = vmatpush1.bf16.msra.mxu0 %v9110
        %9448 = vmatprep.subr.bf16.mxu0 %v9115
        %9449 = vmatpush1.bf16.msra.mxu0 %v9114
        %9450 = vmatprep.subr.bf16.mxu0 %v9119
        %9451 = vmatpush1.bf16.msra.mxu0 %v9118
        %9452 = vmatprep.subr.bf16.mxu0 %v9123
        %9453 = vmatpush1.bf16.msra.mxu0 %v9122
        %9454 = vmatprep.subr.bf16.mxu0 %v9127
        %9455 = vmatpush1.bf16.msra.mxu0 %v9126
        %9456 = vmatprep.subr.bf16.mxu0 %v9131
        %9457 = vmatpush1.bf16.msra.mxu0 %v9130
        %9458 = vmatprep.subr.bf16.mxu0 %v9135
        %9459 = vmatpush1.bf16.msra.mxu0 %v9134
        %9460 = vmatprep.subr.bf16.mxu0 %v9139
        %9461 = vmatpush1.bf16.msra.mxu0 %v9138
        %9462 = vmatprep.subr.bf16.mxu0 %v9143
        %9463 = vmatpush1.bf16.msra.mxu0 %v9142
        %9464 = vmatprep.subr.bf16.mxu0 %v9147
        %9465 = vmatpush1.bf16.msra.mxu0 %v9146
        %9466 = vmatprep.subr.bf16.mxu0 %v9151
        %9467 = vmatpush1.bf16.msra.mxu0 %v9150
        %9468 = vmatprep.subr.bf16.mxu0 %v9155
        %9469 = vmatpush1.bf16.msra.mxu0 %v9154
        %9470 = vmatprep.subr.bf16.mxu0 %v9159
        %9471 = vmatpush1.bf16.msra.mxu0 %v9158
        %9472 = vmatprep.subr.bf16.mxu0 %v9163
        %9473 = vmatpush1.bf16.msra.mxu0 %v9162
        %9474 = vmatprep.mubr.bf16.mxu0 %v8705
        %9475 = vmatmul.mubr.bf16.gmra.mrb[0].mxu0 %v8702
        %v9476 = vpop.f32.mrb[0].mxu0
        %v9477 = vadd.f32 0.0, %v9476
        %v9478 = vpop.f32.mrb[0].mxu0
        %v9479 = vadd.f32 0.0, %v9478
        %v9480 = vpop.f32.mrb[0].mxu0
        %v9481 = vadd.f32 0.0, %v9480
        %v9482 = vpop.f32.mrb[0].mxu0
        %v9483 = vadd.f32 0.0, %v9482
        %9484 = vdwg.mxu0
        %9485 = vmatprep.subr.bf16.mxu0 %v9167
        %9486 = vmatpush1.bf16.msra.mxu0 %v9166
        %9487 = vmatprep.subr.bf16.mxu0 %v9171
        %9488 = vmatpush1.bf16.msra.mxu0 %v9170
        %9489 = vmatprep.subr.bf16.mxu0 %v9175
        %9490 = vmatpush1.bf16.msra.mxu0 %v9174
        %9491 = vmatprep.subr.bf16.mxu0 %v9179
        %9492 = vmatpush1.bf16.msra.mxu0 %v9178
        %9493 = vmatprep.subr.bf16.mxu0 %v9183
        %9494 = vmatpush1.bf16.msra.mxu0 %v9182
        %9495 = vmatprep.subr.bf16.mxu0 %v9187
        %9496 = vmatpush1.bf16.msra.mxu0 %v9186
        %9497 = vmatprep.subr.bf16.mxu0 %v9191
        %9498 = vmatpush1.bf16.msra.mxu0 %v9190
        %9499 = vmatprep.subr.bf16.mxu0 %v9195
        %9500 = vmatpush1.bf16.msra.mxu0 %v9194
        %9501 = vmatprep.subr.bf16.mxu0 %v9199
        %9502 = vmatpush1.bf16.msra.mxu0 %v9198
        %9503 = vmatprep.subr.bf16.mxu0 %v9203
        %9504 = vmatpush1.bf16.msra.mxu0 %v9202
        %9505 = vmatprep.subr.bf16.mxu0 %v9207
        %9506 = vmatpush1.bf16.msra.mxu0 %v9206
        %9507 = vmatprep.subr.bf16.mxu0 %v9211
        %9508 = vmatpush1.bf16.msra.mxu0 %v9210
        %9509 = vmatprep.subr.bf16.mxu0 %v9215
        %9510 = vmatpush1.bf16.msra.mxu0 %v9214
        %9511 = vmatprep.subr.bf16.mxu0 %v9219
        %9512 = vmatpush1.bf16.msra.mxu0 %v9218
        %9513 = vmatprep.subr.bf16.mxu0 %v9223
        %9514 = vmatpush1.bf16.msra.mxu0 %v9222
        %9515 = vmatprep.subr.bf16.mxu0 %v9227
        %9516 = vmatpush1.bf16.msra.mxu0 %v9226
        %9517 = vmatprep.mubr.bf16.mxu0 %v8711
        %9518 = vmatmul.mubr.bf16.gmra.mrb[0].mxu0 %v8708
        %v9519 = vpop.f32.mrb[0].mxu0
        %v9520 = vadd.f32 %v9477, %v9519
        %v9521 = vpop.f32.mrb[0].mxu0
        %v9522 = vadd.f32 %v9479, %v9521
        %v9523 = vpop.f32.mrb[0].mxu0
        %v9524 = vadd.f32 %v9481, %v9523
        %v9525 = vpop.f32.mrb[0].mxu0
        %v9526 = vadd.f32 %v9483, %v9525
        %9527 = vdwg.mxu0
        %v9528 = vadd.f32 %v8551, %v9434
        %v9529 = vadd.f32 %v8552, %v9436
        %v9530 = vadd.f32 %v8553, %v9520
        %v9531 = vadd.f32 %v8554, %v9522
        %v9532 = vadd.f32 %v8555, %v9438
        %v9533 = vadd.f32 %v8556, %v9440
        %v9534 = vadd.f32 %v8557, %v9524
        %v9535 = vadd.f32 %v8558, %v9526
        %v9536 = vld [vmem:[#allocation11] sm:$0xf]
        %v9538 = vlaneseq
        %v9539 = vshrl.u32 %v9538, 7
        %v9540 = vsub.s32 0, %v9539
        %v9541 = vrot.slane %v9536, %v9540
        %v9542 = vlaneseq
        %v9543 = vshrl.u32 %v9542, 7
        %v9544 = vsub.s32 1, %v9543
        %v9545 = vrot.slane %v9536, %v9544
        %v9546 = vlaneseq
        %v9547 = vshrl.u32 %v9546, 7
        %v9548 = vsub.s32 2, %v9547
        %v9549 = vrot.slane %v9536, %v9548
        %v9550 = vlaneseq
        %v9551 = vshrl.u32 %v9550, 7
        %v9552 = vsub.s32 3, %v9551
        %v9553 = vrot.slane %v9536, %v9552
        %v9558 = vadd.f32 %v9528, %v9541
        %v9559 = vadd.f32 %v9529, %v9545
        %v9560 = vadd.f32 %v9530, %v9549
        %v9561 = vadd.f32 %v9531, %v9553
        %v9562 = vadd.f32 %v9532, %v9541
        %v9563 = vadd.f32 %v9533, %v9545
        %v9564 = vadd.f32 %v9534, %v9549
        %v9565 = vadd.f32 %v9535, %v9553
        %v9574 = vcombine.low %v9558, %v9559
        %v9575 = vcombine.high %v9558, %v9559
        %v9576 = vcombine.low %v9560, %v9561
        %v9577 = vcombine.high %v9560, %v9561
        %v9579 = vunpack.c.l.s4 1983009808
        %v9580 = vunpack.c.0.s8 %v9579
        %v9581 = vlaneseq
        %v9582 = vshrl.u32 %v9581, 7
        %v9583 = vsub.s32 %v9580, %v9582
        %v9584 = vrot.slane %v9574, %v9583
        %v9586 = vunpack.c.l.s4 1983009808
        %v9587 = vunpack.c.0.s8 %v9586
        %v9588 = vlaneseq
        %v9589 = vshrl.u32 %v9588, 7
        %v9590 = vsub.s32 %v9587, %v9589
        %v9591 = vrot.slane %v9575, %v9590
        %v9593 = vunpack.c.l.s4 1983009808
        %v9594 = vunpack.c.0.s8 %v9593
        %v9595 = vlaneseq
        %v9596 = vshrl.u32 %v9595, 7
        %v9597 = vsub.s32 %v9594, %v9596
        %v9598 = vrot.slane %v9576, %v9597
        %v9600 = vunpack.c.l.s4 1983009808
        %v9601 = vunpack.c.0.s8 %v9600
        %v9602 = vlaneseq
        %v9603 = vshrl.u32 %v9602, 7
        %v9604 = vsub.s32 %v9601, %v9603
        %v9605 = vrot.slane %v9577, %v9604
        %v9606 = vcombine.low %v9584, %v9598
        %v9607 = vcombine.high %v9584, %v9598
        %v9608 = vcombine.low %v9591, %v9605
        %v9609 = vcombine.high %v9591, %v9605
        %v9610 = vcombine.low %v9562, %v9563
        %v9611 = vcombine.high %v9562, %v9563
        %v9612 = vcombine.low %v9564, %v9565
        %v9613 = vcombine.high %v9564, %v9565
        %v9615 = vunpack.c.l.s4 1983009808
        %v9616 = vunpack.c.0.s8 %v9615
        %v9617 = vlaneseq
        %v9618 = vshrl.u32 %v9617, 7
        %v9619 = vsub.s32 %v9616, %v9618
        %v9620 = vrot.slane %v9610, %v9619
        %v9622 = vunpack.c.l.s4 1983009808
        %v9623 = vunpack.c.0.s8 %v9622
        %v9624 = vlaneseq
        %v9625 = vshrl.u32 %v9624, 7
        %v9626 = vsub.s32 %v9623, %v9625
        %v9627 = vrot.slane %v9611, %v9626
        %v9629 = vunpack.c.l.s4 1983009808
        %v9630 = vunpack.c.0.s8 %v9629
        %v9631 = vlaneseq
        %v9632 = vshrl.u32 %v9631, 7
        %v9633 = vsub.s32 %v9630, %v9632
        %v9634 = vrot.slane %v9612, %v9633
        %v9636 = vunpack.c.l.s4 1983009808
        %v9637 = vunpack.c.0.s8 %v9636
        %v9638 = vlaneseq
        %v9639 = vshrl.u32 %v9638, 7
        %v9640 = vsub.s32 %v9637, %v9639
        %v9641 = vrot.slane %v9613, %v9640
        %v9642 = vcombine.low %v9620, %v9634
        %v9643 = vcombine.high %v9620, %v9634
        %v9644 = vcombine.low %v9627, %v9641
        %v9645 = vcombine.high %v9627, %v9641
        %v9654 = vrot.slane %v9606, 7
        %v9655 = vrot.slane %v9654, 2
        %v9656 = vrot.slane %v9607, 7
        %v9657 = vrot.slane %v9656, 2
        %v9658 = vrot.slane %v9608, 7
        %v9659 = vrot.slane %v9658, 2
        %v9660 = vrot.slane %v9609, 7
        %v9661 = vrot.slane %v9660, 2
        %v9662 = vrot.slane %v9642, 7
        %v9663 = vrot.slane %v9662, 2
        %v9664 = vrot.slane %v9643, 7
        %v9665 = vrot.slane %v9664, 2
        %v9666 = vrot.slane %v9644, 7
        %v9667 = vrot.slane %v9666, 2
        %v9668 = vrot.slane %v9645, 7
        %v9669 = vrot.slane %v9668, 2
        %v9678 = vmax.f32 %v9606, %v9655
        %v9679 = vmax.f32 %v9607, %v9657
        %v9680 = vmax.f32 %v9608, %v9659
        %v9681 = vmax.f32 %v9609, %v9661
        %v9682 = vmax.f32 %v9642, %v9663
        %v9683 = vmax.f32 %v9643, %v9665
        %v9684 = vmax.f32 %v9644, %v9667
        %v9685 = vmax.f32 %v9645, %v9669
        %v9694 = vrot.slane %v9678, 4
        %v9695 = vrot.slane %v9679, 4
        %v9696 = vrot.slane %v9680, 4
        %v9697 = vrot.slane %v9681, 4
        %v9698 = vrot.slane %v9682, 4
        %v9699 = vrot.slane %v9683, 4
        %v9700 = vrot.slane %v9684, 4
        %v9701 = vrot.slane %v9685, 4
        %v9710 = vmax.f32 %v9678, %v9694
        %v9711 = vmax.f32 %v9679, %v9695
        %v9712 = vmax.f32 %v9680, %v9696
        %v9713 = vmax.f32 %v9681, %v9697
        %v9714 = vmax.f32 %v9682, %v9698
        %v9715 = vmax.f32 %v9683, %v9699
        %v9716 = vmax.f32 %v9684, %v9700
        %v9717 = vmax.f32 %v9685, %v9701
        %9718 = vst [vmem:[#allocation4] sm:$0xff] 0
        %9719 = vst [vmem:[#allocation4 + $0x8] sm:$0x33] 0
        %v9728 = vlaneseq
        %v9729 = vshrl.u32 %v9728, 7
        %v9730 = vsub.s32 0, %v9729
        %v9731 = vrot.slane %v9710, %v9730
        %v9732 = vlaneseq
        %v9733 = vshrl.u32 %v9732, 7
        %v9734 = vsub.s32 2, %v9733
        %v9735 = vrot.slane %v9710, %v9734
        %v9736 = vlaneseq
        %v9737 = vshrl.u32 %v9736, 7
        %v9738 = vsub.s32 0, %v9737
        %v9739 = vrot.slane %v9711, %v9738
        %v9740 = vlaneseq
        %v9741 = vshrl.u32 %v9740, 7
        %v9742 = vsub.s32 2, %v9741
        %v9743 = vrot.slane %v9711, %v9742
        %v9744 = vlaneseq
        %v9745 = vshrl.u32 %v9744, 7
        %v9746 = vsub.s32 0, %v9745
        %v9747 = vrot.slane %v9712, %v9746
        %v9748 = vlaneseq
        %v9749 = vshrl.u32 %v9748, 7
        %v9750 = vsub.s32 2, %v9749
        %v9751 = vrot.slane %v9712, %v9750
        %v9752 = vlaneseq
        %v9753 = vshrl.u32 %v9752, 7
        %v9754 = vsub.s32 0, %v9753
        %v9755 = vrot.slane %v9713, %v9754
        %v9756 = vlaneseq
        %v9757 = vshrl.u32 %v9756, 7
        %v9758 = vsub.s32 2, %v9757
        %v9759 = vrot.slane %v9713, %v9758
        %v9760 = vlaneseq
        %v9761 = vshrl.u32 %v9760, 7
        %v9762 = vsub.s32 0, %v9761
        %v9763 = vrot.slane %v9714, %v9762
        %v9764 = vlaneseq
        %v9765 = vshrl.u32 %v9764, 7
        %v9766 = vsub.s32 2, %v9765
        %v9767 = vrot.slane %v9714, %v9766
        %v9768 = vlaneseq
        %v9769 = vshrl.u32 %v9768, 7
        %v9770 = vsub.s32 0, %v9769
        %v9771 = vrot.slane %v9715, %v9770
        %v9772 = vlaneseq
        %v9773 = vshrl.u32 %v9772, 7
        %v9774 = vsub.s32 2, %v9773
        %v9775 = vrot.slane %v9715, %v9774
        %v9776 = vlaneseq
        %v9777 = vshrl.u32 %v9776, 7
        %v9778 = vsub.s32 0, %v9777
        %v9779 = vrot.slane %v9716, %v9778
        %v9780 = vlaneseq
        %v9781 = vshrl.u32 %v9780, 7
        %v9782 = vsub.s32 2, %v9781
        %v9783 = vrot.slane %v9716, %v9782
        %v9784 = vlaneseq
        %v9785 = vshrl.u32 %v9784, 7
        %v9786 = vsub.s32 0, %v9785
        %v9787 = vrot.slane %v9717, %v9786
        %v9788 = vlaneseq
        %v9789 = vshrl.u32 %v9788, 7
        %v9790 = vsub.s32 2, %v9789
        %v9791 = vrot.slane %v9717, %v9790
        %v9808 = vpack.c.bf16 %v9731, %v9731
        %v9809 = vpack.c.bf16 %v9735, %v9735
        %v9810 = vpack.c.bf16 %v9739, %v9739
        %v9811 = vpack.c.bf16 %v9743, %v9743
        %v9812 = vpack.c.bf16 %v9747, %v9747
        %v9813 = vpack.c.bf16 %v9751, %v9751
        %v9814 = vpack.c.bf16 %v9755, %v9755
        %v9815 = vpack.c.bf16 %v9759, %v9759
        %v9816 = vpack.c.bf16 %v9763, %v9763
        %v9817 = vpack.c.bf16 %v9767, %v9767
        %v9818 = vpack.c.bf16 %v9771, %v9771
        %v9819 = vpack.c.bf16 %v9775, %v9775
        %v9820 = vpack.c.bf16 %v9779, %v9779
        %v9821 = vpack.c.bf16 %v9783, %v9783
        %v9822 = vpack.c.bf16 %v9787, %v9787
        %v9823 = vpack.c.bf16 %v9791, %v9791
        %v9840 = vunpack.c.l.b16 %v9808
        %v9841 = vunpack.c.l.b16 %v9809
        %v9842 = vunpack.c.l.b16 %v9810
        %v9843 = vunpack.c.l.b16 %v9811
        %v9844 = vunpack.c.l.b16 %v9812
        %v9845 = vunpack.c.l.b16 %v9813
        %v9846 = vunpack.c.l.b16 %v9814
        %v9847 = vunpack.c.l.b16 %v9815
        %v9848 = vunpack.c.l.b16 %v9816
        %v9849 = vunpack.c.l.b16 %v9817
        %v9850 = vunpack.c.l.b16 %v9818
        %v9851 = vunpack.c.l.b16 %v9819
        %v9852 = vunpack.c.l.b16 %v9820
        %v9853 = vunpack.c.l.b16 %v9821
        %v9854 = vunpack.c.l.b16 %v9822
        %v9855 = vunpack.c.l.b16 %v9823
        %v9856 = vpack.c.b16 %v9841, %v9840
        %v9857 = vpack.c.b16 %v9843, %v9842
        %v9858 = vpack.c.b16 %v9845, %v9844
        %v9859 = vpack.c.b16 %v9847, %v9846
        %v9860 = vpack.c.b16 %v9849, %v9848
        %v9861 = vpack.c.b16 %v9851, %v9850
        %v9862 = vpack.c.b16 %v9853, %v9852
        %v9863 = vpack.c.b16 %v9855, %v9854
        %v9864 = vunpack.c.l.b16 %v9856
        %v9865 = vunpack.c.h.b16 %v9856
        %v9866 = vunpack.c.l.b16 %v9857
        %v9867 = vunpack.c.h.b16 %v9857
        %v9868 = vunpack.c.l.b16 %v9858
        %v9869 = vunpack.c.h.b16 %v9858
        %v9870 = vunpack.c.l.b16 %v9859
        %v9871 = vunpack.c.h.b16 %v9859
        %v9872 = vunpack.c.l.b16 %v9860
        %v9873 = vunpack.c.h.b16 %v9860
        %v9874 = vunpack.c.l.b16 %v9861
        %v9875 = vunpack.c.h.b16 %v9861
        %v9876 = vunpack.c.l.b16 %v9862
        %v9877 = vunpack.c.h.b16 %v9862
        %v9878 = vunpack.c.l.b16 %v9863
        %v9879 = vunpack.c.h.b16 %v9863
        %v9880 = vrot.slane %v9864, 6
        %v9881 = vrot.slane %v9866, 5
        %v9882 = vsel %vm4449, %v9881, %v9880
        %v9883 = vrot.slane %v9868, 4
        %v9884 = vsel %vm4452, %v9883, %v9882
        %v9885 = vrot.slane %v9870, 3
        %v9886 = vsel %vm4455, %v9885, %v9884
        %v9887 = vrot.slane %v9872, 2
        %v9888 = vsel %vm4458, %v9887, %v9886
        %v9889 = vrot.slane %v9874, 1
        %v9890 = vsel %vm4461, %v9889, %v9888
        %v9891 = vrot.slane %v9865, 6
        %v9892 = vrot.slane %v9867, 5
        %v9893 = vsel %vm4449, %v9892, %v9891
        %v9894 = vrot.slane %v9869, 4
        %v9895 = vsel %vm4452, %v9894, %v9893
        %v9896 = vrot.slane %v9871, 3
        %v9897 = vsel %vm4455, %v9896, %v9895
        %v9898 = vrot.slane %v9873, 2
        %v9899 = vsel %vm4458, %v9898, %v9897
        %v9900 = vrot.slane %v9875, 1
        %v9901 = vsel %vm4461, %v9900, %v9899
        %v9902 = vrot.slane %v9878, 7
        %v9903 = vsel %vm4497, %v9902, %v9876
        %v9904 = vrot.slane %v9879, 7
        %v9905 = vsel %vm4497, %v9904, %v9877
        %v9906 = vpack.c.b16 %v9901, %v9890
        %v9907 = vpack.c.b16 %v9905, %v9903
        %9910 = vst [vmem:[#allocation4] sm:$0xee] %v9906
        %9911 = vst [vmem:[#allocation4 + $0x8] sm:$0x11] %v9907
        %v9912 = vld [vmem:[#allocation4] sm:$0xff]
        %v9913 = vld [vmem:[#allocation13] sm:$0xff]
        %v9914 = vld [vmem:[#allocation13 + $0x8] sm:$0xff]
        %v9915 = vld [vmem:[#allocation13 + $0x10] sm:$0xff]
        %v9916 = vld [vmem:[#allocation13 + $0x18] sm:$0xff]
        %v9917 = vld [vmem:[#allocation13 + $0x20] sm:$0xff]
        %v9918 = vld [vmem:[#allocation13 + $0x28] sm:$0xff]
        %v9919 = vld [vmem:[#allocation13 + $0x30] sm:$0xff]
        %v9920 = vld [vmem:[#allocation13 + $0x38] sm:$0xff]
        %v9921 = vld [vmem:[#allocation13 + $0x40] sm:$0xff]
        %v9922 = vld [vmem:[#allocation13 + $0x48] sm:$0xff]
        %v9923 = vld [vmem:[#allocation13 + $0x50] sm:$0xff]
        %v9924 = vld [vmem:[#allocation13 + $0x58] sm:$0xff]
        %v9925 = vld [vmem:[#allocation13 + $0x60] sm:$0xff]
        %v9926 = vld [vmem:[#allocation13 + $0x68] sm:$0xff]
        %v9927 = vld [vmem:[#allocation13 + $0x70] sm:$0xff]
        %v9928 = vld [vmem:[#allocation13 + $0x78] sm:$0xff]
        %v9929 = vld [vmem:[#allocation13 + $0x80] sm:$0xff]
        %v9930 = vld [vmem:[#allocation13 + $0x88] sm:$0xff]
        %v9931 = vld [vmem:[#allocation13 + $0x90] sm:$0xff]
        %v9932 = vld [vmem:[#allocation13 + $0x98] sm:$0xff]
        %v9933 = vld [vmem:[#allocation13 + $0xa0] sm:$0xff]
        %v9934 = vld [vmem:[#allocation13 + $0xa8] sm:$0xff]
        %v9935 = vld [vmem:[#allocation13 + $0xb0] sm:$0xff]
        %v9936 = vld [vmem:[#allocation13 + $0xb8] sm:$0xff]
        %v9937 = vld [vmem:[#allocation13 + $0xc0] sm:$0xff]
        %v9938 = vld [vmem:[#allocation13 + $0xc8] sm:$0xff]
        %v9939 = vld [vmem:[#allocation13 + $0xd0] sm:$0xff]
        %v9940 = vld [vmem:[#allocation13 + $0xd8] sm:$0xff]
        %v9941 = vld [vmem:[#allocation13 + $0xe0] sm:$0xff]
        %v9942 = vld [vmem:[#allocation13 + $0xe8] sm:$0xff]
        %v9943 = vld [vmem:[#allocation13 + $0xf0] sm:$0xff]
        %v9944 = vld [vmem:[#allocation13 + $0xf8] sm:$0xff]
        %v9945 = vld [vmem:[#allocation13 + $0x100] sm:$0xff]
        %v9946 = vld [vmem:[#allocation13 + $0x108] sm:$0xff]
        %v9947 = vld [vmem:[#allocation13 + $0x110] sm:$0xff]
        %v9948 = vld [vmem:[#allocation13 + $0x118] sm:$0xff]
        %v9949 = vld [vmem:[#allocation13 + $0x120] sm:$0xff]
        %v9950 = vld [vmem:[#allocation13 + $0x128] sm:$0xff]
        %v9951 = vld [vmem:[#allocation13 + $0x130] sm:$0xff]
        %v9952 = vld [vmem:[#allocation13 + $0x138] sm:$0xff]
        %v9953 = vld [vmem:[#allocation13 + $0x140] sm:$0xff]
        %v9954 = vld [vmem:[#allocation13 + $0x148] sm:$0xff]
        %v9955 = vld [vmem:[#allocation13 + $0x150] sm:$0xff]
        %v9956 = vld [vmem:[#allocation13 + $0x158] sm:$0xff]
        %v9957 = vld [vmem:[#allocation13 + $0x160] sm:$0xff]
        %v9958 = vld [vmem:[#allocation13 + $0x168] sm:$0xff]
        %v9959 = vld [vmem:[#allocation13 + $0x170] sm:$0xff]
        %v9960 = vld [vmem:[#allocation13 + $0x178] sm:$0xff]
        %v9961 = vld [vmem:[#allocation13 + $0x180] sm:$0xff]
        %v9962 = vld [vmem:[#allocation13 + $0x188] sm:$0xff]
        %v9963 = vld [vmem:[#allocation13 + $0x190] sm:$0xff]
        %v9964 = vld [vmem:[#allocation13 + $0x198] sm:$0xff]
        %v9965 = vld [vmem:[#allocation13 + $0x1a0] sm:$0xff]
        %v9966 = vld [vmem:[#allocation13 + $0x1a8] sm:$0xff]
        %v9967 = vld [vmem:[#allocation13 + $0x1b0] sm:$0xff]
        %v9968 = vld [vmem:[#allocation13 + $0x1b8] sm:$0xff]
        %v9969 = vld [vmem:[#allocation13 + $0x1c0] sm:$0xff]
        %v9970 = vld [vmem:[#allocation13 + $0x1c8] sm:$0xff]
        %v9971 = vld [vmem:[#allocation13 + $0x1d0] sm:$0xff]
        %v9972 = vld [vmem:[#allocation13 + $0x1d8] sm:$0xff]
        %v9973 = vld [vmem:[#allocation13 + $0x1e0] sm:$0xff]
        %v9974 = vld [vmem:[#allocation13 + $0x1e8] sm:$0xff]
        %v9975 = vld [vmem:[#allocation13 + $0x1f0] sm:$0xff]
        %v9976 = vld [vmem:[#allocation13 + $0x1f8] sm:$0xff]
        %v9977 = vld [vmem:[#allocation4 + $0x8] sm:$0x11]
        %s9978 = scalar_lea.vmem [#allocation13], 512
        %v9979 = vld [vmem:[%s9978] sm:$0xff]
        %v9980 = vld [vmem:[%s9978 + $0x8] sm:$0xff]
        %v9981 = vld [vmem:[%s9978 + $0x10] sm:$0xff]
        %v9982 = vld [vmem:[%s9978 + $0x18] sm:$0xff]
        %v9983 = vld [vmem:[%s9978 + $0x20] sm:$0xff]
        %v9984 = vld [vmem:[%s9978 + $0x28] sm:$0xff]
        %v9985 = vld [vmem:[%s9978 + $0x30] sm:$0xff]
        %v9986 = vld [vmem:[%s9978 + $0x38] sm:$0xff]
        %v9987 = vld [vmem:[%s9978 + $0x40] sm:$0xff]
        %v9988 = vld [vmem:[%s9978 + $0x48] sm:$0xff]
        %v9989 = vld [vmem:[%s9978 + $0x50] sm:$0xff]
        %v9990 = vld [vmem:[%s9978 + $0x58] sm:$0xff]
        %v9991 = vld [vmem:[%s9978 + $0x60] sm:$0xff]
        %v9992 = vld [vmem:[%s9978 + $0x68] sm:$0xff]
        %v9993 = vld [vmem:[%s9978 + $0x70] sm:$0xff]
        %v9994 = vld [vmem:[%s9978 + $0x78] sm:$0xff]
        %v9995 = vld [vmem:[%s9978 + $0x80] sm:$0xff]
        %v9996 = vld [vmem:[%s9978 + $0x88] sm:$0xff]
        %v9997 = vld [vmem:[%s9978 + $0x90] sm:$0xff]
        %v9998 = vld [vmem:[%s9978 + $0x98] sm:$0xff]
        %v9999 = vld [vmem:[%s9978 + $0xa0] sm:$0xff]
        %v10000 = vld [vmem:[%s9978 + $0xa8] sm:$0xff]
        %v10001 = vld [vmem:[%s9978 + $0xb0] sm:$0xff]
        %v10002 = vld [vmem:[%s9978 + $0xb8] sm:$0xff]
        %v10003 = vld [vmem:[%s9978 + $0xc0] sm:$0xff]
        %v10004 = vld [vmem:[%s9978 + $0xc8] sm:$0xff]
        %v10005 = vld [vmem:[%s9978 + $0xd0] sm:$0xff]
        %v10006 = vld [vmem:[%s9978 + $0xd8] sm:$0xff]
        %v10007 = vld [vmem:[%s9978 + $0xe0] sm:$0xff]
        %v10008 = vld [vmem:[%s9978 + $0xe8] sm:$0xff]
        %v10009 = vld [vmem:[%s9978 + $0xf0] sm:$0xff]
        %v10010 = vld [vmem:[%s9978 + $0xf8] sm:$0xff]
        %v10011 = vld [vmem:[%s9978 + $0x100] sm:$0xff]
        %v10012 = vld [vmem:[%s9978 + $0x108] sm:$0xff]
        %v10013 = vld [vmem:[%s9978 + $0x110] sm:$0xff]
        %v10014 = vld [vmem:[%s9978 + $0x118] sm:$0xff]
        %v10015 = vld [vmem:[%s9978 + $0x120] sm:$0xff]
        %v10016 = vld [vmem:[%s9978 + $0x128] sm:$0xff]
        %v10017 = vld [vmem:[%s9978 + $0x130] sm:$0xff]
        %v10018 = vld [vmem:[%s9978 + $0x138] sm:$0xff]
        %v10019 = vld [vmem:[%s9978 + $0x140] sm:$0xff]
        %v10020 = vld [vmem:[%s9978 + $0x148] sm:$0xff]
        %v10021 = vld [vmem:[%s9978 + $0x150] sm:$0xff]
        %v10022 = vld [vmem:[%s9978 + $0x158] sm:$0xff]
        %v10023 = vld [vmem:[%s9978 + $0x160] sm:$0xff]
        %v10024 = vld [vmem:[%s9978 + $0x168] sm:$0xff]
        %v10025 = vld [vmem:[%s9978 + $0x170] sm:$0xff]
        %v10026 = vld [vmem:[%s9978 + $0x178] sm:$0xff]
        %v10027 = vld [vmem:[%s9978 + $0x180] sm:$0xff]
        %v10028 = vld [vmem:[%s9978 + $0x188] sm:$0xff]
        %v10029 = vld [vmem:[%s9978 + $0x190] sm:$0xff]
        %v10030 = vld [vmem:[%s9978 + $0x198] sm:$0xff]
        %v10031 = vld [vmem:[%s9978 + $0x1a0] sm:$0xff]
        %v10032 = vld [vmem:[%s9978 + $0x1a8] sm:$0xff]
        %v10033 = vld [vmem:[%s9978 + $0x1b0] sm:$0xff]
        %v10034 = vld [vmem:[%s9978 + $0x1b8] sm:$0xff]
        %v10035 = vld [vmem:[%s9978 + $0x1c0] sm:$0xff]
        %v10036 = vld [vmem:[%s9978 + $0x1c8] sm:$0xff]
        %v10037 = vld [vmem:[%s9978 + $0x1d0] sm:$0xff]
        %v10038 = vld [vmem:[%s9978 + $0x1d8] sm:$0xff]
        %v10039 = vld [vmem:[%s9978 + $0x1e0] sm:$0xff]
        %v10040 = vld [vmem:[%s9978 + $0x1e8] sm:$0xff]
        %v10041 = vld [vmem:[%s9978 + $0x1f0] sm:$0xff]
        %v10042 = vld [vmem:[%s9978 + $0x1f8] sm:$0xff]
        %v10045 = vunpack.c.l.b16 %v9912
        %v10046 = vunpack.c.h.b16 %v9912
        %v10047 = vunpack.c.l.b16 %v9977
        %v10048 = vunpack.c.h.b16 %v9977
        %v10049 = vpack.c.b16 %v10047, %v10045
        %v10050 = vpack.c.b16 %v10048, %v10046
        %v10052 = vshrl.u32 %v10049, 16
        %v10054 = vshll.u32 %v10049, 16
        %v10056 = vrot.slane %v10054, 1
        %v10057 = vor.u32 %v10052, %v10056
        %v10059 = vshrl.u32 %v10050, 16
        %v10061 = vshll.u32 %v10050, 16
        %v10063 = vrot.slane %v10061, 1
        %v10064 = vor.u32 %v10059, %v10063
        %v10131 = vunpack.c.l.b16 %v9979
        %v10132 = vunpack.c.h.b16 %v9979
        %v10133 = vunpack.c.l.b16 %v9980
        %v10134 = vunpack.c.h.b16 %v9980
        %v10135 = vunpack.c.l.b16 %v9981
        %v10136 = vunpack.c.h.b16 %v9981
        %v10137 = vunpack.c.l.b16 %v9982
        %v10138 = vunpack.c.h.b16 %v9982
        %v10139 = vunpack.c.l.b16 %v9983
        %v10140 = vunpack.c.h.b16 %v9983
        %v10141 = vunpack.c.l.b16 %v9984
        %v10142 = vunpack.c.h.b16 %v9984
        %v10143 = vunpack.c.l.b16 %v9985
        %v10144 = vunpack.c.h.b16 %v9985
        %v10145 = vunpack.c.l.b16 %v9986
        %v10146 = vunpack.c.h.b16 %v9986
        %v10147 = vunpack.c.l.b16 %v9987
        %v10148 = vunpack.c.h.b16 %v9987
        %v10149 = vunpack.c.l.b16 %v9988
        %v10150 = vunpack.c.h.b16 %v9988
        %v10151 = vunpack.c.l.b16 %v9989
        %v10152 = vunpack.c.h.b16 %v9989
        %v10153 = vunpack.c.l.b16 %v9990
        %v10154 = vunpack.c.h.b16 %v9990
        %v10155 = vunpack.c.l.b16 %v9991
        %v10156 = vunpack.c.h.b16 %v9991
        %v10157 = vunpack.c.l.b16 %v9992
        %v10158 = vunpack.c.h.b16 %v9992
        %v10159 = vunpack.c.l.b16 %v9993
        %v10160 = vunpack.c.h.b16 %v9993
        %v10161 = vunpack.c.l.b16 %v9994
        %v10162 = vunpack.c.h.b16 %v9994
        %v10163 = vunpack.c.l.b16 %v9995
        %v10164 = vunpack.c.h.b16 %v9995
        %v10165 = vunpack.c.l.b16 %v9996
        %v10166 = vunpack.c.h.b16 %v9996
        %v10167 = vunpack.c.l.b16 %v9997
        %v10168 = vunpack.c.h.b16 %v9997
        %v10169 = vunpack.c.l.b16 %v9998
        %v10170 = vunpack.c.h.b16 %v9998
        %v10171 = vunpack.c.l.b16 %v9999
        %v10172 = vunpack.c.h.b16 %v9999
        %v10173 = vunpack.c.l.b16 %v10000
        %v10174 = vunpack.c.h.b16 %v10000
        %v10175 = vunpack.c.l.b16 %v10001
        %v10176 = vunpack.c.h.b16 %v10001
        %v10177 = vunpack.c.l.b16 %v10002
        %v10178 = vunpack.c.h.b16 %v10002
        %v10179 = vunpack.c.l.b16 %v10003
        %v10180 = vunpack.c.h.b16 %v10003
        %v10181 = vunpack.c.l.b16 %v10004
        %v10182 = vunpack.c.h.b16 %v10004
        %v10183 = vunpack.c.l.b16 %v10005
        %v10184 = vunpack.c.h.b16 %v10005
        %v10185 = vunpack.c.l.b16 %v10006
        %v10186 = vunpack.c.h.b16 %v10006
        %v10187 = vunpack.c.l.b16 %v10007
        %v10188 = vunpack.c.h.b16 %v10007
        %v10189 = vunpack.c.l.b16 %v10008
        %v10190 = vunpack.c.h.b16 %v10008
        %v10191 = vunpack.c.l.b16 %v10009
        %v10192 = vunpack.c.h.b16 %v10009
        %v10193 = vunpack.c.l.b16 %v10010
        %v10194 = vunpack.c.h.b16 %v10010
        %v10195 = vunpack.c.l.b16 %v10011
        %v10196 = vunpack.c.h.b16 %v10011
        %v10197 = vunpack.c.l.b16 %v10012
        %v10198 = vunpack.c.h.b16 %v10012
        %v10199 = vunpack.c.l.b16 %v10013
        %v10200 = vunpack.c.h.b16 %v10013
        %v10201 = vunpack.c.l.b16 %v10014
        %v10202 = vunpack.c.h.b16 %v10014
        %v10203 = vunpack.c.l.b16 %v10015
        %v10204 = vunpack.c.h.b16 %v10015
        %v10205 = vunpack.c.l.b16 %v10016
        %v10206 = vunpack.c.h.b16 %v10016
        %v10207 = vunpack.c.l.b16 %v10017
        %v10208 = vunpack.c.h.b16 %v10017
        %v10209 = vunpack.c.l.b16 %v10018
        %v10210 = vunpack.c.h.b16 %v10018
        %v10211 = vunpack.c.l.b16 %v10019
        %v10212 = vunpack.c.h.b16 %v10019
        %v10213 = vunpack.c.l.b16 %v10020
        %v10214 = vunpack.c.h.b16 %v10020
        %v10215 = vunpack.c.l.b16 %v10021
        %v10216 = vunpack.c.h.b16 %v10021
        %v10217 = vunpack.c.l.b16 %v10022
        %v10218 = vunpack.c.h.b16 %v10022
        %v10219 = vunpack.c.l.b16 %v10023
        %v10220 = vunpack.c.h.b16 %v10023
        %v10221 = vunpack.c.l.b16 %v10024
        %v10222 = vunpack.c.h.b16 %v10024
        %v10223 = vunpack.c.l.b16 %v10025
        %v10224 = vunpack.c.h.b16 %v10025
        %v10225 = vunpack.c.l.b16 %v10026
        %v10226 = vunpack.c.h.b16 %v10026
        %v10227 = vunpack.c.l.b16 %v10027
        %v10228 = vunpack.c.h.b16 %v10027
        %v10229 = vunpack.c.l.b16 %v10028
        %v10230 = vunpack.c.h.b16 %v10028
        %v10231 = vunpack.c.l.b16 %v10029
        %v10232 = vunpack.c.h.b16 %v10029
        %v10233 = vunpack.c.l.b16 %v10030
        %v10234 = vunpack.c.h.b16 %v10030
        %v10235 = vunpack.c.l.b16 %v10031
        %v10236 = vunpack.c.h.b16 %v10031
        %v10237 = vunpack.c.l.b16 %v10032
        %v10238 = vunpack.c.h.b16 %v10032
        %v10239 = vunpack.c.l.b16 %v10033
        %v10240 = vunpack.c.h.b16 %v10033
        %v10241 = vunpack.c.l.b16 %v10034
        %v10242 = vunpack.c.h.b16 %v10034
        %v10243 = vunpack.c.l.b16 %v10035
        %v10244 = vunpack.c.h.b16 %v10035
        %v10245 = vunpack.c.l.b16 %v10036
        %v10246 = vunpack.c.h.b16 %v10036
        %v10247 = vunpack.c.l.b16 %v10037
        %v10248 = vunpack.c.h.b16 %v10037
        %v10249 = vunpack.c.l.b16 %v10038
        %v10250 = vunpack.c.h.b16 %v10038
        %v10251 = vunpack.c.l.b16 %v10039
        %v10252 = vunpack.c.h.b16 %v10039
        %v10253 = vunpack.c.l.b16 %v10040
        %v10254 = vunpack.c.h.b16 %v10040
        %v10255 = vunpack.c.l.b16 %v10041
        %v10256 = vunpack.c.h.b16 %v10041
        %v10257 = vunpack.c.l.b16 %v10042
        %v10258 = vunpack.c.h.b16 %v10042
        %v10259 = vpack.c.b16 %v10135, %v10131
        %v10260 = vpack.c.b16 %v10136, %v10132
        %v10261 = vpack.c.b16 %v10137, %v10133
        %v10262 = vpack.c.b16 %v10138, %v10134
        %v10263 = vpack.c.b16 %v10143, %v10139
        %v10264 = vpack.c.b16 %v10144, %v10140
        %v10265 = vpack.c.b16 %v10145, %v10141
        %v10266 = vpack.c.b16 %v10146, %v10142
        %v10267 = vpack.c.b16 %v10151, %v10147
        %v10268 = vpack.c.b16 %v10152, %v10148
        %v10269 = vpack.c.b16 %v10153, %v10149
        %v10270 = vpack.c.b16 %v10154, %v10150
        %v10271 = vpack.c.b16 %v10159, %v10155
        %v10272 = vpack.c.b16 %v10160, %v10156
        %v10273 = vpack.c.b16 %v10161, %v10157
        %v10274 = vpack.c.b16 %v10162, %v10158
        %v10275 = vpack.c.b16 %v10167, %v10163
        %v10276 = vpack.c.b16 %v10168, %v10164
        %v10277 = vpack.c.b16 %v10169, %v10165
        %v10278 = vpack.c.b16 %v10170, %v10166
        %v10279 = vpack.c.b16 %v10175, %v10171
        %v10280 = vpack.c.b16 %v10176, %v10172
        %v10281 = vpack.c.b16 %v10177, %v10173
        %v10282 = vpack.c.b16 %v10178, %v10174
        %v10283 = vpack.c.b16 %v10183, %v10179
        %v10284 = vpack.c.b16 %v10184, %v10180
        %v10285 = vpack.c.b16 %v10185, %v10181
        %v10286 = vpack.c.b16 %v10186, %v10182
        %v10287 = vpack.c.b16 %v10191, %v10187
        %v10288 = vpack.c.b16 %v10192, %v10188
        %v10289 = vpack.c.b16 %v10193, %v10189
        %v10290 = vpack.c.b16 %v10194, %v10190
        %v10291 = vpack.c.b16 %v10199, %v10195
        %v10292 = vpack.c.b16 %v10200, %v10196
        %v10293 = vpack.c.b16 %v10201, %v10197
        %v10294 = vpack.c.b16 %v10202, %v10198
        %v10295 = vpack.c.b16 %v10207, %v10203
        %v10296 = vpack.c.b16 %v10208, %v10204
        %v10297 = vpack.c.b16 %v10209, %v10205
        %v10298 = vpack.c.b16 %v10210, %v10206
        %v10299 = vpack.c.b16 %v10215, %v10211
        %v10300 = vpack.c.b16 %v10216, %v10212
        %v10301 = vpack.c.b16 %v10217, %v10213
        %v10302 = vpack.c.b16 %v10218, %v10214
        %v10303 = vpack.c.b16 %v10223, %v10219
        %v10304 = vpack.c.b16 %v10224, %v10220
        %v10305 = vpack.c.b16 %v10225, %v10221
        %v10306 = vpack.c.b16 %v10226, %v10222
        %v10307 = vpack.c.b16 %v10231, %v10227
        %v10308 = vpack.c.b16 %v10232, %v10228
        %v10309 = vpack.c.b16 %v10233, %v10229
        %v10310 = vpack.c.b16 %v10234, %v10230
        %v10311 = vpack.c.b16 %v10239, %v10235
        %v10312 = vpack.c.b16 %v10240, %v10236
        %v10313 = vpack.c.b16 %v10241, %v10237
        %v10314 = vpack.c.b16 %v10242, %v10238
        %v10315 = vpack.c.b16 %v10247, %v10243
        %v10316 = vpack.c.b16 %v10248, %v10244
        %v10317 = vpack.c.b16 %v10249, %v10245
        %v10318 = vpack.c.b16 %v10250, %v10246
        %v10319 = vpack.c.b16 %v10255, %v10251
        %v10320 = vpack.c.b16 %v10256, %v10252
        %v10321 = vpack.c.b16 %v10257, %v10253
        %v10322 = vpack.c.b16 %v10258, %v10254
        %10387 = vmatprep.subr.bf16.mxu0 %v10260
        %10388 = vmatpush1.bf16.msra.mxu0 %v10259
        %10389 = vmatprep.subr.bf16.mxu0 %v10264
        %10390 = vmatpush1.bf16.msra.mxu0 %v10263
        %10391 = vmatprep.subr.bf16.mxu0 %v10268
        %10392 = vmatpush1.bf16.msra.mxu0 %v10267
        %10393 = vmatprep.subr.bf16.mxu0 %v10272
        %10394 = vmatpush1.bf16.msra.mxu0 %v10271
        %10395 = vmatprep.subr.bf16.mxu0 %v10276
        %10396 = vmatpush1.bf16.msra.mxu0 %v10275
        %10397 = vmatprep.subr.bf16.mxu0 %v10280
        %10398 = vmatpush1.bf16.msra.mxu0 %v10279
        %10399 = vmatprep.subr.bf16.mxu0 %v10284
        %10400 = vmatpush1.bf16.msra.mxu0 %v10283
        %10401 = vmatprep.subr.bf16.mxu0 %v10288
        %10402 = vmatpush1.bf16.msra.mxu0 %v10287
        %10403 = vmatprep.subr.bf16.mxu0 %v10292
        %10404 = vmatpush1.bf16.msra.mxu0 %v10291
        %10405 = vmatprep.subr.bf16.mxu0 %v10296
        %10406 = vmatpush1.bf16.msra.mxu0 %v10295
        %10407 = vmatprep.subr.bf16.mxu0 %v10300
        %10408 = vmatpush1.bf16.msra.mxu0 %v10299
        %10409 = vmatprep.subr.bf16.mxu0 %v10304
        %10410 = vmatpush1.bf16.msra.mxu0 %v10303
        %10411 = vmatprep.subr.bf16.mxu0 %v10308
        %10412 = vmatpush1.bf16.msra.mxu0 %v10307
        %10413 = vmatprep.subr.bf16.mxu0 %v10312
        %10414 = vmatpush1.bf16.msra.mxu0 %v10311
        %10415 = vmatprep.subr.bf16.mxu0 %v10316
        %10416 = vmatpush1.bf16.msra.mxu0 %v10315
        %10417 = vmatprep.subr.bf16.mxu0 %v10320
        %10418 = vmatpush1.bf16.msra.mxu0 %v10319
        %10419 = vmatprep.mubr.bf16.mxu0 %v10064
        %10420 = vmatmul.mubr.bf16.gmra.mrb[0].mxu0 %v10057
        %v10421 = vpop.f32.mrb[0].mxu0
        %v10422 = vadd.f32 0.0, %v10421
        %v10423 = vpop.f32.mrb[0].mxu0
        %v10424 = vadd.f32 0.0, %v10423
        %v10425 = vpop.f32.mrb[0].mxu0
        %v10426 = vpop.f32.mrb[0].mxu0
        %10427 = vdwg.mxu0
        %10428 = vmatprep.subr.bf16.mxu0 %v10262
        %10429 = vmatpush1.bf16.msra.mxu0 %v10261
        %10430 = vmatprep.subr.bf16.mxu0 %v10266
        %10431 = vmatpush1.bf16.msra.mxu0 %v10265
        %10432 = vmatprep.subr.bf16.mxu0 %v10270
        %10433 = vmatpush1.bf16.msra.mxu0 %v10269
        %10434 = vmatprep.subr.bf16.mxu0 %v10274
        %10435 = vmatpush1.bf16.msra.mxu0 %v10273
        %10436 = vmatprep.subr.bf16.mxu0 %v10278
        %10437 = vmatpush1.bf16.msra.mxu0 %v10277
        %10438 = vmatprep.subr.bf16.mxu0 %v10282
        %10439 = vmatpush1.bf16.msra.mxu0 %v10281
        %10440 = vmatprep.subr.bf16.mxu0 %v10286
        %10441 = vmatpush1.bf16.msra.mxu0 %v10285
        %10442 = vmatprep.subr.bf16.mxu0 %v10290
        %10443 = vmatpush1.bf16.msra.mxu0 %v10289
        %10444 = vmatprep.subr.bf16.mxu0 %v10294
        %10445 = vmatpush1.bf16.msra.mxu0 %v10293
        %10446 = vmatprep.subr.bf16.mxu0 %v10298
        %10447 = vmatpush1.bf16.msra.mxu0 %v10297
        %10448 = vmatprep.subr.bf16.mxu0 %v10302
        %10449 = vmatpush1.bf16.msra.mxu0 %v10301
        %10450 = vmatprep.subr.bf16.mxu0 %v10306
        %10451 = vmatpush1.bf16.msra.mxu0 %v10305
        %10452 = vmatprep.subr.bf16.mxu0 %v10310
        %10453 = vmatpush1.bf16.msra.mxu0 %v10309
        %10454 = vmatprep.subr.bf16.mxu0 %v10314
        %10455 = vmatpush1.bf16.msra.mxu0 %v10313
        %10456 = vmatprep.subr.bf16.mxu0 %v10318
        %10457 = vmatpush1.bf16.msra.mxu0 %v10317
        %10458 = vmatprep.subr.bf16.mxu0 %v10322
        %10459 = vmatpush1.bf16.msra.mxu0 %v10321
        %10460 = vmatprep.mubr.bf16.mxu0 %v10064
        %10461 = vmatmul.mubr.bf16.gmra.mrb[0].mxu0 %v10057
        %v10462 = vpop.f32.mrb[0].mxu0
        %v10463 = vadd.f32 0.0, %v10462
        %v10464 = vpop.f32.mrb[0].mxu0
        %v10465 = vadd.f32 0.0, %v10464
        %v10466 = vpop.f32.mrb[0].mxu0
        %v10467 = vpop.f32.mrb[0].mxu0
        %10468 = vdwg.mxu0
        %v10469 = vpack.c.b16 %v10045, %v10045
        %v10470 = vpack.c.b16 %v10046, %v10046
        %v10537 = vunpack.c.l.b16 %v9913
        %v10538 = vunpack.c.h.b16 %v9913
        %v10539 = vunpack.c.l.b16 %v9914
        %v10540 = vunpack.c.h.b16 %v9914
        %v10541 = vunpack.c.l.b16 %v9915
        %v10542 = vunpack.c.h.b16 %v9915
        %v10543 = vunpack.c.l.b16 %v9916
        %v10544 = vunpack.c.h.b16 %v9916
        %v10545 = vunpack.c.l.b16 %v9917
        %v10546 = vunpack.c.h.b16 %v9917
        %v10547 = vunpack.c.l.b16 %v9918
        %v10548 = vunpack.c.h.b16 %v9918
        %v10549 = vunpack.c.l.b16 %v9919
        %v10550 = vunpack.c.h.b16 %v9919
        %v10551 = vunpack.c.l.b16 %v9920
        %v10552 = vunpack.c.h.b16 %v9920
        %v10553 = vunpack.c.l.b16 %v9921
        %v10554 = vunpack.c.h.b16 %v9921
        %v10555 = vunpack.c.l.b16 %v9922
        %v10556 = vunpack.c.h.b16 %v9922
        %v10557 = vunpack.c.l.b16 %v9923
        %v10558 = vunpack.c.h.b16 %v9923
        %v10559 = vunpack.c.l.b16 %v9924
        %v10560 = vunpack.c.h.b16 %v9924
        %v10561 = vunpack.c.l.b16 %v9925
        %v10562 = vunpack.c.h.b16 %v9925
        %v10563 = vunpack.c.l.b16 %v9926
        %v10564 = vunpack.c.h.b16 %v9926
        %v10565 = vunpack.c.l.b16 %v9927
        %v10566 = vunpack.c.h.b16 %v9927
        %v10567 = vunpack.c.l.b16 %v9928
        %v10568 = vunpack.c.h.b16 %v9928
        %v10569 = vunpack.c.l.b16 %v9929
        %v10570 = vunpack.c.h.b16 %v9929
        %v10571 = vunpack.c.l.b16 %v9930
        %v10572 = vunpack.c.h.b16 %v9930
        %v10573 = vunpack.c.l.b16 %v9931
        %v10574 = vunpack.c.h.b16 %v9931
        %v10575 = vunpack.c.l.b16 %v9932
        %v10576 = vunpack.c.h.b16 %v9932
        %v10577 = vunpack.c.l.b16 %v9933
        %v10578 = vunpack.c.h.b16 %v9933
        %v10579 = vunpack.c.l.b16 %v9934
        %v10580 = vunpack.c.h.b16 %v9934
        %v10581 = vunpack.c.l.b16 %v9935
        %v10582 = vunpack.c.h.b16 %v9935
        %v10583 = vunpack.c.l.b16 %v9936
        %v10584 = vunpack.c.h.b16 %v9936
        %v10585 = vunpack.c.l.b16 %v9937
        %v10586 = vunpack.c.h.b16 %v9937
        %v10587 = vunpack.c.l.b16 %v9938
        %v10588 = vunpack.c.h.b16 %v9938
        %v10589 = vunpack.c.l.b16 %v9939
        %v10590 = vunpack.c.h.b16 %v9939
        %v10591 = vunpack.c.l.b16 %v9940
        %v10592 = vunpack.c.h.b16 %v9940
        %v10593 = vunpack.c.l.b16 %v9941
        %v10594 = vunpack.c.h.b16 %v9941
        %v10595 = vunpack.c.l.b16 %v9942
        %v10596 = vunpack.c.h.b16 %v9942
        %v10597 = vunpack.c.l.b16 %v9943
        %v10598 = vunpack.c.h.b16 %v9943
        %v10599 = vunpack.c.l.b16 %v9944
        %v10600 = vunpack.c.h.b16 %v9944
        %v10601 = vunpack.c.l.b16 %v9945
        %v10602 = vunpack.c.h.b16 %v9945
        %v10603 = vunpack.c.l.b16 %v9946
        %v10604 = vunpack.c.h.b16 %v9946
        %v10605 = vunpack.c.l.b16 %v9947
        %v10606 = vunpack.c.h.b16 %v9947
        %v10607 = vunpack.c.l.b16 %v9948
        %v10608 = vunpack.c.h.b16 %v9948
        %v10609 = vunpack.c.l.b16 %v9949
        %v10610 = vunpack.c.h.b16 %v9949
        %v10611 = vunpack.c.l.b16 %v9950
        %v10612 = vunpack.c.h.b16 %v9950
        %v10613 = vunpack.c.l.b16 %v9951
        %v10614 = vunpack.c.h.b16 %v9951
        %v10615 = vunpack.c.l.b16 %v9952
        %v10616 = vunpack.c.h.b16 %v9952
        %v10617 = vunpack.c.l.b16 %v9953
        %v10618 = vunpack.c.h.b16 %v9953
        %v10619 = vunpack.c.l.b16 %v9954
        %v10620 = vunpack.c.h.b16 %v9954
        %v10621 = vunpack.c.l.b16 %v9955
        %v10622 = vunpack.c.h.b16 %v9955
        %v10623 = vunpack.c.l.b16 %v9956
        %v10624 = vunpack.c.h.b16 %v9956
        %v10625 = vunpack.c.l.b16 %v9957
        %v10626 = vunpack.c.h.b16 %v9957
        %v10627 = vunpack.c.l.b16 %v9958
        %v10628 = vunpack.c.h.b16 %v9958
        %v10629 = vunpack.c.l.b16 %v9959
        %v10630 = vunpack.c.h.b16 %v9959
        %v10631 = vunpack.c.l.b16 %v9960
        %v10632 = vunpack.c.h.b16 %v9960
        %v10633 = vunpack.c.l.b16 %v9961
        %v10634 = vunpack.c.h.b16 %v9961
        %v10635 = vunpack.c.l.b16 %v9962
        %v10636 = vunpack.c.h.b16 %v9962
        %v10637 = vunpack.c.l.b16 %v9963
        %v10638 = vunpack.c.h.b16 %v9963
        %v10639 = vunpack.c.l.b16 %v9964
        %v10640 = vunpack.c.h.b16 %v9964
        %v10641 = vunpack.c.l.b16 %v9965
        %v10642 = vunpack.c.h.b16 %v9965
        %v10643 = vunpack.c.l.b16 %v9966
        %v10644 = vunpack.c.h.b16 %v9966
        %v10645 = vunpack.c.l.b16 %v9967
        %v10646 = vunpack.c.h.b16 %v9967
        %v10647 = vunpack.c.l.b16 %v9968
        %v10648 = vunpack.c.h.b16 %v9968
        %v10649 = vunpack.c.l.b16 %v9969
        %v10650 = vunpack.c.h.b16 %v9969
        %v10651 = vunpack.c.l.b16 %v9970
        %v10652 = vunpack.c.h.b16 %v9970
        %v10653 = vunpack.c.l.b16 %v9971
        %v10654 = vunpack.c.h.b16 %v9971
        %v10655 = vunpack.c.l.b16 %v9972
        %v10656 = vunpack.c.h.b16 %v9972
        %v10657 = vunpack.c.l.b16 %v9973
        %v10658 = vunpack.c.h.b16 %v9973
        %v10659 = vunpack.c.l.b16 %v9974
        %v10660 = vunpack.c.h.b16 %v9974
        %v10661 = vunpack.c.l.b16 %v9975
        %v10662 = vunpack.c.h.b16 %v9975
        %v10663 = vunpack.c.l.b16 %v9976
        %v10664 = vunpack.c.h.b16 %v9976
        %v10665 = vpack.c.b16 %v10541, %v10537
        %v10666 = vpack.c.b16 %v10542, %v10538
        %v10667 = vpack.c.b16 %v10543, %v10539
        %v10668 = vpack.c.b16 %v10544, %v10540
        %v10669 = vpack.c.b16 %v10549, %v10545
        %v10670 = vpack.c.b16 %v10550, %v10546
        %v10671 = vpack.c.b16 %v10551, %v10547
        %v10672 = vpack.c.b16 %v10552, %v10548
        %v10673 = vpack.c.b16 %v10557, %v10553
        %v10674 = vpack.c.b16 %v10558, %v10554
        %v10675 = vpack.c.b16 %v10559, %v10555
        %v10676 = vpack.c.b16 %v10560, %v10556
        %v10677 = vpack.c.b16 %v10565, %v10561
        %v10678 = vpack.c.b16 %v10566, %v10562
        %v10679 = vpack.c.b16 %v10567, %v10563
        %v10680 = vpack.c.b16 %v10568, %v10564
        %v10681 = vpack.c.b16 %v10573, %v10569
        %v10682 = vpack.c.b16 %v10574, %v10570
        %v10683 = vpack.c.b16 %v10575, %v10571
        %v10684 = vpack.c.b16 %v10576, %v10572
        %v10685 = vpack.c.b16 %v10581, %v10577
        %v10686 = vpack.c.b16 %v10582, %v10578
        %v10687 = vpack.c.b16 %v10583, %v10579
        %v10688 = vpack.c.b16 %v10584, %v10580
        %v10689 = vpack.c.b16 %v10589, %v10585
        %v10690 = vpack.c.b16 %v10590, %v10586
        %v10691 = vpack.c.b16 %v10591, %v10587
        %v10692 = vpack.c.b16 %v10592, %v10588
        %v10693 = vpack.c.b16 %v10597, %v10593
        %v10694 = vpack.c.b16 %v10598, %v10594
        %v10695 = vpack.c.b16 %v10599, %v10595
        %v10696 = vpack.c.b16 %v10600, %v10596
        %v10697 = vpack.c.b16 %v10605, %v10601
        %v10698 = vpack.c.b16 %v10606, %v10602
        %v10699 = vpack.c.b16 %v10607, %v10603
        %v10700 = vpack.c.b16 %v10608, %v10604
        %v10701 = vpack.c.b16 %v10613, %v10609
        %v10702 = vpack.c.b16 %v10614, %v10610
        %v10703 = vpack.c.b16 %v10615, %v10611
        %v10704 = vpack.c.b16 %v10616, %v10612
        %v10705 = vpack.c.b16 %v10621, %v10617
        %v10706 = vpack.c.b16 %v10622, %v10618
        %v10707 = vpack.c.b16 %v10623, %v10619
        %v10708 = vpack.c.b16 %v10624, %v10620
        %v10709 = vpack.c.b16 %v10629, %v10625
        %v10710 = vpack.c.b16 %v10630, %v10626
        %v10711 = vpack.c.b16 %v10631, %v10627
        %v10712 = vpack.c.b16 %v10632, %v10628
        %v10713 = vpack.c.b16 %v10637, %v10633
        %v10714 = vpack.c.b16 %v10638, %v10634
        %v10715 = vpack.c.b16 %v10639, %v10635
        %v10716 = vpack.c.b16 %v10640, %v10636
        %v10717 = vpack.c.b16 %v10645, %v10641
        %v10718 = vpack.c.b16 %v10646, %v10642
        %v10719 = vpack.c.b16 %v10647, %v10643
        %v10720 = vpack.c.b16 %v10648, %v10644
        %v10721 = vpack.c.b16 %v10653, %v10649
        %v10722 = vpack.c.b16 %v10654, %v10650
        %v10723 = vpack.c.b16 %v10655, %v10651
        %v10724 = vpack.c.b16 %v10656, %v10652
        %v10725 = vpack.c.b16 %v10661, %v10657
        %v10726 = vpack.c.b16 %v10662, %v10658
        %v10727 = vpack.c.b16 %v10663, %v10659
        %v10728 = vpack.c.b16 %v10664, %v10660
        %10793 = vmatprep.subr.bf16.mxu0 %v10666
        %10794 = vmatpush1.bf16.msra.mxu0 %v10665
        %10795 = vmatprep.subr.bf16.mxu0 %v10670
        %10796 = vmatpush1.bf16.msra.mxu0 %v10669
        %10797 = vmatprep.subr.bf16.mxu0 %v10674
        %10798 = vmatpush1.bf16.msra.mxu0 %v10673
        %10799 = vmatprep.subr.bf16.mxu0 %v10678
        %10800 = vmatpush1.bf16.msra.mxu0 %v10677
        %10801 = vmatprep.subr.bf16.mxu0 %v10682
        %10802 = vmatpush1.bf16.msra.mxu0 %v10681
        %10803 = vmatprep.subr.bf16.mxu0 %v10686
        %10804 = vmatpush1.bf16.msra.mxu0 %v10685
        %10805 = vmatprep.subr.bf16.mxu0 %v10690
        %10806 = vmatpush1.bf16.msra.mxu0 %v10689
        %10807 = vmatprep.subr.bf16.mxu0 %v10694
        %10808 = vmatpush1.bf16.msra.mxu0 %v10693
        %10809 = vmatprep.subr.bf16.mxu0 %v10698
        %10810 = vmatpush1.bf16.msra.mxu0 %v10697
        %10811 = vmatprep.subr.bf16.mxu0 %v10702
        %10812 = vmatpush1.bf16.msra.mxu0 %v10701
        %10813 = vmatprep.subr.bf16.mxu0 %v10706
        %10814 = vmatpush1.bf16.msra.mxu0 %v10705
        %10815 = vmatprep.subr.bf16.mxu0 %v10710
        %10816 = vmatpush1.bf16.msra.mxu0 %v10709
        %10817 = vmatprep.subr.bf16.mxu0 %v10714
        %10818 = vmatpush1.bf16.msra.mxu0 %v10713
        %10819 = vmatprep.subr.bf16.mxu0 %v10718
        %10820 = vmatpush1.bf16.msra.mxu0 %v10717
        %10821 = vmatprep.subr.bf16.mxu0 %v10722
        %10822 = vmatpush1.bf16.msra.mxu0 %v10721
        %10823 = vmatprep.subr.bf16.mxu0 %v10726
        %10824 = vmatpush1.bf16.msra.mxu0 %v10725
        %10825 = vmatprep.mubr.bf16.mxu0 %v10470
        %10826 = vmatmul.mubr.bf16.gmra.mrb[0].mxu0 %v10469
        %v10827 = vpop.f32.mrb[0].mxu0
        %v10828 = vadd.f32 %v10422, %v10827
        %v10829 = vpop.f32.mrb[0].mxu0
        %v10830 = vadd.f32 %v10424, %v10829
        %v10831 = vpop.f32.mrb[0].mxu0
        %v10832 = vpop.f32.mrb[0].mxu0
        %10833 = vdwg.mxu0
        %10834 = vmatprep.subr.bf16.mxu0 %v10668
        %10835 = vmatpush1.bf16.msra.mxu0 %v10667
        %10836 = vmatprep.subr.bf16.mxu0 %v10672
        %10837 = vmatpush1.bf16.msra.mxu0 %v10671
        %10838 = vmatprep.subr.bf16.mxu0 %v10676
        %10839 = vmatpush1.bf16.msra.mxu0 %v10675
        %10840 = vmatprep.subr.bf16.mxu0 %v10680
        %10841 = vmatpush1.bf16.msra.mxu0 %v10679
        %10842 = vmatprep.subr.bf16.mxu0 %v10684
        %10843 = vmatpush1.bf16.msra.mxu0 %v10683
        %10844 = vmatprep.subr.bf16.mxu0 %v10688
        %10845 = vmatpush1.bf16.msra.mxu0 %v10687
        %10846 = vmatprep.subr.bf16.mxu0 %v10692
        %10847 = vmatpush1.bf16.msra.mxu0 %v10691
        %10848 = vmatprep.subr.bf16.mxu0 %v10696
        %10849 = vmatpush1.bf16.msra.mxu0 %v10695
        %10850 = vmatprep.subr.bf16.mxu0 %v10700
        %10851 = vmatpush1.bf16.msra.mxu0 %v10699
        %10852 = vmatprep.subr.bf16.mxu0 %v10704
        %10853 = vmatpush1.bf16.msra.mxu0 %v10703
        %10854 = vmatprep.subr.bf16.mxu0 %v10708
        %10855 = vmatpush1.bf16.msra.mxu0 %v10707
        %10856 = vmatprep.subr.bf16.mxu0 %v10712
        %10857 = vmatpush1.bf16.msra.mxu0 %v10711
        %10858 = vmatprep.subr.bf16.mxu0 %v10716
        %10859 = vmatpush1.bf16.msra.mxu0 %v10715
        %10860 = vmatprep.subr.bf16.mxu0 %v10720
        %10861 = vmatpush1.bf16.msra.mxu0 %v10719
        %10862 = vmatprep.subr.bf16.mxu0 %v10724
        %10863 = vmatpush1.bf16.msra.mxu0 %v10723
        %10864 = vmatprep.subr.bf16.mxu0 %v10728
        %10865 = vmatpush1.bf16.msra.mxu0 %v10727
        %10866 = vmatprep.mubr.bf16.mxu0 %v10470
        %10867 = vmatmul.mubr.bf16.gmra.mrb[0].mxu0 %v10469
        %v10868 = vpop.f32.mrb[0].mxu0
        %v10869 = vadd.f32 %v10463, %v10868
        %v10870 = vpop.f32.mrb[0].mxu0
        %v10871 = vadd.f32 %v10465, %v10870
        %v10872 = vpop.f32.mrb[0].mxu0
        %v10873 = vpop.f32.mrb[0].mxu0
        %10874 = vdwg.mxu0
        %v10875 = vld [vmem:[#allocation4] sm:$0xee]
        %s10876 = scalar_lea.vmem [#allocation13], 1024
        %v10877 = vld [vmem:[%s10876] sm:$0xff]
        %v10878 = vld [vmem:[%s10876 + $0x8] sm:$0xff]
        %v10879 = vld [vmem:[%s10876 + $0x10] sm:$0xff]
        %v10880 = vld [vmem:[%s10876 + $0x18] sm:$0xff]
        %v10881 = vld [vmem:[%s10876 + $0x20] sm:$0xff]
        %v10882 = vld [vmem:[%s10876 + $0x28] sm:$0xff]
        %v10883 = vld [vmem:[%s10876 + $0x30] sm:$0xff]
        %v10884 = vld [vmem:[%s10876 + $0x38] sm:$0xff]
        %v10885 = vld [vmem:[%s10876 + $0x40] sm:$0xff]
        %v10886 = vld [vmem:[%s10876 + $0x48] sm:$0xff]
        %v10887 = vld [vmem:[%s10876 + $0x50] sm:$0xff]
        %v10888 = vld [vmem:[%s10876 + $0x58] sm:$0xff]
        %v10889 = vld [vmem:[%s10876 + $0x60] sm:$0xff]
        %v10890 = vld [vmem:[%s10876 + $0x68] sm:$0xff]
        %v10891 = vld [vmem:[%s10876 + $0x70] sm:$0xff]
        %v10892 = vld [vmem:[%s10876 + $0x78] sm:$0xff]
        %v10893 = vld [vmem:[%s10876 + $0x80] sm:$0xff]
        %v10894 = vld [vmem:[%s10876 + $0x88] sm:$0xff]
        %v10895 = vld [vmem:[%s10876 + $0x90] sm:$0xff]
        %v10896 = vld [vmem:[%s10876 + $0x98] sm:$0xff]
        %v10897 = vld [vmem:[%s10876 + $0xa0] sm:$0xff]
        %v10898 = vld [vmem:[%s10876 + $0xa8] sm:$0xff]
        %v10899 = vld [vmem:[%s10876 + $0xb0] sm:$0xff]
        %v10900 = vld [vmem:[%s10876 + $0xb8] sm:$0xff]
        %v10901 = vld [vmem:[%s10876 + $0xc0] sm:$0xff]
        %v10902 = vld [vmem:[%s10876 + $0xc8] sm:$0xff]
        %v10903 = vld [vmem:[%s10876 + $0xd0] sm:$0xff]
        %v10904 = vld [vmem:[%s10876 + $0xd8] sm:$0xff]
        %v10905 = vld [vmem:[%s10876 + $0xe0] sm:$0xff]
        %v10906 = vld [vmem:[%s10876 + $0xe8] sm:$0xff]
        %v10907 = vld [vmem:[%s10876 + $0xf0] sm:$0xff]
        %v10908 = vld [vmem:[%s10876 + $0xf8] sm:$0xff]
        %v10909 = vld [vmem:[%s10876 + $0x100] sm:$0xff]
        %v10910 = vld [vmem:[%s10876 + $0x108] sm:$0xff]
        %v10911 = vld [vmem:[%s10876 + $0x110] sm:$0xff]
        %v10912 = vld [vmem:[%s10876 + $0x118] sm:$0xff]
        %v10913 = vld [vmem:[%s10876 + $0x120] sm:$0xff]
        %v10914 = vld [vmem:[%s10876 + $0x128] sm:$0xff]
        %v10915 = vld [vmem:[%s10876 + $0x130] sm:$0xff]
        %v10916 = vld [vmem:[%s10876 + $0x138] sm:$0xff]
        %v10917 = vld [vmem:[%s10876 + $0x140] sm:$0xff]
        %v10918 = vld [vmem:[%s10876 + $0x148] sm:$0xff]
        %v10919 = vld [vmem:[%s10876 + $0x150] sm:$0xff]
        %v10920 = vld [vmem:[%s10876 + $0x158] sm:$0xff]
        %v10921 = vld [vmem:[%s10876 + $0x160] sm:$0xff]
        %v10922 = vld [vmem:[%s10876 + $0x168] sm:$0xff]
        %v10923 = vld [vmem:[%s10876 + $0x170] sm:$0xff]
        %v10924 = vld [vmem:[%s10876 + $0x178] sm:$0xff]
        %v10925 = vld [vmem:[%s10876 + $0x180] sm:$0xff]
        %v10926 = vld [vmem:[%s10876 + $0x188] sm:$0xff]
        %v10927 = vld [vmem:[%s10876 + $0x190] sm:$0xff]
        %v10928 = vld [vmem:[%s10876 + $0x198] sm:$0xff]
        %v10929 = vld [vmem:[%s10876 + $0x1a0] sm:$0xff]
        %v10930 = vld [vmem:[%s10876 + $0x1a8] sm:$0xff]
        %v10931 = vld [vmem:[%s10876 + $0x1b0] sm:$0xff]
        %v10932 = vld [vmem:[%s10876 + $0x1b8] sm:$0xff]
        %v10933 = vld [vmem:[%s10876 + $0x1c0] sm:$0xff]
        %v10934 = vld [vmem:[%s10876 + $0x1c8] sm:$0xff]
        %v10935 = vld [vmem:[%s10876 + $0x1d0] sm:$0xff]
        %v10936 = vld [vmem:[%s10876 + $0x1d8] sm:$0xff]
        %v10937 = vld [vmem:[%s10876 + $0x1e0] sm:$0xff]
        %v10938 = vld [vmem:[%s10876 + $0x1e8] sm:$0xff]
        %v10939 = vld [vmem:[%s10876 + $0x1f0] sm:$0xff]
        %v10940 = vld [vmem:[%s10876 + $0x1f8] sm:$0xff]
        %v10942 = vunpack.c.l.b16 %v10875
        %v10943 = vunpack.c.h.b16 %v10875
        %v10944 = vpack.c.b16 %v10047, %v10942
        %v10945 = vpack.c.b16 %v10048, %v10943
        %v10946 = vrot.slane %v10944, 1
        %v10947 = vrot.slane %v10945, 1
        %v11014 = vunpack.c.l.b16 %v10877
        %v11015 = vunpack.c.h.b16 %v10877
        %v11016 = vunpack.c.l.b16 %v10878
        %v11017 = vunpack.c.h.b16 %v10878
        %v11018 = vunpack.c.l.b16 %v10879
        %v11019 = vunpack.c.h.b16 %v10879
        %v11020 = vunpack.c.l.b16 %v10880
        %v11021 = vunpack.c.h.b16 %v10880
        %v11022 = vunpack.c.l.b16 %v10881
        %v11023 = vunpack.c.h.b16 %v10881
        %v11024 = vunpack.c.l.b16 %v10882
        %v11025 = vunpack.c.h.b16 %v10882
        %v11026 = vunpack.c.l.b16 %v10883
        %v11027 = vunpack.c.h.b16 %v10883
        %v11028 = vunpack.c.l.b16 %v10884
        %v11029 = vunpack.c.h.b16 %v10884
        %v11030 = vunpack.c.l.b16 %v10885
        %v11031 = vunpack.c.h.b16 %v10885
        %v11032 = vunpack.c.l.b16 %v10886
        %v11033 = vunpack.c.h.b16 %v10886
        %v11034 = vunpack.c.l.b16 %v10887
        %v11035 = vunpack.c.h.b16 %v10887
        %v11036 = vunpack.c.l.b16 %v10888
        %v11037 = vunpack.c.h.b16 %v10888
        %v11038 = vunpack.c.l.b16 %v10889
        %v11039 = vunpack.c.h.b16 %v10889
        %v11040 = vunpack.c.l.b16 %v10890
        %v11041 = vunpack.c.h.b16 %v10890
        %v11042 = vunpack.c.l.b16 %v10891
        %v11043 = vunpack.c.h.b16 %v10891
        %v11044 = vunpack.c.l.b16 %v10892
        %v11045 = vunpack.c.h.b16 %v10892
        %v11046 = vunpack.c.l.b16 %v10893
        %v11047 = vunpack.c.h.b16 %v10893
        %v11048 = vunpack.c.l.b16 %v10894
        %v11049 = vunpack.c.h.b16 %v10894
        %v11050 = vunpack.c.l.b16 %v10895
        %v11051 = vunpack.c.h.b16 %v10895
        %v11052 = vunpack.c.l.b16 %v10896
        %v11053 = vunpack.c.h.b16 %v10896
        %v11054 = vunpack.c.l.b16 %v10897
        %v11055 = vunpack.c.h.b16 %v10897
        %v11056 = vunpack.c.l.b16 %v10898
        %v11057 = vunpack.c.h.b16 %v10898
        %v11058 = vunpack.c.l.b16 %v10899
        %v11059 = vunpack.c.h.b16 %v10899
        %v11060 = vunpack.c.l.b16 %v10900
        %v11061 = vunpack.c.h.b16 %v10900
        %v11062 = vunpack.c.l.b16 %v10901
        %v11063 = vunpack.c.h.b16 %v10901
        %v11064 = vunpack.c.l.b16 %v10902
        %v11065 = vunpack.c.h.b16 %v10902
        %v11066 = vunpack.c.l.b16 %v10903
        %v11067 = vunpack.c.h.b16 %v10903
        %v11068 = vunpack.c.l.b16 %v10904
        %v11069 = vunpack.c.h.b16 %v10904
        %v11070 = vunpack.c.l.b16 %v10905
        %v11071 = vunpack.c.h.b16 %v10905
        %v11072 = vunpack.c.l.b16 %v10906
        %v11073 = vunpack.c.h.b16 %v10906
        %v11074 = vunpack.c.l.b16 %v10907
        %v11075 = vunpack.c.h.b16 %v10907
        %v11076 = vunpack.c.l.b16 %v10908
        %v11077 = vunpack.c.h.b16 %v10908
        %v11078 = vunpack.c.l.b16 %v10909
        %v11079 = vunpack.c.h.b16 %v10909
        %v11080 = vunpack.c.l.b16 %v10910
        %v11081 = vunpack.c.h.b16 %v10910
        %v11082 = vunpack.c.l.b16 %v10911
        %v11083 = vunpack.c.h.b16 %v10911
        %v11084 = vunpack.c.l.b16 %v10912
        %v11085 = vunpack.c.h.b16 %v10912
        %v11086 = vunpack.c.l.b16 %v10913
        %v11087 = vunpack.c.h.b16 %v10913
        %v11088 = vunpack.c.l.b16 %v10914
        %v11089 = vunpack.c.h.b16 %v10914
        %v11090 = vunpack.c.l.b16 %v10915
        %v11091 = vunpack.c.h.b16 %v10915
        %v11092 = vunpack.c.l.b16 %v10916
        %v11093 = vunpack.c.h.b16 %v10916
        %v11094 = vunpack.c.l.b16 %v10917
        %v11095 = vunpack.c.h.b16 %v10917
        %v11096 = vunpack.c.l.b16 %v10918
        %v11097 = vunpack.c.h.b16 %v10918
        %v11098 = vunpack.c.l.b16 %v10919
        %v11099 = vunpack.c.h.b16 %v10919
        %v11100 = vunpack.c.l.b16 %v10920
        %v11101 = vunpack.c.h.b16 %v10920
        %v11102 = vunpack.c.l.b16 %v10921
        %v11103 = vunpack.c.h.b16 %v10921
        %v11104 = vunpack.c.l.b16 %v10922
        %v11105 = vunpack.c.h.b16 %v10922
        %v11106 = vunpack.c.l.b16 %v10923
        %v11107 = vunpack.c.h.b16 %v10923
        %v11108 = vunpack.c.l.b16 %v10924
        %v11109 = vunpack.c.h.b16 %v10924
        %v11110 = vunpack.c.l.b16 %v10925
        %v11111 = vunpack.c.h.b16 %v10925
        %v11112 = vunpack.c.l.b16 %v10926
        %v11113 = vunpack.c.h.b16 %v10926
        %v11114 = vunpack.c.l.b16 %v10927
        %v11115 = vunpack.c.h.b16 %v10927
        %v11116 = vunpack.c.l.b16 %v10928
        %v11117 = vunpack.c.h.b16 %v10928
        %v11118 = vunpack.c.l.b16 %v10929
        %v11119 = vunpack.c.h.b16 %v10929
        %v11120 = vunpack.c.l.b16 %v10930
        %v11121 = vunpack.c.h.b16 %v10930
        %v11122 = vunpack.c.l.b16 %v10931
        %v11123 = vunpack.c.h.b16 %v10931
        %v11124 = vunpack.c.l.b16 %v10932
        %v11125 = vunpack.c.h.b16 %v10932
        %v11126 = vunpack.c.l.b16 %v10933
        %v11127 = vunpack.c.h.b16 %v10933
        %v11128 = vunpack.c.l.b16 %v10934
        %v11129 = vunpack.c.h.b16 %v10934
        %v11130 = vunpack.c.l.b16 %v10935
        %v11131 = vunpack.c.h.b16 %v10935
        %v11132 = vunpack.c.l.b16 %v10936
        %v11133 = vunpack.c.h.b16 %v10936
        %v11134 = vunpack.c.l.b16 %v10937
        %v11135 = vunpack.c.h.b16 %v10937
        %v11136 = vunpack.c.l.b16 %v10938
        %v11137 = vunpack.c.h.b16 %v10938
        %v11138 = vunpack.c.l.b16 %v10939
        %v11139 = vunpack.c.h.b16 %v10939
        %v11140 = vunpack.c.l.b16 %v10940
        %v11141 = vunpack.c.h.b16 %v10940
        %v11142 = vpack.c.b16 %v11018, %v11014
        %v11143 = vpack.c.b16 %v11019, %v11015
        %v11144 = vpack.c.b16 %v11020, %v11016
        %v11145 = vpack.c.b16 %v11021, %v11017
        %v11146 = vpack.c.b16 %v11026, %v11022
        %v11147 = vpack.c.b16 %v11027, %v11023
        %v11148 = vpack.c.b16 %v11028, %v11024
        %v11149 = vpack.c.b16 %v11029, %v11025
        %v11150 = vpack.c.b16 %v11034, %v11030
        %v11151 = vpack.c.b16 %v11035, %v11031
        %v11152 = vpack.c.b16 %v11036, %v11032
        %v11153 = vpack.c.b16 %v11037, %v11033
        %v11154 = vpack.c.b16 %v11042, %v11038
        %v11155 = vpack.c.b16 %v11043, %v11039
        %v11156 = vpack.c.b16 %v11044, %v11040
        %v11157 = vpack.c.b16 %v11045, %v11041
        %v11158 = vpack.c.b16 %v11050, %v11046
        %v11159 = vpack.c.b16 %v11051, %v11047
        %v11160 = vpack.c.b16 %v11052, %v11048
        %v11161 = vpack.c.b16 %v11053, %v11049
        %v11162 = vpack.c.b16 %v11058, %v11054
        %v11163 = vpack.c.b16 %v11059, %v11055
        %v11164 = vpack.c.b16 %v11060, %v11056
        %v11165 = vpack.c.b16 %v11061, %v11057
        %v11166 = vpack.c.b16 %v11066, %v11062
        %v11167 = vpack.c.b16 %v11067, %v11063
        %v11168 = vpack.c.b16 %v11068, %v11064
        %v11169 = vpack.c.b16 %v11069, %v11065
        %v11170 = vpack.c.b16 %v11074, %v11070
        %v11171 = vpack.c.b16 %v11075, %v11071
        %v11172 = vpack.c.b16 %v11076, %v11072
        %v11173 = vpack.c.b16 %v11077, %v11073
        %v11174 = vpack.c.b16 %v11082, %v11078
        %v11175 = vpack.c.b16 %v11083, %v11079
        %v11176 = vpack.c.b16 %v11084, %v11080
        %v11177 = vpack.c.b16 %v11085, %v11081
        %v11178 = vpack.c.b16 %v11090, %v11086
        %v11179 = vpack.c.b16 %v11091, %v11087
        %v11180 = vpack.c.b16 %v11092, %v11088
        %v11181 = vpack.c.b16 %v11093, %v11089
        %v11182 = vpack.c.b16 %v11098, %v11094
        %v11183 = vpack.c.b16 %v11099, %v11095
        %v11184 = vpack.c.b16 %v11100, %v11096
        %v11185 = vpack.c.b16 %v11101, %v11097
        %v11186 = vpack.c.b16 %v11106, %v11102
        %v11187 = vpack.c.b16 %v11107, %v11103
        %v11188 = vpack.c.b16 %v11108, %v11104
        %v11189 = vpack.c.b16 %v11109, %v11105
        %v11190 = vpack.c.b16 %v11114, %v11110
        %v11191 = vpack.c.b16 %v11115, %v11111
        %v11192 = vpack.c.b16 %v11116, %v11112
        %v11193 = vpack.c.b16 %v11117, %v11113
        %v11194 = vpack.c.b16 %v11122, %v11118
        %v11195 = vpack.c.b16 %v11123, %v11119
        %v11196 = vpack.c.b16 %v11124, %v11120
        %v11197 = vpack.c.b16 %v11125, %v11121
        %v11198 = vpack.c.b16 %v11130, %v11126
        %v11199 = vpack.c.b16 %v11131, %v11127
        %v11200 = vpack.c.b16 %v11132, %v11128
        %v11201 = vpack.c.b16 %v11133, %v11129
        %v11202 = vpack.c.b16 %v11138, %v11134
        %v11203 = vpack.c.b16 %v11139, %v11135
        %v11204 = vpack.c.b16 %v11140, %v11136
        %v11205 = vpack.c.b16 %v11141, %v11137
        %11270 = vmatprep.subr.bf16.mxu0 %v11143
        %11271 = vmatpush1.bf16.msra.mxu0 %v11142
        %11272 = vmatprep.subr.bf16.mxu0 %v11147
        %11273 = vmatpush1.bf16.msra.mxu0 %v11146
        %11274 = vmatprep.subr.bf16.mxu0 %v11151
        %11275 = vmatpush1.bf16.msra.mxu0 %v11150
        %11276 = vmatprep.subr.bf16.mxu0 %v11155
        %11277 = vmatpush1.bf16.msra.mxu0 %v11154
        %11278 = vmatprep.subr.bf16.mxu0 %v11159
        %11279 = vmatpush1.bf16.msra.mxu0 %v11158
        %11280 = vmatprep.subr.bf16.mxu0 %v11163
        %11281 = vmatpush1.bf16.msra.mxu0 %v11162
        %11282 = vmatprep.subr.bf16.mxu0 %v11167
        %11283 = vmatpush1.bf16.msra.mxu0 %v11166
        %11284 = vmatprep.subr.bf16.mxu0 %v11171
        %11285 = vmatpush1.bf16.msra.mxu0 %v11170
        %11286 = vmatprep.subr.bf16.mxu0 %v11175
        %11287 = vmatpush1.bf16.msra.mxu0 %v11174
        %11288 = vmatprep.subr.bf16.mxu0 %v11179
        %11289 = vmatpush1.bf16.msra.mxu0 %v11178
        %11290 = vmatprep.subr.bf16.mxu0 %v11183
        %11291 = vmatpush1.bf16.msra.mxu0 %v11182
        %11292 = vmatprep.subr.bf16.mxu0 %v11187
        %11293 = vmatpush1.bf16.msra.mxu0 %v11186
        %11294 = vmatprep.subr.bf16.mxu0 %v11191
        %11295 = vmatpush1.bf16.msra.mxu0 %v11190
        %11296 = vmatprep.subr.bf16.mxu0 %v11195
        %11297 = vmatpush1.bf16.msra.mxu0 %v11194
        %11298 = vmatprep.subr.bf16.mxu0 %v11199
        %11299 = vmatpush1.bf16.msra.mxu0 %v11198
        %11300 = vmatprep.subr.bf16.mxu0 %v11203
        %11301 = vmatpush1.bf16.msra.mxu0 %v11202
        %11302 = vmatprep.mubr.bf16.mxu0 %v10947
        %11303 = vmatmul.mubr.bf16.gmra.mrb[0].mxu0 %v10946
        %v11304 = vpop.f32.mrb[0].mxu0
        %v11305 = vadd.f32 0.0, %v11304
        %v11306 = vpop.f32.mrb[0].mxu0
        %v11307 = vadd.f32 0.0, %v11306
        %v11308 = vpop.f32.mrb[0].mxu0
        %v11309 = vpop.f32.mrb[0].mxu0
        %11310 = vdwg.mxu0
        %11311 = vmatprep.subr.bf16.mxu0 %v11145
        %11312 = vmatpush1.bf16.msra.mxu0 %v11144
        %11313 = vmatprep.subr.bf16.mxu0 %v11149
        %11314 = vmatpush1.bf16.msra.mxu0 %v11148
        %11315 = vmatprep.subr.bf16.mxu0 %v11153
        %11316 = vmatpush1.bf16.msra.mxu0 %v11152
        %11317 = vmatprep.subr.bf16.mxu0 %v11157
        %11318 = vmatpush1.bf16.msra.mxu0 %v11156
        %11319 = vmatprep.subr.bf16.mxu0 %v11161
        %11320 = vmatpush1.bf16.msra.mxu0 %v11160
        %11321 = vmatprep.subr.bf16.mxu0 %v11165
        %11322 = vmatpush1.bf16.msra.mxu0 %v11164
        %11323 = vmatprep.subr.bf16.mxu0 %v11169
        %11324 = vmatpush1.bf16.msra.mxu0 %v11168
        %11325 = vmatprep.subr.bf16.mxu0 %v11173
        %11326 = vmatpush1.bf16.msra.mxu0 %v11172
        %11327 = vmatprep.subr.bf16.mxu0 %v11177
        %11328 = vmatpush1.bf16.msra.mxu0 %v11176
        %11329 = vmatprep.subr.bf16.mxu0 %v11181
        %11330 = vmatpush1.bf16.msra.mxu0 %v11180
        %11331 = vmatprep.subr.bf16.mxu0 %v11185
        %11332 = vmatpush1.bf16.msra.mxu0 %v11184
        %11333 = vmatprep.subr.bf16.mxu0 %v11189
        %11334 = vmatpush1.bf16.msra.mxu0 %v11188
        %11335 = vmatprep.subr.bf16.mxu0 %v11193
        %11336 = vmatpush1.bf16.msra.mxu0 %v11192
        %11337 = vmatprep.subr.bf16.mxu0 %v11197
        %11338 = vmatpush1.bf16.msra.mxu0 %v11196
        %11339 = vmatprep.subr.bf16.mxu0 %v11201
        %11340 = vmatpush1.bf16.msra.mxu0 %v11200
        %11341 = vmatprep.subr.bf16.mxu0 %v11205
        %11342 = vmatpush1.bf16.msra.mxu0 %v11204
        %11343 = vmatprep.mubr.bf16.mxu0 %v10947
        %11344 = vmatmul.mubr.bf16.gmra.mrb[0].mxu0 %v10946
        %v11345 = vpop.f32.mrb[0].mxu0
        %v11346 = vadd.f32 0.0, %v11345
        %v11347 = vpop.f32.mrb[0].mxu0
        %v11348 = vadd.f32 0.0, %v11347
        %v11349 = vpop.f32.mrb[0].mxu0
        %v11350 = vpop.f32.mrb[0].mxu0
        %11351 = vdwg.mxu0
        %v11352 = vadd.f32 %v10828, %v11305
        %v11353 = vadd.f32 %v10830, %v11307
        %v11354 = vadd.f32 %v10869, %v11346
        %v11355 = vadd.f32 %v10871, %v11348
        %v11356 = vld [vmem:[#allocation4 + $0x8] sm:$0x33]
        %s11357 = scalar_lea.vmem [#allocation13], 1536
        %v11358 = vld [vmem:[%s11357] sm:$0xff]
        %v11359 = vld [vmem:[%s11357 + $0x8] sm:$0xff]
        %v11360 = vld [vmem:[%s11357 + $0x10] sm:$0xff]
        %v11361 = vld [vmem:[%s11357 + $0x18] sm:$0xff]
        %v11362 = vld [vmem:[%s11357 + $0x20] sm:$0xff]
        %v11363 = vld [vmem:[%s11357 + $0x28] sm:$0xff]
        %v11364 = vld [vmem:[%s11357 + $0x30] sm:$0xff]
        %v11365 = vld [vmem:[%s11357 + $0x38] sm:$0xff]
        %v11366 = vld [vmem:[%s11357 + $0x40] sm:$0xff]
        %v11367 = vld [vmem:[%s11357 + $0x48] sm:$0xff]
        %v11368 = vld [vmem:[%s11357 + $0x50] sm:$0xff]
        %v11369 = vld [vmem:[%s11357 + $0x58] sm:$0xff]
        %v11370 = vld [vmem:[%s11357 + $0x60] sm:$0xff]
        %v11371 = vld [vmem:[%s11357 + $0x68] sm:$0xff]
        %v11372 = vld [vmem:[%s11357 + $0x70] sm:$0xff]
        %v11373 = vld [vmem:[%s11357 + $0x78] sm:$0xff]
        %v11374 = vld [vmem:[%s11357 + $0x80] sm:$0xff]
        %v11375 = vld [vmem:[%s11357 + $0x88] sm:$0xff]
        %v11376 = vld [vmem:[%s11357 + $0x90] sm:$0xff]
        %v11377 = vld [vmem:[%s11357 + $0x98] sm:$0xff]
        %v11378 = vld [vmem:[%s11357 + $0xa0] sm:$0xff]
        %v11379 = vld [vmem:[%s11357 + $0xa8] sm:$0xff]
        %v11380 = vld [vmem:[%s11357 + $0xb0] sm:$0xff]
        %v11381 = vld [vmem:[%s11357 + $0xb8] sm:$0xff]
        %v11382 = vld [vmem:[%s11357 + $0xc0] sm:$0xff]
        %v11383 = vld [vmem:[%s11357 + $0xc8] sm:$0xff]
        %v11384 = vld [vmem:[%s11357 + $0xd0] sm:$0xff]
        %v11385 = vld [vmem:[%s11357 + $0xd8] sm:$0xff]
        %v11386 = vld [vmem:[%s11357 + $0xe0] sm:$0xff]
        %v11387 = vld [vmem:[%s11357 + $0xe8] sm:$0xff]
        %v11388 = vld [vmem:[%s11357 + $0xf0] sm:$0xff]
        %v11389 = vld [vmem:[%s11357 + $0xf8] sm:$0xff]
        %v11390 = vld [vmem:[%s11357 + $0x100] sm:$0xff]
        %v11391 = vld [vmem:[%s11357 + $0x108] sm:$0xff]
        %v11392 = vld [vmem:[%s11357 + $0x110] sm:$0xff]
        %v11393 = vld [vmem:[%s11357 + $0x118] sm:$0xff]
        %v11394 = vld [vmem:[%s11357 + $0x120] sm:$0xff]
        %v11395 = vld [vmem:[%s11357 + $0x128] sm:$0xff]
        %v11396 = vld [vmem:[%s11357 + $0x130] sm:$0xff]
        %v11397 = vld [vmem:[%s11357 + $0x138] sm:$0xff]
        %v11398 = vld [vmem:[%s11357 + $0x140] sm:$0xff]
        %v11399 = vld [vmem:[%s11357 + $0x148] sm:$0xff]
        %v11400 = vld [vmem:[%s11357 + $0x150] sm:$0xff]
        %v11401 = vld [vmem:[%s11357 + $0x158] sm:$0xff]
        %v11402 = vld [vmem:[%s11357 + $0x160] sm:$0xff]
        %v11403 = vld [vmem:[%s11357 + $0x168] sm:$0xff]
        %v11404 = vld [vmem:[%s11357 + $0x170] sm:$0xff]
        %v11405 = vld [vmem:[%s11357 + $0x178] sm:$0xff]
        %v11406 = vld [vmem:[%s11357 + $0x180] sm:$0xff]
        %v11407 = vld [vmem:[%s11357 + $0x188] sm:$0xff]
        %v11408 = vld [vmem:[%s11357 + $0x190] sm:$0xff]
        %v11409 = vld [vmem:[%s11357 + $0x198] sm:$0xff]
        %v11410 = vld [vmem:[%s11357 + $0x1a0] sm:$0xff]
        %v11411 = vld [vmem:[%s11357 + $0x1a8] sm:$0xff]
        %v11412 = vld [vmem:[%s11357 + $0x1b0] sm:$0xff]
        %v11413 = vld [vmem:[%s11357 + $0x1b8] sm:$0xff]
        %v11414 = vld [vmem:[%s11357 + $0x1c0] sm:$0xff]
        %v11415 = vld [vmem:[%s11357 + $0x1c8] sm:$0xff]
        %v11416 = vld [vmem:[%s11357 + $0x1d0] sm:$0xff]
        %v11417 = vld [vmem:[%s11357 + $0x1d8] sm:$0xff]
        %v11418 = vld [vmem:[%s11357 + $0x1e0] sm:$0xff]
        %v11419 = vld [vmem:[%s11357 + $0x1e8] sm:$0xff]
        %v11420 = vld [vmem:[%s11357 + $0x1f0] sm:$0xff]
        %v11421 = vld [vmem:[%s11357 + $0x1f8] sm:$0xff]
        %v11423 = vunpack.c.l.b16 %v11356
        %v11424 = vunpack.c.h.b16 %v11356
        %v11425 = vpack.c.b16 %v11423, %v10942
        %v11426 = vpack.c.b16 %v11424, %v10943
        %v11428 = vshrl.u32 %v11425, 16
        %v11430 = vrot.slane %v11428, 1
        %v11431 = vshll.u32 %v11425, 16
        %v11433 = vrot.slane %v11431, 2
        %v11434 = vor.u32 %v11430, %v11433
        %v11436 = vshrl.u32 %v11426, 16
        %v11438 = vrot.slane %v11436, 1
        %v11439 = vshll.u32 %v11426, 16
        %v11441 = vrot.slane %v11439, 2
        %v11442 = vor.u32 %v11438, %v11441
        %v11509 = vunpack.c.l.b16 %v11358
        %v11510 = vunpack.c.h.b16 %v11358
        %v11511 = vunpack.c.l.b16 %v11359
        %v11512 = vunpack.c.h.b16 %v11359
        %v11513 = vunpack.c.l.b16 %v11360
        %v11514 = vunpack.c.h.b16 %v11360
        %v11515 = vunpack.c.l.b16 %v11361
        %v11516 = vunpack.c.h.b16 %v11361
        %v11517 = vunpack.c.l.b16 %v11362
        %v11518 = vunpack.c.h.b16 %v11362
        %v11519 = vunpack.c.l.b16 %v11363
        %v11520 = vunpack.c.h.b16 %v11363
        %v11521 = vunpack.c.l.b16 %v11364
        %v11522 = vunpack.c.h.b16 %v11364
        %v11523 = vunpack.c.l.b16 %v11365
        %v11524 = vunpack.c.h.b16 %v11365
        %v11525 = vunpack.c.l.b16 %v11366
        %v11526 = vunpack.c.h.b16 %v11366
        %v11527 = vunpack.c.l.b16 %v11367
        %v11528 = vunpack.c.h.b16 %v11367
        %v11529 = vunpack.c.l.b16 %v11368
        %v11530 = vunpack.c.h.b16 %v11368
        %v11531 = vunpack.c.l.b16 %v11369
        %v11532 = vunpack.c.h.b16 %v11369
        %v11533 = vunpack.c.l.b16 %v11370
        %v11534 = vunpack.c.h.b16 %v11370
        %v11535 = vunpack.c.l.b16 %v11371
        %v11536 = vunpack.c.h.b16 %v11371
        %v11537 = vunpack.c.l.b16 %v11372
        %v11538 = vunpack.c.h.b16 %v11372
        %v11539 = vunpack.c.l.b16 %v11373
        %v11540 = vunpack.c.h.b16 %v11373
        %v11541 = vunpack.c.l.b16 %v11374
        %v11542 = vunpack.c.h.b16 %v11374
        %v11543 = vunpack.c.l.b16 %v11375
        %v11544 = vunpack.c.h.b16 %v11375
        %v11545 = vunpack.c.l.b16 %v11376
        %v11546 = vunpack.c.h.b16 %v11376
        %v11547 = vunpack.c.l.b16 %v11377
        %v11548 = vunpack.c.h.b16 %v11377
        %v11549 = vunpack.c.l.b16 %v11378
        %v11550 = vunpack.c.h.b16 %v11378
        %v11551 = vunpack.c.l.b16 %v11379
        %v11552 = vunpack.c.h.b16 %v11379
        %v11553 = vunpack.c.l.b16 %v11380
        %v11554 = vunpack.c.h.b16 %v11380
        %v11555 = vunpack.c.l.b16 %v11381
        %v11556 = vunpack.c.h.b16 %v11381
        %v11557 = vunpack.c.l.b16 %v11382
        %v11558 = vunpack.c.h.b16 %v11382
        %v11559 = vunpack.c.l.b16 %v11383
        %v11560 = vunpack.c.h.b16 %v11383
        %v11561 = vunpack.c.l.b16 %v11384
        %v11562 = vunpack.c.h.b16 %v11384
        %v11563 = vunpack.c.l.b16 %v11385
        %v11564 = vunpack.c.h.b16 %v11385
        %v11565 = vunpack.c.l.b16 %v11386
        %v11566 = vunpack.c.h.b16 %v11386
        %v11567 = vunpack.c.l.b16 %v11387
        %v11568 = vunpack.c.h.b16 %v11387
        %v11569 = vunpack.c.l.b16 %v11388
        %v11570 = vunpack.c.h.b16 %v11388
        %v11571 = vunpack.c.l.b16 %v11389
        %v11572 = vunpack.c.h.b16 %v11389
        %v11573 = vunpack.c.l.b16 %v11390
        %v11574 = vunpack.c.h.b16 %v11390
        %v11575 = vunpack.c.l.b16 %v11391
        %v11576 = vunpack.c.h.b16 %v11391
        %v11577 = vunpack.c.l.b16 %v11392
        %v11578 = vunpack.c.h.b16 %v11392
        %v11579 = vunpack.c.l.b16 %v11393
        %v11580 = vunpack.c.h.b16 %v11393
        %v11581 = vunpack.c.l.b16 %v11394
        %v11582 = vunpack.c.h.b16 %v11394
        %v11583 = vunpack.c.l.b16 %v11395
        %v11584 = vunpack.c.h.b16 %v11395
        %v11585 = vunpack.c.l.b16 %v11396
        %v11586 = vunpack.c.h.b16 %v11396
        %v11587 = vunpack.c.l.b16 %v11397
        %v11588 = vunpack.c.h.b16 %v11397
        %v11589 = vunpack.c.l.b16 %v11398
        %v11590 = vunpack.c.h.b16 %v11398
        %v11591 = vunpack.c.l.b16 %v11399
        %v11592 = vunpack.c.h.b16 %v11399
        %v11593 = vunpack.c.l.b16 %v11400
        %v11594 = vunpack.c.h.b16 %v11400
        %v11595 = vunpack.c.l.b16 %v11401
        %v11596 = vunpack.c.h.b16 %v11401
        %v11597 = vunpack.c.l.b16 %v11402
        %v11598 = vunpack.c.h.b16 %v11402
        %v11599 = vunpack.c.l.b16 %v11403
        %v11600 = vunpack.c.h.b16 %v11403
        %v11601 = vunpack.c.l.b16 %v11404
        %v11602 = vunpack.c.h.b16 %v11404
        %v11603 = vunpack.c.l.b16 %v11405
        %v11604 = vunpack.c.h.b16 %v11405
        %v11605 = vunpack.c.l.b16 %v11406
        %v11606 = vunpack.c.h.b16 %v11406
        %v11607 = vunpack.c.l.b16 %v11407
        %v11608 = vunpack.c.h.b16 %v11407
        %v11609 = vunpack.c.l.b16 %v11408
        %v11610 = vunpack.c.h.b16 %v11408
        %v11611 = vunpack.c.l.b16 %v11409
        %v11612 = vunpack.c.h.b16 %v11409
        %v11613 = vunpack.c.l.b16 %v11410
        %v11614 = vunpack.c.h.b16 %v11410
        %v11615 = vunpack.c.l.b16 %v11411
        %v11616 = vunpack.c.h.b16 %v11411
        %v11617 = vunpack.c.l.b16 %v11412
        %v11618 = vunpack.c.h.b16 %v11412
        %v11619 = vunpack.c.l.b16 %v11413
        %v11620 = vunpack.c.h.b16 %v11413
        %v11621 = vunpack.c.l.b16 %v11414
        %v11622 = vunpack.c.h.b16 %v11414
        %v11623 = vunpack.c.l.b16 %v11415
        %v11624 = vunpack.c.h.b16 %v11415
        %v11625 = vunpack.c.l.b16 %v11416
        %v11626 = vunpack.c.h.b16 %v11416
        %v11627 = vunpack.c.l.b16 %v11417
        %v11628 = vunpack.c.h.b16 %v11417
        %v11629 = vunpack.c.l.b16 %v11418
        %v11630 = vunpack.c.h.b16 %v11418
        %v11631 = vunpack.c.l.b16 %v11419
        %v11632 = vunpack.c.h.b16 %v11419
        %v11633 = vunpack.c.l.b16 %v11420
        %v11634 = vunpack.c.h.b16 %v11420
        %v11635 = vunpack.c.l.b16 %v11421
        %v11636 = vunpack.c.h.b16 %v11421
        %v11637 = vpack.c.b16 %v11513, %v11509
        %v11638 = vpack.c.b16 %v11514, %v11510
        %v11639 = vpack.c.b16 %v11515, %v11511
        %v11640 = vpack.c.b16 %v11516, %v11512
        %v11641 = vpack.c.b16 %v11521, %v11517
        %v11642 = vpack.c.b16 %v11522, %v11518
        %v11643 = vpack.c.b16 %v11523, %v11519
        %v11644 = vpack.c.b16 %v11524, %v11520
        %v11645 = vpack.c.b16 %v11529, %v11525
        %v11646 = vpack.c.b16 %v11530, %v11526
        %v11647 = vpack.c.b16 %v11531, %v11527
        %v11648 = vpack.c.b16 %v11532, %v11528
        %v11649 = vpack.c.b16 %v11537, %v11533
        %v11650 = vpack.c.b16 %v11538, %v11534
        %v11651 = vpack.c.b16 %v11539, %v11535
        %v11652 = vpack.c.b16 %v11540, %v11536
        %v11653 = vpack.c.b16 %v11545, %v11541
        %v11654 = vpack.c.b16 %v11546, %v11542
        %v11655 = vpack.c.b16 %v11547, %v11543
        %v11656 = vpack.c.b16 %v11548, %v11544
        %v11657 = vpack.c.b16 %v11553, %v11549
        %v11658 = vpack.c.b16 %v11554, %v11550
        %v11659 = vpack.c.b16 %v11555, %v11551
        %v11660 = vpack.c.b16 %v11556, %v11552
        %v11661 = vpack.c.b16 %v11561, %v11557
        %v11662 = vpack.c.b16 %v11562, %v11558
        %v11663 = vpack.c.b16 %v11563, %v11559
        %v11664 = vpack.c.b16 %v11564, %v11560
        %v11665 = vpack.c.b16 %v11569, %v11565
        %v11666 = vpack.c.b16 %v11570, %v11566
        %v11667 = vpack.c.b16 %v11571, %v11567
        %v11668 = vpack.c.b16 %v11572, %v11568
        %v11669 = vpack.c.b16 %v11577, %v11573
        %v11670 = vpack.c.b16 %v11578, %v11574
        %v11671 = vpack.c.b16 %v11579, %v11575
        %v11672 = vpack.c.b16 %v11580, %v11576
        %v11673 = vpack.c.b16 %v11585, %v11581
        %v11674 = vpack.c.b16 %v11586, %v11582
        %v11675 = vpack.c.b16 %v11587, %v11583
        %v11676 = vpack.c.b16 %v11588, %v11584
        %v11677 = vpack.c.b16 %v11593, %v11589
        %v11678 = vpack.c.b16 %v11594, %v11590
        %v11679 = vpack.c.b16 %v11595, %v11591
        %v11680 = vpack.c.b16 %v11596, %v11592
        %v11681 = vpack.c.b16 %v11601, %v11597
        %v11682 = vpack.c.b16 %v11602, %v11598
        %v11683 = vpack.c.b16 %v11603, %v11599
        %v11684 = vpack.c.b16 %v11604, %v11600
        %v11685 = vpack.c.b16 %v11609, %v11605
        %v11686 = vpack.c.b16 %v11610, %v11606
        %v11687 = vpack.c.b16 %v11611, %v11607
        %v11688 = vpack.c.b16 %v11612, %v11608
        %v11689 = vpack.c.b16 %v11617, %v11613
        %v11690 = vpack.c.b16 %v11618, %v11614
        %v11691 = vpack.c.b16 %v11619, %v11615
        %v11692 = vpack.c.b16 %v11620, %v11616
        %v11693 = vpack.c.b16 %v11625, %v11621
        %v11694 = vpack.c.b16 %v11626, %v11622
        %v11695 = vpack.c.b16 %v11627, %v11623
        %v11696 = vpack.c.b16 %v11628, %v11624
        %v11697 = vpack.c.b16 %v11633, %v11629
        %v11698 = vpack.c.b16 %v11634, %v11630
        %v11699 = vpack.c.b16 %v11635, %v11631
        %v11700 = vpack.c.b16 %v11636, %v11632
        %11765 = vmatprep.subr.bf16.mxu0 %v11638
        %11766 = vmatpush1.bf16.msra.mxu0 %v11637
        %11767 = vmatprep.subr.bf16.mxu0 %v11642
        %11768 = vmatpush1.bf16.msra.mxu0 %v11641
        %11769 = vmatprep.subr.bf16.mxu0 %v11646
        %11770 = vmatpush1.bf16.msra.mxu0 %v11645
        %11771 = vmatprep.subr.bf16.mxu0 %v11650
        %11772 = vmatpush1.bf16.msra.mxu0 %v11649
        %11773 = vmatprep.subr.bf16.mxu0 %v11654
        %11774 = vmatpush1.bf16.msra.mxu0 %v11653
        %11775 = vmatprep.subr.bf16.mxu0 %v11658
        %11776 = vmatpush1.bf16.msra.mxu0 %v11657
        %11777 = vmatprep.subr.bf16.mxu0 %v11662
        %11778 = vmatpush1.bf16.msra.mxu0 %v11661
        %11779 = vmatprep.subr.bf16.mxu0 %v11666
        %11780 = vmatpush1.bf16.msra.mxu0 %v11665
        %11781 = vmatprep.subr.bf16.mxu0 %v11670
        %11782 = vmatpush1.bf16.msra.mxu0 %v11669
        %11783 = vmatprep.subr.bf16.mxu0 %v11674
        %11784 = vmatpush1.bf16.msra.mxu0 %v11673
        %11785 = vmatprep.subr.bf16.mxu0 %v11678
        %11786 = vmatpush1.bf16.msra.mxu0 %v11677
        %11787 = vmatprep.subr.bf16.mxu0 %v11682
        %11788 = vmatpush1.bf16.msra.mxu0 %v11681
        %11789 = vmatprep.subr.bf16.mxu0 %v11686
        %11790 = vmatpush1.bf16.msra.mxu0 %v11685
        %11791 = vmatprep.subr.bf16.mxu0 %v11690
        %11792 = vmatpush1.bf16.msra.mxu0 %v11689
        %11793 = vmatprep.subr.bf16.mxu0 %v11694
        %11794 = vmatpush1.bf16.msra.mxu0 %v11693
        %11795 = vmatprep.subr.bf16.mxu0 %v11698
        %11796 = vmatpush1.bf16.msra.mxu0 %v11697
        %11797 = vmatprep.mubr.bf16.mxu0 %v11442
        %11798 = vmatmul.mubr.bf16.gmra.mrb[0].mxu0 %v11434
        %v11799 = vpop.f32.mrb[0].mxu0
        %v11800 = vadd.f32 0.0, %v11799
        %v11801 = vpop.f32.mrb[0].mxu0
        %v11802 = vadd.f32 0.0, %v11801
        %v11803 = vpop.f32.mrb[0].mxu0
        %v11804 = vpop.f32.mrb[0].mxu0
        %11805 = vdwg.mxu0
        %11806 = vmatprep.subr.bf16.mxu0 %v11640
        %11807 = vmatpush1.bf16.msra.mxu0 %v11639
        %11808 = vmatprep.subr.bf16.mxu0 %v11644
        %11809 = vmatpush1.bf16.msra.mxu0 %v11643
        %11810 = vmatprep.subr.bf16.mxu0 %v11648
        %11811 = vmatpush1.bf16.msra.mxu0 %v11647
        %11812 = vmatprep.subr.bf16.mxu0 %v11652
        %11813 = vmatpush1.bf16.msra.mxu0 %v11651
        %11814 = vmatprep.subr.bf16.mxu0 %v11656
        %11815 = vmatpush1.bf16.msra.mxu0 %v11655
        %11816 = vmatprep.subr.bf16.mxu0 %v11660
        %11817 = vmatpush1.bf16.msra.mxu0 %v11659
        %11818 = vmatprep.subr.bf16.mxu0 %v11664
        %11819 = vmatpush1.bf16.msra.mxu0 %v11663
        %11820 = vmatprep.subr.bf16.mxu0 %v11668
        %11821 = vmatpush1.bf16.msra.mxu0 %v11667
        %11822 = vmatprep.subr.bf16.mxu0 %v11672
        %11823 = vmatpush1.bf16.msra.mxu0 %v11671
        %11824 = vmatprep.subr.bf16.mxu0 %v11676
        %11825 = vmatpush1.bf16.msra.mxu0 %v11675
        %11826 = vmatprep.subr.bf16.mxu0 %v11680
        %11827 = vmatpush1.bf16.msra.mxu0 %v11679
        %11828 = vmatprep.subr.bf16.mxu0 %v11684
        %11829 = vmatpush1.bf16.msra.mxu0 %v11683
        %11830 = vmatprep.subr.bf16.mxu0 %v11688
        %11831 = vmatpush1.bf16.msra.mxu0 %v11687
        %11832 = vmatprep.subr.bf16.mxu0 %v11692
        %11833 = vmatpush1.bf16.msra.mxu0 %v11691
        %11834 = vmatprep.subr.bf16.mxu0 %v11696
        %11835 = vmatpush1.bf16.msra.mxu0 %v11695
        %11836 = vmatprep.subr.bf16.mxu0 %v11700
        %11837 = vmatpush1.bf16.msra.mxu0 %v11699
        %11838 = vmatprep.mubr.bf16.mxu0 %v11442
        %11839 = vmatmul.mubr.bf16.gmra.mrb[0].mxu0 %v11434
        %v11840 = vpop.f32.mrb[0].mxu0
        %v11841 = vadd.f32 0.0, %v11840
        %v11842 = vpop.f32.mrb[0].mxu0
        %v11843 = vadd.f32 0.0, %v11842
        %v11844 = vpop.f32.mrb[0].mxu0
        %v11845 = vpop.f32.mrb[0].mxu0
        %11846 = vdwg.mxu0
        %v11847 = vadd.f32 %v11352, %v11800
        %v11848 = vadd.f32 %v11353, %v11802
        %v11849 = vadd.f32 %v11354, %v11841
        %v11850 = vadd.f32 %v11355, %v11843
        %v11851 = vld [vmem:[#allocation4] sm:$0xcc]
        %s11852 = scalar_lea.vmem [#allocation13], 2048
        %v11853 = vld [vmem:[%s11852] sm:$0xff]
        %v11854 = vld [vmem:[%s11852 + $0x8] sm:$0xff]
        %v11855 = vld [vmem:[%s11852 + $0x10] sm:$0xff]
        %v11856 = vld [vmem:[%s11852 + $0x18] sm:$0xff]
        %v11857 = vld [vmem:[%s11852 + $0x20] sm:$0xff]
        %v11858 = vld [vmem:[%s11852 + $0x28] sm:$0xff]
        %v11859 = vld [vmem:[%s11852 + $0x30] sm:$0xff]
        %v11860 = vld [vmem:[%s11852 + $0x38] sm:$0xff]
        %v11861 = vld [vmem:[%s11852 + $0x40] sm:$0xff]
        %v11862 = vld [vmem:[%s11852 + $0x48] sm:$0xff]
        %v11863 = vld [vmem:[%s11852 + $0x50] sm:$0xff]
        %v11864 = vld [vmem:[%s11852 + $0x58] sm:$0xff]
        %v11865 = vld [vmem:[%s11852 + $0x60] sm:$0xff]
        %v11866 = vld [vmem:[%s11852 + $0x68] sm:$0xff]
        %v11867 = vld [vmem:[%s11852 + $0x70] sm:$0xff]
        %v11868 = vld [vmem:[%s11852 + $0x78] sm:$0xff]
        %v11869 = vld [vmem:[%s11852 + $0x80] sm:$0xff]
        %v11870 = vld [vmem:[%s11852 + $0x88] sm:$0xff]
        %v11871 = vld [vmem:[%s11852 + $0x90] sm:$0xff]
        %v11872 = vld [vmem:[%s11852 + $0x98] sm:$0xff]
        %v11873 = vld [vmem:[%s11852 + $0xa0] sm:$0xff]
        %v11874 = vld [vmem:[%s11852 + $0xa8] sm:$0xff]
        %v11875 = vld [vmem:[%s11852 + $0xb0] sm:$0xff]
        %v11876 = vld [vmem:[%s11852 + $0xb8] sm:$0xff]
        %v11877 = vld [vmem:[%s11852 + $0xc0] sm:$0xff]
        %v11878 = vld [vmem:[%s11852 + $0xc8] sm:$0xff]
        %v11879 = vld [vmem:[%s11852 + $0xd0] sm:$0xff]
        %v11880 = vld [vmem:[%s11852 + $0xd8] sm:$0xff]
        %v11881 = vld [vmem:[%s11852 + $0xe0] sm:$0xff]
        %v11882 = vld [vmem:[%s11852 + $0xe8] sm:$0xff]
        %v11883 = vld [vmem:[%s11852 + $0xf0] sm:$0xff]
        %v11884 = vld [vmem:[%s11852 + $0xf8] sm:$0xff]
        %v11885 = vld [vmem:[%s11852 + $0x100] sm:$0xff]
        %v11886 = vld [vmem:[%s11852 + $0x108] sm:$0xff]
        %v11887 = vld [vmem:[%s11852 + $0x110] sm:$0xff]
        %v11888 = vld [vmem:[%s11852 + $0x118] sm:$0xff]
        %v11889 = vld [vmem:[%s11852 + $0x120] sm:$0xff]
        %v11890 = vld [vmem:[%s11852 + $0x128] sm:$0xff]
        %v11891 = vld [vmem:[%s11852 + $0x130] sm:$0xff]
        %v11892 = vld [vmem:[%s11852 + $0x138] sm:$0xff]
        %v11893 = vld [vmem:[%s11852 + $0x140] sm:$0xff]
        %v11894 = vld [vmem:[%s11852 + $0x148] sm:$0xff]
        %v11895 = vld [vmem:[%s11852 + $0x150] sm:$0xff]
        %v11896 = vld [vmem:[%s11852 + $0x158] sm:$0xff]
        %v11897 = vld [vmem:[%s11852 + $0x160] sm:$0xff]
        %v11898 = vld [vmem:[%s11852 + $0x168] sm:$0xff]
        %v11899 = vld [vmem:[%s11852 + $0x170] sm:$0xff]
        %v11900 = vld [vmem:[%s11852 + $0x178] sm:$0xff]
        %v11901 = vld [vmem:[%s11852 + $0x180] sm:$0xff]
        %v11902 = vld [vmem:[%s11852 + $0x188] sm:$0xff]
        %v11903 = vld [vmem:[%s11852 + $0x190] sm:$0xff]
        %v11904 = vld [vmem:[%s11852 + $0x198] sm:$0xff]
        %v11905 = vld [vmem:[%s11852 + $0x1a0] sm:$0xff]
        %v11906 = vld [vmem:[%s11852 + $0x1a8] sm:$0xff]
        %v11907 = vld [vmem:[%s11852 + $0x1b0] sm:$0xff]
        %v11908 = vld [vmem:[%s11852 + $0x1b8] sm:$0xff]
        %v11909 = vld [vmem:[%s11852 + $0x1c0] sm:$0xff]
        %v11910 = vld [vmem:[%s11852 + $0x1c8] sm:$0xff]
        %v11911 = vld [vmem:[%s11852 + $0x1d0] sm:$0xff]
        %v11912 = vld [vmem:[%s11852 + $0x1d8] sm:$0xff]
        %v11913 = vld [vmem:[%s11852 + $0x1e0] sm:$0xff]
        %v11914 = vld [vmem:[%s11852 + $0x1e8] sm:$0xff]
        %v11915 = vld [vmem:[%s11852 + $0x1f0] sm:$0xff]
        %v11916 = vld [vmem:[%s11852 + $0x1f8] sm:$0xff]
        %v11918 = vunpack.c.l.b16 %v11851
        %v11919 = vunpack.c.h.b16 %v11851
        %v11920 = vpack.c.b16 %v11423, %v11918
        %v11921 = vpack.c.b16 %v11424, %v11919
        %v11922 = vrot.slane %v11920, 2
        %v11923 = vrot.slane %v11921, 2
        %v11990 = vunpack.c.l.b16 %v11853
        %v11991 = vunpack.c.h.b16 %v11853
        %v11992 = vunpack.c.l.b16 %v11854
        %v11993 = vunpack.c.h.b16 %v11854
        %v11994 = vunpack.c.l.b16 %v11855
        %v11995 = vunpack.c.h.b16 %v11855
        %v11996 = vunpack.c.l.b16 %v11856
        %v11997 = vunpack.c.h.b16 %v11856
        %v11998 = vunpack.c.l.b16 %v11857
        %v11999 = vunpack.c.h.b16 %v11857
        %v12000 = vunpack.c.l.b16 %v11858
        %v12001 = vunpack.c.h.b16 %v11858
        %v12002 = vunpack.c.l.b16 %v11859
        %v12003 = vunpack.c.h.b16 %v11859
        %v12004 = vunpack.c.l.b16 %v11860
        %v12005 = vunpack.c.h.b16 %v11860
        %v12006 = vunpack.c.l.b16 %v11861
        %v12007 = vunpack.c.h.b16 %v11861
        %v12008 = vunpack.c.l.b16 %v11862
        %v12009 = vunpack.c.h.b16 %v11862
        %v12010 = vunpack.c.l.b16 %v11863
        %v12011 = vunpack.c.h.b16 %v11863
        %v12012 = vunpack.c.l.b16 %v11864
        %v12013 = vunpack.c.h.b16 %v11864
        %v12014 = vunpack.c.l.b16 %v11865
        %v12015 = vunpack.c.h.b16 %v11865
        %v12016 = vunpack.c.l.b16 %v11866
        %v12017 = vunpack.c.h.b16 %v11866
        %v12018 = vunpack.c.l.b16 %v11867
        %v12019 = vunpack.c.h.b16 %v11867
        %v12020 = vunpack.c.l.b16 %v11868
        %v12021 = vunpack.c.h.b16 %v11868
        %v12022 = vunpack.c.l.b16 %v11869
        %v12023 = vunpack.c.h.b16 %v11869
        %v12024 = vunpack.c.l.b16 %v11870
        %v12025 = vunpack.c.h.b16 %v11870
        %v12026 = vunpack.c.l.b16 %v11871
        %v12027 = vunpack.c.h.b16 %v11871
        %v12028 = vunpack.c.l.b16 %v11872
        %v12029 = vunpack.c.h.b16 %v11872
        %v12030 = vunpack.c.l.b16 %v11873
        %v12031 = vunpack.c.h.b16 %v11873
        %v12032 = vunpack.c.l.b16 %v11874
        %v12033 = vunpack.c.h.b16 %v11874
        %v12034 = vunpack.c.l.b16 %v11875
        %v12035 = vunpack.c.h.b16 %v11875
        %v12036 = vunpack.c.l.b16 %v11876
        %v12037 = vunpack.c.h.b16 %v11876
        %v12038 = vunpack.c.l.b16 %v11877
        %v12039 = vunpack.c.h.b16 %v11877
        %v12040 = vunpack.c.l.b16 %v11878
        %v12041 = vunpack.c.h.b16 %v11878
        %v12042 = vunpack.c.l.b16 %v11879
        %v12043 = vunpack.c.h.b16 %v11879
        %v12044 = vunpack.c.l.b16 %v11880
        %v12045 = vunpack.c.h.b16 %v11880
        %v12046 = vunpack.c.l.b16 %v11881
        %v12047 = vunpack.c.h.b16 %v11881
        %v12048 = vunpack.c.l.b16 %v11882
        %v12049 = vunpack.c.h.b16 %v11882
        %v12050 = vunpack.c.l.b16 %v11883
        %v12051 = vunpack.c.h.b16 %v11883
        %v12052 = vunpack.c.l.b16 %v11884
        %v12053 = vunpack.c.h.b16 %v11884
        %v12054 = vunpack.c.l.b16 %v11885
        %v12055 = vunpack.c.h.b16 %v11885
        %v12056 = vunpack.c.l.b16 %v11886
        %v12057 = vunpack.c.h.b16 %v11886
        %v12058 = vunpack.c.l.b16 %v11887
        %v12059 = vunpack.c.h.b16 %v11887
        %v12060 = vunpack.c.l.b16 %v11888
        %v12061 = vunpack.c.h.b16 %v11888
        %v12062 = vunpack.c.l.b16 %v11889
        %v12063 = vunpack.c.h.b16 %v11889
        %v12064 = vunpack.c.l.b16 %v11890
        %v12065 = vunpack.c.h.b16 %v11890
        %v12066 = vunpack.c.l.b16 %v11891
        %v12067 = vunpack.c.h.b16 %v11891
        %v12068 = vunpack.c.l.b16 %v11892
        %v12069 = vunpack.c.h.b16 %v11892
        %v12070 = vunpack.c.l.b16 %v11893
        %v12071 = vunpack.c.h.b16 %v11893
        %v12072 = vunpack.c.l.b16 %v11894
        %v12073 = vunpack.c.h.b16 %v11894
        %v12074 = vunpack.c.l.b16 %v11895
        %v12075 = vunpack.c.h.b16 %v11895
        %v12076 = vunpack.c.l.b16 %v11896
        %v12077 = vunpack.c.h.b16 %v11896
        %v12078 = vunpack.c.l.b16 %v11897
        %v12079 = vunpack.c.h.b16 %v11897
        %v12080 = vunpack.c.l.b16 %v11898
        %v12081 = vunpack.c.h.b16 %v11898
        %v12082 = vunpack.c.l.b16 %v11899
        %v12083 = vunpack.c.h.b16 %v11899
        %v12084 = vunpack.c.l.b16 %v11900
        %v12085 = vunpack.c.h.b16 %v11900
        %v12086 = vunpack.c.l.b16 %v11901
        %v12087 = vunpack.c.h.b16 %v11901
        %v12088 = vunpack.c.l.b16 %v11902
        %v12089 = vunpack.c.h.b16 %v11902
        %v12090 = vunpack.c.l.b16 %v11903
        %v12091 = vunpack.c.h.b16 %v11903
        %v12092 = vunpack.c.l.b16 %v11904
        %v12093 = vunpack.c.h.b16 %v11904
        %v12094 = vunpack.c.l.b16 %v11905
        %v12095 = vunpack.c.h.b16 %v11905
        %v12096 = vunpack.c.l.b16 %v11906
        %v12097 = vunpack.c.h.b16 %v11906
        %v12098 = vunpack.c.l.b16 %v11907
        %v12099 = vunpack.c.h.b16 %v11907
        %v12100 = vunpack.c.l.b16 %v11908
        %v12101 = vunpack.c.h.b16 %v11908
        %v12102 = vunpack.c.l.b16 %v11909
        %v12103 = vunpack.c.h.b16 %v11909
        %v12104 = vunpack.c.l.b16 %v11910
        %v12105 = vunpack.c.h.b16 %v11910
        %v12106 = vunpack.c.l.b16 %v11911
        %v12107 = vunpack.c.h.b16 %v11911
        %v12108 = vunpack.c.l.b16 %v11912
        %v12109 = vunpack.c.h.b16 %v11912
        %v12110 = vunpack.c.l.b16 %v11913
        %v12111 = vunpack.c.h.b16 %v11913
        %v12112 = vunpack.c.l.b16 %v11914
        %v12113 = vunpack.c.h.b16 %v11914
        %v12114 = vunpack.c.l.b16 %v11915
        %v12115 = vunpack.c.h.b16 %v11915
        %v12116 = vunpack.c.l.b16 %v11916
        %v12117 = vunpack.c.h.b16 %v11916
        %v12118 = vpack.c.b16 %v11994, %v11990
        %v12119 = vpack.c.b16 %v11995, %v11991
        %v12120 = vpack.c.b16 %v11996, %v11992
        %v12121 = vpack.c.b16 %v11997, %v11993
        %v12122 = vpack.c.b16 %v12002, %v11998
        %v12123 = vpack.c.b16 %v12003, %v11999
        %v12124 = vpack.c.b16 %v12004, %v12000
        %v12125 = vpack.c.b16 %v12005, %v12001
        %v12126 = vpack.c.b16 %v12010, %v12006
        %v12127 = vpack.c.b16 %v12011, %v12007
        %v12128 = vpack.c.b16 %v12012, %v12008
        %v12129 = vpack.c.b16 %v12013, %v12009
        %v12130 = vpack.c.b16 %v12018, %v12014
        %v12131 = vpack.c.b16 %v12019, %v12015
        %v12132 = vpack.c.b16 %v12020, %v12016
        %v12133 = vpack.c.b16 %v12021, %v12017
        %v12134 = vpack.c.b16 %v12026, %v12022
        %v12135 = vpack.c.b16 %v12027, %v12023
        %v12136 = vpack.c.b16 %v12028, %v12024
        %v12137 = vpack.c.b16 %v12029, %v12025
        %v12138 = vpack.c.b16 %v12034, %v12030
        %v12139 = vpack.c.b16 %v12035, %v12031
        %v12140 = vpack.c.b16 %v12036, %v12032
        %v12141 = vpack.c.b16 %v12037, %v12033
        %v12142 = vpack.c.b16 %v12042, %v12038
        %v12143 = vpack.c.b16 %v12043, %v12039
        %v12144 = vpack.c.b16 %v12044, %v12040
        %v12145 = vpack.c.b16 %v12045, %v12041
        %v12146 = vpack.c.b16 %v12050, %v12046
        %v12147 = vpack.c.b16 %v12051, %v12047
        %v12148 = vpack.c.b16 %v12052, %v12048
        %v12149 = vpack.c.b16 %v12053, %v12049
        %v12150 = vpack.c.b16 %v12058, %v12054
        %v12151 = vpack.c.b16 %v12059, %v12055
        %v12152 = vpack.c.b16 %v12060, %v12056
        %v12153 = vpack.c.b16 %v12061, %v12057
        %v12154 = vpack.c.b16 %v12066, %v12062
        %v12155 = vpack.c.b16 %v12067, %v12063
        %v12156 = vpack.c.b16 %v12068, %v12064
        %v12157 = vpack.c.b16 %v12069, %v12065
        %v12158 = vpack.c.b16 %v12074, %v12070
        %v12159 = vpack.c.b16 %v12075, %v12071
        %v12160 = vpack.c.b16 %v12076, %v12072
        %v12161 = vpack.c.b16 %v12077, %v12073
        %v12162 = vpack.c.b16 %v12082, %v12078
        %v12163 = vpack.c.b16 %v12083, %v12079
        %v12164 = vpack.c.b16 %v12084, %v12080
        %v12165 = vpack.c.b16 %v12085, %v12081
        %v12166 = vpack.c.b16 %v12090, %v12086
        %v12167 = vpack.c.b16 %v12091, %v12087
        %v12168 = vpack.c.b16 %v12092, %v12088
        %v12169 = vpack.c.b16 %v12093, %v12089
        %v12170 = vpack.c.b16 %v12098, %v12094
        %v12171 = vpack.c.b16 %v12099, %v12095
        %v12172 = vpack.c.b16 %v12100, %v12096
        %v12173 = vpack.c.b16 %v12101, %v12097
        %v12174 = vpack.c.b16 %v12106, %v12102
        %v12175 = vpack.c.b16 %v12107, %v12103
        %v12176 = vpack.c.b16 %v12108, %v12104
        %v12177 = vpack.c.b16 %v12109, %v12105
        %v12178 = vpack.c.b16 %v12114, %v12110
        %v12179 = vpack.c.b16 %v12115, %v12111
        %v12180 = vpack.c.b16 %v12116, %v12112
        %v12181 = vpack.c.b16 %v12117, %v12113
        %12246 = vmatprep.subr.bf16.mxu0 %v12119
        %12247 = vmatpush1.bf16.msra.mxu0 %v12118
        %12248 = vmatprep.subr.bf16.mxu0 %v12123
        %12249 = vmatpush1.bf16.msra.mxu0 %v12122
        %12250 = vmatprep.subr.bf16.mxu0 %v12127
        %12251 = vmatpush1.bf16.msra.mxu0 %v12126
        %12252 = vmatprep.subr.bf16.mxu0 %v12131
        %12253 = vmatpush1.bf16.msra.mxu0 %v12130
        %12254 = vmatprep.subr.bf16.mxu0 %v12135
        %12255 = vmatpush1.bf16.msra.mxu0 %v12134
        %12256 = vmatprep.subr.bf16.mxu0 %v12139
        %12257 = vmatpush1.bf16.msra.mxu0 %v12138
        %12258 = vmatprep.subr.bf16.mxu0 %v12143
        %12259 = vmatpush1.bf16.msra.mxu0 %v12142
        %12260 = vmatprep.subr.bf16.mxu0 %v12147
        %12261 = vmatpush1.bf16.msra.mxu0 %v12146
        %12262 = vmatprep.subr.bf16.mxu0 %v12151
        %12263 = vmatpush1.bf16.msra.mxu0 %v12150
        %12264 = vmatprep.subr.bf16.mxu0 %v12155
        %12265 = vmatpush1.bf16.msra.mxu0 %v12154
        %12266 = vmatprep.subr.bf16.mxu0 %v12159
        %12267 = vmatpush1.bf16.msra.mxu0 %v12158
        %12268 = vmatprep.subr.bf16.mxu0 %v12163
        %12269 = vmatpush1.bf16.msra.mxu0 %v12162
        %12270 = vmatprep.subr.bf16.mxu0 %v12167
        %12271 = vmatpush1.bf16.msra.mxu0 %v12166
        %12272 = vmatprep.subr.bf16.mxu0 %v12171
        %12273 = vmatpush1.bf16.msra.mxu0 %v12170
        %12274 = vmatprep.subr.bf16.mxu0 %v12175
        %12275 = vmatpush1.bf16.msra.mxu0 %v12174
        %12276 = vmatprep.subr.bf16.mxu0 %v12179
        %12277 = vmatpush1.bf16.msra.mxu0 %v12178
        %12278 = vmatprep.mubr.bf16.mxu0 %v11923
        %12279 = vmatmul.mubr.bf16.gmra.mrb[0].mxu0 %v11922
        %v12280 = vpop.f32.mrb[0].mxu0
        %v12281 = vadd.f32 0.0, %v12280
        %v12282 = vpop.f32.mrb[0].mxu0
        %v12283 = vadd.f32 0.0, %v12282
        %v12284 = vpop.f32.mrb[0].mxu0
        %v12285 = vpop.f32.mrb[0].mxu0
        %12286 = vdwg.mxu0
        %12287 = vmatprep.subr.bf16.mxu0 %v12121
        %12288 = vmatpush1.bf16.msra.mxu0 %v12120
        %12289 = vmatprep.subr.bf16.mxu0 %v12125
        %12290 = vmatpush1.bf16.msra.mxu0 %v12124
        %12291 = vmatprep.subr.bf16.mxu0 %v12129
        %12292 = vmatpush1.bf16.msra.mxu0 %v12128
        %12293 = vmatprep.subr.bf16.mxu0 %v12133
        %12294 = vmatpush1.bf16.msra.mxu0 %v12132
        %12295 = vmatprep.subr.bf16.mxu0 %v12137
        %12296 = vmatpush1.bf16.msra.mxu0 %v12136
        %12297 = vmatprep.subr.bf16.mxu0 %v12141
        %12298 = vmatpush1.bf16.msra.mxu0 %v12140
        %12299 = vmatprep.subr.bf16.mxu0 %v12145
        %12300 = vmatpush1.bf16.msra.mxu0 %v12144
        %12301 = vmatprep.subr.bf16.mxu0 %v12149
        %12302 = vmatpush1.bf16.msra.mxu0 %v12148
        %12303 = vmatprep.subr.bf16.mxu0 %v12153
        %12304 = vmatpush1.bf16.msra.mxu0 %v12152
        %12305 = vmatprep.subr.bf16.mxu0 %v12157
        %12306 = vmatpush1.bf16.msra.mxu0 %v12156
        %12307 = vmatprep.subr.bf16.mxu0 %v12161
        %12308 = vmatpush1.bf16.msra.mxu0 %v12160
        %12309 = vmatprep.subr.bf16.mxu0 %v12165
        %12310 = vmatpush1.bf16.msra.mxu0 %v12164
        %12311 = vmatprep.subr.bf16.mxu0 %v12169
        %12312 = vmatpush1.bf16.msra.mxu0 %v12168
        %12313 = vmatprep.subr.bf16.mxu0 %v12173
        %12314 = vmatpush1.bf16.msra.mxu0 %v12172
        %12315 = vmatprep.subr.bf16.mxu0 %v12177
        %12316 = vmatpush1.bf16.msra.mxu0 %v12176
        %12317 = vmatprep.subr.bf16.mxu0 %v12181
        %12318 = vmatpush1.bf16.msra.mxu0 %v12180
        %12319 = vmatprep.mubr.bf16.mxu0 %v11923
        %12320 = vmatmul.mubr.bf16.gmra.mrb[0].mxu0 %v11922
        %v12321 = vpop.f32.mrb[0].mxu0
        %v12322 = vadd.f32 0.0, %v12321
        %v12323 = vpop.f32.mrb[0].mxu0
        %v12324 = vadd.f32 0.0, %v12323
        %v12325 = vpop.f32.mrb[0].mxu0
        %v12326 = vpop.f32.mrb[0].mxu0
        %12327 = vdwg.mxu0
        %v12328 = vadd.f32 %v11847, %v12281
        %v12329 = vadd.f32 %v11848, %v12283
        %v12330 = vadd.f32 %v11849, %v12322
        %v12331 = vadd.f32 %v11850, %v12324
        %v12332 = vld [vmem:[#allocation14] sm:$0xf]
        %v12334 = vlaneseq
        %v12335 = vshrl.u32 %v12334, 7
        %v12336 = vsub.s32 0, %v12335
        %v12337 = vrot.slane %v12332, %v12336
        %v12338 = vlaneseq
        %v12339 = vshrl.u32 %v12338, 7
        %v12340 = vsub.s32 1, %v12339
        %v12341 = vrot.slane %v12332, %v12340
        %v12342 = vlaneseq
        %v12343 = vshrl.u32 %v12342, 7
        %v12344 = vsub.s32 2, %v12343
        %v12345 = vrot.slane %v12332, %v12344
        %v12346 = vlaneseq
        %v12347 = vshrl.u32 %v12346, 7
        %v12348 = vsub.s32 3, %v12347
        %v12349 = vrot.slane %v12332, %v12348
        %v12354 = vadd.f32 %v12328, %v12337
        %v12355 = vadd.f32 %v12329, %v12341
        %v12356 = vadd.f32 %v12330, %v12345
        %v12357 = vadd.f32 %v12331, %v12349
        %v12362 = vcombine.low %v12354, %v12355
        %v12363 = vcombine.high %v12354, %v12355
        %v12364 = vcombine.low %v12356, %v12357
        %v12365 = vcombine.high %v12356, %v12357
        %v12367 = vunpack.c.l.s4 1983009808
        %v12368 = vunpack.c.0.s8 %v12367
        %v12369 = vlaneseq
        %v12370 = vshrl.u32 %v12369, 7
        %v12371 = vsub.s32 %v12368, %v12370
        %v12372 = vrot.slane %v12362, %v12371
        %v12374 = vunpack.c.l.s4 1983009808
        %v12375 = vunpack.c.0.s8 %v12374
        %v12376 = vlaneseq
        %v12377 = vshrl.u32 %v12376, 7
        %v12378 = vsub.s32 %v12375, %v12377
        %v12379 = vrot.slane %v12363, %v12378
        %v12381 = vunpack.c.l.s4 1983009808
        %v12382 = vunpack.c.0.s8 %v12381
        %v12383 = vlaneseq
        %v12384 = vshrl.u32 %v12383, 7
        %v12385 = vsub.s32 %v12382, %v12384
        %v12386 = vrot.slane %v12364, %v12385
        %v12388 = vunpack.c.l.s4 1983009808
        %v12389 = vunpack.c.0.s8 %v12388
        %v12390 = vlaneseq
        %v12391 = vshrl.u32 %v12390, 7
        %v12392 = vsub.s32 %v12389, %v12391
        %v12393 = vrot.slane %v12365, %v12392
        %v12394 = vcombine.low %v12372, %v12386
        %v12395 = vcombine.high %v12372, %v12386
        %v12396 = vcombine.low %v12379, %v12393
        %v12397 = vcombine.high %v12379, %v12393
        %v12402 = vrot.slane %v12394, 7
        %v12403 = vrot.slane %v12402, 2
        %v12404 = vrot.slane %v12395, 7
        %v12405 = vrot.slane %v12404, 2
        %v12406 = vrot.slane %v12396, 7
        %v12407 = vrot.slane %v12406, 2
        %v12408 = vrot.slane %v12397, 7
        %v12409 = vrot.slane %v12408, 2
        %v12414 = vmax.f32 %v12394, %v12403
        %v12415 = vmax.f32 %v12395, %v12405
        %v12416 = vmax.f32 %v12396, %v12407
        %v12417 = vmax.f32 %v12397, %v12409
        %v12422 = vrot.slane %v12414, 4
        %v12423 = vrot.slane %v12415, 4
        %v12424 = vrot.slane %v12416, 4
        %v12425 = vrot.slane %v12417, 4
        %v12430 = vmax.f32 %v12414, %v12422
        %v12431 = vmax.f32 %v12415, %v12423
        %v12432 = vmax.f32 %v12416, %v12424
        %v12433 = vmax.f32 %v12417, %v12425
        %v12438 = vlaneseq
        %v12439 = vshrl.u32 %v12438, 7
        %v12440 = vsub.s32 0, %v12439
        %v12441 = vrot.slane %v12430, %v12440
        %v12442 = vlaneseq
        %v12443 = vshrl.u32 %v12442, 7
        %v12444 = vsub.s32 2, %v12443
        %v12445 = vrot.slane %v12430, %v12444
        %v12446 = vlaneseq
        %v12447 = vshrl.u32 %v12446, 7
        %v12448 = vsub.s32 0, %v12447
        %v12449 = vrot.slane %v12431, %v12448
        %v12450 = vlaneseq
        %v12451 = vshrl.u32 %v12450, 7
        %v12452 = vsub.s32 2, %v12451
        %v12453 = vrot.slane %v12431, %v12452
        %v12454 = vlaneseq
        %v12455 = vshrl.u32 %v12454, 7
        %v12456 = vsub.s32 0, %v12455
        %v12457 = vrot.slane %v12432, %v12456
        %v12458 = vlaneseq
        %v12459 = vshrl.u32 %v12458, 7
        %v12460 = vsub.s32 2, %v12459
        %v12461 = vrot.slane %v12432, %v12460
        %v12462 = vlaneseq
        %v12463 = vshrl.u32 %v12462, 7
        %v12464 = vsub.s32 0, %v12463
        %v12465 = vrot.slane %v12433, %v12464
        %v12466 = vlaneseq
        %v12467 = vshrl.u32 %v12466, 7
        %v12468 = vsub.s32 2, %v12467
        %v12469 = vrot.slane %v12433, %v12468
        %v12478 = vpack.c.bf16 %v12441, %v12441
        %v12479 = vpack.c.bf16 %v12445, %v12445
        %v12480 = vpack.c.bf16 %v12449, %v12449
        %v12481 = vpack.c.bf16 %v12453, %v12453
        %v12482 = vpack.c.bf16 %v12457, %v12457
        %v12483 = vpack.c.bf16 %v12461, %v12461
        %v12484 = vpack.c.bf16 %v12465, %v12465
        %v12485 = vpack.c.bf16 %v12469, %v12469
        %v12486 = vld [vmem:[%s7] sm:$0xf]
        %v12487 = vld [vmem:[%s7 + $0x4] sm:$0xf]
        %v12488 = vld [vmem:[%s7 + $0x8] sm:$0xf]
        %v12489 = vld [vmem:[%s7 + $0xc] sm:$0xf]
        %v12490 = vld [vmem:[%s7 + $0x10] sm:$0xf]
        %v12491 = vld [vmem:[%s7 + $0x14] sm:$0xf]
        %v12492 = vld [vmem:[%s7 + $0x18] sm:$0xf]
        %v12493 = vld [vmem:[%s7 + $0x1c] sm:$0xf]
        %v12494 = vld [vmem:[%s7 + $0x20] sm:$0xf]
        %v12495 = vld [vmem:[%s7 + $0x24] sm:$0xf]
        %v12496 = vld [vmem:[%s7 + $0x28] sm:$0xf]
        %v12497 = vld [vmem:[%s7 + $0x2c] sm:$0xf]
        %v12498 = vld [vmem:[%s7 + $0x30] sm:$0xf]
        %v12499 = vld [vmem:[%s7 + $0x34] sm:$0xf]
        %v12500 = vld [vmem:[%s7 + $0x38] sm:$0xf]
        %v12501 = vld [vmem:[%s7 + $0x3c] sm:$0xf]
        %v12502 = vld [vmem:[%s7 + $0x40] sm:$0xf]
        %v12503 = vld [vmem:[%s7 + $0x44] sm:$0xf]
        %v12504 = vld [vmem:[%s7 + $0x48] sm:$0xf]
        %v12505 = vld [vmem:[%s7 + $0x4c] sm:$0xf]
        %v12506 = vld [vmem:[%s7 + $0x50] sm:$0xf]
        %v12507 = vld [vmem:[%s7 + $0x54] sm:$0xf]
        %v12508 = vld [vmem:[%s7 + $0x58] sm:$0xf]
        %v12509 = vld [vmem:[%s7 + $0x5c] sm:$0xf]
        %v12510 = vld [vmem:[%s7 + $0x60] sm:$0xf]
        %v12511 = vld [vmem:[%s7 + $0x64] sm:$0xf]
        %v12512 = vld [vmem:[%s7 + $0x68] sm:$0xf]
        %v12513 = vld [vmem:[%s7 + $0x6c] sm:$0xf]
        %v12514 = vld [vmem:[%s7 + $0x70] sm:$0xf]
        %v12515 = vld [vmem:[%s7 + $0x74] sm:$0xf]
        %v12516 = vld [vmem:[%s7 + $0x78] sm:$0xf]
        %v12517 = vld [vmem:[%s7 + $0x7c] sm:$0xf]
        %s12518 = scalar_lea.vmem %s7, 128
        %v12519 = vld [vmem:[%s12518] sm:$0xf]
        %v12520 = vld [vmem:[%s12518 + $0x4] sm:$0xf]
        %v12521 = vld [vmem:[%s12518 + $0x8] sm:$0xf]
        %v12522 = vld [vmem:[%s12518 + $0xc] sm:$0xf]
        %v12523 = vld [vmem:[%s12518 + $0x10] sm:$0xf]
        %v12524 = vld [vmem:[%s12518 + $0x14] sm:$0xf]
        %v12525 = vld [vmem:[%s12518 + $0x18] sm:$0xf]
        %v12526 = vld [vmem:[%s12518 + $0x1c] sm:$0xf]
        %v12527 = vld [vmem:[%s12518 + $0x20] sm:$0xf]
        %v12528 = vld [vmem:[%s12518 + $0x24] sm:$0xf]
        %v12529 = vld [vmem:[%s12518 + $0x28] sm:$0xf]
        %v12530 = vld [vmem:[%s12518 + $0x2c] sm:$0xf]
        %v12531 = vld [vmem:[%s12518 + $0x30] sm:$0xf]
        %v12532 = vld [vmem:[%s12518 + $0x34] sm:$0xf]
        %v12533 = vld [vmem:[%s12518 + $0x38] sm:$0xf]
        %v12534 = vld [vmem:[%s12518 + $0x3c] sm:$0xf]
        %v12535 = vld [vmem:[%s12518 + $0x40] sm:$0xf]
        %v12536 = vld [vmem:[%s12518 + $0x44] sm:$0xf]
        %v12537 = vld [vmem:[%s12518 + $0x48] sm:$0xf]
        %v12538 = vld [vmem:[%s12518 + $0x4c] sm:$0xf]
        %v12539 = vld [vmem:[%s12518 + $0x50] sm:$0xf]
        %v12540 = vld [vmem:[%s12518 + $0x54] sm:$0xf]
        %v12541 = vld [vmem:[%s12518 + $0x58] sm:$0xf]
        %v12542 = vld [vmem:[%s12518 + $0x5c] sm:$0xf]
        %v12543 = vld [vmem:[%s12518 + $0x60] sm:$0xf]
        %v12544 = vld [vmem:[%s12518 + $0x64] sm:$0xf]
        %v12545 = vld [vmem:[%s12518 + $0x68] sm:$0xf]
        %v12546 = vld [vmem:[%s12518 + $0x6c] sm:$0xf]
        %v12547 = vld [vmem:[%s12518 + $0x70] sm:$0xf]
        %v12548 = vld [vmem:[%s12518 + $0x74] sm:$0xf]
        %v12549 = vld [vmem:[%s12518 + $0x78] sm:$0xf]
        %v12550 = vld [vmem:[%s12518 + $0x7c] sm:$0xf]
        %v12583 = vunpack.c.l.b16 %v12519
        %v12584 = vunpack.c.l.b16 %v12520
        %v12585 = vunpack.c.l.b16 %v12521
        %v12586 = vunpack.c.l.b16 %v12522
        %v12587 = vunpack.c.l.b16 %v12523
        %v12588 = vunpack.c.l.b16 %v12524
        %v12589 = vunpack.c.l.b16 %v12525
        %v12590 = vunpack.c.l.b16 %v12526
        %v12591 = vunpack.c.l.b16 %v12527
        %v12592 = vunpack.c.l.b16 %v12528
        %v12593 = vunpack.c.l.b16 %v12529
        %v12594 = vunpack.c.l.b16 %v12530
        %v12595 = vunpack.c.l.b16 %v12531
        %v12596 = vunpack.c.l.b16 %v12532
        %v12597 = vunpack.c.l.b16 %v12533
        %v12598 = vunpack.c.l.b16 %v12534
        %v12599 = vunpack.c.l.b16 %v12535
        %v12600 = vunpack.c.l.b16 %v12536
        %v12601 = vunpack.c.l.b16 %v12537
        %v12602 = vunpack.c.l.b16 %v12538
        %v12603 = vunpack.c.l.b16 %v12539
        %v12604 = vunpack.c.l.b16 %v12540
        %v12605 = vunpack.c.l.b16 %v12541
        %v12606 = vunpack.c.l.b16 %v12542
        %v12607 = vunpack.c.l.b16 %v12543
        %v12608 = vunpack.c.l.b16 %v12544
        %v12609 = vunpack.c.l.b16 %v12545
        %v12610 = vunpack.c.l.b16 %v12546
        %v12611 = vunpack.c.l.b16 %v12547
        %v12612 = vunpack.c.l.b16 %v12548
        %v12613 = vunpack.c.l.b16 %v12549
        %v12614 = vunpack.c.l.b16 %v12550
        %v12615 = vpack.c.b16 %v12584, %v12583
        %v12616 = vpack.c.b16 %v12586, %v12585
        %v12617 = vpack.c.b16 %v12588, %v12587
        %v12618 = vpack.c.b16 %v12590, %v12589
        %v12619 = vpack.c.b16 %v12592, %v12591
        %v12620 = vpack.c.b16 %v12594, %v12593
        %v12621 = vpack.c.b16 %v12596, %v12595
        %v12622 = vpack.c.b16 %v12598, %v12597
        %v12623 = vpack.c.b16 %v12600, %v12599
        %v12624 = vpack.c.b16 %v12602, %v12601
        %v12625 = vpack.c.b16 %v12604, %v12603
        %v12626 = vpack.c.b16 %v12606, %v12605
        %v12627 = vpack.c.b16 %v12608, %v12607
        %v12628 = vpack.c.b16 %v12610, %v12609
        %v12629 = vpack.c.b16 %v12612, %v12611
        %v12630 = vpack.c.b16 %v12614, %v12613
        %12647 = vmatprep.subr.bf16.mxu0 0
        %12648 = vmatpush1.bf16.msra.mxu0 %v12615
        %12649 = vmatprep.subr.bf16.mxu0 0
        %12650 = vmatpush1.bf16.msra.mxu0 %v12616
        %12651 = vmatprep.subr.bf16.mxu0 0
        %12652 = vmatpush1.bf16.msra.mxu0 %v12617
        %12653 = vmatprep.subr.bf16.mxu0 0
        %12654 = vmatpush1.bf16.msra.mxu0 %v12618
        %12655 = vmatprep.subr.bf16.mxu0 0
        %12656 = vmatpush1.bf16.msra.mxu0 %v12619
        %12657 = vmatprep.subr.bf16.mxu0 0
        %12658 = vmatpush1.bf16.msra.mxu0 %v12620
        %12659 = vmatprep.subr.bf16.mxu0 0
        %12660 = vmatpush1.bf16.msra.mxu0 %v12621
        %12661 = vmatprep.subr.bf16.mxu0 0
        %12662 = vmatpush1.bf16.msra.mxu0 %v12622
        %12663 = vmatprep.subr.bf16.mxu0 0
        %12664 = vmatpush1.bf16.msra.mxu0 %v12623
        %12665 = vmatprep.subr.bf16.mxu0 0
        %12666 = vmatpush1.bf16.msra.mxu0 %v12624
        %12667 = vmatprep.subr.bf16.mxu0 0
        %12668 = vmatpush1.bf16.msra.mxu0 %v12625
        %12669 = vmatprep.subr.bf16.mxu0 0
        %12670 = vmatpush1.bf16.msra.mxu0 %v12626
        %12671 = vmatprep.subr.bf16.mxu0 0
        %12672 = vmatpush1.bf16.msra.mxu0 %v12627
        %12673 = vmatprep.subr.bf16.mxu0 0
        %12674 = vmatpush1.bf16.msra.mxu0 %v12628
        %12675 = vmatprep.subr.bf16.mxu0 0
        %12676 = vmatpush1.bf16.msra.mxu0 %v12629
        %12677 = vmatprep.subr.bf16.mxu0 0
        %12678 = vmatpush1.bf16.msra.mxu0 %v12630
        %12679 = vmatprep.mubr.bf16.mxu0 %v12481
        %12680 = vmatmul.mubr.bf16.gmra.mrb[0].mxu0 %v12480
        %v12681 = vpop.f32.mrb[0].mxu0
        %v12682 = vadd.f32 0.0, %v12681
        %v12683 = vpop.f32.mrb[0].mxu0
        %v12684 = vpop.f32.mrb[0].mxu0
        %v12685 = vpop.f32.mrb[0].mxu0
        %12686 = vdwg.mxu0
        %v12719 = vunpack.c.l.b16 %v12486
        %v12720 = vunpack.c.l.b16 %v12487
        %v12721 = vunpack.c.l.b16 %v12488
        %v12722 = vunpack.c.l.b16 %v12489
        %v12723 = vunpack.c.l.b16 %v12490
        %v12724 = vunpack.c.l.b16 %v12491
        %v12725 = vunpack.c.l.b16 %v12492
        %v12726 = vunpack.c.l.b16 %v12493
        %v12727 = vunpack.c.l.b16 %v12494
        %v12728 = vunpack.c.l.b16 %v12495
        %v12729 = vunpack.c.l.b16 %v12496
        %v12730 = vunpack.c.l.b16 %v12497
        %v12731 = vunpack.c.l.b16 %v12498
        %v12732 = vunpack.c.l.b16 %v12499
        %v12733 = vunpack.c.l.b16 %v12500
        %v12734 = vunpack.c.l.b16 %v12501
        %v12735 = vunpack.c.l.b16 %v12502
        %v12736 = vunpack.c.l.b16 %v12503
        %v12737 = vunpack.c.l.b16 %v12504
        %v12738 = vunpack.c.l.b16 %v12505
        %v12739 = vunpack.c.l.b16 %v12506
        %v12740 = vunpack.c.l.b16 %v12507
        %v12741 = vunpack.c.l.b16 %v12508
        %v12742 = vunpack.c.l.b16 %v12509
        %v12743 = vunpack.c.l.b16 %v12510
        %v12744 = vunpack.c.l.b16 %v12511
        %v12745 = vunpack.c.l.b16 %v12512
        %v12746 = vunpack.c.l.b16 %v12513
        %v12747 = vunpack.c.l.b16 %v12514
        %v12748 = vunpack.c.l.b16 %v12515
        %v12749 = vunpack.c.l.b16 %v12516
        %v12750 = vunpack.c.l.b16 %v12517
        %v12751 = vpack.c.b16 %v12720, %v12719
        %v12752 = vpack.c.b16 %v12722, %v12721
        %v12753 = vpack.c.b16 %v12724, %v12723
        %v12754 = vpack.c.b16 %v12726, %v12725
        %v12755 = vpack.c.b16 %v12728, %v12727
        %v12756 = vpack.c.b16 %v12730, %v12729
        %v12757 = vpack.c.b16 %v12732, %v12731
        %v12758 = vpack.c.b16 %v12734, %v12733
        %v12759 = vpack.c.b16 %v12736, %v12735
        %v12760 = vpack.c.b16 %v12738, %v12737
        %v12761 = vpack.c.b16 %v12740, %v12739
        %v12762 = vpack.c.b16 %v12742, %v12741
        %v12763 = vpack.c.b16 %v12744, %v12743
        %v12764 = vpack.c.b16 %v12746, %v12745
        %v12765 = vpack.c.b16 %v12748, %v12747
        %v12766 = vpack.c.b16 %v12750, %v12749
        %12783 = vmatprep.subr.bf16.mxu0 0
        %12784 = vmatpush1.bf16.msra.mxu0 %v12751
        %12785 = vmatprep.subr.bf16.mxu0 0
        %12786 = vmatpush1.bf16.msra.mxu0 %v12752
        %12787 = vmatprep.subr.bf16.mxu0 0
        %12788 = vmatpush1.bf16.msra.mxu0 %v12753
        %12789 = vmatprep.subr.bf16.mxu0 0
        %12790 = vmatpush1.bf16.msra.mxu0 %v12754
        %12791 = vmatprep.subr.bf16.mxu0 0
        %12792 = vmatpush1.bf16.msra.mxu0 %v12755
        %12793 = vmatprep.subr.bf16.mxu0 0
        %12794 = vmatpush1.bf16.msra.mxu0 %v12756
        %12795 = vmatprep.subr.bf16.mxu0 0
        %12796 = vmatpush1.bf16.msra.mxu0 %v12757
        %12797 = vmatprep.subr.bf16.mxu0 0
        %12798 = vmatpush1.bf16.msra.mxu0 %v12758
        %12799 = vmatprep.subr.bf16.mxu0 0
        %12800 = vmatpush1.bf16.msra.mxu0 %v12759
        %12801 = vmatprep.subr.bf16.mxu0 0
        %12802 = vmatpush1.bf16.msra.mxu0 %v12760
        %12803 = vmatprep.subr.bf16.mxu0 0
        %12804 = vmatpush1.bf16.msra.mxu0 %v12761
        %12805 = vmatprep.subr.bf16.mxu0 0
        %12806 = vmatpush1.bf16.msra.mxu0 %v12762
        %12807 = vmatprep.subr.bf16.mxu0 0
        %12808 = vmatpush1.bf16.msra.mxu0 %v12763
        %12809 = vmatprep.subr.bf16.mxu0 0
        %12810 = vmatpush1.bf16.msra.mxu0 %v12764
        %12811 = vmatprep.subr.bf16.mxu0 0
        %12812 = vmatpush1.bf16.msra.mxu0 %v12765
        %12813 = vmatprep.subr.bf16.mxu0 0
        %12814 = vmatpush1.bf16.msra.mxu0 %v12766
        %12815 = vmatprep.mubr.bf16.mxu0 %v12479
        %12816 = vmatmul.mubr.bf16.gmra.mrb[0].mxu0 %v12478
        %v12817 = vpop.f32.mrb[0].mxu0
        %v12818 = vadd.f32 %v12682, %v12817
        %v12819 = vpop.f32.mrb[0].mxu0
        %v12820 = vpop.f32.mrb[0].mxu0
        %v12821 = vpop.f32.mrb[0].mxu0
        %12822 = vdwg.mxu0
        %s12823 = scalar_lea.vmem %s7, 256
        %v12824 = vld [vmem:[%s12823] sm:$0xf]
        %v12825 = vld [vmem:[%s12823 + $0x4] sm:$0xf]
        %v12826 = vld [vmem:[%s12823 + $0x8] sm:$0xf]
        %v12827 = vld [vmem:[%s12823 + $0xc] sm:$0xf]
        %v12828 = vld [vmem:[%s12823 + $0x10] sm:$0xf]
        %v12829 = vld [vmem:[%s12823 + $0x14] sm:$0xf]
        %v12830 = vld [vmem:[%s12823 + $0x18] sm:$0xf]
        %v12831 = vld [vmem:[%s12823 + $0x1c] sm:$0xf]
        %v12832 = vld [vmem:[%s12823 + $0x20] sm:$0xf]
        %v12833 = vld [vmem:[%s12823 + $0x24] sm:$0xf]
        %v12834 = vld [vmem:[%s12823 + $0x28] sm:$0xf]
        %v12835 = vld [vmem:[%s12823 + $0x2c] sm:$0xf]
        %v12836 = vld [vmem:[%s12823 + $0x30] sm:$0xf]
        %v12837 = vld [vmem:[%s12823 + $0x34] sm:$0xf]
        %v12838 = vld [vmem:[%s12823 + $0x38] sm:$0xf]
        %v12839 = vld [vmem:[%s12823 + $0x3c] sm:$0xf]
        %v12840 = vld [vmem:[%s12823 + $0x40] sm:$0xf]
        %v12841 = vld [vmem:[%s12823 + $0x44] sm:$0xf]
        %v12842 = vld [vmem:[%s12823 + $0x48] sm:$0xf]
        %v12843 = vld [vmem:[%s12823 + $0x4c] sm:$0xf]
        %v12844 = vld [vmem:[%s12823 + $0x50] sm:$0xf]
        %v12845 = vld [vmem:[%s12823 + $0x54] sm:$0xf]
        %v12846 = vld [vmem:[%s12823 + $0x58] sm:$0xf]
        %v12847 = vld [vmem:[%s12823 + $0x5c] sm:$0xf]
        %v12848 = vld [vmem:[%s12823 + $0x60] sm:$0xf]
        %v12849 = vld [vmem:[%s12823 + $0x64] sm:$0xf]
        %v12850 = vld [vmem:[%s12823 + $0x68] sm:$0xf]
        %v12851 = vld [vmem:[%s12823 + $0x6c] sm:$0xf]
        %v12852 = vld [vmem:[%s12823 + $0x70] sm:$0xf]
        %v12853 = vld [vmem:[%s12823 + $0x74] sm:$0xf]
        %v12854 = vld [vmem:[%s12823 + $0x78] sm:$0xf]
        %v12855 = vld [vmem:[%s12823 + $0x7c] sm:$0xf]
        %v12888 = vunpack.c.l.b16 %v12824
        %v12889 = vunpack.c.l.b16 %v12825
        %v12890 = vunpack.c.l.b16 %v12826
        %v12891 = vunpack.c.l.b16 %v12827
        %v12892 = vunpack.c.l.b16 %v12828
        %v12893 = vunpack.c.l.b16 %v12829
        %v12894 = vunpack.c.l.b16 %v12830
        %v12895 = vunpack.c.l.b16 %v12831
        %v12896 = vunpack.c.l.b16 %v12832
        %v12897 = vunpack.c.l.b16 %v12833
        %v12898 = vunpack.c.l.b16 %v12834
        %v12899 = vunpack.c.l.b16 %v12835
        %v12900 = vunpack.c.l.b16 %v12836
        %v12901 = vunpack.c.l.b16 %v12837
        %v12902 = vunpack.c.l.b16 %v12838
        %v12903 = vunpack.c.l.b16 %v12839
        %v12904 = vunpack.c.l.b16 %v12840
        %v12905 = vunpack.c.l.b16 %v12841
        %v12906 = vunpack.c.l.b16 %v12842
        %v12907 = vunpack.c.l.b16 %v12843
        %v12908 = vunpack.c.l.b16 %v12844
        %v12909 = vunpack.c.l.b16 %v12845
        %v12910 = vunpack.c.l.b16 %v12846
        %v12911 = vunpack.c.l.b16 %v12847
        %v12912 = vunpack.c.l.b16 %v12848
        %v12913 = vunpack.c.l.b16 %v12849
        %v12914 = vunpack.c.l.b16 %v12850
        %v12915 = vunpack.c.l.b16 %v12851
        %v12916 = vunpack.c.l.b16 %v12852
        %v12917 = vunpack.c.l.b16 %v12853
        %v12918 = vunpack.c.l.b16 %v12854
        %v12919 = vunpack.c.l.b16 %v12855
        %v12920 = vpack.c.b16 %v12889, %v12888
        %v12921 = vpack.c.b16 %v12891, %v12890
        %v12922 = vpack.c.b16 %v12893, %v12892
        %v12923 = vpack.c.b16 %v12895, %v12894
        %v12924 = vpack.c.b16 %v12897, %v12896
        %v12925 = vpack.c.b16 %v12899, %v12898
        %v12926 = vpack.c.b16 %v12901, %v12900
        %v12927 = vpack.c.b16 %v12903, %v12902
        %v12928 = vpack.c.b16 %v12905, %v12904
        %v12929 = vpack.c.b16 %v12907, %v12906
        %v12930 = vpack.c.b16 %v12909, %v12908
        %v12931 = vpack.c.b16 %v12911, %v12910
        %v12932 = vpack.c.b16 %v12913, %v12912
        %v12933 = vpack.c.b16 %v12915, %v12914
        %v12934 = vpack.c.b16 %v12917, %v12916
        %v12935 = vpack.c.b16 %v12919, %v12918
        %12952 = vmatprep.subr.bf16.mxu0 0
        %12953 = vmatpush1.bf16.msra.mxu0 %v12920
        %12954 = vmatprep.subr.bf16.mxu0 0
        %12955 = vmatpush1.bf16.msra.mxu0 %v12921
        %12956 = vmatprep.subr.bf16.mxu0 0
        %12957 = vmatpush1.bf16.msra.mxu0 %v12922
        %12958 = vmatprep.subr.bf16.mxu0 0
        %12959 = vmatpush1.bf16.msra.mxu0 %v12923
        %12960 = vmatprep.subr.bf16.mxu0 0
        %12961 = vmatpush1.bf16.msra.mxu0 %v12924
        %12962 = vmatprep.subr.bf16.mxu0 0
        %12963 = vmatpush1.bf16.msra.mxu0 %v12925
        %12964 = vmatprep.subr.bf16.mxu0 0
        %12965 = vmatpush1.bf16.msra.mxu0 %v12926
        %12966 = vmatprep.subr.bf16.mxu0 0
        %12967 = vmatpush1.bf16.msra.mxu0 %v12927
        %12968 = vmatprep.subr.bf16.mxu0 0
        %12969 = vmatpush1.bf16.msra.mxu0 %v12928
        %12970 = vmatprep.subr.bf16.mxu0 0
        %12971 = vmatpush1.bf16.msra.mxu0 %v12929
        %12972 = vmatprep.subr.bf16.mxu0 0
        %12973 = vmatpush1.bf16.msra.mxu0 %v12930
        %12974 = vmatprep.subr.bf16.mxu0 0
        %12975 = vmatpush1.bf16.msra.mxu0 %v12931
        %12976 = vmatprep.subr.bf16.mxu0 0
        %12977 = vmatpush1.bf16.msra.mxu0 %v12932
        %12978 = vmatprep.subr.bf16.mxu0 0
        %12979 = vmatpush1.bf16.msra.mxu0 %v12933
        %12980 = vmatprep.subr.bf16.mxu0 0
        %12981 = vmatpush1.bf16.msra.mxu0 %v12934
        %12982 = vmatprep.subr.bf16.mxu0 0
        %12983 = vmatpush1.bf16.msra.mxu0 %v12935
        %12984 = vmatprep.mubr.bf16.mxu0 %v12483
        %12985 = vmatmul.mubr.bf16.gmra.mrb[0].mxu0 %v12482
        %v12986 = vpop.f32.mrb[0].mxu0
        %v12987 = vadd.f32 0.0, %v12986
        %v12988 = vpop.f32.mrb[0].mxu0
        %v12989 = vpop.f32.mrb[0].mxu0
        %v12990 = vpop.f32.mrb[0].mxu0
        %12991 = vdwg.mxu0
        %v12992 = vadd.f32 %v12818, %v12987
        %s12993 = scalar_lea.vmem %s7, 384
        %v12994 = vld [vmem:[%s12993] sm:$0xf]
        %v12995 = vld [vmem:[%s12993 + $0x4] sm:$0xf]
        %v12996 = vld [vmem:[%s12993 + $0x8] sm:$0xf]
        %v12997 = vld [vmem:[%s12993 + $0xc] sm:$0xf]
        %v12998 = vld [vmem:[%s12993 + $0x10] sm:$0xf]
        %v12999 = vld [vmem:[%s12993 + $0x14] sm:$0xf]
        %v13000 = vld [vmem:[%s12993 + $0x18] sm:$0xf]
        %v13001 = vld [vmem:[%s12993 + $0x1c] sm:$0xf]
        %v13002 = vld [vmem:[%s12993 + $0x20] sm:$0xf]
        %v13003 = vld [vmem:[%s12993 + $0x24] sm:$0xf]
        %v13004 = vld [vmem:[%s12993 + $0x28] sm:$0xf]
        %v13005 = vld [vmem:[%s12993 + $0x2c] sm:$0xf]
        %v13006 = vld [vmem:[%s12993 + $0x30] sm:$0xf]
        %v13007 = vld [vmem:[%s12993 + $0x34] sm:$0xf]
        %v13008 = vld [vmem:[%s12993 + $0x38] sm:$0xf]
        %v13009 = vld [vmem:[%s12993 + $0x3c] sm:$0xf]
        %v13010 = vld [vmem:[%s12993 + $0x40] sm:$0xf]
        %v13011 = vld [vmem:[%s12993 + $0x44] sm:$0xf]
        %v13012 = vld [vmem:[%s12993 + $0x48] sm:$0xf]
        %v13013 = vld [vmem:[%s12993 + $0x4c] sm:$0xf]
        %v13014 = vld [vmem:[%s12993 + $0x50] sm:$0xf]
        %v13015 = vld [vmem:[%s12993 + $0x54] sm:$0xf]
        %v13016 = vld [vmem:[%s12993 + $0x58] sm:$0xf]
        %v13017 = vld [vmem:[%s12993 + $0x5c] sm:$0xf]
        %v13018 = vld [vmem:[%s12993 + $0x60] sm:$0xf]
        %v13019 = vld [vmem:[%s12993 + $0x64] sm:$0xf]
        %v13020 = vld [vmem:[%s12993 + $0x68] sm:$0xf]
        %v13021 = vld [vmem:[%s12993 + $0x6c] sm:$0xf]
        %v13022 = vld [vmem:[%s12993 + $0x70] sm:$0xf]
        %v13023 = vld [vmem:[%s12993 + $0x74] sm:$0xf]
        %v13024 = vld [vmem:[%s12993 + $0x78] sm:$0xf]
        %v13025 = vld [vmem:[%s12993 + $0x7c] sm:$0xf]
        %v13058 = vunpack.c.l.b16 %v12994
        %v13059 = vunpack.c.l.b16 %v12995
        %v13060 = vunpack.c.l.b16 %v12996
        %v13061 = vunpack.c.l.b16 %v12997
        %v13062 = vunpack.c.l.b16 %v12998
        %v13063 = vunpack.c.l.b16 %v12999
        %v13064 = vunpack.c.l.b16 %v13000
        %v13065 = vunpack.c.l.b16 %v13001
        %v13066 = vunpack.c.l.b16 %v13002
        %v13067 = vunpack.c.l.b16 %v13003
        %v13068 = vunpack.c.l.b16 %v13004
        %v13069 = vunpack.c.l.b16 %v13005
        %v13070 = vunpack.c.l.b16 %v13006
        %v13071 = vunpack.c.l.b16 %v13007
        %v13072 = vunpack.c.l.b16 %v13008
        %v13073 = vunpack.c.l.b16 %v13009
        %v13074 = vunpack.c.l.b16 %v13010
        %v13075 = vunpack.c.l.b16 %v13011
        %v13076 = vunpack.c.l.b16 %v13012
        %v13077 = vunpack.c.l.b16 %v13013
        %v13078 = vunpack.c.l.b16 %v13014
        %v13079 = vunpack.c.l.b16 %v13015
        %v13080 = vunpack.c.l.b16 %v13016
        %v13081 = vunpack.c.l.b16 %v13017
        %v13082 = vunpack.c.l.b16 %v13018
        %v13083 = vunpack.c.l.b16 %v13019
        %v13084 = vunpack.c.l.b16 %v13020
        %v13085 = vunpack.c.l.b16 %v13021
        %v13086 = vunpack.c.l.b16 %v13022
        %v13087 = vunpack.c.l.b16 %v13023
        %v13088 = vunpack.c.l.b16 %v13024
        %v13089 = vunpack.c.l.b16 %v13025
        %v13090 = vpack.c.b16 %v13059, %v13058
        %v13091 = vpack.c.b16 %v13061, %v13060
        %v13092 = vpack.c.b16 %v13063, %v13062
        %v13093 = vpack.c.b16 %v13065, %v13064
        %v13094 = vpack.c.b16 %v13067, %v13066
        %v13095 = vpack.c.b16 %v13069, %v13068
        %v13096 = vpack.c.b16 %v13071, %v13070
        %v13097 = vpack.c.b16 %v13073, %v13072
        %v13098 = vpack.c.b16 %v13075, %v13074
        %v13099 = vpack.c.b16 %v13077, %v13076
        %v13100 = vpack.c.b16 %v13079, %v13078
        %v13101 = vpack.c.b16 %v13081, %v13080
        %v13102 = vpack.c.b16 %v13083, %v13082
        %v13103 = vpack.c.b16 %v13085, %v13084
        %v13104 = vpack.c.b16 %v13087, %v13086
        %v13105 = vpack.c.b16 %v13089, %v13088
        %13122 = vmatprep.subr.bf16.mxu0 0
        %13123 = vmatpush1.bf16.msra.mxu0 %v13090
        %13124 = vmatprep.subr.bf16.mxu0 0
        %13125 = vmatpush1.bf16.msra.mxu0 %v13091
        %13126 = vmatprep.subr.bf16.mxu0 0
        %13127 = vmatpush1.bf16.msra.mxu0 %v13092
        %13128 = vmatprep.subr.bf16.mxu0 0
        %13129 = vmatpush1.bf16.msra.mxu0 %v13093
        %13130 = vmatprep.subr.bf16.mxu0 0
        %13131 = vmatpush1.bf16.msra.mxu0 %v13094
        %13132 = vmatprep.subr.bf16.mxu0 0
        %13133 = vmatpush1.bf16.msra.mxu0 %v13095
        %13134 = vmatprep.subr.bf16.mxu0 0
        %13135 = vmatpush1.bf16.msra.mxu0 %v13096
        %13136 = vmatprep.subr.bf16.mxu0 0
        %13137 = vmatpush1.bf16.msra.mxu0 %v13097
        %13138 = vmatprep.subr.bf16.mxu0 0
        %13139 = vmatpush1.bf16.msra.mxu0 %v13098
        %13140 = vmatprep.subr.bf16.mxu0 0
        %13141 = vmatpush1.bf16.msra.mxu0 %v13099
        %13142 = vmatprep.subr.bf16.mxu0 0
        %13143 = vmatpush1.bf16.msra.mxu0 %v13100
        %13144 = vmatprep.subr.bf16.mxu0 0
        %13145 = vmatpush1.bf16.msra.mxu0 %v13101
        %13146 = vmatprep.subr.bf16.mxu0 0
        %13147 = vmatpush1.bf16.msra.mxu0 %v13102
        %13148 = vmatprep.subr.bf16.mxu0 0
        %13149 = vmatpush1.bf16.msra.mxu0 %v13103
        %13150 = vmatprep.subr.bf16.mxu0 0
        %13151 = vmatpush1.bf16.msra.mxu0 %v13104
        %13152 = vmatprep.subr.bf16.mxu0 0
        %13153 = vmatpush1.bf16.msra.mxu0 %v13105
        %13154 = vmatprep.mubr.bf16.mxu0 %v12485
        %13155 = vmatmul.mubr.bf16.gmra.mrb[0].mxu0 %v12484
        %v13156 = vpop.f32.mrb[0].mxu0
        %v13157 = vadd.f32 0.0, %v13156
        %v13158 = vpop.f32.mrb[0].mxu0
        %v13159 = vpop.f32.mrb[0].mxu0
        %v13160 = vpop.f32.mrb[0].mxu0
        %13161 = vdwg.mxu0
        %v13162 = vadd.f32 %v12992, %v13157
        %v13163 = vld [vmem:[#allocation16] sm:$0x1]
        %v13164 = vadd.f32 %v13162, %v13163
        %v13165 = vpack.c.bf16 %v13164, %v13164
        %v13166 = vld [vmem:[%s9] sm:$0xf]
        %v13167 = vld [vmem:[%s9 + $0x4] sm:$0xf]
        %v13168 = vld [vmem:[%s9 + $0x8] sm:$0xf]
        %v13169 = vld [vmem:[%s9 + $0xc] sm:$0xf]
        %v13170 = vld [vmem:[%s9 + $0x10] sm:$0xf]
        %v13171 = vld [vmem:[%s9 + $0x14] sm:$0xf]
        %v13172 = vld [vmem:[%s9 + $0x18] sm:$0xf]
        %v13173 = vld [vmem:[%s9 + $0x1c] sm:$0xf]
        %v13174 = vld [vmem:[#allocation17] sm:$0x1]
        %v13183 = vunpack.c.l.b16 %v13166
        %v13184 = vunpack.c.l.b16 %v13167
        %v13185 = vunpack.c.l.b16 %v13168
        %v13186 = vunpack.c.l.b16 %v13169
        %v13187 = vunpack.c.l.b16 %v13170
        %v13188 = vunpack.c.l.b16 %v13171
        %v13189 = vunpack.c.l.b16 %v13172
        %v13190 = vunpack.c.l.b16 %v13173
        %v13191 = vpack.c.b16 %v13184, %v13183
        %v13192 = vpack.c.b16 %v13186, %v13185
        %v13193 = vpack.c.b16 %v13188, %v13187
        %v13194 = vpack.c.b16 %v13190, %v13189
        %vm13199 = vcmask 523264
        %v13201 = vsel %vm13199, %v13165, 0
        %13203 = vmatprep.subr.bf16.mxu0 0
        %13204 = vmatpush1.bf16.msra.mxu0 %v13191
        %13205 = vmatprep.subr.bf16.mxu0 0
        %13206 = vmatpush1.bf16.msra.mxu0 %v13192
        %13207 = vmatprep.subr.bf16.mxu0 0
        %13208 = vmatpush1.bf16.msra.mxu0 %v13193
        %13209 = vmatprep.subr.bf16.mxu0 0
        %13210 = vmatpush1.bf16.msra.mxu0 %v13194
        %13211 = vmatprep.subr.bf16.mxu0 0
        %13212 = vmatpush1.bf16.msra.mxu0 0
        %13213 = vmatprep.subr.bf16.mxu0 0
        %13214 = vmatpush1.bf16.msra.mxu0 0
        %13215 = vmatprep.subr.bf16.mxu0 0
        %13216 = vmatpush1.bf16.msra.mxu0 0
        %13217 = vmatprep.subr.bf16.mxu0 0
        %13218 = vmatpush1.bf16.msra.mxu0 0
        %13219 = vmatprep.subr.bf16.mxu0 0
        %13220 = vmatpush1.bf16.msra.mxu0 0
        %13221 = vmatprep.subr.bf16.mxu0 0
        %13222 = vmatpush1.bf16.msra.mxu0 0
        %13223 = vmatprep.subr.bf16.mxu0 0
        %13224 = vmatpush1.bf16.msra.mxu0 0
        %13225 = vmatprep.subr.bf16.mxu0 0
        %13226 = vmatpush1.bf16.msra.mxu0 0
        %13227 = vmatprep.subr.bf16.mxu0 0
        %13228 = vmatpush1.bf16.msra.mxu0 0
        %13229 = vmatprep.subr.bf16.mxu0 0
        %13230 = vmatpush1.bf16.msra.mxu0 0
        %13231 = vmatprep.subr.bf16.mxu0 0
        %13232 = vmatpush1.bf16.msra.mxu0 0
        %13233 = vmatprep.subr.bf16.mxu0 0
        %13234 = vmatpush1.bf16.msra.mxu0 0
        %13235 = vmatprep.mubr.bf16.mxu0 0
        %13236 = vmatmul.mubr.bf16.gmra.mrb[0].mxu0 %v13201
        %v13237 = vpop.f32.mrb[0].mxu0
        %v13238 = vadd.f32 %v13174, %v13237
        %v13239 = vpop.f32.mrb[0].mxu0
        %v13240 = vpop.f32.mrb[0].mxu0
        %v13241 = vpop.f32.mrb[0].mxu0
        %13242 = vdwg.mxu0
        %vm13243 = vcmask 73728
        %13244 = vst.msk [vmem:[%s485] sm:$0x1] %vm13243, %v13238
        %s13245 = sand.u32 %s274, 1
        %s13246 = scalar_lea.sflag [#allocation7], %s13245
        %s13247 = sand.u32 %s274, 1
        %s13248 = scalar_lea.vmem [#allocation19], %s13247
        // Predicated region
        $region97: #{few_shot_forward.1} parent=63 // pred_check
          %p13249 = pneg %p284
        $region98: #{few_shot_forward.1} parent=63 // pred_check_branch
          %13251 = sbr.rel (%p13249) target = $region100
        $region99: #{few_shot_forward.1} parent=63 // pred_region
          %s13253 = ssub.s32 16, 16
          %13254 = vsyncadd %s13246, %s13253
          %s13255 = smul.addr %s30, 16
          %s13256 = scalar_lea.hbm %s11, %s13255
          %s13258 = sshll.u32 %s13248, 4
          %s13259 = int_to_ptr.vmem [resolvable:$true] %s13258
          %13261 = dma.vmem_to_hbm [thread:$0]  %s13259, 16, %s13256, %s13246
        $region100: #{few_shot_forward.1} parent=63 // pred_fallthru
          _
      $region64: #{few_shot_forward.1} parent=5 // pred_fallthru
        _
      %p13262 = scmp.le.s32.totalorder 2, %s25
      // Predicated region
      $region101: #{few_shot_forward.1} parent=5 // pred_check
        %p13263 = pneg %p13262
      $region102: #{few_shot_forward.1} parent=5 // pred_check_branch
        %13265 = sbr.rel (%p13263) target = $region104
      $region103: #{few_shot_forward.1} parent=5 // pred_region
        %s13266 = ssub.s32 %s25, 2
        // Predicated region
        $region105: #{few_shot_forward.1} parent=103 // pred_check
          %p13267 = pneg %p290
        $region106: #{few_shot_forward.1} parent=103 // pred_check_branch
          %13269 = sbr.rel (%p13267) target = $region108
        $region107: #{few_shot_forward.1} parent=103 // pred_region
          %s13270 = sand.u32 %s275, 1
          %s13271 = scalar_lea.sflag [#allocation7], %s13270
          %s13272 = sand.u32 %s275, 1
          %s13273 = scalar_lea.vmem [#allocation19], %s13272
          %13274 = dma.done %s13271, 16
        $region108: #{few_shot_forward.1} parent=103 // pred_fallthru
          _
      $region104: #{few_shot_forward.1} parent=5 // pred_fallthru
        _
    $region6: #{few_shot_forward.1} parent=1 // loop_footer
      %s29 = sadd.s32 1, %s25
    $region7: #{few_shot_forward.1} parent=1 // loop_footer_branch
      %24 = sbr.rel target = $region3
    $region8: #{few_shot_forward.1} parent=1 // loop_exit
      _
    %13275 = vsyncpa [#allocation6], 1
    %s13276 = scalar_lea.sflag [#allocation6], 1
    %13277 = vsyncpa %s13276, 1
    %13278 = vsyncpa [#allocation9], 1
    %13279 = vsyncpa [#allocation12], 1
    %13280 = vsyncpa [#allocation15], 1
    %13281 = vsyncpa [#allocation18], 1
    %13282 = vsyncpa [#allocation7], 1
    %s13283 = scalar_lea.sflag [#allocation7], 1
    %13284 = vsyncpa %s13283, 1

</llo_original>
